<compile_context>
chip_gen: v5e
topology: v5e:2x2
jax: 0.10.0
libtpu: 0.0.40
codegen_flags: <defaults>
</compile_context>

<pallas_src>
import jax
import jax.numpy as jnp
from jax.experimental import pallas as pl
from jax.experimental.pallas import tpu as pltpu


TN = 512  # branch-hidden tile; 1024 // TN = 2 grid steps


# ----------------------------- Pallas kernel ---------------------------------
def fusion_kernel(img_ref, aud_ref,
                  wi_ref, si_ref, bi_ref,
                  wa_ref, sa_ref, ba_ref,
                  wf1_ref, sf1_ref, bf1_ref,
                  wf2_ref, bf2_ref,
                  out_ref,
                  h_acc_ref):
    j = pl.program_id(0)

    @pl.when(j == 0)
    def _init():
        h_acc_ref[...] = jnp.zeros_like(h_acc_ref)

    # Resident activations are already bf16 (cast once in the wrapper).
    img_x = img_ref[...]
    aud_x = aud_ref[...]

    # int8 -> bf16 dequant on the VPU (hidden under weight-DMA slack); the
    # per-output-channel scale is applied to the small [B, tn] dot result.
    wi_bf = wi_ref[...].astype(jnp.bfloat16)
    wa_bf = wa_ref[...].astype(jnp.bfloat16)

    # image / audio branch, hidden tile j: Linear(2048 -> tn) + sigmoid
    img_j = jax.nn.sigmoid(
        jnp.dot(img_x, wi_bf, preferred_element_type=jnp.float32) * si_ref[...]
        + bi_ref[...])
    aud_j = jax.nn.sigmoid(
        jnp.dot(aud_x, wa_bf, preferred_element_type=jnp.float32) * sa_ref[...]
        + ba_ref[...])

    # fusion_fc1 partial contraction over this hidden tile.  Wf1 row-blocks
    # were pre-stacked as [img_rows_j ; aud_rows_j], so
    #   cat @ Wf1 == sum_j concat(img_j, aud_j) @ Wf1_stacked[j]
    # and the two partial dots collapse into a single MXU call.
    cat_j = jnp.concatenate(
        [img_j.astype(jnp.bfloat16), aud_j.astype(jnp.bfloat16)], axis=-1)
    wf1_bf = wf1_ref[...].astype(jnp.bfloat16)
    h_acc_ref[...] += jnp.dot(cat_j, wf1_bf,
                              preferred_element_type=jnp.float32)

    @pl.when(j == pl.num_programs(0) - 1)
    def _finalize():
        # Wf1 scale is per output column (constant over j) -> applied once.
        h = jax.nn.sigmoid(h_acc_ref[...] * sf1_ref[...] + bf1_ref[...])
        out = jax.nn.sigmoid(
            jnp.dot(h.astype(jnp.bfloat16), wf2_ref[...],
                    preferred_element_type=jnp.float32)
            + bf2_ref[...])
        # NOTE: padded classifier columns come out as sigmoid(0)=0.5; they are
        # sliced off outside the kernel.
        out_ref[...] = out.astype(out_ref.dtype)


def fusion_forward(image_rep, audio_rep, params, num_classes, *, tn=TN):
    """image_rep, audio_rep: [B, 2048] float32 features from the backbones."""
    B = image_rep.shape[0]
    d_in = params["wi_q"].shape[0]       # 2048
    hidden = params["wi_q"].shape[1]     # 1024 (branch hidden, tiled by tn)
    d_fuse = params["wf1_q"].shape[1]    # 512
    nc_pad = params["wf2"].shape[1]      # lane-dense padded classifier width

    # Cast resident activations to bf16 once (halves their DMA; removes the
    # per-step VPU casts that re-ran on the same resident data).
    img_bf = image_rep.astype(jnp.bfloat16)
    aud_bf = audio_rep.astype(jnp.bfloat16)

    out_full = pl.pallas_call(
        fusion_kernel,
        out_shape=jax.ShapeDtypeStruct((B, nc_pad), jnp.float32),
        grid_spec=pltpu.PrefetchScalarGridSpec(
            num_scalar_prefetch=0,
            grid=(hidden // tn,),
            in_specs=[
                pl.BlockSpec((B, d_in), lambda j: (0, 0)),          # image_rep (resident)
                pl.BlockSpec((B, d_in), lambda j: (0, 0)),          # audio_rep (resident)
                pl.BlockSpec((d_in, tn), lambda j: (0, j)),         # Wi int8 tile
                pl.BlockSpec((1, tn), lambda j: (0, j)),            # Wi col scales
                pl.BlockSpec((1, tn), lambda j: (0, j)),            # bi tile
                pl.BlockSpec((d_in, tn), lambda j: (0, j)),         # Wa int8 tile
                pl.BlockSpec((1, tn), lambda j: (0, j)),            # Wa col scales
                pl.BlockSpec((1, tn), lambda j: (0, j)),            # ba tile
                pl.BlockSpec((2 * tn, d_fuse), lambda j: (j, 0)),   # Wf1 stacked int8 tile
                pl.BlockSpec((1, d_fuse), lambda j: (0, 0)),        # Wf1 col scales (resident)
                pl.BlockSpec((1, d_fuse), lambda j: (0, 0)),        # bf1 (resident)
                pl.BlockSpec((d_fuse, nc_pad), lambda j: (0, 0)),   # Wf2 bf16 (resident)
                pl.BlockSpec((1, nc_pad), lambda j: (0, 0)),        # bf2 (resident)
            ],
            out_specs=pl.BlockSpec((B, nc_pad), lambda j: (0, 0)),
            scratch_shapes=[pltpu.VMEM((B, d_fuse), jnp.float32)],
        ),
        compiler_params=pltpu.CompilerParams(
            dimension_semantics=("arbitrary",),   # grid axis is a reduction
            vmem_limit_bytes=16 << 20,            # footprint ~6 MiB
        ),
    )(img_bf, aud_bf,
      params["wi_q"], params["si"], params["bi"],
      params["wa_q"], params["sa"], params["ba"],
      params["wf1_q"], params["sf1"], params["bf1"],
      params["wf2"], params["bf2"])

    return out_full[:, :num_classes]


# --------------------------- parameter construction --------------------------
def quantize_per_column(w):
    """Symmetric per-output-channel int8 quantization of [in, out] weights."""
    amax = jnp.max(jnp.abs(w), axis=0, keepdims=True)        # (1, out)
    scale = jnp.maximum(amax, 1e-12) / 127.0
    wq = jnp.clip(jnp.round(w / scale), -127.0, 127.0).astype(jnp.int8)
    return wq, scale.astype(jnp.float32)


def stack_wf1(wf1, tn):
    """Reorder Wf1 rows so block j = [img rows j*tn:(j+1)*tn ; aud rows ditto]."""
    hidden = wf1.shape[0] // 2
    nb = hidden // tn
    img_part = wf1[:hidden].reshape(nb, tn, -1)
    aud_part = wf1[hidden:].reshape(nb, tn, -1)
    return jnp.concatenate([img_part, aud_part], axis=1).reshape(2 * hidden, -1)


def unstack_wf1(wf1_stacked, tn):
    """Inverse of stack_wf1 (used only by the reference)."""
    hidden = wf1_stacked.shape[0] // 2
    nb = hidden // tn
    blocks = wf1_stacked.reshape(nb, 2, tn, -1)
    img_part = blocks[:, 0].reshape(hidden, -1)
    aud_part = blocks[:, 1].reshape(hidden, -1)
    return jnp.concatenate([img_part, aud_part], axis=0)


def make_params(key, num_classes, *, tn=TN):
    ks = jax.random.split(key, 8)

    def lin(kw, kb, fan_in, fan_out):
        # PyTorch-Linear-like init (nonzero bias so the bias path is exercised)
        bound = 1.0 / jnp.sqrt(fan_in)
        w = jax.random.uniform(kw, (fan_in, fan_out), jnp.float32, -bound, bound)
        b = jax.random.uniform(kb, (1, fan_out), jnp.float32, -bound, bound)
        return w, b

    wi, bi = lin(ks[0], ks[1], 2048, 1024)          # image_fc1 (stored [in, out])
    wa, ba = lin(ks[2], ks[3], 2048, 1024)          # audio_fc1
    wf1, bf1 = lin(ks[4], ks[5], 2048, 512)         # fusion_fc1
    wf2, bf2 = lin(ks[6], ks[7], 512, num_classes)  # fusion_fc2

    # Lane-dense padding of the classifier (num_classes -> multiple of 128);
    # padded columns are zero weights / zero bias and are sliced off outside.
    nc_pad = pl.cdiv(num_classes, 128) * 128
    wf2_p = jnp.zeros((512, nc_pad), jnp.float32).at[:, :num_classes].set(wf2)
    bf2_p = jnp.zeros((1, nc_pad), jnp.float32).at[:, :num_classes].set(bf2)

    # Big weights -> int8 + per-column f32 scales; Wf2 is tiny, keep bf16.
    wi_q, si = quantize_per_column(wi)
    wa_q, sa = quantize_per_column(wa)
    wf1_q, sf1 = quantize_per_column(wf1)
    wf1_q = stack_wf1(wf1_q, tn)

    params = {
        "wi_q": wi_q, "si": si, "bi": bi,
        "wa_q": wa_q, "sa": sa, "ba": ba,
        "wf1_q": wf1_q, "sf1": sf1, "bf1": bf1,
        "wf2": wf2_p.astype(jnp.bfloat16), "bf2": bf2_p,
    }
    ref_params = {"wi": wi, "bi": bi, "wa": wa, "ba": ba,
                  "wf1": wf1, "bf1": bf1, "wf2": wf2, "bf2": bf2}
    return params, ref_params


# TODO(synk): image_net / audio_net are arbitrary external backbones injected
# into FusionNet; they are modeled here as deterministic flatten+linear feature
# extractors in plain JAX (returning a tuple so `backbone(x)[0]` matches the
# PyTorch call convention).  Fusing them into the same pallas_call / prefetching
# the fusion weights behind them (P10) is a further optimization left out here.
def make_backbone(key, in_features, out_features=2048):
    bound = 1.0 / jnp.sqrt(in_features)
    w = jax.random.uniform(key, (in_features, out_features), jnp.float32,
                           -bound, bound)

    def backbone(x):
        flat = x.reshape(x.shape[0], -1)
        return (flat @ w,)  # tuple, so [0] indexing works as in PyTorch

    return backbone


# --------------------------------- references --------------------------------
def reference_forward_dequant(image_rep, audio_rep, params, num_classes, *, tn=TN):
    """f32 reference using the SAME int8-dequantized weights the kernel uses."""
    wi = params["wi_q"].astype(jnp.float32) * params["si"]
    wa = params["wa_q"].astype(jnp.float32) * params["sa"]
    wf1 = unstack_wf1(params["wf1_q"], tn).astype(jnp.float32) * params["sf1"]
    wf2 = params["wf2"].astype(jnp.float32)
    img = jax.nn.sigmoid(image_rep @ wi + params["bi"])
    aud = jax.nn.sigmoid(audio_rep @ wa + params["ba"])
    cat = jnp.concatenate([img, aud], axis=1)
    h = jax.nn.sigmoid(cat @ wf1 + params["bf1"])
    out = jax.nn.sigmoid(h @ wf2 + params["bf2"])
    return out[:, :num_classes]


def reference_forward_f32(image_rep, audio_rep, rp):
    """f32 reference with the original (unquantized) weights — the true spec."""
    img = jax.nn.sigmoid(image_rep @ rp["wi"] + rp["bi"])
    aud = jax.nn.sigmoid(audio_rep @ rp["wa"] + rp["ba"])
    cat = jnp.concatenate([img, aud], axis=1)
    h = jax.nn.sigmoid(cat @ rp["wf1"] + rp["bf1"])
    return jax.nn.sigmoid(h @ rp["wf2"] + rp["bf2"])


# ----------------------------------- main -------------------------------------
if __name__ == "__main__":
    num_classes = 10
    B = 8

    key = jax.random.PRNGKey(0)
    k_img, k_aud, k_bb_i, k_bb_a, k_par = jax.random.split(key, 5)

    # raw inputs (small shapes): image NCHW, audio [B, C, T]
    image = jax.random.normal(k_img, (B, 3, 16, 16), jnp.float32)
    audio = jax.random.normal(k_aud, (B, 1, 64), jnp.float32)

    image_net = make_backbone(k_bb_i, 3 * 16 * 16)
    audio_net = make_backbone(k_bb_a, 1 * 64)
    params, ref_params = make_params(k_par, num_classes)

    # FusionNet.forward
    image_rep = image_net(image)[0]          # [B, 2048]
    audio_rep = audio_net(audio)[0]          # [B, 2048]

    out = fusion_forward(image_rep, audio_rep, params, num_classes)
    out = jax.block_until_ready(out)
    assert out.shape == (B, num_classes)

    # (1) vs. a reference running the same dequantized weights in f32:
    #     only bf16 activation rounding differs.
    ref_q = reference_forward_dequant(image_rep, audio_rep, params, num_classes)
    assert jnp.allclose(out, ref_q, atol=1e-2, rtol=1e-2), \
        "mismatch vs dequantized-weight reference"

    # (2) vs. the original f32-weight module semantics (adds per-channel int8
    #     quantization error on the three big weights): looser tolerance.
    ref_f = reference_forward_f32(image_rep, audio_rep, ref_params)
    assert jnp.allclose(out, ref_f, atol=3e-2, rtol=3e-2), \
        "mismatch vs f32 reference"

    print("KERNEL_OK")
</pallas_src>

<mosaic_0001>
module attributes {stable_mosaic.version = 11 : i64} {
  func.func @fusion_kernel(%arg0: i32, %arg1: memref<8x2048xbf16, #tpu.memory_space<vmem>>, %arg2: memref<8x2048xbf16, #tpu.memory_space<vmem>>, %arg3: memref<2048x512xi8, #tpu.memory_space<vmem>>, %arg4: memref<1x512xf32, #tpu.memory_space<vmem>>, %arg5: memref<1x512xf32, #tpu.memory_space<vmem>>, %arg6: memref<2048x512xi8, #tpu.memory_space<vmem>>, %arg7: memref<1x512xf32, #tpu.memory_space<vmem>>, %arg8: memref<1x512xf32, #tpu.memory_space<vmem>>, %arg9: memref<1024x512xi8, #tpu.memory_space<vmem>>, %arg10: memref<1x512xf32, #tpu.memory_space<vmem>>, %arg11: memref<1x512xf32, #tpu.memory_space<vmem>>, %arg12: memref<512x128xbf16, #tpu.memory_space<vmem>>, %arg13: memref<1x128xf32, #tpu.memory_space<vmem>>, %arg14: memref<8x128xf32, #tpu.memory_space<vmem>>, %arg15: memref<8x512xf32, #tpu.memory_space<vmem>>) attributes {dimension_semantics = [#tpu.dimension_semantics<arbitrary>], iteration_bounds = array<i64: 2>, scalar_prefetch = 0 : i64, scratch_operands = 1 : i64, tpu.core_type = #tpu.core_type<tc>, window_params = [{pipeline_mode = #tpu.pipeline_mode<synchronous>, transform_indices = @transform_0, window_bounds = array<i64: 8, 2048>}, {pipeline_mode = #tpu.pipeline_mode<synchronous>, transform_indices = @transform_1, window_bounds = array<i64: 8, 2048>}, {transform_indices = @transform_2, window_bounds = array<i64: 2048, 512>}, {transform_indices = @transform_3, window_bounds = array<i64: 1, 512>}, {transform_indices = @transform_4, window_bounds = array<i64: 1, 512>}, {transform_indices = @transform_5, window_bounds = array<i64: 2048, 512>}, {transform_indices = @transform_6, window_bounds = array<i64: 1, 512>}, {transform_indices = @transform_7, window_bounds = array<i64: 1, 512>}, {transform_indices = @transform_8, window_bounds = array<i64: 1024, 512>}, {pipeline_mode = #tpu.pipeline_mode<synchronous>, transform_indices = @transform_9, window_bounds = array<i64: 1, 512>}, {pipeline_mode = #tpu.pipeline_mode<synchronous>, transform_indices = @transform_10, window_bounds = array<i64: 1, 512>}, {pipeline_mode = #tpu.pipeline_mode<synchronous>, transform_indices = @transform_11, window_bounds = array<i64: 512, 128>}, {pipeline_mode = #tpu.pipeline_mode<synchronous>, transform_indices = @transform_12, window_bounds = array<i64: 1, 128>}, {pipeline_mode = #tpu.pipeline_mode<synchronous>, transform_indices = @transform_13, window_bounds = array<i64: 8, 128>}]} {
    %c0_i32 = arith.constant 0 : i32
    %0 = arith.cmpi eq, %arg0, %c0_i32 : i32
    %1 = arith.extui %0 : i1 to i32
    %c0_i32_0 = arith.constant 0 : i32
    %2 = arith.cmpi ne, %1, %c0_i32_0 : i32
    scf.if %2 {
      %cst_27 = arith.constant 0.000000e+00 : f32
      %45 = vector.broadcast %cst_27 : f32 to vector<8x512xf32>
      %c0_28 = arith.constant 0 : index
      %c0_29 = arith.constant 0 : index
      %46 = vector.load %arg15[%c0_28, %c0_29] : memref<8x512xf32, #tpu.memory_space<vmem>>, vector<8x512xf32>
      tpu.vector_store %arg15[%c0_28, %c0_29], %45 {strides = array<i32>} : memref<8x512xf32, #tpu.memory_space<vmem>>, vector<8x512xf32>,
    } else {
    }
    %c0 = arith.constant 0 : index
    %c0_1 = arith.constant 0 : index
    %3 = vector.load %arg1[%c0, %c0_1] : memref<8x2048xbf16, #tpu.memory_space<vmem>>, vector<8x2048xbf16>
    %c0_2 = arith.constant 0 : index
    %c0_3 = arith.constant 0 : index
    %4 = vector.load %arg2[%c0_2, %c0_3] : memref<8x2048xbf16, #tpu.memory_space<vmem>>, vector<8x2048xbf16>
    %c0_4 = arith.constant 0 : index
    %c0_5 = arith.constant 0 : index
    %5 = vector.load %arg3[%c0_4, %c0_5] : memref<2048x512xi8, #tpu.memory_space<vmem>>, vector<2048x512xi8>
    %6 = arith.sitofp %5 : vector<2048x512xi8> to vector<2048x512xbf16>
    %c0_6 = arith.constant 0 : index
    %c0_7 = arith.constant 0 : index
    %7 = vector.load %arg6[%c0_6, %c0_7] : memref<2048x512xi8, #tpu.memory_space<vmem>>, vector<2048x512xi8>
    %8 = arith.sitofp %7 : vector<2048x512xi8> to vector<2048x512xbf16>
    %cst = arith.constant dense<0.000000e+00> : vector<8x512xf32>
    %9 = tpu.matmul %3, %6, %cst {dimension_numbers = #tpu.dot_dimension_numbers<[1], [0], [0], [1], [0, 0, 1, 1], [], []>} : vector<8x2048xbf16>, vector<2048x512xbf16>, vector<8x512xf32> -> vector<8x512xf32>
    %c0_8 = arith.constant 0 : index
    %c0_9 = arith.constant 0 : index
    %10 = vector.load %arg4[%c0_8, %c0_9] : memref<1x512xf32, #tpu.memory_space<vmem>>, vector<1x512xf32>
    %11 = vector.broadcast %10 : vector<1x512xf32> to vector<8x512xf32>
    %12 = arith.mulf %9, %11 : vector<8x512xf32>
    %c0_10 = arith.constant 0 : index
    %c0_11 = arith.constant 0 : index
    %13 = vector.load %arg5[%c0_10, %c0_11] : memref<1x512xf32, #tpu.memory_space<vmem>>, vector<1x512xf32>
    %14 = vector.broadcast %13 : vector<1x512xf32> to vector<8x512xf32>
    %15 = arith.addf %12, %14 : vector<8x512xf32>
    %16 = arith.negf %15 : vector<8x512xf32>
    %17 = math.exp %16 : vector<8x512xf32>
    %cst_12 = arith.constant 1.000000e+00 : f32
    %18 = vector.broadcast %cst_12 : f32 to vector<8x512xf32>
    %19 = arith.addf %18, %17 : vector<8x512xf32>
    %20 = arith.divf %18, %19 : vector<8x512xf32>
    %cst_13 = arith.constant dense<0.000000e+00> : vector<8x512xf32>
    %21 = tpu.matmul %4, %8, %cst_13 {dimension_numbers = #tpu.dot_dimension_numbers<[1], [0], [0], [1], [0, 0, 1, 1], [], []>} : vector<8x2048xbf16>, vector<2048x512xbf16>, vector<8x512xf32> -> vector<8x512xf32>
    %c0_14 = arith.constant 0 : index
    %c0_15 = arith.constant 0 : index
    %22 = vector.load %arg7[%c0_14, %c0_15] : memref<1x512xf32, #tpu.memory_space<vmem>>, vector<1x512xf32>
    %23 = vector.broadcast %22 : vector<1x512xf32> to vector<8x512xf32>
    %24 = arith.mulf %21, %23 : vector<8x512xf32>
    %c0_16 = arith.constant 0 : index
    %c0_17 = arith.constant 0 : index
    %25 = vector.load %arg8[%c0_16, %c0_17] : memref<1x512xf32, #tpu.memory_space<vmem>>, vector<1x512xf32>
    %26 = vector.broadcast %25 : vector<1x512xf32> to vector<8x512xf32>
    %27 = arith.addf %24, %26 : vector<8x512xf32>
    %28 = arith.negf %27 : vector<8x512xf32>
    %29 = math.exp %28 : vector<8x512xf32>
    %cst_18 = arith.constant 1.000000e+00 : f32
    %30 = vector.broadcast %cst_18 : f32 to vector<8x512xf32>
    %31 = arith.addf %30, %29 : vector<8x512xf32>
    %32 = arith.divf %30, %31 : vector<8x512xf32>
    %33 = arith.truncf %20 : vector<8x512xf32> to vector<8x512xbf16>
    %34 = arith.truncf %32 : vector<8x512xf32> to vector<8x512xbf16>
    %35 = tpu.concatenate %33, %34 in 1 : vector<8x512xbf16>, vector<8x512xbf16> -> vector<8x1024xbf16>
    %c0_19 = arith.constant 0 : index
    %c0_20 = arith.constant 0 : index
    %36 = vector.load %arg9[%c0_19, %c0_20] : memref<1024x512xi8, #tpu.memory_space<vmem>>, vector<1024x512xi8>
    %37 = arith.sitofp %36 : vector<1024x512xi8> to vector<1024x512xbf16>
    %c0_21 = arith.constant 0 : index
    %c0_22 = arith.constant 0 : index
    %38 = vector.load %arg15[%c0_21, %c0_22] : memref<8x512xf32, #tpu.memory_space<vmem>>, vector<8x512xf32>
    %cst_23 = arith.constant dense<0.000000e+00> : vector<8x512xf32>
    %39 = tpu.matmul %35, %37, %cst_23 {dimension_numbers = #tpu.dot_dimension_numbers<[1], [0], [0], [1], [0, 0, 1, 1], [], []>} : vector<8x1024xbf16>, vector<1024x512xbf16>, vector<8x512xf32> -> vector<8x512xf32>
    %40 = arith.addf %38, %39 : vector<8x512xf32>
    %c0_24 = arith.constant 0 : index
    %c0_25 = arith.constant 0 : index
    %41 = vector.load %arg15[%c0_24, %c0_25] : memref<8x512xf32, #tpu.memory_space<vmem>>, vector<8x512xf32>
    tpu.vector_store %arg15[%c0_24, %c0_25], %40 {strides = array<i32>} : memref<8x512xf32, #tpu.memory_space<vmem>>, vector<8x512xf32>,
    %c1_i32 = arith.constant 1 : i32
    %42 = arith.cmpi eq, %arg0, %c1_i32 : i32
    %43 = arith.extui %42 : i1 to i32
    %c0_i32_26 = arith.constant 0 : i32
    %44 = arith.cmpi ne, %43, %c0_i32_26 : i32
    scf.if %44 {
      %c0_27 = arith.constant 0 : index
      %c0_28 = arith.constant 0 : index
      %45 = vector.load %arg15[%c0_27, %c0_28] : memref<8x512xf32, #tpu.memory_space<vmem>>, vector<8x512xf32>
      %c0_29 = arith.constant 0 : index
      %c0_30 = arith.constant 0 : index
      %46 = vector.load %arg10[%c0_29, %c0_30] : memref<1x512xf32, #tpu.memory_space<vmem>>, vector<1x512xf32>
      %47 = vector.broadcast %46 : vector<1x512xf32> to vector<8x512xf32>
      %48 = arith.mulf %45, %47 : vector<8x512xf32>
      %c0_31 = arith.constant 0 : index
      %c0_32 = arith.constant 0 : index
      %49 = vector.load %arg11[%c0_31, %c0_32] : memref<1x512xf32, #tpu.memory_space<vmem>>, vector<1x512xf32>
      %50 = vector.broadcast %49 : vector<1x512xf32> to vector<8x512xf32>
      %51 = arith.addf %48, %50 : vector<8x512xf32>
      %52 = arith.negf %51 : vector<8x512xf32>
      %53 = math.exp %52 : vector<8x512xf32>
      %cst_33 = arith.constant 1.000000e+00 : f32
      %54 = vector.broadcast %cst_33 : f32 to vector<8x512xf32>
      %55 = arith.addf %54, %53 : vector<8x512xf32>
      %56 = arith.divf %54, %55 : vector<8x512xf32>
      %57 = arith.truncf %56 : vector<8x512xf32> to vector<8x512xbf16>
      %c0_34 = arith.constant 0 : index
      %c0_35 = arith.constant 0 : index
      %58 = vector.load %arg12[%c0_34, %c0_35] : memref<512x128xbf16, #tpu.memory_space<vmem>>, vector<512x128xbf16>
      %cst_36 = arith.constant dense<0.000000e+00> : vector<8x128xf32>
      %59 = tpu.matmul %57, %58, %cst_36 {dimension_numbers = #tpu.dot_dimension_numbers<[1], [0], [0], [1], [0, 0, 1, 1], [], []>} : vector<8x512xbf16>, vector<512x128xbf16>, vector<8x128xf32> -> vector<8x128xf32>
      %c0_37 = arith.constant 0 : index
      %c0_38 = arith.constant 0 : index
      %60 = vector.load %arg13[%c0_37, %c0_38] : memref<1x128xf32, #tpu.memory_space<vmem>>, vector<1x128xf32>
      %61 = vector.broadcast %60 : vector<1x128xf32> to vector<8x128xf32>
      %62 = arith.addf %59, %61 : vector<8x128xf32>
      %63 = arith.negf %62 : vector<8x128xf32>
      %64 = math.exp %63 : vector<8x128xf32>
      %cst_39 = arith.constant 1.000000e+00 : f32
      %65 = vector.broadcast %cst_39 : f32 to vector<8x128xf32>
      %66 = arith.addf %65, %64 : vector<8x128xf32>
      %67 = arith.divf %65, %66 : vector<8x128xf32>
      %c0_40 = arith.constant 0 : index
      %c0_41 = arith.constant 0 : index
      %68 = vector.load %arg14[%c0_40, %c0_41] : memref<8x128xf32, #tpu.memory_space<vmem>>, vector<8x128xf32>
      tpu.vector_store %arg14[%c0_40, %c0_41], %67 {strides = array<i32>} : memref<8x128xf32, #tpu.memory_space<vmem>>, vector<8x128xf32>,
    } else {
    }
    return
  }
  func.func @transform_0(%arg0: i32) -> (i32, i32) {
    %c0_i32 = arith.constant 0 : i32
    %c0_i32_0 = arith.constant 0 : i32
    %c0_i32_1 = arith.constant 0 : i32
    return %c0_i32, %c0_i32_0 : i32, i32
  }
  func.func @transform_1(%arg0: i32) -> (i32, i32) {
    %c0_i32 = arith.constant 0 : i32
    %c0_i32_0 = arith.constant 0 : i32
    %c0_i32_1 = arith.constant 0 : i32
    return %c0_i32, %c0_i32_0 : i32, i32
  }
  func.func @transform_2(%arg0: i32) -> (i32, i32) {
    %c0_i32 = arith.constant 0 : i32
    %c0_i32_0 = arith.constant 0 : i32
    return %c0_i32, %arg0 : i32, i32
  }
  func.func @transform_3(%arg0: i32) -> (i32, i32) {
    %c0_i32 = arith.constant 0 : i32
    %c0_i32_0 = arith.constant 0 : i32
    return %c0_i32, %arg0 : i32, i32
  }
  func.func @transform_4(%arg0: i32) -> (i32, i32) {
    %c0_i32 = arith.constant 0 : i32
    %c0_i32_0 = arith.constant 0 : i32
    return %c0_i32, %arg0 : i32, i32
  }
  func.func @transform_5(%arg0: i32) -> (i32, i32) {
    %c0_i32 = arith.constant 0 : i32
    %c0_i32_0 = arith.constant 0 : i32
    return %c0_i32, %arg0 : i32, i32
  }
  func.func @transform_6(%arg0: i32) -> (i32, i32) {
    %c0_i32 = arith.constant 0 : i32
    %c0_i32_0 = arith.constant 0 : i32
    return %c0_i32, %arg0 : i32, i32
  }
  func.func @transform_7(%arg0: i32) -> (i32, i32) {
    %c0_i32 = arith.constant 0 : i32
    %c0_i32_0 = arith.constant 0 : i32
    return %c0_i32, %arg0 : i32, i32
  }
  func.func @transform_8(%arg0: i32) -> (i32, i32) {
    %c0_i32 = arith.constant 0 : i32
    %c0_i32_0 = arith.constant 0 : i32
    return %arg0, %c0_i32 : i32, i32
  }
  func.func @transform_9(%arg0: i32) -> (i32, i32) {
    %c0_i32 = arith.constant 0 : i32
    %c0_i32_0 = arith.constant 0 : i32
    %c0_i32_1 = arith.constant 0 : i32
    return %c0_i32, %c0_i32_0 : i32, i32
  }
  func.func @transform_10(%arg0: i32) -> (i32, i32) {
    %c0_i32 = arith.constant 0 : i32
    %c0_i32_0 = arith.constant 0 : i32
    %c0_i32_1 = arith.constant 0 : i32
    return %c0_i32, %c0_i32_0 : i32, i32
  }
  func.func @transform_11(%arg0: i32) -> (i32, i32) {
    %c0_i32 = arith.constant 0 : i32
    %c0_i32_0 = arith.constant 0 : i32
    %c0_i32_1 = arith.constant 0 : i32
    return %c0_i32, %c0_i32_0 : i32, i32
  }
  func.func @transform_12(%arg0: i32) -> (i32, i32) {
    %c0_i32 = arith.constant 0 : i32
    %c0_i32_0 = arith.constant 0 : i32
    %c0_i32_1 = arith.constant 0 : i32
    return %c0_i32, %c0_i32_0 : i32, i32
  }
  func.func @transform_13(%arg0: i32) -> (i32, i32) {
    %c0_i32 = arith.constant 0 : i32
    %c0_i32_0 = arith.constant 0 : i32
    %c0_i32_1 = arith.constant 0 : i32
    return %c0_i32, %c0_i32_0 : i32, i32
  }
}

</mosaic_0001>

<llo_original>
// kernel: tpu_custom_call.1
$region0: #{tpu_custom_call.1}
  #allocation0 [shape = 'u32[]', space=smem, size = 0x4, offset = 0x4, fixed_abs, tag = 'smem constant byte address 0x4 - core index']
  #allocation1 [shape = 'u32[72,128]{1,0:T(1,128)}', space=vmem, size = 0x9000, scoped, tag = 'internal scratch']
  #allocation2 [shape = 'f32[8,512]{1,0:T(8,128)}', space=vmem, size = 0x4000, scoped, tag = 'scratch operand']
  %s0 = inlined_call_operand.hbm [shape: bf16[8,2048], index: 0, kind: input, shape index: {}]
  %s1 = inlined_call_operand.hbm [shape: bf16[8,2048], index: 1, kind: input, shape index: {}]
  %s2 = inlined_call_operand.hbm [shape: s8[2048,1024], index: 2, kind: input, shape index: {}]
  %s3 = inlined_call_operand.hbm [shape: f32[1,1024], index: 3, kind: input, shape index: {}]
  %s4 = inlined_call_operand.hbm [shape: f32[1,1024], index: 4, kind: input, shape index: {}]
  %s5 = inlined_call_operand.hbm [shape: s8[2048,1024], index: 5, kind: input, shape index: {}]
  %s6 = inlined_call_operand.hbm [shape: f32[1,1024], index: 6, kind: input, shape index: {}]
  %s7 = inlined_call_operand.hbm [shape: f32[1,1024], index: 7, kind: input, shape index: {}]
  %s8 = inlined_call_operand.hbm [shape: s8[2048,512], index: 8, kind: input, shape index: {}]
  %s9 = inlined_call_operand.hbm [shape: f32[1,512], index: 9, kind: input, shape index: {}]
  %s10 = inlined_call_operand.hbm [shape: f32[1,512], index: 10, kind: input, shape index: {}]
  %s11 = inlined_call_operand.hbm [shape: bf16[512,128], index: 11, kind: input, shape index: {}]
  %s12 = inlined_call_operand.hbm [shape: f32[1,128], index: 12, kind: input, shape index: {}]
  %s13 = inlined_call_operand.hbm [shape: f32[8,128], index: 13, kind: output, shape index: {}]
  %s14 = sld [smem:[#allocation0]]
  $region145: #{tpu_custom_call.1} parent=0
    _
  %s16 = ssub.s32 1, %s14
  %s17 = scalar_select 0, %s16, %s14
  $region1: #{tpu_custom_call.1} parent=0
    #allocation3 [shape = 'u8[32768]{0}', space=vmem, size = 0x8000, scoped, tag = 'input window, operand 0, single buffered']
    #allocation4 [shape = 's32[2]{0}', space=sflag, size = 0x8, scoped, tag = 'scoped memory for tpu_custom_call.1']
    #allocation5 [shape = 's32[2]{0}', space=sflag, size = 0x8, scoped, tag = 'scoped memory for tpu_custom_call.1']
    #allocation6 [shape = 'u8[32768]{0}', space=vmem, size = 0x8000, scoped, tag = 'input window, operand 1, single buffered']
    #allocation7 [shape = 's32[1]{0}', space=sflag, size = 0x4, scoped, tag = 'scoped memory for tpu_custom_call.1']
    #allocation8 [shape = 'u8[2097152]{0}', space=vmem, size = 0x200000, scoped, tag = 'input window, operand 2']
    #allocation9 [shape = 'u8[4096]{0}', space=vmem, size = 0x1000, scoped, tag = 'input window, operand 3']
    #allocation10 [shape = 'u8[4096]{0}', space=vmem, size = 0x1000, scoped, tag = 'input window, operand 4']
    #allocation11 [shape = 'u8[2097152]{0}', space=vmem, size = 0x200000, scoped, tag = 'input window, operand 5']
    #allocation12 [shape = 'u8[4096]{0}', space=vmem, size = 0x1000, scoped, tag = 'input window, operand 6']
    #allocation13 [shape = 'u8[4096]{0}', space=vmem, size = 0x1000, scoped, tag = 'input window, operand 7']
    #allocation14 [shape = 'u8[1048576]{0}', space=vmem, size = 0x100000, scoped, tag = 'input window, operand 8']
    #allocation15 [shape = 'u8[2048]{0}', space=vmem, size = 0x800, scoped, tag = 'input window, operand 9, single buffered']
    #allocation16 [shape = 'u8[2048]{0}', space=vmem, size = 0x800, scoped, tag = 'input window, operand 10, single buffered']
    #allocation17 [shape = 's32[1]{0}', space=sflag, size = 0x4, scoped, tag = 'scoped memory for tpu_custom_call.1']
    #allocation18 [shape = 'u8[131072]{0}', space=vmem, size = 0x20000, scoped, tag = 'input window, operand 11, single buffered']
    #allocation19 [shape = 'u8[512]{0}', space=vmem, size = 0x400, scoped, tag = 'input window, operand 12, single buffered']
    #allocation20 [shape = 's32[1]{0}', space=sflag, size = 0x4, scoped, tag = 'scoped memory for tpu_custom_call.1']
    #allocation21 [shape = 'u8[4096]{0}', space=vmem, size = 0x1000, scoped, tag = 'output window, operand 0, single buffered']
    %18 = vsyncpa [#allocation4], 0
    %19 = vsyncpa [#allocation7], 0
    %20 = vsyncpa [#allocation17], 0
    %21 = vsyncpa [#allocation20], 0
    %22 = vsyncpa [#allocation5], 0
    loop: start=0, step=1, limit=4
    $region2: #{tpu_custom_call.1} parent=1 // loop_pre_header
      _
    $region3: #{tpu_custom_call.1} parent=1 // loop_header
      %s24 = sphi 0, %s28
      %p25 = scmp.ge.s32.totalorder %s24, 4
      %s32 = sphi 0, %s32
      %s34 = sphi 0, %s32
      %s35 = sphi 0, %s34
      %s49 = sphi 0, %s35
      %s53 = sphi 0, %s53
      %s55 = sphi 0, %s53
      %s56 = sphi 0, %s55
      %s70 = sphi 0, %s56
      %s76 = sphi 0, %s78
      %s79 = sphi 0, %s76
      %s80 = sphi 0, %s79
      %s96 = sphi 0, %s80
      %s102 = sphi 0, %s104
      %s105 = sphi 0, %s102
      %s106 = sphi 0, %s105
      %s122 = sphi 0, %s106
      %s128 = sphi 0, %s130
      %s131 = sphi 0, %s128
      %s132 = sphi 0, %s131
      %s148 = sphi 0, %s132
      %s154 = sphi 0, %s156
      %s157 = sphi 0, %s154
      %s158 = sphi 0, %s157
      %s174 = sphi 0, %s158
      %s180 = sphi 0, %s182
      %s183 = sphi 0, %s180
      %s184 = sphi 0, %s183
      %s200 = sphi 0, %s184
      %s206 = sphi 0, %s208
      %s209 = sphi 0, %s206
      %s210 = sphi 0, %s209
      %s226 = sphi 0, %s210
      %s232 = sphi 0, %s234
      %s235 = sphi 0, %s232
      %s236 = sphi 0, %s235
      %s252 = sphi 0, %s236
      %s256 = sphi 0, %s256
      %s258 = sphi 0, %s256
      %s259 = sphi 0, %s258
      %s273 = sphi 0, %s259
      %s277 = sphi 0, %s277
      %s279 = sphi 0, %s277
      %s280 = sphi 0, %s279
      %s294 = sphi 0, %s280
      %s298 = sphi 0, %s298
      %s300 = sphi 0, %s298
      %s301 = sphi 0, %s300
      %s315 = sphi 0, %s301
      %s319 = sphi 0, %s319
      %s321 = sphi 0, %s319
      %s322 = sphi 0, %s321
      %s336 = sphi 0, %s322
      %s340 = sphi 0, %s340
      %s342 = sphi 0, %s340
      %s343 = sphi 0, %s342
      %s357 = sphi 0, %s343
    $region4: #{tpu_custom_call.1} parent=1 // loop_header_branch
      %27 = sbr.rel (%p25) target = $region8
    $region5: #{tpu_custom_call.1} parent=1 // loop_body
      %s29 = ssub.s32 %s24, 1
      %s30 = ssub.s32 %s24, 2
      %s31 = sadd.s32 %s24, 1
      %s33 = sadd.s32 %s32, 1
      %p36 = scmp.eq.s32.totalorder %s24, 1
      %p37 = scmp.ne.s32.totalorder %s32, %s34
      %p38 = scmp.eq.s32.totalorder %s24, 0
      %p39 = por %p37, %p38
      %p40 = scmp.ne.s32.totalorder %s32, %s34
      %p41 = scmp.eq.s32.totalorder %s29, 1
      %p42 = por %p40, %p41
      %p43 = scmp.ne.s32.totalorder %s34, %s35
      %p44 = scmp.eq.s32.totalorder %s29, 0
      %p45 = por %p43, %p44
      %p46 = scmp.ne.s32.totalorder %s34, %s35
      %p47 = scmp.eq.s32.totalorder %s30, 1
      %p48 = por %p46, %p47
      %p50 = scmp.ne.s32.totalorder %s35, %s49
      %p51 = scmp.eq.s32.totalorder %s30, 0
      %p52 = por %p50, %p51
      %s54 = sadd.s32 %s53, 1
      %p57 = scmp.eq.s32.totalorder %s24, 1
      %p58 = scmp.ne.s32.totalorder %s53, %s55
      %p59 = scmp.eq.s32.totalorder %s24, 0
      %p60 = por %p58, %p59
      %p61 = scmp.ne.s32.totalorder %s53, %s55
      %p62 = scmp.eq.s32.totalorder %s29, 1
      %p63 = por %p61, %p62
      %p64 = scmp.ne.s32.totalorder %s55, %s56
      %p65 = scmp.eq.s32.totalorder %s29, 0
      %p66 = por %p64, %p65
      %p67 = scmp.ne.s32.totalorder %s55, %s56
      %p68 = scmp.eq.s32.totalorder %s30, 1
      %p69 = por %p67, %p68
      %p71 = scmp.ne.s32.totalorder %s56, %s70
      %p72 = scmp.eq.s32.totalorder %s30, 0
      %p73 = por %p71, %p72
      %s74 = ssub.s32 %s24, %s31
      %p75 = scmp.eq.s32.totalorder %s74, 0
      %s77 = sadd.s32 %s76, 1
      %s78 = scalar_select %p75, %s76, %s77
      %p81 = pneg %p75
      %p82 = scmp.eq.s32.totalorder %s24, 1
      %p83 = por %p81, %p82
      %p84 = scmp.ne.s32.totalorder %s76, %s79
      %p85 = scmp.eq.s32.totalorder %s24, 0
      %p86 = por %p84, %p85
      %p87 = scmp.ne.s32.totalorder %s76, %s79
      %p88 = scmp.eq.s32.totalorder %s29, 1
      %p89 = por %p87, %p88
      %p90 = scmp.ne.s32.totalorder %s79, %s80
      %p91 = scmp.eq.s32.totalorder %s29, 0
      %p92 = por %p90, %p91
      %p93 = scmp.ne.s32.totalorder %s79, %s80
      %p94 = scmp.eq.s32.totalorder %s30, 1
      %p95 = por %p93, %p94
      %p97 = scmp.ne.s32.totalorder %s80, %s96
      %p98 = scmp.eq.s32.totalorder %s30, 0
      %p99 = por %p97, %p98
      %s100 = ssub.s32 %s24, %s31
      %p101 = scmp.eq.s32.totalorder %s100, 0
      %s103 = sadd.s32 %s102, 1
      %s104 = scalar_select %p101, %s102, %s103
      %p107 = pneg %p101
      %p108 = scmp.eq.s32.totalorder %s24, 1
      %p109 = por %p107, %p108
      %p110 = scmp.ne.s32.totalorder %s102, %s105
      %p111 = scmp.eq.s32.totalorder %s24, 0
      %p112 = por %p110, %p111
      %p113 = scmp.ne.s32.totalorder %s102, %s105
      %p114 = scmp.eq.s32.totalorder %s29, 1
      %p115 = por %p113, %p114
      %p116 = scmp.ne.s32.totalorder %s105, %s106
      %p117 = scmp.eq.s32.totalorder %s29, 0
      %p118 = por %p116, %p117
      %p119 = scmp.ne.s32.totalorder %s105, %s106
      %p120 = scmp.eq.s32.totalorder %s30, 1
      %p121 = por %p119, %p120
      %p123 = scmp.ne.s32.totalorder %s106, %s122
      %p124 = scmp.eq.s32.totalorder %s30, 0
      %p125 = por %p123, %p124
      %s126 = ssub.s32 %s24, %s31
      %p127 = scmp.eq.s32.totalorder %s126, 0
      %s129 = sadd.s32 %s128, 1
      %s130 = scalar_select %p127, %s128, %s129
      %p133 = pneg %p127
      %p134 = scmp.eq.s32.totalorder %s24, 1
      %p135 = por %p133, %p134
      %p136 = scmp.ne.s32.totalorder %s128, %s131
      %p137 = scmp.eq.s32.totalorder %s24, 0
      %p138 = por %p136, %p137
      %p139 = scmp.ne.s32.totalorder %s128, %s131
      %p140 = scmp.eq.s32.totalorder %s29, 1
      %p141 = por %p139, %p140
      %p142 = scmp.ne.s32.totalorder %s131, %s132
      %p143 = scmp.eq.s32.totalorder %s29, 0
      %p144 = por %p142, %p143
      %p145 = scmp.ne.s32.totalorder %s131, %s132
      %p146 = scmp.eq.s32.totalorder %s30, 1
      %p147 = por %p145, %p146
      %p149 = scmp.ne.s32.totalorder %s132, %s148
      %p150 = scmp.eq.s32.totalorder %s30, 0
      %p151 = por %p149, %p150
      %s152 = ssub.s32 %s24, %s31
      %p153 = scmp.eq.s32.totalorder %s152, 0
      %s155 = sadd.s32 %s154, 1
      %s156 = scalar_select %p153, %s154, %s155
      %p159 = pneg %p153
      %p160 = scmp.eq.s32.totalorder %s24, 1
      %p161 = por %p159, %p160
      %p162 = scmp.ne.s32.totalorder %s154, %s157
      %p163 = scmp.eq.s32.totalorder %s24, 0
      %p164 = por %p162, %p163
      %p165 = scmp.ne.s32.totalorder %s154, %s157
      %p166 = scmp.eq.s32.totalorder %s29, 1
      %p167 = por %p165, %p166
      %p168 = scmp.ne.s32.totalorder %s157, %s158
      %p169 = scmp.eq.s32.totalorder %s29, 0
      %p170 = por %p168, %p169
      %p171 = scmp.ne.s32.totalorder %s157, %s158
      %p172 = scmp.eq.s32.totalorder %s30, 1
      %p173 = por %p171, %p172
      %p175 = scmp.ne.s32.totalorder %s158, %s174
      %p176 = scmp.eq.s32.totalorder %s30, 0
      %p177 = por %p175, %p176
      %s178 = ssub.s32 %s24, %s31
      %p179 = scmp.eq.s32.totalorder %s178, 0
      %s181 = sadd.s32 %s180, 1
      %s182 = scalar_select %p179, %s180, %s181
      %p185 = pneg %p179
      %p186 = scmp.eq.s32.totalorder %s24, 1
      %p187 = por %p185, %p186
      %p188 = scmp.ne.s32.totalorder %s180, %s183
      %p189 = scmp.eq.s32.totalorder %s24, 0
      %p190 = por %p188, %p189
      %p191 = scmp.ne.s32.totalorder %s180, %s183
      %p192 = scmp.eq.s32.totalorder %s29, 1
      %p193 = por %p191, %p192
      %p194 = scmp.ne.s32.totalorder %s183, %s184
      %p195 = scmp.eq.s32.totalorder %s29, 0
      %p196 = por %p194, %p195
      %p197 = scmp.ne.s32.totalorder %s183, %s184
      %p198 = scmp.eq.s32.totalorder %s30, 1
      %p199 = por %p197, %p198
      %p201 = scmp.ne.s32.totalorder %s184, %s200
      %p202 = scmp.eq.s32.totalorder %s30, 0
      %p203 = por %p201, %p202
      %s204 = ssub.s32 %s24, %s31
      %p205 = scmp.eq.s32.totalorder %s204, 0
      %s207 = sadd.s32 %s206, 1
      %s208 = scalar_select %p205, %s206, %s207
      %p211 = pneg %p205
      %p212 = scmp.eq.s32.totalorder %s24, 1
      %p213 = por %p211, %p212
      %p214 = scmp.ne.s32.totalorder %s206, %s209
      %p215 = scmp.eq.s32.totalorder %s24, 0
      %p216 = por %p214, %p215
      %p217 = scmp.ne.s32.totalorder %s206, %s209
      %p218 = scmp.eq.s32.totalorder %s29, 1
      %p219 = por %p217, %p218
      %p220 = scmp.ne.s32.totalorder %s209, %s210
      %p221 = scmp.eq.s32.totalorder %s29, 0
      %p222 = por %p220, %p221
      %p223 = scmp.ne.s32.totalorder %s209, %s210
      %p224 = scmp.eq.s32.totalorder %s30, 1
      %p225 = por %p223, %p224
      %p227 = scmp.ne.s32.totalorder %s210, %s226
      %p228 = scmp.eq.s32.totalorder %s30, 0
      %p229 = por %p227, %p228
      %s230 = ssub.s32 %s24, %s31
      %p231 = scmp.eq.s32.totalorder %s230, 0
      %s233 = sadd.s32 %s232, 1
      %s234 = scalar_select %p231, %s232, %s233
      %p237 = pneg %p231
      %p238 = scmp.eq.s32.totalorder %s24, 1
      %p239 = por %p237, %p238
      %p240 = scmp.ne.s32.totalorder %s232, %s235
      %p241 = scmp.eq.s32.totalorder %s24, 0
      %p242 = por %p240, %p241
      %p243 = scmp.ne.s32.totalorder %s232, %s235
      %p244 = scmp.eq.s32.totalorder %s29, 1
      %p245 = por %p243, %p244
      %p246 = scmp.ne.s32.totalorder %s235, %s236
      %p247 = scmp.eq.s32.totalorder %s29, 0
      %p248 = por %p246, %p247
      %p249 = scmp.ne.s32.totalorder %s235, %s236
      %p250 = scmp.eq.s32.totalorder %s30, 1
      %p251 = por %p249, %p250
      %p253 = scmp.ne.s32.totalorder %s236, %s252
      %p254 = scmp.eq.s32.totalorder %s30, 0
      %p255 = por %p253, %p254
      %s257 = sadd.s32 %s256, 1
      %p260 = scmp.eq.s32.totalorder %s24, 1
      %p261 = scmp.ne.s32.totalorder %s256, %s258
      %p262 = scmp.eq.s32.totalorder %s24, 0
      %p263 = por %p261, %p262
      %p264 = scmp.ne.s32.totalorder %s256, %s258
      %p265 = scmp.eq.s32.totalorder %s29, 1
      %p266 = por %p264, %p265
      %p267 = scmp.ne.s32.totalorder %s258, %s259
      %p268 = scmp.eq.s32.totalorder %s29, 0
      %p269 = por %p267, %p268
      %p270 = scmp.ne.s32.totalorder %s258, %s259
      %p271 = scmp.eq.s32.totalorder %s30, 1
      %p272 = por %p270, %p271
      %p274 = scmp.ne.s32.totalorder %s259, %s273
      %p275 = scmp.eq.s32.totalorder %s30, 0
      %p276 = por %p274, %p275
      %s278 = sadd.s32 %s277, 1
      %p281 = scmp.eq.s32.totalorder %s24, 1
      %p282 = scmp.ne.s32.totalorder %s277, %s279
      %p283 = scmp.eq.s32.totalorder %s24, 0
      %p284 = por %p282, %p283
      %p285 = scmp.ne.s32.totalorder %s277, %s279
      %p286 = scmp.eq.s32.totalorder %s29, 1
      %p287 = por %p285, %p286
      %p288 = scmp.ne.s32.totalorder %s279, %s280
      %p289 = scmp.eq.s32.totalorder %s29, 0
      %p290 = por %p288, %p289
      %p291 = scmp.ne.s32.totalorder %s279, %s280
      %p292 = scmp.eq.s32.totalorder %s30, 1
      %p293 = por %p291, %p292
      %p295 = scmp.ne.s32.totalorder %s280, %s294
      %p296 = scmp.eq.s32.totalorder %s30, 0
      %p297 = por %p295, %p296
      %s299 = sadd.s32 %s298, 1
      %p302 = scmp.eq.s32.totalorder %s24, 1
      %p303 = scmp.ne.s32.totalorder %s298, %s300
      %p304 = scmp.eq.s32.totalorder %s24, 0
      %p305 = por %p303, %p304
      %p306 = scmp.ne.s32.totalorder %s298, %s300
      %p307 = scmp.eq.s32.totalorder %s29, 1
      %p308 = por %p306, %p307
      %p309 = scmp.ne.s32.totalorder %s300, %s301
      %p310 = scmp.eq.s32.totalorder %s29, 0
      %p311 = por %p309, %p310
      %p312 = scmp.ne.s32.totalorder %s300, %s301
      %p313 = scmp.eq.s32.totalorder %s30, 1
      %p314 = por %p312, %p313
      %p316 = scmp.ne.s32.totalorder %s301, %s315
      %p317 = scmp.eq.s32.totalorder %s30, 0
      %p318 = por %p316, %p317
      %s320 = sadd.s32 %s319, 1
      %p323 = scmp.eq.s32.totalorder %s24, 1
      %p324 = scmp.ne.s32.totalorder %s319, %s321
      %p325 = scmp.eq.s32.totalorder %s24, 0
      %p326 = por %p324, %p325
      %p327 = scmp.ne.s32.totalorder %s319, %s321
      %p328 = scmp.eq.s32.totalorder %s29, 1
      %p329 = por %p327, %p328
      %p330 = scmp.ne.s32.totalorder %s321, %s322
      %p331 = scmp.eq.s32.totalorder %s29, 0
      %p332 = por %p330, %p331
      %p333 = scmp.ne.s32.totalorder %s321, %s322
      %p334 = scmp.eq.s32.totalorder %s30, 1
      %p335 = por %p333, %p334
      %p337 = scmp.ne.s32.totalorder %s322, %s336
      %p338 = scmp.eq.s32.totalorder %s30, 0
      %p339 = por %p337, %p338
      %s341 = sadd.s32 %s340, 1
      %p344 = scmp.eq.s32.totalorder %s24, 1
      %p345 = scmp.ne.s32.totalorder %s340, %s342
      %p346 = scmp.eq.s32.totalorder %s24, 0
      %p347 = por %p345, %p346
      %p348 = scmp.ne.s32.totalorder %s340, %s342
      %p349 = scmp.eq.s32.totalorder %s29, 1
      %p350 = por %p348, %p349
      %p351 = scmp.ne.s32.totalorder %s342, %s343
      %p352 = scmp.eq.s32.totalorder %s29, 0
      %p353 = por %p351, %p352
      %p354 = scmp.ne.s32.totalorder %s342, %s343
      %p355 = scmp.eq.s32.totalorder %s30, 1
      %p356 = por %p354, %p355
      %p358 = scmp.ne.s32.totalorder %s343, %s357
      %p359 = scmp.eq.s32.totalorder %s30, 0
      %p360 = por %p358, %p359
      %p361 = scmp.le.s32.totalorder 1, %s24
      %p362 = scmp.lt.s32.totalorder %s24, 3
      %p363 = pnand %p361, %p362
      %p364 = pneg %p363
      // Predicated region
      $region9: #{tpu_custom_call.1} parent=5 // pred_check
        _
      $region10: #{tpu_custom_call.1} parent=5 // pred_check_branch
        %366 = sbr.rel (%p363) target = $region12
      $region11: #{tpu_custom_call.1} parent=5 // pred_region
        %s367 = ssub.s32 %s24, 1
        // Predicated region
        $region13: #{tpu_custom_call.1} parent=11 // pred_check
          %p368 = pneg %p45
        $region14: #{tpu_custom_call.1} parent=11 // pred_check_branch
          %370 = sbr.rel (%p368) target = $region16
        $region15: #{tpu_custom_call.1} parent=11 // pred_region
          %372 = vsyncadd [#allocation4], 0
          %s374 = sshll.u32 %s0, 4
          %s375 = int_to_ptr.hbm [resolvable:$true] %s374
          %s376 = sshll.u32 [#allocation3], 4
          %s377 = int_to_ptr.vmem [resolvable:$true] %s376
          %379 = dma.hbm_to_vmem [thread:$0]  %s375, 1024, %s377, [#allocation4]
        $region16: #{tpu_custom_call.1} parent=11 // pred_fallthru
          _
        // Predicated region
        $region17: #{tpu_custom_call.1} parent=11 // pred_check
          %p380 = pneg %p66
        $region18: #{tpu_custom_call.1} parent=11 // pred_check_branch
          %382 = sbr.rel (%p380) target = $region20
        $region19: #{tpu_custom_call.1} parent=11 // pred_region
          %384 = vsyncadd [#allocation7], 0
          %s386 = sshll.u32 %s1, 4
          %s387 = int_to_ptr.hbm [resolvable:$true] %s386
          %s388 = sshll.u32 [#allocation6], 4
          %s389 = int_to_ptr.vmem [resolvable:$true] %s388
          %391 = dma.hbm_to_vmem [thread:$0]  %s387, 1024, %s389, [#allocation7]
        $region20: #{tpu_custom_call.1} parent=11 // pred_fallthru
          _
        // Predicated region
        $region21: #{tpu_custom_call.1} parent=11 // pred_check
          %p392 = pneg %p269
        $region22: #{tpu_custom_call.1} parent=11 // pred_check_branch
          %394 = sbr.rel (%p392) target = $region24
        $region23: #{tpu_custom_call.1} parent=11 // pred_region
          %396 = vsyncadd [#allocation7], 0
          %s398 = sshll.u32 %s9, 4
          %s399 = int_to_ptr.hbm [resolvable:$true] %s398
          %s400 = sshll.u32 [#allocation15], 4
          %s401 = int_to_ptr.vmem [resolvable:$true] %s400
          %403 = dma.hbm_to_vmem [thread:$0]  %s399, 64, %s401, [#allocation7]
        $region24: #{tpu_custom_call.1} parent=11 // pred_fallthru
          _
        // Predicated region
        $region25: #{tpu_custom_call.1} parent=11 // pred_check
          %p404 = pneg %p290
        $region26: #{tpu_custom_call.1} parent=11 // pred_check_branch
          %406 = sbr.rel (%p404) target = $region28
        $region27: #{tpu_custom_call.1} parent=11 // pred_region
          %408 = vsyncadd [#allocation17], 0
          %s410 = sshll.u32 %s10, 4
          %s411 = int_to_ptr.hbm [resolvable:$true] %s410
          %s412 = sshll.u32 [#allocation16], 4
          %s413 = int_to_ptr.vmem [resolvable:$true] %s412
          %415 = dma.hbm_to_vmem [thread:$0]  %s411, 64, %s413, [#allocation17]
        $region28: #{tpu_custom_call.1} parent=11 // pred_fallthru
          _
        // Predicated region
        $region29: #{tpu_custom_call.1} parent=11 // pred_check
          %p416 = pneg %p311
        $region30: #{tpu_custom_call.1} parent=11 // pred_check_branch
          %418 = sbr.rel (%p416) target = $region32
        $region31: #{tpu_custom_call.1} parent=11 // pred_region
          %420 = vsyncadd [#allocation17], 0
          %s421 = sshll.u32 %s11, 4
          %s422 = int_to_ptr.hbm [resolvable:$true] %s421
          %s423 = sshll.u32 [#allocation18], 4
          %s424 = int_to_ptr.vmem [resolvable:$true] %s423
          %429 = dma.hbm_to_vmem [thread:$0]  %s422, 4096, %s424, [#allocation17], 64, 64, 4
        $region32: #{tpu_custom_call.1} parent=11 // pred_fallthru
          _
        // Predicated region
        $region33: #{tpu_custom_call.1} parent=11 // pred_check
          %p430 = pneg %p332
        $region34: #{tpu_custom_call.1} parent=11 // pred_check_branch
          %432 = sbr.rel (%p430) target = $region36
        $region35: #{tpu_custom_call.1} parent=11 // pred_region
          %434 = vsyncadd [#allocation20], 0
          %s436 = sshll.u32 %s12, 4
          %s437 = int_to_ptr.hbm [resolvable:$true] %s436
          %s438 = sshll.u32 [#allocation19], 4
          %s439 = int_to_ptr.vmem [resolvable:$true] %s438
          %441 = dma.hbm_to_vmem [thread:$0]  %s437, 16, %s439, [#allocation20]
        $region36: #{tpu_custom_call.1} parent=11 // pred_fallthru
          _
      $region12: #{tpu_custom_call.1} parent=5 // pred_fallthru
        _
      %p442 = scmp.lt.s32.totalorder %s24, 2
      // Predicated region
      $region37: #{tpu_custom_call.1} parent=5 // pred_check
        %p443 = pneg %p442
      $region38: #{tpu_custom_call.1} parent=5 // pred_check_branch
        %445 = sbr.rel (%p443) target = $region40
      $region39: #{tpu_custom_call.1} parent=5 // pred_region
        // Predicated region
        $region41: #{tpu_custom_call.1} parent=39 // pred_check
          %p446 = pneg %p86
        $region42: #{tpu_custom_call.1} parent=39 // pred_check_branch
          %448 = sbr.rel (%p446) target = $region44
        $region43: #{tpu_custom_call.1} parent=39 // pred_region
          %s449 = sand.u32 %s24, 1
          %s450 = scalar_lea.sflag [#allocation4], %s449
          %s451 = sand.u32 %s76, 1
          %s452 = smul.addr %s451, 2048
          %s453 = scalar_lea.vmem [#allocation8], %s452
          %s454 = smul.u32 4, %s24
          %456 = vsyncadd %s450, 0
          %s457 = smul.addr %s454, 8
          %s458 = scalar_lea.hbm %s2, %s457
          %s459 = sshll.u32 %s458, 4
          %s460 = int_to_ptr.hbm [resolvable:$true] %s459
          %s461 = sshll.u32 %s453, 4
          %s462 = int_to_ptr.vmem [resolvable:$true] %s461
          %467 = dma.hbm_to_vmem [thread:$0]  %s460, 32768, %s462, %s450, 1024, 512, 32
        $region44: #{tpu_custom_call.1} parent=39 // pred_fallthru
          _
        // Predicated region
        $region45: #{tpu_custom_call.1} parent=39 // pred_check
          %p468 = pneg %p112
        $region46: #{tpu_custom_call.1} parent=39 // pred_check_branch
          %470 = sbr.rel (%p468) target = $region48
        $region47: #{tpu_custom_call.1} parent=39 // pred_region
          %s471 = sand.u32 %s24, 1
          %s472 = scalar_lea.sflag [#allocation4], %s471
          %s473 = sand.u32 %s102, 1
          %s474 = smul.addr %s473, 4
          %s475 = scalar_lea.vmem [#allocation9], %s474
          %s476 = smul.u32 4, %s24
          %478 = vsyncadd %s472, 0
          %s479 = scalar_lea.hbm %s3, %s476
          %s481 = sshll.u32 %s479, 4
          %s482 = int_to_ptr.hbm [resolvable:$true] %s481
          %s483 = sshll.u32 %s475, 4
          %s484 = int_to_ptr.vmem [resolvable:$true] %s483
          %486 = dma.hbm_to_vmem [thread:$0]  %s482, 64, %s484, %s472
        $region48: #{tpu_custom_call.1} parent=39 // pred_fallthru
          _
        // Predicated region
        $region49: #{tpu_custom_call.1} parent=39 // pred_check
          %p487 = pneg %p138
        $region50: #{tpu_custom_call.1} parent=39 // pred_check_branch
          %489 = sbr.rel (%p487) target = $region52
        $region51: #{tpu_custom_call.1} parent=39 // pred_region
          %s490 = sand.u32 %s24, 1
          %s491 = scalar_lea.sflag [#allocation4], %s490
          %s492 = sand.u32 %s128, 1
          %s493 = smul.addr %s492, 4
          %s494 = scalar_lea.vmem [#allocation10], %s493
          %s495 = smul.u32 4, %s24
          %497 = vsyncadd %s491, 0
          %s498 = scalar_lea.hbm %s4, %s495
          %s500 = sshll.u32 %s498, 4
          %s501 = int_to_ptr.hbm [resolvable:$true] %s500
          %s502 = sshll.u32 %s494, 4
          %s503 = int_to_ptr.vmem [resolvable:$true] %s502
          %505 = dma.hbm_to_vmem [thread:$0]  %s501, 64, %s503, %s491
        $region52: #{tpu_custom_call.1} parent=39 // pred_fallthru
          _
        // Predicated region
        $region53: #{tpu_custom_call.1} parent=39 // pred_check
          %p506 = pneg %p164
        $region54: #{tpu_custom_call.1} parent=39 // pred_check_branch
          %508 = sbr.rel (%p506) target = $region56
        $region55: #{tpu_custom_call.1} parent=39 // pred_region
          %s509 = sand.u32 %s24, 1
          %s510 = scalar_lea.sflag [#allocation4], %s509
          %s511 = sand.u32 %s154, 1
          %s512 = smul.addr %s511, 2048
          %s513 = scalar_lea.vmem [#allocation11], %s512
          %s514 = smul.u32 4, %s24
          %516 = vsyncadd %s510, 0
          %s517 = smul.addr %s514, 8
          %s518 = scalar_lea.hbm %s5, %s517
          %s519 = sshll.u32 %s518, 4
          %s520 = int_to_ptr.hbm [resolvable:$true] %s519
          %s521 = sshll.u32 %s513, 4
          %s522 = int_to_ptr.vmem [resolvable:$true] %s521
          %527 = dma.hbm_to_vmem [thread:$0]  %s520, 32768, %s522, %s510, 1024, 512, 32
        $region56: #{tpu_custom_call.1} parent=39 // pred_fallthru
          _
        // Predicated region
        $region57: #{tpu_custom_call.1} parent=39 // pred_check
          %p528 = pneg %p190
        $region58: #{tpu_custom_call.1} parent=39 // pred_check_branch
          %530 = sbr.rel (%p528) target = $region60
        $region59: #{tpu_custom_call.1} parent=39 // pred_region
          %s531 = sand.u32 %s24, 1
          %s532 = scalar_lea.sflag [#allocation4], %s531
          %s533 = sand.u32 %s180, 1
          %s534 = smul.addr %s533, 4
          %s535 = scalar_lea.vmem [#allocation12], %s534
          %s536 = smul.u32 4, %s24
          %538 = vsyncadd %s532, 0
          %s539 = scalar_lea.hbm %s6, %s536
          %s541 = sshll.u32 %s539, 4
          %s542 = int_to_ptr.hbm [resolvable:$true] %s541
          %s543 = sshll.u32 %s535, 4
          %s544 = int_to_ptr.vmem [resolvable:$true] %s543
          %546 = dma.hbm_to_vmem [thread:$0]  %s542, 64, %s544, %s532
        $region60: #{tpu_custom_call.1} parent=39 // pred_fallthru
          _
        // Predicated region
        $region61: #{tpu_custom_call.1} parent=39 // pred_check
          %p547 = pneg %p216
        $region62: #{tpu_custom_call.1} parent=39 // pred_check_branch
          %549 = sbr.rel (%p547) target = $region64
        $region63: #{tpu_custom_call.1} parent=39 // pred_region
          %s550 = sand.u32 %s24, 1
          %s551 = scalar_lea.sflag [#allocation4], %s550
          %s552 = sand.u32 %s206, 1
          %s553 = smul.addr %s552, 4
          %s554 = scalar_lea.vmem [#allocation13], %s553
          %s555 = smul.u32 4, %s24
          %557 = vsyncadd %s551, 0
          %s558 = scalar_lea.hbm %s7, %s555
          %s560 = sshll.u32 %s558, 4
          %s561 = int_to_ptr.hbm [resolvable:$true] %s560
          %s562 = sshll.u32 %s554, 4
          %s563 = int_to_ptr.vmem [resolvable:$true] %s562
          %565 = dma.hbm_to_vmem [thread:$0]  %s561, 64, %s563, %s551
        $region64: #{tpu_custom_call.1} parent=39 // pred_fallthru
          _
        // Predicated region
        $region65: #{tpu_custom_call.1} parent=39 // pred_check
          %p566 = pneg %p242
        $region66: #{tpu_custom_call.1} parent=39 // pred_check_branch
          %568 = sbr.rel (%p566) target = $region68
        $region67: #{tpu_custom_call.1} parent=39 // pred_region
          %s569 = sand.u32 %s24, 1
          %s570 = scalar_lea.sflag [#allocation4], %s569
          %s571 = sand.u32 %s232, 1
          %s572 = smul.addr %s571, 1024
          %s573 = scalar_lea.vmem [#allocation14], %s572
          %s574 = smul.u32 32, %s24
          %576 = vsyncadd %s570, 0
          %s577 = smul.addr %s574, 4
          %s578 = smul.addr %s577, 8
          %s579 = scalar_lea.hbm %s8, %s578
          %s580 = sshll.u32 %s579, 4
          %s581 = int_to_ptr.hbm [resolvable:$true] %s580
          %s582 = sshll.u32 %s573, 4
          %s583 = int_to_ptr.vmem [resolvable:$true] %s582
          %588 = dma.hbm_to_vmem [thread:$0]  %s581, 16384, %s583, %s570, 512, 512, 32
        $region68: #{tpu_custom_call.1} parent=39 // pred_fallthru
          _
      $region40: #{tpu_custom_call.1} parent=5 // pred_fallthru
        _
      %p589 = scmp.le.s32.totalorder 1, %s24
      %p590 = scmp.lt.s32.totalorder %s24, 3
      %p591 = pnand %p589, %p590
      %p592 = pneg %p591
      // Predicated region
      $region69: #{tpu_custom_call.1} parent=5 // pred_check
        _
      $region70: #{tpu_custom_call.1} parent=5 // pred_check_branch
        %594 = sbr.rel (%p591) target = $region72
      $region71: #{tpu_custom_call.1} parent=5 // pred_region
        %s595 = ssub.s32 %s24, 1
        // Predicated region
        $region73: #{tpu_custom_call.1} parent=71 // pred_check
          %p596 = pneg %p45
        $region74: #{tpu_custom_call.1} parent=71 // pred_check_branch
          %598 = sbr.rel (%p596) target = $region76
        $region75: #{tpu_custom_call.1} parent=71 // pred_region
          %600 = dma.done [#allocation4], 1024
        $region76: #{tpu_custom_call.1} parent=71 // pred_fallthru
          _
        // Predicated region
        $region77: #{tpu_custom_call.1} parent=71 // pred_check
          %p601 = pneg %p66
        $region78: #{tpu_custom_call.1} parent=71 // pred_check_branch
          %603 = sbr.rel (%p601) target = $region80
        $region79: #{tpu_custom_call.1} parent=71 // pred_region
          %605 = dma.done [#allocation7], 1024
        $region80: #{tpu_custom_call.1} parent=71 // pred_fallthru
          _
        %s606 = sand.u32 %s29, 1
        %s607 = scalar_lea.sflag [#allocation4], %s606
        %s608 = sand.u32 %s79, 1
        %s609 = smul.addr %s608, 2048
        %s610 = scalar_lea.vmem [#allocation8], %s609
        // Predicated region
        $region81: #{tpu_custom_call.1} parent=71 // pred_check
          %p611 = pneg %p92
        $region82: #{tpu_custom_call.1} parent=71 // pred_check_branch
          %613 = sbr.rel (%p611) target = $region84
        $region83: #{tpu_custom_call.1} parent=71 // pred_region
          %615 = dma.done %s607, 32768
        $region84: #{tpu_custom_call.1} parent=71 // pred_fallthru
          _
        %s616 = sand.u32 %s29, 1
        %s617 = scalar_lea.sflag [#allocation4], %s616
        %s618 = sand.u32 %s105, 1
        %s619 = smul.addr %s618, 4
        %s620 = scalar_lea.vmem [#allocation9], %s619
        // Predicated region
        $region85: #{tpu_custom_call.1} parent=71 // pred_check
          %p621 = pneg %p118
        $region86: #{tpu_custom_call.1} parent=71 // pred_check_branch
          %623 = sbr.rel (%p621) target = $region88
        $region87: #{tpu_custom_call.1} parent=71 // pred_region
          %625 = dma.done %s617, 64
        $region88: #{tpu_custom_call.1} parent=71 // pred_fallthru
          _
        %s626 = sand.u32 %s29, 1
        %s627 = scalar_lea.sflag [#allocation4], %s626
        %s628 = sand.u32 %s131, 1
        %s629 = smul.addr %s628, 4
        %s630 = scalar_lea.vmem [#allocation10], %s629
        // Predicated region
        $region89: #{tpu_custom_call.1} parent=71 // pred_check
          %p631 = pneg %p144
        $region90: #{tpu_custom_call.1} parent=71 // pred_check_branch
          %633 = sbr.rel (%p631) target = $region92
        $region91: #{tpu_custom_call.1} parent=71 // pred_region
          %635 = dma.done %s627, 64
        $region92: #{tpu_custom_call.1} parent=71 // pred_fallthru
          _
        %s636 = sand.u32 %s29, 1
        %s637 = scalar_lea.sflag [#allocation4], %s636
        %s638 = sand.u32 %s157, 1
        %s639 = smul.addr %s638, 2048
        %s640 = scalar_lea.vmem [#allocation11], %s639
        // Predicated region
        $region93: #{tpu_custom_call.1} parent=71 // pred_check
          %p641 = pneg %p170
        $region94: #{tpu_custom_call.1} parent=71 // pred_check_branch
          %643 = sbr.rel (%p641) target = $region96
        $region95: #{tpu_custom_call.1} parent=71 // pred_region
          %645 = dma.done %s637, 32768
        $region96: #{tpu_custom_call.1} parent=71 // pred_fallthru
          _
        %s646 = sand.u32 %s29, 1
        %s647 = scalar_lea.sflag [#allocation4], %s646
        %s648 = sand.u32 %s183, 1
        %s649 = smul.addr %s648, 4
        %s650 = scalar_lea.vmem [#allocation12], %s649
        // Predicated region
        $region97: #{tpu_custom_call.1} parent=71 // pred_check
          %p651 = pneg %p196
        $region98: #{tpu_custom_call.1} parent=71 // pred_check_branch
          %653 = sbr.rel (%p651) target = $region100
        $region99: #{tpu_custom_call.1} parent=71 // pred_region
          %655 = dma.done %s647, 64
        $region100: #{tpu_custom_call.1} parent=71 // pred_fallthru
          _
        %s656 = sand.u32 %s29, 1
        %s657 = scalar_lea.sflag [#allocation4], %s656
        %s658 = sand.u32 %s209, 1
        %s659 = smul.addr %s658, 4
        %s660 = scalar_lea.vmem [#allocation13], %s659
        // Predicated region
        $region101: #{tpu_custom_call.1} parent=71 // pred_check
          %p661 = pneg %p222
        $region102: #{tpu_custom_call.1} parent=71 // pred_check_branch
          %663 = sbr.rel (%p661) target = $region104
        $region103: #{tpu_custom_call.1} parent=71 // pred_region
          %665 = dma.done %s657, 64
        $region104: #{tpu_custom_call.1} parent=71 // pred_fallthru
          _
        %s666 = sand.u32 %s29, 1
        %s667 = scalar_lea.sflag [#allocation4], %s666
        %s668 = sand.u32 %s235, 1
        %s669 = smul.addr %s668, 1024
        %s670 = scalar_lea.vmem [#allocation14], %s669
        // Predicated region
        $region105: #{tpu_custom_call.1} parent=71 // pred_check
          %p671 = pneg %p248
        $region106: #{tpu_custom_call.1} parent=71 // pred_check_branch
          %673 = sbr.rel (%p671) target = $region108
        $region107: #{tpu_custom_call.1} parent=71 // pred_region
          %675 = dma.done %s667, 16384
        $region108: #{tpu_custom_call.1} parent=71 // pred_fallthru
          _
        // Predicated region
        $region109: #{tpu_custom_call.1} parent=71 // pred_check
          %p676 = pneg %p269
        $region110: #{tpu_custom_call.1} parent=71 // pred_check_branch
          %678 = sbr.rel (%p676) target = $region112
        $region111: #{tpu_custom_call.1} parent=71 // pred_region
          %680 = dma.done [#allocation7], 64
        $region112: #{tpu_custom_call.1} parent=71 // pred_fallthru
          _
        // Predicated region
        $region113: #{tpu_custom_call.1} parent=71 // pred_check
          %p681 = pneg %p290
        $region114: #{tpu_custom_call.1} parent=71 // pred_check_branch
          %683 = sbr.rel (%p681) target = $region116
        $region115: #{tpu_custom_call.1} parent=71 // pred_region
          %685 = dma.done [#allocation17], 64
        $region116: #{tpu_custom_call.1} parent=71 // pred_fallthru
          _
        // Predicated region
        $region117: #{tpu_custom_call.1} parent=71 // pred_check
          %p686 = pneg %p311
        $region118: #{tpu_custom_call.1} parent=71 // pred_check_branch
          %688 = sbr.rel (%p686) target = $region120
        $region119: #{tpu_custom_call.1} parent=71 // pred_region
          %690 = dma.done [#allocation17], 4096
        $region120: #{tpu_custom_call.1} parent=71 // pred_fallthru
          _
        // Predicated region
        $region121: #{tpu_custom_call.1} parent=71 // pred_check
          %p691 = pneg %p332
        $region122: #{tpu_custom_call.1} parent=71 // pred_check_branch
          %693 = sbr.rel (%p691) target = $region124
        $region123: #{tpu_custom_call.1} parent=71 // pred_region
          %695 = dma.done [#allocation20], 16
        $region124: #{tpu_custom_call.1} parent=71 // pred_fallthru
          _
        %p696 = pneg %p45
        %p697 = pneg %p42
        %p698 = pneg %p66
        %p699 = pneg %p63
        %s700 = sand.u32 %s29, 1
        %s701 = scalar_lea.sflag [#allocation4], %s700
        %s702 = sand.u32 %s79, 1
        %s703 = smul.addr %s702, 2048
        %s704 = scalar_lea.vmem [#allocation8], %s703
        %p705 = pneg %p92
        %p706 = pneg %p89
        %s707 = sand.u32 %s29, 1
        %s708 = scalar_lea.sflag [#allocation4], %s707
        %s709 = sand.u32 %s105, 1
        %s710 = smul.addr %s709, 4
        %s711 = scalar_lea.vmem [#allocation9], %s710
        %p712 = pneg %p118
        %p713 = pneg %p115
        %s714 = sand.u32 %s29, 1
        %s715 = scalar_lea.sflag [#allocation4], %s714
        %s716 = sand.u32 %s131, 1
        %s717 = smul.addr %s716, 4
        %s718 = scalar_lea.vmem [#allocation10], %s717
        %p719 = pneg %p144
        %p720 = pneg %p141
        %s721 = sand.u32 %s29, 1
        %s722 = scalar_lea.sflag [#allocation4], %s721
        %s723 = sand.u32 %s157, 1
        %s724 = smul.addr %s723, 2048
        %s725 = scalar_lea.vmem [#allocation11], %s724
        %p726 = pneg %p170
        %p727 = pneg %p167
        %s728 = sand.u32 %s29, 1
        %s729 = scalar_lea.sflag [#allocation4], %s728
        %s730 = sand.u32 %s183, 1
        %s731 = smul.addr %s730, 4
        %s732 = scalar_lea.vmem [#allocation12], %s731
        %p733 = pneg %p196
        %p734 = pneg %p193
        %s735 = sand.u32 %s29, 1
        %s736 = scalar_lea.sflag [#allocation4], %s735
        %s737 = sand.u32 %s209, 1
        %s738 = smul.addr %s737, 4
        %s739 = scalar_lea.vmem [#allocation13], %s738
        %p740 = pneg %p222
        %p741 = pneg %p219
        %s742 = sand.u32 %s29, 1
        %s743 = scalar_lea.sflag [#allocation4], %s742
        %s744 = sand.u32 %s235, 1
        %s745 = smul.addr %s744, 1024
        %s746 = scalar_lea.vmem [#allocation14], %s745
        %p747 = pneg %p248
        %p748 = pneg %p245
        %p749 = pneg %p269
        %p750 = pneg %p266
        %p751 = pneg %p290
        %p752 = pneg %p287
        %p753 = pneg %p311
        %p754 = pneg %p308
        %p755 = pneg %p332
        %p756 = pneg %p329
        %p757 = pneg %p353
        %p758 = pneg %p350
        %s759 = smul.u32 4, %s29
        %s760 = smul.u32 4, %s29
        %s761 = smul.u32 4, %s29
        %s762 = smul.u32 4, %s29
        %s763 = smul.u32 4, %s29
        %s764 = smul.u32 4, %s29
        %s765 = smul.u32 32, %s29
        %p766 = scmp.eq.s32.totalorder %s29, 0
        // Predicated region
        $region125: #{tpu_custom_call.1} parent=71 // pred_check
          %p767 = pneg %p766
        $region126: #{tpu_custom_call.1} parent=71 // pred_check_branch
          %769 = sbr.rel (%p767) target = $region128
        $region127: #{tpu_custom_call.1} parent=71 // pred_region
          %770 = vst [vmem:[#allocation2] sm:$0xff] 0.0
          %771 = vst [vmem:[#allocation2 + $0x8] sm:$0xff] 0.0
          %772 = vst [vmem:[#allocation2 + $0x10] sm:$0xff] 0.0
          %773 = vst [vmem:[#allocation2 + $0x18] sm:$0xff] 0.0
        $region128: #{tpu_custom_call.1} parent=71 // pred_fallthru
          _
        %v774 = vld [vmem:[#allocation3] sm:$0xff]
        %v775 = vld [vmem:[#allocation3 + $0x8] sm:$0xff]
        %v776 = vld [vmem:[#allocation3 + $0x10] sm:$0xff]
        %v777 = vld [vmem:[#allocation3 + $0x18] sm:$0xff]
        %v778 = vld [vmem:[#allocation3 + $0x20] sm:$0xff]
        %v779 = vld [vmem:[#allocation3 + $0x28] sm:$0xff]
        %v780 = vld [vmem:[#allocation3 + $0x30] sm:$0xff]
        %v781 = vld [vmem:[#allocation3 + $0x38] sm:$0xff]
        %v782 = vld [vmem:[#allocation6] sm:$0xff]
        %v783 = vld [vmem:[#allocation6 + $0x8] sm:$0xff]
        %v784 = vld [vmem:[#allocation6 + $0x10] sm:$0xff]
        %v785 = vld [vmem:[#allocation6 + $0x18] sm:$0xff]
        %v786 = vld [vmem:[#allocation6 + $0x20] sm:$0xff]
        %v787 = vld [vmem:[#allocation6 + $0x28] sm:$0xff]
        %v788 = vld [vmem:[#allocation6 + $0x30] sm:$0xff]
        %v789 = vld [vmem:[#allocation6 + $0x38] sm:$0xff]
        %v790 = vld [vmem:[%s610] sm:$0xff]
        %v791 = vld [vmem:[%s610 + $0x8] sm:$0xff]
        %v792 = vld [vmem:[%s610 + $0x10] sm:$0xff]
        %v793 = vld [vmem:[%s610 + $0x18] sm:$0xff]
        %v794 = vld [vmem:[%s610 + $0x20] sm:$0xff]
        %v795 = vld [vmem:[%s610 + $0x28] sm:$0xff]
        %v796 = vld [vmem:[%s610 + $0x30] sm:$0xff]
        %v797 = vld [vmem:[%s610 + $0x38] sm:$0xff]
        %v798 = vld [vmem:[%s610 + $0x40] sm:$0xff]
        %v799 = vld [vmem:[%s610 + $0x48] sm:$0xff]
        %v800 = vld [vmem:[%s610 + $0x50] sm:$0xff]
        %v801 = vld [vmem:[%s610 + $0x58] sm:$0xff]
        %v802 = vld [vmem:[%s610 + $0x60] sm:$0xff]
        %v803 = vld [vmem:[%s610 + $0x68] sm:$0xff]
        %v804 = vld [vmem:[%s610 + $0x70] sm:$0xff]
        %v805 = vld [vmem:[%s610 + $0x78] sm:$0xff]
        %v806 = vld [vmem:[%s610 + $0x80] sm:$0xff]
        %v807 = vld [vmem:[%s610 + $0x88] sm:$0xff]
        %v808 = vld [vmem:[%s610 + $0x90] sm:$0xff]
        %v809 = vld [vmem:[%s610 + $0x98] sm:$0xff]
        %v810 = vld [vmem:[%s610 + $0xa0] sm:$0xff]
        %v811 = vld [vmem:[%s610 + $0xa8] sm:$0xff]
        %v812 = vld [vmem:[%s610 + $0xb0] sm:$0xff]
        %v813 = vld [vmem:[%s610 + $0xb8] sm:$0xff]
        %v814 = vld [vmem:[%s610 + $0xc0] sm:$0xff]
        %v815 = vld [vmem:[%s610 + $0xc8] sm:$0xff]
        %v816 = vld [vmem:[%s610 + $0xd0] sm:$0xff]
        %v817 = vld [vmem:[%s610 + $0xd8] sm:$0xff]
        %v818 = vld [vmem:[%s610 + $0xe0] sm:$0xff]
        %v819 = vld [vmem:[%s610 + $0xe8] sm:$0xff]
        %v820 = vld [vmem:[%s610 + $0xf0] sm:$0xff]
        %v821 = vld [vmem:[%s610 + $0xf8] sm:$0xff]
        %v822 = vld [vmem:[%s610 + $0x100] sm:$0xff]
        %v823 = vld [vmem:[%s610 + $0x108] sm:$0xff]
        %v824 = vld [vmem:[%s610 + $0x110] sm:$0xff]
        %v825 = vld [vmem:[%s610 + $0x118] sm:$0xff]
        %v826 = vld [vmem:[%s610 + $0x120] sm:$0xff]
        %v827 = vld [vmem:[%s610 + $0x128] sm:$0xff]
        %v828 = vld [vmem:[%s610 + $0x130] sm:$0xff]
        %v829 = vld [vmem:[%s610 + $0x138] sm:$0xff]
        %v830 = vld [vmem:[%s610 + $0x140] sm:$0xff]
        %v831 = vld [vmem:[%s610 + $0x148] sm:$0xff]
        %v832 = vld [vmem:[%s610 + $0x150] sm:$0xff]
        %v833 = vld [vmem:[%s610 + $0x158] sm:$0xff]
        %v834 = vld [vmem:[%s610 + $0x160] sm:$0xff]
        %v835 = vld [vmem:[%s610 + $0x168] sm:$0xff]
        %v836 = vld [vmem:[%s610 + $0x170] sm:$0xff]
        %v837 = vld [vmem:[%s610 + $0x178] sm:$0xff]
        %v838 = vld [vmem:[%s610 + $0x180] sm:$0xff]
        %v839 = vld [vmem:[%s610 + $0x188] sm:$0xff]
        %v840 = vld [vmem:[%s610 + $0x190] sm:$0xff]
        %v841 = vld [vmem:[%s610 + $0x198] sm:$0xff]
        %v842 = vld [vmem:[%s610 + $0x1a0] sm:$0xff]
        %v843 = vld [vmem:[%s610 + $0x1a8] sm:$0xff]
        %v844 = vld [vmem:[%s610 + $0x1b0] sm:$0xff]
        %v845 = vld [vmem:[%s610 + $0x1b8] sm:$0xff]
        %v846 = vld [vmem:[%s610 + $0x1c0] sm:$0xff]
        %v847 = vld [vmem:[%s610 + $0x1c8] sm:$0xff]
        %v848 = vld [vmem:[%s610 + $0x1d0] sm:$0xff]
        %v849 = vld [vmem:[%s610 + $0x1d8] sm:$0xff]
        %v850 = vld [vmem:[%s610 + $0x1e0] sm:$0xff]
        %v851 = vld [vmem:[%s610 + $0x1e8] sm:$0xff]
        %v852 = vld [vmem:[%s610 + $0x1f0] sm:$0xff]
        %v853 = vld [vmem:[%s610 + $0x1f8] sm:$0xff]
        %v854 = vld [vmem:[%s610 + $0x200] sm:$0xff]
        %v855 = vld [vmem:[%s610 + $0x208] sm:$0xff]
        %v856 = vld [vmem:[%s610 + $0x210] sm:$0xff]
        %v857 = vld [vmem:[%s610 + $0x218] sm:$0xff]
        %v858 = vld [vmem:[%s610 + $0x220] sm:$0xff]
        %v859 = vld [vmem:[%s610 + $0x228] sm:$0xff]
        %v860 = vld [vmem:[%s610 + $0x230] sm:$0xff]
        %v861 = vld [vmem:[%s610 + $0x238] sm:$0xff]
        %v862 = vld [vmem:[%s610 + $0x240] sm:$0xff]
        %v863 = vld [vmem:[%s610 + $0x248] sm:$0xff]
        %v864 = vld [vmem:[%s610 + $0x250] sm:$0xff]
        %v865 = vld [vmem:[%s610 + $0x258] sm:$0xff]
        %v866 = vld [vmem:[%s610 + $0x260] sm:$0xff]
        %v867 = vld [vmem:[%s610 + $0x268] sm:$0xff]
        %v868 = vld [vmem:[%s610 + $0x270] sm:$0xff]
        %v869 = vld [vmem:[%s610 + $0x278] sm:$0xff]
        %v870 = vld [vmem:[%s610 + $0x280] sm:$0xff]
        %v871 = vld [vmem:[%s610 + $0x288] sm:$0xff]
        %v872 = vld [vmem:[%s610 + $0x290] sm:$0xff]
        %v873 = vld [vmem:[%s610 + $0x298] sm:$0xff]
        %v874 = vld [vmem:[%s610 + $0x2a0] sm:$0xff]
        %v875 = vld [vmem:[%s610 + $0x2a8] sm:$0xff]
        %v876 = vld [vmem:[%s610 + $0x2b0] sm:$0xff]
        %v877 = vld [vmem:[%s610 + $0x2b8] sm:$0xff]
        %v878 = vld [vmem:[%s610 + $0x2c0] sm:$0xff]
        %v879 = vld [vmem:[%s610 + $0x2c8] sm:$0xff]
        %v880 = vld [vmem:[%s610 + $0x2d0] sm:$0xff]
        %v881 = vld [vmem:[%s610 + $0x2d8] sm:$0xff]
        %v882 = vld [vmem:[%s610 + $0x2e0] sm:$0xff]
        %v883 = vld [vmem:[%s610 + $0x2e8] sm:$0xff]
        %v884 = vld [vmem:[%s610 + $0x2f0] sm:$0xff]
        %v885 = vld [vmem:[%s610 + $0x2f8] sm:$0xff]
        %v886 = vld [vmem:[%s610 + $0x300] sm:$0xff]
        %v887 = vld [vmem:[%s610 + $0x308] sm:$0xff]
        %v888 = vld [vmem:[%s610 + $0x310] sm:$0xff]
        %v889 = vld [vmem:[%s610 + $0x318] sm:$0xff]
        %v890 = vld [vmem:[%s610 + $0x320] sm:$0xff]
        %v891 = vld [vmem:[%s610 + $0x328] sm:$0xff]
        %v892 = vld [vmem:[%s610 + $0x330] sm:$0xff]
        %v893 = vld [vmem:[%s610 + $0x338] sm:$0xff]
        %v894 = vld [vmem:[%s610 + $0x340] sm:$0xff]
        %v895 = vld [vmem:[%s610 + $0x348] sm:$0xff]
        %v896 = vld [vmem:[%s610 + $0x350] sm:$0xff]
        %v897 = vld [vmem:[%s610 + $0x358] sm:$0xff]
        %v898 = vld [vmem:[%s610 + $0x360] sm:$0xff]
        %v899 = vld [vmem:[%s610 + $0x368] sm:$0xff]
        %v900 = vld [vmem:[%s610 + $0x370] sm:$0xff]
        %v901 = vld [vmem:[%s610 + $0x378] sm:$0xff]
        %v902 = vld [vmem:[%s610 + $0x380] sm:$0xff]
        %v903 = vld [vmem:[%s610 + $0x388] sm:$0xff]
        %v904 = vld [vmem:[%s610 + $0x390] sm:$0xff]
        %v905 = vld [vmem:[%s610 + $0x398] sm:$0xff]
        %v906 = vld [vmem:[%s610 + $0x3a0] sm:$0xff]
        %v907 = vld [vmem:[%s610 + $0x3a8] sm:$0xff]
        %v908 = vld [vmem:[%s610 + $0x3b0] sm:$0xff]
        %v909 = vld [vmem:[%s610 + $0x3b8] sm:$0xff]
        %v910 = vld [vmem:[%s610 + $0x3c0] sm:$0xff]
        %v911 = vld [vmem:[%s610 + $0x3c8] sm:$0xff]
        %v912 = vld [vmem:[%s610 + $0x3d0] sm:$0xff]
        %v913 = vld [vmem:[%s610 + $0x3d8] sm:$0xff]
        %v914 = vld [vmem:[%s610 + $0x3e0] sm:$0xff]
        %v915 = vld [vmem:[%s610 + $0x3e8] sm:$0xff]
        %v916 = vld [vmem:[%s610 + $0x3f0] sm:$0xff]
        %v917 = vld [vmem:[%s610 + $0x3f8] sm:$0xff]
        %v918 = vld [vmem:[%s610 + $0x400] sm:$0xff]
        %v919 = vld [vmem:[%s610 + $0x408] sm:$0xff]
        %v920 = vld [vmem:[%s610 + $0x410] sm:$0xff]
        %v921 = vld [vmem:[%s610 + $0x418] sm:$0xff]
        %v922 = vld [vmem:[%s610 + $0x420] sm:$0xff]
        %v923 = vld [vmem:[%s610 + $0x428] sm:$0xff]
        %v924 = vld [vmem:[%s610 + $0x430] sm:$0xff]
        %v925 = vld [vmem:[%s610 + $0x438] sm:$0xff]
        %v926 = vld [vmem:[%s610 + $0x440] sm:$0xff]
        %v927 = vld [vmem:[%s610 + $0x448] sm:$0xff]
        %v928 = vld [vmem:[%s610 + $0x450] sm:$0xff]
        %v929 = vld [vmem:[%s610 + $0x458] sm:$0xff]
        %v930 = vld [vmem:[%s610 + $0x460] sm:$0xff]
        %v931 = vld [vmem:[%s610 + $0x468] sm:$0xff]
        %v932 = vld [vmem:[%s610 + $0x470] sm:$0xff]
        %v933 = vld [vmem:[%s610 + $0x478] sm:$0xff]
        %v934 = vld [vmem:[%s610 + $0x480] sm:$0xff]
        %v935 = vld [vmem:[%s610 + $0x488] sm:$0xff]
        %v936 = vld [vmem:[%s610 + $0x490] sm:$0xff]
        %v937 = vld [vmem:[%s610 + $0x498] sm:$0xff]
        %v938 = vld [vmem:[%s610 + $0x4a0] sm:$0xff]
        %v939 = vld [vmem:[%s610 + $0x4a8] sm:$0xff]
        %v940 = vld [vmem:[%s610 + $0x4b0] sm:$0xff]
        %v941 = vld [vmem:[%s610 + $0x4b8] sm:$0xff]
        %v942 = vld [vmem:[%s610 + $0x4c0] sm:$0xff]
        %v943 = vld [vmem:[%s610 + $0x4c8] sm:$0xff]
        %v944 = vld [vmem:[%s610 + $0x4d0] sm:$0xff]
        %v945 = vld [vmem:[%s610 + $0x4d8] sm:$0xff]
        %v946 = vld [vmem:[%s610 + $0x4e0] sm:$0xff]
        %v947 = vld [vmem:[%s610 + $0x4e8] sm:$0xff]
        %v948 = vld [vmem:[%s610 + $0x4f0] sm:$0xff]
        %v949 = vld [vmem:[%s610 + $0x4f8] sm:$0xff]
        %v950 = vld [vmem:[%s610 + $0x500] sm:$0xff]
        %v951 = vld [vmem:[%s610 + $0x508] sm:$0xff]
        %v952 = vld [vmem:[%s610 + $0x510] sm:$0xff]
        %v953 = vld [vmem:[%s610 + $0x518] sm:$0xff]
        %v954 = vld [vmem:[%s610 + $0x520] sm:$0xff]
        %v955 = vld [vmem:[%s610 + $0x528] sm:$0xff]
        %v956 = vld [vmem:[%s610 + $0x530] sm:$0xff]
        %v957 = vld [vmem:[%s610 + $0x538] sm:$0xff]
        %v958 = vld [vmem:[%s610 + $0x540] sm:$0xff]
        %v959 = vld [vmem:[%s610 + $0x548] sm:$0xff]
        %v960 = vld [vmem:[%s610 + $0x550] sm:$0xff]
        %v961 = vld [vmem:[%s610 + $0x558] sm:$0xff]
        %v962 = vld [vmem:[%s610 + $0x560] sm:$0xff]
        %v963 = vld [vmem:[%s610 + $0x568] sm:$0xff]
        %v964 = vld [vmem:[%s610 + $0x570] sm:$0xff]
        %v965 = vld [vmem:[%s610 + $0x578] sm:$0xff]
        %v966 = vld [vmem:[%s610 + $0x580] sm:$0xff]
        %v967 = vld [vmem:[%s610 + $0x588] sm:$0xff]
        %v968 = vld [vmem:[%s610 + $0x590] sm:$0xff]
        %v969 = vld [vmem:[%s610 + $0x598] sm:$0xff]
        %v970 = vld [vmem:[%s610 + $0x5a0] sm:$0xff]
        %v971 = vld [vmem:[%s610 + $0x5a8] sm:$0xff]
        %v972 = vld [vmem:[%s610 + $0x5b0] sm:$0xff]
        %v973 = vld [vmem:[%s610 + $0x5b8] sm:$0xff]
        %v974 = vld [vmem:[%s610 + $0x5c0] sm:$0xff]
        %v975 = vld [vmem:[%s610 + $0x5c8] sm:$0xff]
        %v976 = vld [vmem:[%s610 + $0x5d0] sm:$0xff]
        %v977 = vld [vmem:[%s610 + $0x5d8] sm:$0xff]
        %v978 = vld [vmem:[%s610 + $0x5e0] sm:$0xff]
        %v979 = vld [vmem:[%s610 + $0x5e8] sm:$0xff]
        %v980 = vld [vmem:[%s610 + $0x5f0] sm:$0xff]
        %v981 = vld [vmem:[%s610 + $0x5f8] sm:$0xff]
        %v982 = vld [vmem:[%s610 + $0x600] sm:$0xff]
        %v983 = vld [vmem:[%s610 + $0x608] sm:$0xff]
        %v984 = vld [vmem:[%s610 + $0x610] sm:$0xff]
        %v985 = vld [vmem:[%s610 + $0x618] sm:$0xff]
        %v986 = vld [vmem:[%s610 + $0x620] sm:$0xff]
        %v987 = vld [vmem:[%s610 + $0x628] sm:$0xff]
        %v988 = vld [vmem:[%s610 + $0x630] sm:$0xff]
        %v989 = vld [vmem:[%s610 + $0x638] sm:$0xff]
        %v990 = vld [vmem:[%s610 + $0x640] sm:$0xff]
        %v991 = vld [vmem:[%s610 + $0x648] sm:$0xff]
        %v992 = vld [vmem:[%s610 + $0x650] sm:$0xff]
        %v993 = vld [vmem:[%s610 + $0x658] sm:$0xff]
        %v994 = vld [vmem:[%s610 + $0x660] sm:$0xff]
        %v995 = vld [vmem:[%s610 + $0x668] sm:$0xff]
        %v996 = vld [vmem:[%s610 + $0x670] sm:$0xff]
        %v997 = vld [vmem:[%s610 + $0x678] sm:$0xff]
        %v998 = vld [vmem:[%s610 + $0x680] sm:$0xff]
        %v999 = vld [vmem:[%s610 + $0x688] sm:$0xff]
        %v1000 = vld [vmem:[%s610 + $0x690] sm:$0xff]
        %v1001 = vld [vmem:[%s610 + $0x698] sm:$0xff]
        %v1002 = vld [vmem:[%s610 + $0x6a0] sm:$0xff]
        %v1003 = vld [vmem:[%s610 + $0x6a8] sm:$0xff]
        %v1004 = vld [vmem:[%s610 + $0x6b0] sm:$0xff]
        %v1005 = vld [vmem:[%s610 + $0x6b8] sm:$0xff]
        %v1006 = vld [vmem:[%s610 + $0x6c0] sm:$0xff]
        %v1007 = vld [vmem:[%s610 + $0x6c8] sm:$0xff]
        %v1008 = vld [vmem:[%s610 + $0x6d0] sm:$0xff]
        %v1009 = vld [vmem:[%s610 + $0x6d8] sm:$0xff]
        %v1010 = vld [vmem:[%s610 + $0x6e0] sm:$0xff]
        %v1011 = vld [vmem:[%s610 + $0x6e8] sm:$0xff]
        %v1012 = vld [vmem:[%s610 + $0x6f0] sm:$0xff]
        %v1013 = vld [vmem:[%s610 + $0x6f8] sm:$0xff]
        %v1014 = vld [vmem:[%s610 + $0x700] sm:$0xff]
        %v1015 = vld [vmem:[%s610 + $0x708] sm:$0xff]
        %v1016 = vld [vmem:[%s610 + $0x710] sm:$0xff]
        %v1017 = vld [vmem:[%s610 + $0x718] sm:$0xff]
        %v1018 = vld [vmem:[%s610 + $0x720] sm:$0xff]
        %v1019 = vld [vmem:[%s610 + $0x728] sm:$0xff]
        %v1020 = vld [vmem:[%s610 + $0x730] sm:$0xff]
        %v1021 = vld [vmem:[%s610 + $0x738] sm:$0xff]
        %v1022 = vld [vmem:[%s610 + $0x740] sm:$0xff]
        %v1023 = vld [vmem:[%s610 + $0x748] sm:$0xff]
        %v1024 = vld [vmem:[%s610 + $0x750] sm:$0xff]
        %v1025 = vld [vmem:[%s610 + $0x758] sm:$0xff]
        %v1026 = vld [vmem:[%s610 + $0x760] sm:$0xff]
        %v1027 = vld [vmem:[%s610 + $0x768] sm:$0xff]
        %v1028 = vld [vmem:[%s610 + $0x770] sm:$0xff]
        %v1029 = vld [vmem:[%s610 + $0x778] sm:$0xff]
        %v1030 = vld [vmem:[%s610 + $0x780] sm:$0xff]
        %v1031 = vld [vmem:[%s610 + $0x788] sm:$0xff]
        %v1032 = vld [vmem:[%s610 + $0x790] sm:$0xff]
        %v1033 = vld [vmem:[%s610 + $0x798] sm:$0xff]
        %v1034 = vld [vmem:[%s610 + $0x7a0] sm:$0xff]
        %v1035 = vld [vmem:[%s610 + $0x7a8] sm:$0xff]
        %v1036 = vld [vmem:[%s610 + $0x7b0] sm:$0xff]
        %v1037 = vld [vmem:[%s610 + $0x7b8] sm:$0xff]
        %v1038 = vld [vmem:[%s610 + $0x7c0] sm:$0xff]
        %v1039 = vld [vmem:[%s610 + $0x7c8] sm:$0xff]
        %v1040 = vld [vmem:[%s610 + $0x7d0] sm:$0xff]
        %v1041 = vld [vmem:[%s610 + $0x7d8] sm:$0xff]
        %v1042 = vld [vmem:[%s610 + $0x7e0] sm:$0xff]
        %v1043 = vld [vmem:[%s610 + $0x7e8] sm:$0xff]
        %v1044 = vld [vmem:[%s610 + $0x7f0] sm:$0xff]
        %v1045 = vld [vmem:[%s610 + $0x7f8] sm:$0xff]
        %v1046 = vunpack.c.0.s8 %v790
        %v1047 = vunpack.c.0.s8 %v791
        %v1048 = vunpack.c.0.s8 %v792
        %v1049 = vunpack.c.0.s8 %v793
        %v1050 = vunpack.c.1.s8 %v790
        %v1051 = vunpack.c.1.s8 %v791
        %v1052 = vunpack.c.1.s8 %v792
        %v1053 = vunpack.c.1.s8 %v793
        %v1054 = vunpack.c.2.s8 %v790
        %v1055 = vunpack.c.2.s8 %v791
        %v1056 = vunpack.c.2.s8 %v792
        %v1057 = vunpack.c.2.s8 %v793
        %v1058 = vunpack.c.3.s8 %v790
        %v1059 = vunpack.c.3.s8 %v791
        %v1060 = vunpack.c.3.s8 %v792
        %v1061 = vunpack.c.3.s8 %v793
        %v1062 = vunpack.c.0.s8 %v794
        %v1063 = vunpack.c.0.s8 %v795
        %v1064 = vunpack.c.0.s8 %v796
        %v1065 = vunpack.c.0.s8 %v797
        %v1066 = vunpack.c.1.s8 %v794
        %v1067 = vunpack.c.1.s8 %v795
        %v1068 = vunpack.c.1.s8 %v796
        %v1069 = vunpack.c.1.s8 %v797
        %v1070 = vunpack.c.2.s8 %v794
        %v1071 = vunpack.c.2.s8 %v795
        %v1072 = vunpack.c.2.s8 %v796
        %v1073 = vunpack.c.2.s8 %v797
        %v1074 = vunpack.c.3.s8 %v794
        %v1075 = vunpack.c.3.s8 %v795
        %v1076 = vunpack.c.3.s8 %v796
        %v1077 = vunpack.c.3.s8 %v797
        %v1078 = vunpack.c.0.s8 %v798
        %v1079 = vunpack.c.0.s8 %v799
        %v1080 = vunpack.c.0.s8 %v800
        %v1081 = vunpack.c.0.s8 %v801
        %v1082 = vunpack.c.1.s8 %v798
        %v1083 = vunpack.c.1.s8 %v799
        %v1084 = vunpack.c.1.s8 %v800
        %v1085 = vunpack.c.1.s8 %v801
        %v1086 = vunpack.c.2.s8 %v798
        %v1087 = vunpack.c.2.s8 %v799
        %v1088 = vunpack.c.2.s8 %v800
        %v1089 = vunpack.c.2.s8 %v801
        %v1090 = vunpack.c.3.s8 %v798
        %v1091 = vunpack.c.3.s8 %v799
        %v1092 = vunpack.c.3.s8 %v800
        %v1093 = vunpack.c.3.s8 %v801
        %v1094 = vunpack.c.0.s8 %v802
        %v1095 = vunpack.c.0.s8 %v803
        %v1096 = vunpack.c.0.s8 %v804
        %v1097 = vunpack.c.0.s8 %v805
        %v1098 = vunpack.c.1.s8 %v802
        %v1099 = vunpack.c.1.s8 %v803
        %v1100 = vunpack.c.1.s8 %v804
        %v1101 = vunpack.c.1.s8 %v805
        %v1102 = vunpack.c.2.s8 %v802
        %v1103 = vunpack.c.2.s8 %v803
        %v1104 = vunpack.c.2.s8 %v804
        %v1105 = vunpack.c.2.s8 %v805
        %v1106 = vunpack.c.3.s8 %v802
        %v1107 = vunpack.c.3.s8 %v803
        %v1108 = vunpack.c.3.s8 %v804
        %v1109 = vunpack.c.3.s8 %v805
        %v1110 = vunpack.c.0.s8 %v806
        %v1111 = vunpack.c.0.s8 %v807
        %v1112 = vunpack.c.0.s8 %v808
        %v1113 = vunpack.c.0.s8 %v809
        %v1114 = vunpack.c.1.s8 %v806
        %v1115 = vunpack.c.1.s8 %v807
        %v1116 = vunpack.c.1.s8 %v808
        %v1117 = vunpack.c.1.s8 %v809
        %v1118 = vunpack.c.2.s8 %v806
        %v1119 = vunpack.c.2.s8 %v807
        %v1120 = vunpack.c.2.s8 %v808
        %v1121 = vunpack.c.2.s8 %v809
        %v1122 = vunpack.c.3.s8 %v806
        %v1123 = vunpack.c.3.s8 %v807
        %v1124 = vunpack.c.3.s8 %v808
        %v1125 = vunpack.c.3.s8 %v809
        %v1126 = vunpack.c.0.s8 %v810
        %v1127 = vunpack.c.0.s8 %v811
        %v1128 = vunpack.c.0.s8 %v812
        %v1129 = vunpack.c.0.s8 %v813
        %v1130 = vunpack.c.1.s8 %v810
        %v1131 = vunpack.c.1.s8 %v811
        %v1132 = vunpack.c.1.s8 %v812
        %v1133 = vunpack.c.1.s8 %v813
        %v1134 = vunpack.c.2.s8 %v810
        %v1135 = vunpack.c.2.s8 %v811
        %v1136 = vunpack.c.2.s8 %v812
        %v1137 = vunpack.c.2.s8 %v813
        %v1138 = vunpack.c.3.s8 %v810
        %v1139 = vunpack.c.3.s8 %v811
        %v1140 = vunpack.c.3.s8 %v812
        %v1141 = vunpack.c.3.s8 %v813
        %v1142 = vunpack.c.0.s8 %v814
        %v1143 = vunpack.c.0.s8 %v815
        %v1144 = vunpack.c.0.s8 %v816
        %v1145 = vunpack.c.0.s8 %v817
        %v1146 = vunpack.c.1.s8 %v814
        %v1147 = vunpack.c.1.s8 %v815
        %v1148 = vunpack.c.1.s8 %v816
        %v1149 = vunpack.c.1.s8 %v817
        %v1150 = vunpack.c.2.s8 %v814
        %v1151 = vunpack.c.2.s8 %v815
        %v1152 = vunpack.c.2.s8 %v816
        %v1153 = vunpack.c.2.s8 %v817
        %v1154 = vunpack.c.3.s8 %v814
        %v1155 = vunpack.c.3.s8 %v815
        %v1156 = vunpack.c.3.s8 %v816
        %v1157 = vunpack.c.3.s8 %v817
        %v1158 = vunpack.c.0.s8 %v818
        %v1159 = vunpack.c.0.s8 %v819
        %v1160 = vunpack.c.0.s8 %v820
        %v1161 = vunpack.c.0.s8 %v821
        %v1162 = vunpack.c.1.s8 %v818
        %v1163 = vunpack.c.1.s8 %v819
        %v1164 = vunpack.c.1.s8 %v820
        %v1165 = vunpack.c.1.s8 %v821
        %v1166 = vunpack.c.2.s8 %v818
        %v1167 = vunpack.c.2.s8 %v819
        %v1168 = vunpack.c.2.s8 %v820
        %v1169 = vunpack.c.2.s8 %v821
        %v1170 = vunpack.c.3.s8 %v818
        %v1171 = vunpack.c.3.s8 %v819
        %v1172 = vunpack.c.3.s8 %v820
        %v1173 = vunpack.c.3.s8 %v821
        %v1174 = vunpack.c.0.s8 %v822
        %v1175 = vunpack.c.0.s8 %v823
        %v1176 = vunpack.c.0.s8 %v824
        %v1177 = vunpack.c.0.s8 %v825
        %v1178 = vunpack.c.1.s8 %v822
        %v1179 = vunpack.c.1.s8 %v823
        %v1180 = vunpack.c.1.s8 %v824
        %v1181 = vunpack.c.1.s8 %v825
        %v1182 = vunpack.c.2.s8 %v822
        %v1183 = vunpack.c.2.s8 %v823
        %v1184 = vunpack.c.2.s8 %v824
        %v1185 = vunpack.c.2.s8 %v825
        %v1186 = vunpack.c.3.s8 %v822
        %v1187 = vunpack.c.3.s8 %v823
        %v1188 = vunpack.c.3.s8 %v824
        %v1189 = vunpack.c.3.s8 %v825
        %v1190 = vunpack.c.0.s8 %v826
        %v1191 = vunpack.c.0.s8 %v827
        %v1192 = vunpack.c.0.s8 %v828
        %v1193 = vunpack.c.0.s8 %v829
        %v1194 = vunpack.c.1.s8 %v826
        %v1195 = vunpack.c.1.s8 %v827
        %v1196 = vunpack.c.1.s8 %v828
        %v1197 = vunpack.c.1.s8 %v829
        %v1198 = vunpack.c.2.s8 %v826
        %v1199 = vunpack.c.2.s8 %v827
        %v1200 = vunpack.c.2.s8 %v828
        %v1201 = vunpack.c.2.s8 %v829
        %v1202 = vunpack.c.3.s8 %v826
        %v1203 = vunpack.c.3.s8 %v827
        %v1204 = vunpack.c.3.s8 %v828
        %v1205 = vunpack.c.3.s8 %v829
        %v1206 = vunpack.c.0.s8 %v830
        %v1207 = vunpack.c.0.s8 %v831
        %v1208 = vunpack.c.0.s8 %v832
        %v1209 = vunpack.c.0.s8 %v833
        %v1210 = vunpack.c.1.s8 %v830
        %v1211 = vunpack.c.1.s8 %v831
        %v1212 = vunpack.c.1.s8 %v832
        %v1213 = vunpack.c.1.s8 %v833
        %v1214 = vunpack.c.2.s8 %v830
        %v1215 = vunpack.c.2.s8 %v831
        %v1216 = vunpack.c.2.s8 %v832
        %v1217 = vunpack.c.2.s8 %v833
        %v1218 = vunpack.c.3.s8 %v830
        %v1219 = vunpack.c.3.s8 %v831
        %v1220 = vunpack.c.3.s8 %v832
        %v1221 = vunpack.c.3.s8 %v833
        %v1222 = vunpack.c.0.s8 %v834
        %v1223 = vunpack.c.0.s8 %v835
        %v1224 = vunpack.c.0.s8 %v836
        %v1225 = vunpack.c.0.s8 %v837
        %v1226 = vunpack.c.1.s8 %v834
        %v1227 = vunpack.c.1.s8 %v835
        %v1228 = vunpack.c.1.s8 %v836
        %v1229 = vunpack.c.1.s8 %v837
        %v1230 = vunpack.c.2.s8 %v834
        %v1231 = vunpack.c.2.s8 %v835
        %v1232 = vunpack.c.2.s8 %v836
        %v1233 = vunpack.c.2.s8 %v837
        %v1234 = vunpack.c.3.s8 %v834
        %v1235 = vunpack.c.3.s8 %v835
        %v1236 = vunpack.c.3.s8 %v836
        %v1237 = vunpack.c.3.s8 %v837
        %v1238 = vunpack.c.0.s8 %v838
        %v1239 = vunpack.c.0.s8 %v839
        %v1240 = vunpack.c.0.s8 %v840
        %v1241 = vunpack.c.0.s8 %v841
        %v1242 = vunpack.c.1.s8 %v838
        %v1243 = vunpack.c.1.s8 %v839
        %v1244 = vunpack.c.1.s8 %v840
        %v1245 = vunpack.c.1.s8 %v841
        %v1246 = vunpack.c.2.s8 %v838
        %v1247 = vunpack.c.2.s8 %v839
        %v1248 = vunpack.c.2.s8 %v840
        %v1249 = vunpack.c.2.s8 %v841
        %v1250 = vunpack.c.3.s8 %v838
        %v1251 = vunpack.c.3.s8 %v839
        %v1252 = vunpack.c.3.s8 %v840
        %v1253 = vunpack.c.3.s8 %v841
        %v1254 = vunpack.c.0.s8 %v842
        %v1255 = vunpack.c.0.s8 %v843
        %v1256 = vunpack.c.0.s8 %v844
        %v1257 = vunpack.c.0.s8 %v845
        %v1258 = vunpack.c.1.s8 %v842
        %v1259 = vunpack.c.1.s8 %v843
        %v1260 = vunpack.c.1.s8 %v844
        %v1261 = vunpack.c.1.s8 %v845
        %v1262 = vunpack.c.2.s8 %v842
        %v1263 = vunpack.c.2.s8 %v843
        %v1264 = vunpack.c.2.s8 %v844
        %v1265 = vunpack.c.2.s8 %v845
        %v1266 = vunpack.c.3.s8 %v842
        %v1267 = vunpack.c.3.s8 %v843
        %v1268 = vunpack.c.3.s8 %v844
        %v1269 = vunpack.c.3.s8 %v845
        %v1270 = vunpack.c.0.s8 %v846
        %v1271 = vunpack.c.0.s8 %v847
        %v1272 = vunpack.c.0.s8 %v848
        %v1273 = vunpack.c.0.s8 %v849
        %v1274 = vunpack.c.1.s8 %v846
        %v1275 = vunpack.c.1.s8 %v847
        %v1276 = vunpack.c.1.s8 %v848
        %v1277 = vunpack.c.1.s8 %v849
        %v1278 = vunpack.c.2.s8 %v846
        %v1279 = vunpack.c.2.s8 %v847
        %v1280 = vunpack.c.2.s8 %v848
        %v1281 = vunpack.c.2.s8 %v849
        %v1282 = vunpack.c.3.s8 %v846
        %v1283 = vunpack.c.3.s8 %v847
        %v1284 = vunpack.c.3.s8 %v848
        %v1285 = vunpack.c.3.s8 %v849
        %v1286 = vunpack.c.0.s8 %v850
        %v1287 = vunpack.c.0.s8 %v851
        %v1288 = vunpack.c.0.s8 %v852
        %v1289 = vunpack.c.0.s8 %v853
        %v1290 = vunpack.c.1.s8 %v850
        %v1291 = vunpack.c.1.s8 %v851
        %v1292 = vunpack.c.1.s8 %v852
        %v1293 = vunpack.c.1.s8 %v853
        %v1294 = vunpack.c.2.s8 %v850
        %v1295 = vunpack.c.2.s8 %v851
        %v1296 = vunpack.c.2.s8 %v852
        %v1297 = vunpack.c.2.s8 %v853
        %v1298 = vunpack.c.3.s8 %v850
        %v1299 = vunpack.c.3.s8 %v851
        %v1300 = vunpack.c.3.s8 %v852
        %v1301 = vunpack.c.3.s8 %v853
        %v1302 = vunpack.c.0.s8 %v854
        %v1303 = vunpack.c.0.s8 %v855
        %v1304 = vunpack.c.0.s8 %v856
        %v1305 = vunpack.c.0.s8 %v857
        %v1306 = vunpack.c.1.s8 %v854
        %v1307 = vunpack.c.1.s8 %v855
        %v1308 = vunpack.c.1.s8 %v856
        %v1309 = vunpack.c.1.s8 %v857
        %v1310 = vunpack.c.2.s8 %v854
        %v1311 = vunpack.c.2.s8 %v855
        %v1312 = vunpack.c.2.s8 %v856
        %v1313 = vunpack.c.2.s8 %v857
        %v1314 = vunpack.c.3.s8 %v854
        %v1315 = vunpack.c.3.s8 %v855
        %v1316 = vunpack.c.3.s8 %v856
        %v1317 = vunpack.c.3.s8 %v857
        %v1318 = vunpack.c.0.s8 %v858
        %v1319 = vunpack.c.0.s8 %v859
        %v1320 = vunpack.c.0.s8 %v860
        %v1321 = vunpack.c.0.s8 %v861
        %v1322 = vunpack.c.1.s8 %v858
        %v1323 = vunpack.c.1.s8 %v859
        %v1324 = vunpack.c.1.s8 %v860
        %v1325 = vunpack.c.1.s8 %v861
        %v1326 = vunpack.c.2.s8 %v858
        %v1327 = vunpack.c.2.s8 %v859
        %v1328 = vunpack.c.2.s8 %v860
        %v1329 = vunpack.c.2.s8 %v861
        %v1330 = vunpack.c.3.s8 %v858
        %v1331 = vunpack.c.3.s8 %v859
        %v1332 = vunpack.c.3.s8 %v860
        %v1333 = vunpack.c.3.s8 %v861
        %v1334 = vunpack.c.0.s8 %v862
        %v1335 = vunpack.c.0.s8 %v863
        %v1336 = vunpack.c.0.s8 %v864
        %v1337 = vunpack.c.0.s8 %v865
        %v1338 = vunpack.c.1.s8 %v862
        %v1339 = vunpack.c.1.s8 %v863
        %v1340 = vunpack.c.1.s8 %v864
        %v1341 = vunpack.c.1.s8 %v865
        %v1342 = vunpack.c.2.s8 %v862
        %v1343 = vunpack.c.2.s8 %v863
        %v1344 = vunpack.c.2.s8 %v864
        %v1345 = vunpack.c.2.s8 %v865
        %v1346 = vunpack.c.3.s8 %v862
        %v1347 = vunpack.c.3.s8 %v863
        %v1348 = vunpack.c.3.s8 %v864
        %v1349 = vunpack.c.3.s8 %v865
        %v1350 = vunpack.c.0.s8 %v866
        %v1351 = vunpack.c.0.s8 %v867
        %v1352 = vunpack.c.0.s8 %v868
        %v1353 = vunpack.c.0.s8 %v869
        %v1354 = vunpack.c.1.s8 %v866
        %v1355 = vunpack.c.1.s8 %v867
        %v1356 = vunpack.c.1.s8 %v868
        %v1357 = vunpack.c.1.s8 %v869
        %v1358 = vunpack.c.2.s8 %v866
        %v1359 = vunpack.c.2.s8 %v867
        %v1360 = vunpack.c.2.s8 %v868
        %v1361 = vunpack.c.2.s8 %v869
        %v1362 = vunpack.c.3.s8 %v866
        %v1363 = vunpack.c.3.s8 %v867
        %v1364 = vunpack.c.3.s8 %v868
        %v1365 = vunpack.c.3.s8 %v869
        %v1366 = vunpack.c.0.s8 %v870
        %v1367 = vunpack.c.0.s8 %v871
        %v1368 = vunpack.c.0.s8 %v872
        %v1369 = vunpack.c.0.s8 %v873
        %v1370 = vunpack.c.1.s8 %v870
        %v1371 = vunpack.c.1.s8 %v871
        %v1372 = vunpack.c.1.s8 %v872
        %v1373 = vunpack.c.1.s8 %v873
        %v1374 = vunpack.c.2.s8 %v870
        %v1375 = vunpack.c.2.s8 %v871
        %v1376 = vunpack.c.2.s8 %v872
        %v1377 = vunpack.c.2.s8 %v873
        %v1378 = vunpack.c.3.s8 %v870
        %v1379 = vunpack.c.3.s8 %v871
        %v1380 = vunpack.c.3.s8 %v872
        %v1381 = vunpack.c.3.s8 %v873
        %v1382 = vunpack.c.0.s8 %v874
        %v1383 = vunpack.c.0.s8 %v875
        %v1384 = vunpack.c.0.s8 %v876
        %v1385 = vunpack.c.0.s8 %v877
        %v1386 = vunpack.c.1.s8 %v874
        %v1387 = vunpack.c.1.s8 %v875
        %v1388 = vunpack.c.1.s8 %v876
        %v1389 = vunpack.c.1.s8 %v877
        %v1390 = vunpack.c.2.s8 %v874
        %v1391 = vunpack.c.2.s8 %v875
        %v1392 = vunpack.c.2.s8 %v876
        %v1393 = vunpack.c.2.s8 %v877
        %v1394 = vunpack.c.3.s8 %v874
        %v1395 = vunpack.c.3.s8 %v875
        %v1396 = vunpack.c.3.s8 %v876
        %v1397 = vunpack.c.3.s8 %v877
        %v1398 = vunpack.c.0.s8 %v878
        %v1399 = vunpack.c.0.s8 %v879
        %v1400 = vunpack.c.0.s8 %v880
        %v1401 = vunpack.c.0.s8 %v881
        %v1402 = vunpack.c.1.s8 %v878
        %v1403 = vunpack.c.1.s8 %v879
        %v1404 = vunpack.c.1.s8 %v880
        %v1405 = vunpack.c.1.s8 %v881
        %v1406 = vunpack.c.2.s8 %v878
        %v1407 = vunpack.c.2.s8 %v879
        %v1408 = vunpack.c.2.s8 %v880
        %v1409 = vunpack.c.2.s8 %v881
        %v1410 = vunpack.c.3.s8 %v878
        %v1411 = vunpack.c.3.s8 %v879
        %v1412 = vunpack.c.3.s8 %v880
        %v1413 = vunpack.c.3.s8 %v881
        %v1414 = vunpack.c.0.s8 %v882
        %v1415 = vunpack.c.0.s8 %v883
        %v1416 = vunpack.c.0.s8 %v884
        %v1417 = vunpack.c.0.s8 %v885
        %v1418 = vunpack.c.1.s8 %v882
        %v1419 = vunpack.c.1.s8 %v883
        %v1420 = vunpack.c.1.s8 %v884
        %v1421 = vunpack.c.1.s8 %v885
        %v1422 = vunpack.c.2.s8 %v882
        %v1423 = vunpack.c.2.s8 %v883
        %v1424 = vunpack.c.2.s8 %v884
        %v1425 = vunpack.c.2.s8 %v885
        %v1426 = vunpack.c.3.s8 %v882
        %v1427 = vunpack.c.3.s8 %v883
        %v1428 = vunpack.c.3.s8 %v884
        %v1429 = vunpack.c.3.s8 %v885
        %v1430 = vunpack.c.0.s8 %v886
        %v1431 = vunpack.c.0.s8 %v887
        %v1432 = vunpack.c.0.s8 %v888
        %v1433 = vunpack.c.0.s8 %v889
        %v1434 = vunpack.c.1.s8 %v886
        %v1435 = vunpack.c.1.s8 %v887
        %v1436 = vunpack.c.1.s8 %v888
        %v1437 = vunpack.c.1.s8 %v889
        %v1438 = vunpack.c.2.s8 %v886
        %v1439 = vunpack.c.2.s8 %v887
        %v1440 = vunpack.c.2.s8 %v888
        %v1441 = vunpack.c.2.s8 %v889
        %v1442 = vunpack.c.3.s8 %v886
        %v1443 = vunpack.c.3.s8 %v887
        %v1444 = vunpack.c.3.s8 %v888
        %v1445 = vunpack.c.3.s8 %v889
        %v1446 = vunpack.c.0.s8 %v890
        %v1447 = vunpack.c.0.s8 %v891
        %v1448 = vunpack.c.0.s8 %v892
        %v1449 = vunpack.c.0.s8 %v893
        %v1450 = vunpack.c.1.s8 %v890
        %v1451 = vunpack.c.1.s8 %v891
        %v1452 = vunpack.c.1.s8 %v892
        %v1453 = vunpack.c.1.s8 %v893
        %v1454 = vunpack.c.2.s8 %v890
        %v1455 = vunpack.c.2.s8 %v891
        %v1456 = vunpack.c.2.s8 %v892
        %v1457 = vunpack.c.2.s8 %v893
        %v1458 = vunpack.c.3.s8 %v890
        %v1459 = vunpack.c.3.s8 %v891
        %v1460 = vunpack.c.3.s8 %v892
        %v1461 = vunpack.c.3.s8 %v893
        %v1462 = vunpack.c.0.s8 %v894
        %v1463 = vunpack.c.0.s8 %v895
        %v1464 = vunpack.c.0.s8 %v896
        %v1465 = vunpack.c.0.s8 %v897
        %v1466 = vunpack.c.1.s8 %v894
        %v1467 = vunpack.c.1.s8 %v895
        %v1468 = vunpack.c.1.s8 %v896
        %v1469 = vunpack.c.1.s8 %v897
        %v1470 = vunpack.c.2.s8 %v894
        %v1471 = vunpack.c.2.s8 %v895
        %v1472 = vunpack.c.2.s8 %v896
        %v1473 = vunpack.c.2.s8 %v897
        %v1474 = vunpack.c.3.s8 %v894
        %v1475 = vunpack.c.3.s8 %v895
        %v1476 = vunpack.c.3.s8 %v896
        %v1477 = vunpack.c.3.s8 %v897
        %v1478 = vunpack.c.0.s8 %v898
        %v1479 = vunpack.c.0.s8 %v899
        %v1480 = vunpack.c.0.s8 %v900
        %v1481 = vunpack.c.0.s8 %v901
        %v1482 = vunpack.c.1.s8 %v898
        %v1483 = vunpack.c.1.s8 %v899
        %v1484 = vunpack.c.1.s8 %v900
        %v1485 = vunpack.c.1.s8 %v901
        %v1486 = vunpack.c.2.s8 %v898
        %v1487 = vunpack.c.2.s8 %v899
        %v1488 = vunpack.c.2.s8 %v900
        %v1489 = vunpack.c.2.s8 %v901
        %v1490 = vunpack.c.3.s8 %v898
        %v1491 = vunpack.c.3.s8 %v899
        %v1492 = vunpack.c.3.s8 %v900
        %v1493 = vunpack.c.3.s8 %v901
        %v1494 = vunpack.c.0.s8 %v902
        %v1495 = vunpack.c.0.s8 %v903
        %v1496 = vunpack.c.0.s8 %v904
        %v1497 = vunpack.c.0.s8 %v905
        %v1498 = vunpack.c.1.s8 %v902
        %v1499 = vunpack.c.1.s8 %v903
        %v1500 = vunpack.c.1.s8 %v904
        %v1501 = vunpack.c.1.s8 %v905
        %v1502 = vunpack.c.2.s8 %v902
        %v1503 = vunpack.c.2.s8 %v903
        %v1504 = vunpack.c.2.s8 %v904
        %v1505 = vunpack.c.2.s8 %v905
        %v1506 = vunpack.c.3.s8 %v902
        %v1507 = vunpack.c.3.s8 %v903
        %v1508 = vunpack.c.3.s8 %v904
        %v1509 = vunpack.c.3.s8 %v905
        %v1510 = vunpack.c.0.s8 %v906
        %v1511 = vunpack.c.0.s8 %v907
        %v1512 = vunpack.c.0.s8 %v908
        %v1513 = vunpack.c.0.s8 %v909
        %v1514 = vunpack.c.1.s8 %v906
        %v1515 = vunpack.c.1.s8 %v907
        %v1516 = vunpack.c.1.s8 %v908
        %v1517 = vunpack.c.1.s8 %v909
        %v1518 = vunpack.c.2.s8 %v906
        %v1519 = vunpack.c.2.s8 %v907
        %v1520 = vunpack.c.2.s8 %v908
        %v1521 = vunpack.c.2.s8 %v909
        %v1522 = vunpack.c.3.s8 %v906
        %v1523 = vunpack.c.3.s8 %v907
        %v1524 = vunpack.c.3.s8 %v908
        %v1525 = vunpack.c.3.s8 %v909
        %v1526 = vunpack.c.0.s8 %v910
        %v1527 = vunpack.c.0.s8 %v911
        %v1528 = vunpack.c.0.s8 %v912
        %v1529 = vunpack.c.0.s8 %v913
        %v1530 = vunpack.c.1.s8 %v910
        %v1531 = vunpack.c.1.s8 %v911
        %v1532 = vunpack.c.1.s8 %v912
        %v1533 = vunpack.c.1.s8 %v913
        %v1534 = vunpack.c.2.s8 %v910
        %v1535 = vunpack.c.2.s8 %v911
        %v1536 = vunpack.c.2.s8 %v912
        %v1537 = vunpack.c.2.s8 %v913
        %v1538 = vunpack.c.3.s8 %v910
        %v1539 = vunpack.c.3.s8 %v911
        %v1540 = vunpack.c.3.s8 %v912
        %v1541 = vunpack.c.3.s8 %v913
        %v1542 = vunpack.c.0.s8 %v914
        %v1543 = vunpack.c.0.s8 %v915
        %v1544 = vunpack.c.0.s8 %v916
        %v1545 = vunpack.c.0.s8 %v917
        %v1546 = vunpack.c.1.s8 %v914
        %v1547 = vunpack.c.1.s8 %v915
        %v1548 = vunpack.c.1.s8 %v916
        %v1549 = vunpack.c.1.s8 %v917
        %v1550 = vunpack.c.2.s8 %v914
        %v1551 = vunpack.c.2.s8 %v915
        %v1552 = vunpack.c.2.s8 %v916
        %v1553 = vunpack.c.2.s8 %v917
        %v1554 = vunpack.c.3.s8 %v914
        %v1555 = vunpack.c.3.s8 %v915
        %v1556 = vunpack.c.3.s8 %v916
        %v1557 = vunpack.c.3.s8 %v917
        %v1558 = vunpack.c.0.s8 %v918
        %v1559 = vunpack.c.0.s8 %v919
        %v1560 = vunpack.c.0.s8 %v920
        %v1561 = vunpack.c.0.s8 %v921
        %v1562 = vunpack.c.1.s8 %v918
        %v1563 = vunpack.c.1.s8 %v919
        %v1564 = vunpack.c.1.s8 %v920
        %v1565 = vunpack.c.1.s8 %v921
        %v1566 = vunpack.c.2.s8 %v918
        %v1567 = vunpack.c.2.s8 %v919
        %v1568 = vunpack.c.2.s8 %v920
        %v1569 = vunpack.c.2.s8 %v921
        %v1570 = vunpack.c.3.s8 %v918
        %v1571 = vunpack.c.3.s8 %v919
        %v1572 = vunpack.c.3.s8 %v920
        %v1573 = vunpack.c.3.s8 %v921
        %v1574 = vunpack.c.0.s8 %v922
        %v1575 = vunpack.c.0.s8 %v923
        %v1576 = vunpack.c.0.s8 %v924
        %v1577 = vunpack.c.0.s8 %v925
        %v1578 = vunpack.c.1.s8 %v922
        %v1579 = vunpack.c.1.s8 %v923
        %v1580 = vunpack.c.1.s8 %v924
        %v1581 = vunpack.c.1.s8 %v925
        %v1582 = vunpack.c.2.s8 %v922
        %v1583 = vunpack.c.2.s8 %v923
        %v1584 = vunpack.c.2.s8 %v924
        %v1585 = vunpack.c.2.s8 %v925
        %v1586 = vunpack.c.3.s8 %v922
        %v1587 = vunpack.c.3.s8 %v923
        %v1588 = vunpack.c.3.s8 %v924
        %v1589 = vunpack.c.3.s8 %v925
        %v1590 = vunpack.c.0.s8 %v926
        %v1591 = vunpack.c.0.s8 %v927
        %v1592 = vunpack.c.0.s8 %v928
        %v1593 = vunpack.c.0.s8 %v929
        %v1594 = vunpack.c.1.s8 %v926
        %v1595 = vunpack.c.1.s8 %v927
        %v1596 = vunpack.c.1.s8 %v928
        %v1597 = vunpack.c.1.s8 %v929
        %v1598 = vunpack.c.2.s8 %v926
        %v1599 = vunpack.c.2.s8 %v927
        %v1600 = vunpack.c.2.s8 %v928
        %v1601 = vunpack.c.2.s8 %v929
        %v1602 = vunpack.c.3.s8 %v926
        %v1603 = vunpack.c.3.s8 %v927
        %v1604 = vunpack.c.3.s8 %v928
        %v1605 = vunpack.c.3.s8 %v929
        %v1606 = vunpack.c.0.s8 %v930
        %v1607 = vunpack.c.0.s8 %v931
        %v1608 = vunpack.c.0.s8 %v932
        %v1609 = vunpack.c.0.s8 %v933
        %v1610 = vunpack.c.1.s8 %v930
        %v1611 = vunpack.c.1.s8 %v931
        %v1612 = vunpack.c.1.s8 %v932
        %v1613 = vunpack.c.1.s8 %v933
        %v1614 = vunpack.c.2.s8 %v930
        %v1615 = vunpack.c.2.s8 %v931
        %v1616 = vunpack.c.2.s8 %v932
        %v1617 = vunpack.c.2.s8 %v933
        %v1618 = vunpack.c.3.s8 %v930
        %v1619 = vunpack.c.3.s8 %v931
        %v1620 = vunpack.c.3.s8 %v932
        %v1621 = vunpack.c.3.s8 %v933
        %v1622 = vunpack.c.0.s8 %v934
        %v1623 = vunpack.c.0.s8 %v935
        %v1624 = vunpack.c.0.s8 %v936
        %v1625 = vunpack.c.0.s8 %v937
        %v1626 = vunpack.c.1.s8 %v934
        %v1627 = vunpack.c.1.s8 %v935
        %v1628 = vunpack.c.1.s8 %v936
        %v1629 = vunpack.c.1.s8 %v937
        %v1630 = vunpack.c.2.s8 %v934
        %v1631 = vunpack.c.2.s8 %v935
        %v1632 = vunpack.c.2.s8 %v936
        %v1633 = vunpack.c.2.s8 %v937
        %v1634 = vunpack.c.3.s8 %v934
        %v1635 = vunpack.c.3.s8 %v935
        %v1636 = vunpack.c.3.s8 %v936
        %v1637 = vunpack.c.3.s8 %v937
        %v1638 = vunpack.c.0.s8 %v938
        %v1639 = vunpack.c.0.s8 %v939
        %v1640 = vunpack.c.0.s8 %v940
        %v1641 = vunpack.c.0.s8 %v941
        %v1642 = vunpack.c.1.s8 %v938
        %v1643 = vunpack.c.1.s8 %v939
        %v1644 = vunpack.c.1.s8 %v940
        %v1645 = vunpack.c.1.s8 %v941
        %v1646 = vunpack.c.2.s8 %v938
        %v1647 = vunpack.c.2.s8 %v939
        %v1648 = vunpack.c.2.s8 %v940
        %v1649 = vunpack.c.2.s8 %v941
        %v1650 = vunpack.c.3.s8 %v938
        %v1651 = vunpack.c.3.s8 %v939
        %v1652 = vunpack.c.3.s8 %v940
        %v1653 = vunpack.c.3.s8 %v941
        %v1654 = vunpack.c.0.s8 %v942
        %v1655 = vunpack.c.0.s8 %v943
        %v1656 = vunpack.c.0.s8 %v944
        %v1657 = vunpack.c.0.s8 %v945
        %v1658 = vunpack.c.1.s8 %v942
        %v1659 = vunpack.c.1.s8 %v943
        %v1660 = vunpack.c.1.s8 %v944
        %v1661 = vunpack.c.1.s8 %v945
        %v1662 = vunpack.c.2.s8 %v942
        %v1663 = vunpack.c.2.s8 %v943
        %v1664 = vunpack.c.2.s8 %v944
        %v1665 = vunpack.c.2.s8 %v945
        %v1666 = vunpack.c.3.s8 %v942
        %v1667 = vunpack.c.3.s8 %v943
        %v1668 = vunpack.c.3.s8 %v944
        %v1669 = vunpack.c.3.s8 %v945
        %v1670 = vunpack.c.0.s8 %v946
        %v1671 = vunpack.c.0.s8 %v947
        %v1672 = vunpack.c.0.s8 %v948
        %v1673 = vunpack.c.0.s8 %v949
        %v1674 = vunpack.c.1.s8 %v946
        %v1675 = vunpack.c.1.s8 %v947
        %v1676 = vunpack.c.1.s8 %v948
        %v1677 = vunpack.c.1.s8 %v949
        %v1678 = vunpack.c.2.s8 %v946
        %v1679 = vunpack.c.2.s8 %v947
        %v1680 = vunpack.c.2.s8 %v948
        %v1681 = vunpack.c.2.s8 %v949
        %v1682 = vunpack.c.3.s8 %v946
        %v1683 = vunpack.c.3.s8 %v947
        %v1684 = vunpack.c.3.s8 %v948
        %v1685 = vunpack.c.3.s8 %v949
        %v1686 = vunpack.c.0.s8 %v950
        %v1687 = vunpack.c.0.s8 %v951
        %v1688 = vunpack.c.0.s8 %v952
        %v1689 = vunpack.c.0.s8 %v953
        %v1690 = vunpack.c.1.s8 %v950
        %v1691 = vunpack.c.1.s8 %v951
        %v1692 = vunpack.c.1.s8 %v952
        %v1693 = vunpack.c.1.s8 %v953
        %v1694 = vunpack.c.2.s8 %v950
        %v1695 = vunpack.c.2.s8 %v951
        %v1696 = vunpack.c.2.s8 %v952
        %v1697 = vunpack.c.2.s8 %v953
        %v1698 = vunpack.c.3.s8 %v950
        %v1699 = vunpack.c.3.s8 %v951
        %v1700 = vunpack.c.3.s8 %v952
        %v1701 = vunpack.c.3.s8 %v953
        %v1702 = vunpack.c.0.s8 %v954
        %v1703 = vunpack.c.0.s8 %v955
        %v1704 = vunpack.c.0.s8 %v956
        %v1705 = vunpack.c.0.s8 %v957
        %v1706 = vunpack.c.1.s8 %v954
        %v1707 = vunpack.c.1.s8 %v955
        %v1708 = vunpack.c.1.s8 %v956
        %v1709 = vunpack.c.1.s8 %v957
        %v1710 = vunpack.c.2.s8 %v954
        %v1711 = vunpack.c.2.s8 %v955
        %v1712 = vunpack.c.2.s8 %v956
        %v1713 = vunpack.c.2.s8 %v957
        %v1714 = vunpack.c.3.s8 %v954
        %v1715 = vunpack.c.3.s8 %v955
        %v1716 = vunpack.c.3.s8 %v956
        %v1717 = vunpack.c.3.s8 %v957
        %v1718 = vunpack.c.0.s8 %v958
        %v1719 = vunpack.c.0.s8 %v959
        %v1720 = vunpack.c.0.s8 %v960
        %v1721 = vunpack.c.0.s8 %v961
        %v1722 = vunpack.c.1.s8 %v958
        %v1723 = vunpack.c.1.s8 %v959
        %v1724 = vunpack.c.1.s8 %v960
        %v1725 = vunpack.c.1.s8 %v961
        %v1726 = vunpack.c.2.s8 %v958
        %v1727 = vunpack.c.2.s8 %v959
        %v1728 = vunpack.c.2.s8 %v960
        %v1729 = vunpack.c.2.s8 %v961
        %v1730 = vunpack.c.3.s8 %v958
        %v1731 = vunpack.c.3.s8 %v959
        %v1732 = vunpack.c.3.s8 %v960
        %v1733 = vunpack.c.3.s8 %v961
        %v1734 = vunpack.c.0.s8 %v962
        %v1735 = vunpack.c.0.s8 %v963
        %v1736 = vunpack.c.0.s8 %v964
        %v1737 = vunpack.c.0.s8 %v965
        %v1738 = vunpack.c.1.s8 %v962
        %v1739 = vunpack.c.1.s8 %v963
        %v1740 = vunpack.c.1.s8 %v964
        %v1741 = vunpack.c.1.s8 %v965
        %v1742 = vunpack.c.2.s8 %v962
        %v1743 = vunpack.c.2.s8 %v963
        %v1744 = vunpack.c.2.s8 %v964
        %v1745 = vunpack.c.2.s8 %v965
        %v1746 = vunpack.c.3.s8 %v962
        %v1747 = vunpack.c.3.s8 %v963
        %v1748 = vunpack.c.3.s8 %v964
        %v1749 = vunpack.c.3.s8 %v965
        %v1750 = vunpack.c.0.s8 %v966
        %v1751 = vunpack.c.0.s8 %v967
        %v1752 = vunpack.c.0.s8 %v968
        %v1753 = vunpack.c.0.s8 %v969
        %v1754 = vunpack.c.1.s8 %v966
        %v1755 = vunpack.c.1.s8 %v967
        %v1756 = vunpack.c.1.s8 %v968
        %v1757 = vunpack.c.1.s8 %v969
        %v1758 = vunpack.c.2.s8 %v966
        %v1759 = vunpack.c.2.s8 %v967
        %v1760 = vunpack.c.2.s8 %v968
        %v1761 = vunpack.c.2.s8 %v969
        %v1762 = vunpack.c.3.s8 %v966
        %v1763 = vunpack.c.3.s8 %v967
        %v1764 = vunpack.c.3.s8 %v968
        %v1765 = vunpack.c.3.s8 %v969
        %v1766 = vunpack.c.0.s8 %v970
        %v1767 = vunpack.c.0.s8 %v971
        %v1768 = vunpack.c.0.s8 %v972
        %v1769 = vunpack.c.0.s8 %v973
        %v1770 = vunpack.c.1.s8 %v970
        %v1771 = vunpack.c.1.s8 %v971
        %v1772 = vunpack.c.1.s8 %v972
        %v1773 = vunpack.c.1.s8 %v973
        %v1774 = vunpack.c.2.s8 %v970
        %v1775 = vunpack.c.2.s8 %v971
        %v1776 = vunpack.c.2.s8 %v972
        %v1777 = vunpack.c.2.s8 %v973
        %v1778 = vunpack.c.3.s8 %v970
        %v1779 = vunpack.c.3.s8 %v971
        %v1780 = vunpack.c.3.s8 %v972
        %v1781 = vunpack.c.3.s8 %v973
        %v1782 = vunpack.c.0.s8 %v974
        %v1783 = vunpack.c.0.s8 %v975
        %v1784 = vunpack.c.0.s8 %v976
        %v1785 = vunpack.c.0.s8 %v977
        %v1786 = vunpack.c.1.s8 %v974
        %v1787 = vunpack.c.1.s8 %v975
        %v1788 = vunpack.c.1.s8 %v976
        %v1789 = vunpack.c.1.s8 %v977
        %v1790 = vunpack.c.2.s8 %v974
        %v1791 = vunpack.c.2.s8 %v975
        %v1792 = vunpack.c.2.s8 %v976
        %v1793 = vunpack.c.2.s8 %v977
        %v1794 = vunpack.c.3.s8 %v974
        %v1795 = vunpack.c.3.s8 %v975
        %v1796 = vunpack.c.3.s8 %v976
        %v1797 = vunpack.c.3.s8 %v977
        %v1798 = vunpack.c.0.s8 %v978
        %v1799 = vunpack.c.0.s8 %v979
        %v1800 = vunpack.c.0.s8 %v980
        %v1801 = vunpack.c.0.s8 %v981
        %v1802 = vunpack.c.1.s8 %v978
        %v1803 = vunpack.c.1.s8 %v979
        %v1804 = vunpack.c.1.s8 %v980
        %v1805 = vunpack.c.1.s8 %v981
        %v1806 = vunpack.c.2.s8 %v978
        %v1807 = vunpack.c.2.s8 %v979
        %v1808 = vunpack.c.2.s8 %v980
        %v1809 = vunpack.c.2.s8 %v981
        %v1810 = vunpack.c.3.s8 %v978
        %v1811 = vunpack.c.3.s8 %v979
        %v1812 = vunpack.c.3.s8 %v980
        %v1813 = vunpack.c.3.s8 %v981
        %v1814 = vunpack.c.0.s8 %v982
        %v1815 = vunpack.c.0.s8 %v983
        %v1816 = vunpack.c.0.s8 %v984
        %v1817 = vunpack.c.0.s8 %v985
        %v1818 = vunpack.c.1.s8 %v982
        %v1819 = vunpack.c.1.s8 %v983
        %v1820 = vunpack.c.1.s8 %v984
        %v1821 = vunpack.c.1.s8 %v985
        %v1822 = vunpack.c.2.s8 %v982
        %v1823 = vunpack.c.2.s8 %v983
        %v1824 = vunpack.c.2.s8 %v984
        %v1825 = vunpack.c.2.s8 %v985
        %v1826 = vunpack.c.3.s8 %v982
        %v1827 = vunpack.c.3.s8 %v983
        %v1828 = vunpack.c.3.s8 %v984
        %v1829 = vunpack.c.3.s8 %v985
        %v1830 = vunpack.c.0.s8 %v986
        %v1831 = vunpack.c.0.s8 %v987
        %v1832 = vunpack.c.0.s8 %v988
        %v1833 = vunpack.c.0.s8 %v989
        %v1834 = vunpack.c.1.s8 %v986
        %v1835 = vunpack.c.1.s8 %v987
        %v1836 = vunpack.c.1.s8 %v988
        %v1837 = vunpack.c.1.s8 %v989
        %v1838 = vunpack.c.2.s8 %v986
        %v1839 = vunpack.c.2.s8 %v987
        %v1840 = vunpack.c.2.s8 %v988
        %v1841 = vunpack.c.2.s8 %v989
        %v1842 = vunpack.c.3.s8 %v986
        %v1843 = vunpack.c.3.s8 %v987
        %v1844 = vunpack.c.3.s8 %v988
        %v1845 = vunpack.c.3.s8 %v989
        %v1846 = vunpack.c.0.s8 %v990
        %v1847 = vunpack.c.0.s8 %v991
        %v1848 = vunpack.c.0.s8 %v992
        %v1849 = vunpack.c.0.s8 %v993
        %v1850 = vunpack.c.1.s8 %v990
        %v1851 = vunpack.c.1.s8 %v991
        %v1852 = vunpack.c.1.s8 %v992
        %v1853 = vunpack.c.1.s8 %v993
        %v1854 = vunpack.c.2.s8 %v990
        %v1855 = vunpack.c.2.s8 %v991
        %v1856 = vunpack.c.2.s8 %v992
        %v1857 = vunpack.c.2.s8 %v993
        %v1858 = vunpack.c.3.s8 %v990
        %v1859 = vunpack.c.3.s8 %v991
        %v1860 = vunpack.c.3.s8 %v992
        %v1861 = vunpack.c.3.s8 %v993
        %v1862 = vunpack.c.0.s8 %v994
        %v1863 = vunpack.c.0.s8 %v995
        %v1864 = vunpack.c.0.s8 %v996
        %v1865 = vunpack.c.0.s8 %v997
        %v1866 = vunpack.c.1.s8 %v994
        %v1867 = vunpack.c.1.s8 %v995
        %v1868 = vunpack.c.1.s8 %v996
        %v1869 = vunpack.c.1.s8 %v997
        %v1870 = vunpack.c.2.s8 %v994
        %v1871 = vunpack.c.2.s8 %v995
        %v1872 = vunpack.c.2.s8 %v996
        %v1873 = vunpack.c.2.s8 %v997
        %v1874 = vunpack.c.3.s8 %v994
        %v1875 = vunpack.c.3.s8 %v995
        %v1876 = vunpack.c.3.s8 %v996
        %v1877 = vunpack.c.3.s8 %v997
        %v1878 = vunpack.c.0.s8 %v998
        %v1879 = vunpack.c.0.s8 %v999
        %v1880 = vunpack.c.0.s8 %v1000
        %v1881 = vunpack.c.0.s8 %v1001
        %v1882 = vunpack.c.1.s8 %v998
        %v1883 = vunpack.c.1.s8 %v999
        %v1884 = vunpack.c.1.s8 %v1000
        %v1885 = vunpack.c.1.s8 %v1001
        %v1886 = vunpack.c.2.s8 %v998
        %v1887 = vunpack.c.2.s8 %v999
        %v1888 = vunpack.c.2.s8 %v1000
        %v1889 = vunpack.c.2.s8 %v1001
        %v1890 = vunpack.c.3.s8 %v998
        %v1891 = vunpack.c.3.s8 %v999
        %v1892 = vunpack.c.3.s8 %v1000
        %v1893 = vunpack.c.3.s8 %v1001
        %v1894 = vunpack.c.0.s8 %v1002
        %v1895 = vunpack.c.0.s8 %v1003
        %v1896 = vunpack.c.0.s8 %v1004
        %v1897 = vunpack.c.0.s8 %v1005
        %v1898 = vunpack.c.1.s8 %v1002
        %v1899 = vunpack.c.1.s8 %v1003
        %v1900 = vunpack.c.1.s8 %v1004
        %v1901 = vunpack.c.1.s8 %v1005
        %v1902 = vunpack.c.2.s8 %v1002
        %v1903 = vunpack.c.2.s8 %v1003
        %v1904 = vunpack.c.2.s8 %v1004
        %v1905 = vunpack.c.2.s8 %v1005
        %v1906 = vunpack.c.3.s8 %v1002
        %v1907 = vunpack.c.3.s8 %v1003
        %v1908 = vunpack.c.3.s8 %v1004
        %v1909 = vunpack.c.3.s8 %v1005
        %v1910 = vunpack.c.0.s8 %v1006
        %v1911 = vunpack.c.0.s8 %v1007
        %v1912 = vunpack.c.0.s8 %v1008
        %v1913 = vunpack.c.0.s8 %v1009
        %v1914 = vunpack.c.1.s8 %v1006
        %v1915 = vunpack.c.1.s8 %v1007
        %v1916 = vunpack.c.1.s8 %v1008
        %v1917 = vunpack.c.1.s8 %v1009
        %v1918 = vunpack.c.2.s8 %v1006
        %v1919 = vunpack.c.2.s8 %v1007
        %v1920 = vunpack.c.2.s8 %v1008
        %v1921 = vunpack.c.2.s8 %v1009
        %v1922 = vunpack.c.3.s8 %v1006
        %v1923 = vunpack.c.3.s8 %v1007
        %v1924 = vunpack.c.3.s8 %v1008
        %v1925 = vunpack.c.3.s8 %v1009
        %v1926 = vunpack.c.0.s8 %v1010
        %v1927 = vunpack.c.0.s8 %v1011
        %v1928 = vunpack.c.0.s8 %v1012
        %v1929 = vunpack.c.0.s8 %v1013
        %v1930 = vunpack.c.1.s8 %v1010
        %v1931 = vunpack.c.1.s8 %v1011
        %v1932 = vunpack.c.1.s8 %v1012
        %v1933 = vunpack.c.1.s8 %v1013
        %v1934 = vunpack.c.2.s8 %v1010
        %v1935 = vunpack.c.2.s8 %v1011
        %v1936 = vunpack.c.2.s8 %v1012
        %v1937 = vunpack.c.2.s8 %v1013
        %v1938 = vunpack.c.3.s8 %v1010
        %v1939 = vunpack.c.3.s8 %v1011
        %v1940 = vunpack.c.3.s8 %v1012
        %v1941 = vunpack.c.3.s8 %v1013
        %v1942 = vunpack.c.0.s8 %v1014
        %v1943 = vunpack.c.0.s8 %v1015
        %v1944 = vunpack.c.0.s8 %v1016
        %v1945 = vunpack.c.0.s8 %v1017
        %v1946 = vunpack.c.1.s8 %v1014
        %v1947 = vunpack.c.1.s8 %v1015
        %v1948 = vunpack.c.1.s8 %v1016
        %v1949 = vunpack.c.1.s8 %v1017
        %v1950 = vunpack.c.2.s8 %v1014
        %v1951 = vunpack.c.2.s8 %v1015
        %v1952 = vunpack.c.2.s8 %v1016
        %v1953 = vunpack.c.2.s8 %v1017
        %v1954 = vunpack.c.3.s8 %v1014
        %v1955 = vunpack.c.3.s8 %v1015
        %v1956 = vunpack.c.3.s8 %v1016
        %v1957 = vunpack.c.3.s8 %v1017
        %v1958 = vunpack.c.0.s8 %v1018
        %v1959 = vunpack.c.0.s8 %v1019
        %v1960 = vunpack.c.0.s8 %v1020
        %v1961 = vunpack.c.0.s8 %v1021
        %v1962 = vunpack.c.1.s8 %v1018
        %v1963 = vunpack.c.1.s8 %v1019
        %v1964 = vunpack.c.1.s8 %v1020
        %v1965 = vunpack.c.1.s8 %v1021
        %v1966 = vunpack.c.2.s8 %v1018
        %v1967 = vunpack.c.2.s8 %v1019
        %v1968 = vunpack.c.2.s8 %v1020
        %v1969 = vunpack.c.2.s8 %v1021
        %v1970 = vunpack.c.3.s8 %v1018
        %v1971 = vunpack.c.3.s8 %v1019
        %v1972 = vunpack.c.3.s8 %v1020
        %v1973 = vunpack.c.3.s8 %v1021
        %v1974 = vunpack.c.0.s8 %v1022
        %v1975 = vunpack.c.0.s8 %v1023
        %v1976 = vunpack.c.0.s8 %v1024
        %v1977 = vunpack.c.0.s8 %v1025
        %v1978 = vunpack.c.1.s8 %v1022
        %v1979 = vunpack.c.1.s8 %v1023
        %v1980 = vunpack.c.1.s8 %v1024
        %v1981 = vunpack.c.1.s8 %v1025
        %v1982 = vunpack.c.2.s8 %v1022
        %v1983 = vunpack.c.2.s8 %v1023
        %v1984 = vunpack.c.2.s8 %v1024
        %v1985 = vunpack.c.2.s8 %v1025
        %v1986 = vunpack.c.3.s8 %v1022
        %v1987 = vunpack.c.3.s8 %v1023
        %v1988 = vunpack.c.3.s8 %v1024
        %v1989 = vunpack.c.3.s8 %v1025
        %v1990 = vunpack.c.0.s8 %v1026
        %v1991 = vunpack.c.0.s8 %v1027
        %v1992 = vunpack.c.0.s8 %v1028
        %v1993 = vunpack.c.0.s8 %v1029
        %v1994 = vunpack.c.1.s8 %v1026
        %v1995 = vunpack.c.1.s8 %v1027
        %v1996 = vunpack.c.1.s8 %v1028
        %v1997 = vunpack.c.1.s8 %v1029
        %v1998 = vunpack.c.2.s8 %v1026
        %v1999 = vunpack.c.2.s8 %v1027
        %v2000 = vunpack.c.2.s8 %v1028
        %v2001 = vunpack.c.2.s8 %v1029
        %v2002 = vunpack.c.3.s8 %v1026
        %v2003 = vunpack.c.3.s8 %v1027
        %v2004 = vunpack.c.3.s8 %v1028
        %v2005 = vunpack.c.3.s8 %v1029
        %v2006 = vunpack.c.0.s8 %v1030
        %v2007 = vunpack.c.0.s8 %v1031
        %v2008 = vunpack.c.0.s8 %v1032
        %v2009 = vunpack.c.0.s8 %v1033
        %v2010 = vunpack.c.1.s8 %v1030
        %v2011 = vunpack.c.1.s8 %v1031
        %v2012 = vunpack.c.1.s8 %v1032
        %v2013 = vunpack.c.1.s8 %v1033
        %v2014 = vunpack.c.2.s8 %v1030
        %v2015 = vunpack.c.2.s8 %v1031
        %v2016 = vunpack.c.2.s8 %v1032
        %v2017 = vunpack.c.2.s8 %v1033
        %v2018 = vunpack.c.3.s8 %v1030
        %v2019 = vunpack.c.3.s8 %v1031
        %v2020 = vunpack.c.3.s8 %v1032
        %v2021 = vunpack.c.3.s8 %v1033
        %v2022 = vunpack.c.0.s8 %v1034
        %v2023 = vunpack.c.0.s8 %v1035
        %v2024 = vunpack.c.0.s8 %v1036
        %v2025 = vunpack.c.0.s8 %v1037
        %v2026 = vunpack.c.1.s8 %v1034
        %v2027 = vunpack.c.1.s8 %v1035
        %v2028 = vunpack.c.1.s8 %v1036
        %v2029 = vunpack.c.1.s8 %v1037
        %v2030 = vunpack.c.2.s8 %v1034
        %v2031 = vunpack.c.2.s8 %v1035
        %v2032 = vunpack.c.2.s8 %v1036
        %v2033 = vunpack.c.2.s8 %v1037
        %v2034 = vunpack.c.3.s8 %v1034
        %v2035 = vunpack.c.3.s8 %v1035
        %v2036 = vunpack.c.3.s8 %v1036
        %v2037 = vunpack.c.3.s8 %v1037
        %v2038 = vunpack.c.0.s8 %v1038
        %v2039 = vunpack.c.0.s8 %v1039
        %v2040 = vunpack.c.0.s8 %v1040
        %v2041 = vunpack.c.0.s8 %v1041
        %v2042 = vunpack.c.1.s8 %v1038
        %v2043 = vunpack.c.1.s8 %v1039
        %v2044 = vunpack.c.1.s8 %v1040
        %v2045 = vunpack.c.1.s8 %v1041
        %v2046 = vunpack.c.2.s8 %v1038
        %v2047 = vunpack.c.2.s8 %v1039
        %v2048 = vunpack.c.2.s8 %v1040
        %v2049 = vunpack.c.2.s8 %v1041
        %v2050 = vunpack.c.3.s8 %v1038
        %v2051 = vunpack.c.3.s8 %v1039
        %v2052 = vunpack.c.3.s8 %v1040
        %v2053 = vunpack.c.3.s8 %v1041
        %v2054 = vunpack.c.0.s8 %v1042
        %v2055 = vunpack.c.0.s8 %v1043
        %v2056 = vunpack.c.0.s8 %v1044
        %v2057 = vunpack.c.0.s8 %v1045
        %v2058 = vunpack.c.1.s8 %v1042
        %v2059 = vunpack.c.1.s8 %v1043
        %v2060 = vunpack.c.1.s8 %v1044
        %v2061 = vunpack.c.1.s8 %v1045
        %v2062 = vunpack.c.2.s8 %v1042
        %v2063 = vunpack.c.2.s8 %v1043
        %v2064 = vunpack.c.2.s8 %v1044
        %v2065 = vunpack.c.2.s8 %v1045
        %v2066 = vunpack.c.3.s8 %v1042
        %v2067 = vunpack.c.3.s8 %v1043
        %v2068 = vunpack.c.3.s8 %v1044
        %v2069 = vunpack.c.3.s8 %v1045
        %v2070 = vcvt.s32.f32 %v1046
        %v2071 = vcvt.s32.f32 %v1047
        %v2072 = vcvt.s32.f32 %v1048
        %v2073 = vcvt.s32.f32 %v1049
        %v2074 = vcvt.s32.f32 %v1050
        %v2075 = vcvt.s32.f32 %v1051
        %v2076 = vcvt.s32.f32 %v1052
        %v2077 = vcvt.s32.f32 %v1053
        %v2078 = vcvt.s32.f32 %v1054
        %v2079 = vcvt.s32.f32 %v1055
        %v2080 = vcvt.s32.f32 %v1056
        %v2081 = vcvt.s32.f32 %v1057
        %v2082 = vcvt.s32.f32 %v1058
        %v2083 = vcvt.s32.f32 %v1059
        %v2084 = vcvt.s32.f32 %v1060
        %v2085 = vcvt.s32.f32 %v1061
        %v2086 = vcvt.s32.f32 %v1062
        %v2087 = vcvt.s32.f32 %v1063
        %v2088 = vcvt.s32.f32 %v1064
        %v2089 = vcvt.s32.f32 %v1065
        %v2090 = vcvt.s32.f32 %v1066
        %v2091 = vcvt.s32.f32 %v1067
        %v2092 = vcvt.s32.f32 %v1068
        %v2093 = vcvt.s32.f32 %v1069
        %v2094 = vcvt.s32.f32 %v1070
        %v2095 = vcvt.s32.f32 %v1071
        %v2096 = vcvt.s32.f32 %v1072
        %v2097 = vcvt.s32.f32 %v1073
        %v2098 = vcvt.s32.f32 %v1074
        %v2099 = vcvt.s32.f32 %v1075
        %v2100 = vcvt.s32.f32 %v1076
        %v2101 = vcvt.s32.f32 %v1077
        %v2102 = vcvt.s32.f32 %v1078
        %v2103 = vcvt.s32.f32 %v1079
        %v2104 = vcvt.s32.f32 %v1080
        %v2105 = vcvt.s32.f32 %v1081
        %v2106 = vcvt.s32.f32 %v1082
        %v2107 = vcvt.s32.f32 %v1083
        %v2108 = vcvt.s32.f32 %v1084
        %v2109 = vcvt.s32.f32 %v1085
        %v2110 = vcvt.s32.f32 %v1086
        %v2111 = vcvt.s32.f32 %v1087
        %v2112 = vcvt.s32.f32 %v1088
        %v2113 = vcvt.s32.f32 %v1089
        %v2114 = vcvt.s32.f32 %v1090
        %v2115 = vcvt.s32.f32 %v1091
        %v2116 = vcvt.s32.f32 %v1092
        %v2117 = vcvt.s32.f32 %v1093
        %v2118 = vcvt.s32.f32 %v1094
        %v2119 = vcvt.s32.f32 %v1095
        %v2120 = vcvt.s32.f32 %v1096
        %v2121 = vcvt.s32.f32 %v1097
        %v2122 = vcvt.s32.f32 %v1098
        %v2123 = vcvt.s32.f32 %v1099
        %v2124 = vcvt.s32.f32 %v1100
        %v2125 = vcvt.s32.f32 %v1101
        %v2126 = vcvt.s32.f32 %v1102
        %v2127 = vcvt.s32.f32 %v1103
        %v2128 = vcvt.s32.f32 %v1104
        %v2129 = vcvt.s32.f32 %v1105
        %v2130 = vcvt.s32.f32 %v1106
        %v2131 = vcvt.s32.f32 %v1107
        %v2132 = vcvt.s32.f32 %v1108
        %v2133 = vcvt.s32.f32 %v1109
        %v2134 = vcvt.s32.f32 %v1110
        %v2135 = vcvt.s32.f32 %v1111
        %v2136 = vcvt.s32.f32 %v1112
        %v2137 = vcvt.s32.f32 %v1113
        %v2138 = vcvt.s32.f32 %v1114
        %v2139 = vcvt.s32.f32 %v1115
        %v2140 = vcvt.s32.f32 %v1116
        %v2141 = vcvt.s32.f32 %v1117
        %v2142 = vcvt.s32.f32 %v1118
        %v2143 = vcvt.s32.f32 %v1119
        %v2144 = vcvt.s32.f32 %v1120
        %v2145 = vcvt.s32.f32 %v1121
        %v2146 = vcvt.s32.f32 %v1122
        %v2147 = vcvt.s32.f32 %v1123
        %v2148 = vcvt.s32.f32 %v1124
        %v2149 = vcvt.s32.f32 %v1125
        %v2150 = vcvt.s32.f32 %v1126
        %v2151 = vcvt.s32.f32 %v1127
        %v2152 = vcvt.s32.f32 %v1128
        %v2153 = vcvt.s32.f32 %v1129
        %v2154 = vcvt.s32.f32 %v1130
        %v2155 = vcvt.s32.f32 %v1131
        %v2156 = vcvt.s32.f32 %v1132
        %v2157 = vcvt.s32.f32 %v1133
        %v2158 = vcvt.s32.f32 %v1134
        %v2159 = vcvt.s32.f32 %v1135
        %v2160 = vcvt.s32.f32 %v1136
        %v2161 = vcvt.s32.f32 %v1137
        %v2162 = vcvt.s32.f32 %v1138
        %v2163 = vcvt.s32.f32 %v1139
        %v2164 = vcvt.s32.f32 %v1140
        %v2165 = vcvt.s32.f32 %v1141
        %v2166 = vcvt.s32.f32 %v1142
        %v2167 = vcvt.s32.f32 %v1143
        %v2168 = vcvt.s32.f32 %v1144
        %v2169 = vcvt.s32.f32 %v1145
        %v2170 = vcvt.s32.f32 %v1146
        %v2171 = vcvt.s32.f32 %v1147
        %v2172 = vcvt.s32.f32 %v1148
        %v2173 = vcvt.s32.f32 %v1149
        %v2174 = vcvt.s32.f32 %v1150
        %v2175 = vcvt.s32.f32 %v1151
        %v2176 = vcvt.s32.f32 %v1152
        %v2177 = vcvt.s32.f32 %v1153
        %v2178 = vcvt.s32.f32 %v1154
        %v2179 = vcvt.s32.f32 %v1155
        %v2180 = vcvt.s32.f32 %v1156
        %v2181 = vcvt.s32.f32 %v1157
        %v2182 = vcvt.s32.f32 %v1158
        %v2183 = vcvt.s32.f32 %v1159
        %v2184 = vcvt.s32.f32 %v1160
        %v2185 = vcvt.s32.f32 %v1161
        %v2186 = vcvt.s32.f32 %v1162
        %v2187 = vcvt.s32.f32 %v1163
        %v2188 = vcvt.s32.f32 %v1164
        %v2189 = vcvt.s32.f32 %v1165
        %v2190 = vcvt.s32.f32 %v1166
        %v2191 = vcvt.s32.f32 %v1167
        %v2192 = vcvt.s32.f32 %v1168
        %v2193 = vcvt.s32.f32 %v1169
        %v2194 = vcvt.s32.f32 %v1170
        %v2195 = vcvt.s32.f32 %v1171
        %v2196 = vcvt.s32.f32 %v1172
        %v2197 = vcvt.s32.f32 %v1173
        %v2198 = vcvt.s32.f32 %v1174
        %v2199 = vcvt.s32.f32 %v1175
        %v2200 = vcvt.s32.f32 %v1176
        %v2201 = vcvt.s32.f32 %v1177
        %v2202 = vcvt.s32.f32 %v1178
        %v2203 = vcvt.s32.f32 %v1179
        %v2204 = vcvt.s32.f32 %v1180
        %v2205 = vcvt.s32.f32 %v1181
        %v2206 = vcvt.s32.f32 %v1182
        %v2207 = vcvt.s32.f32 %v1183
        %v2208 = vcvt.s32.f32 %v1184
        %v2209 = vcvt.s32.f32 %v1185
        %v2210 = vcvt.s32.f32 %v1186
        %v2211 = vcvt.s32.f32 %v1187
        %v2212 = vcvt.s32.f32 %v1188
        %v2213 = vcvt.s32.f32 %v1189
        %v2214 = vcvt.s32.f32 %v1190
        %v2215 = vcvt.s32.f32 %v1191
        %v2216 = vcvt.s32.f32 %v1192
        %v2217 = vcvt.s32.f32 %v1193
        %v2218 = vcvt.s32.f32 %v1194
        %v2219 = vcvt.s32.f32 %v1195
        %v2220 = vcvt.s32.f32 %v1196
        %v2221 = vcvt.s32.f32 %v1197
        %v2222 = vcvt.s32.f32 %v1198
        %v2223 = vcvt.s32.f32 %v1199
        %v2224 = vcvt.s32.f32 %v1200
        %v2225 = vcvt.s32.f32 %v1201
        %v2226 = vcvt.s32.f32 %v1202
        %v2227 = vcvt.s32.f32 %v1203
        %v2228 = vcvt.s32.f32 %v1204
        %v2229 = vcvt.s32.f32 %v1205
        %v2230 = vcvt.s32.f32 %v1206
        %v2231 = vcvt.s32.f32 %v1207
        %v2232 = vcvt.s32.f32 %v1208
        %v2233 = vcvt.s32.f32 %v1209
        %v2234 = vcvt.s32.f32 %v1210
        %v2235 = vcvt.s32.f32 %v1211
        %v2236 = vcvt.s32.f32 %v1212
        %v2237 = vcvt.s32.f32 %v1213
        %v2238 = vcvt.s32.f32 %v1214
        %v2239 = vcvt.s32.f32 %v1215
        %v2240 = vcvt.s32.f32 %v1216
        %v2241 = vcvt.s32.f32 %v1217
        %v2242 = vcvt.s32.f32 %v1218
        %v2243 = vcvt.s32.f32 %v1219
        %v2244 = vcvt.s32.f32 %v1220
        %v2245 = vcvt.s32.f32 %v1221
        %v2246 = vcvt.s32.f32 %v1222
        %v2247 = vcvt.s32.f32 %v1223
        %v2248 = vcvt.s32.f32 %v1224
        %v2249 = vcvt.s32.f32 %v1225
        %v2250 = vcvt.s32.f32 %v1226
        %v2251 = vcvt.s32.f32 %v1227
        %v2252 = vcvt.s32.f32 %v1228
        %v2253 = vcvt.s32.f32 %v1229
        %v2254 = vcvt.s32.f32 %v1230
        %v2255 = vcvt.s32.f32 %v1231
        %v2256 = vcvt.s32.f32 %v1232
        %v2257 = vcvt.s32.f32 %v1233
        %v2258 = vcvt.s32.f32 %v1234
        %v2259 = vcvt.s32.f32 %v1235
        %v2260 = vcvt.s32.f32 %v1236
        %v2261 = vcvt.s32.f32 %v1237
        %v2262 = vcvt.s32.f32 %v1238
        %v2263 = vcvt.s32.f32 %v1239
        %v2264 = vcvt.s32.f32 %v1240
        %v2265 = vcvt.s32.f32 %v1241
        %v2266 = vcvt.s32.f32 %v1242
        %v2267 = vcvt.s32.f32 %v1243
        %v2268 = vcvt.s32.f32 %v1244
        %v2269 = vcvt.s32.f32 %v1245
        %v2270 = vcvt.s32.f32 %v1246
        %v2271 = vcvt.s32.f32 %v1247
        %v2272 = vcvt.s32.f32 %v1248
        %v2273 = vcvt.s32.f32 %v1249
        %v2274 = vcvt.s32.f32 %v1250
        %v2275 = vcvt.s32.f32 %v1251
        %v2276 = vcvt.s32.f32 %v1252
        %v2277 = vcvt.s32.f32 %v1253
        %v2278 = vcvt.s32.f32 %v1254
        %v2279 = vcvt.s32.f32 %v1255
        %v2280 = vcvt.s32.f32 %v1256
        %v2281 = vcvt.s32.f32 %v1257
        %v2282 = vcvt.s32.f32 %v1258
        %v2283 = vcvt.s32.f32 %v1259
        %v2284 = vcvt.s32.f32 %v1260
        %v2285 = vcvt.s32.f32 %v1261
        %v2286 = vcvt.s32.f32 %v1262
        %v2287 = vcvt.s32.f32 %v1263
        %v2288 = vcvt.s32.f32 %v1264
        %v2289 = vcvt.s32.f32 %v1265
        %v2290 = vcvt.s32.f32 %v1266
        %v2291 = vcvt.s32.f32 %v1267
        %v2292 = vcvt.s32.f32 %v1268
        %v2293 = vcvt.s32.f32 %v1269
        %v2294 = vcvt.s32.f32 %v1270
        %v2295 = vcvt.s32.f32 %v1271
        %v2296 = vcvt.s32.f32 %v1272
        %v2297 = vcvt.s32.f32 %v1273
        %v2298 = vcvt.s32.f32 %v1274
        %v2299 = vcvt.s32.f32 %v1275
        %v2300 = vcvt.s32.f32 %v1276
        %v2301 = vcvt.s32.f32 %v1277
        %v2302 = vcvt.s32.f32 %v1278
        %v2303 = vcvt.s32.f32 %v1279
        %v2304 = vcvt.s32.f32 %v1280
        %v2305 = vcvt.s32.f32 %v1281
        %v2306 = vcvt.s32.f32 %v1282
        %v2307 = vcvt.s32.f32 %v1283
        %v2308 = vcvt.s32.f32 %v1284
        %v2309 = vcvt.s32.f32 %v1285
        %v2310 = vcvt.s32.f32 %v1286
        %v2311 = vcvt.s32.f32 %v1287
        %v2312 = vcvt.s32.f32 %v1288
        %v2313 = vcvt.s32.f32 %v1289
        %v2314 = vcvt.s32.f32 %v1290
        %v2315 = vcvt.s32.f32 %v1291
        %v2316 = vcvt.s32.f32 %v1292
        %v2317 = vcvt.s32.f32 %v1293
        %v2318 = vcvt.s32.f32 %v1294
        %v2319 = vcvt.s32.f32 %v1295
        %v2320 = vcvt.s32.f32 %v1296
        %v2321 = vcvt.s32.f32 %v1297
        %v2322 = vcvt.s32.f32 %v1298
        %v2323 = vcvt.s32.f32 %v1299
        %v2324 = vcvt.s32.f32 %v1300
        %v2325 = vcvt.s32.f32 %v1301
        %v2326 = vcvt.s32.f32 %v1302
        %v2327 = vcvt.s32.f32 %v1303
        %v2328 = vcvt.s32.f32 %v1304
        %v2329 = vcvt.s32.f32 %v1305
        %v2330 = vcvt.s32.f32 %v1306
        %v2331 = vcvt.s32.f32 %v1307
        %v2332 = vcvt.s32.f32 %v1308
        %v2333 = vcvt.s32.f32 %v1309
        %v2334 = vcvt.s32.f32 %v1310
        %v2335 = vcvt.s32.f32 %v1311
        %v2336 = vcvt.s32.f32 %v1312
        %v2337 = vcvt.s32.f32 %v1313
        %v2338 = vcvt.s32.f32 %v1314
        %v2339 = vcvt.s32.f32 %v1315
        %v2340 = vcvt.s32.f32 %v1316
        %v2341 = vcvt.s32.f32 %v1317
        %v2342 = vcvt.s32.f32 %v1318
        %v2343 = vcvt.s32.f32 %v1319
        %v2344 = vcvt.s32.f32 %v1320
        %v2345 = vcvt.s32.f32 %v1321
        %v2346 = vcvt.s32.f32 %v1322
        %v2347 = vcvt.s32.f32 %v1323
        %v2348 = vcvt.s32.f32 %v1324
        %v2349 = vcvt.s32.f32 %v1325
        %v2350 = vcvt.s32.f32 %v1326
        %v2351 = vcvt.s32.f32 %v1327
        %v2352 = vcvt.s32.f32 %v1328
        %v2353 = vcvt.s32.f32 %v1329
        %v2354 = vcvt.s32.f32 %v1330
        %v2355 = vcvt.s32.f32 %v1331
        %v2356 = vcvt.s32.f32 %v1332
        %v2357 = vcvt.s32.f32 %v1333
        %v2358 = vcvt.s32.f32 %v1334
        %v2359 = vcvt.s32.f32 %v1335
        %v2360 = vcvt.s32.f32 %v1336
        %v2361 = vcvt.s32.f32 %v1337
        %v2362 = vcvt.s32.f32 %v1338
        %v2363 = vcvt.s32.f32 %v1339
        %v2364 = vcvt.s32.f32 %v1340
        %v2365 = vcvt.s32.f32 %v1341
        %v2366 = vcvt.s32.f32 %v1342
        %v2367 = vcvt.s32.f32 %v1343
        %v2368 = vcvt.s32.f32 %v1344
        %v2369 = vcvt.s32.f32 %v1345
        %v2370 = vcvt.s32.f32 %v1346
        %v2371 = vcvt.s32.f32 %v1347
        %v2372 = vcvt.s32.f32 %v1348
        %v2373 = vcvt.s32.f32 %v1349
        %v2374 = vcvt.s32.f32 %v1350
        %v2375 = vcvt.s32.f32 %v1351
        %v2376 = vcvt.s32.f32 %v1352
        %v2377 = vcvt.s32.f32 %v1353
        %v2378 = vcvt.s32.f32 %v1354
        %v2379 = vcvt.s32.f32 %v1355
        %v2380 = vcvt.s32.f32 %v1356
        %v2381 = vcvt.s32.f32 %v1357
        %v2382 = vcvt.s32.f32 %v1358
        %v2383 = vcvt.s32.f32 %v1359
        %v2384 = vcvt.s32.f32 %v1360
        %v2385 = vcvt.s32.f32 %v1361
        %v2386 = vcvt.s32.f32 %v1362
        %v2387 = vcvt.s32.f32 %v1363
        %v2388 = vcvt.s32.f32 %v1364
        %v2389 = vcvt.s32.f32 %v1365
        %v2390 = vcvt.s32.f32 %v1366
        %v2391 = vcvt.s32.f32 %v1367
        %v2392 = vcvt.s32.f32 %v1368
        %v2393 = vcvt.s32.f32 %v1369
        %v2394 = vcvt.s32.f32 %v1370
        %v2395 = vcvt.s32.f32 %v1371
        %v2396 = vcvt.s32.f32 %v1372
        %v2397 = vcvt.s32.f32 %v1373
        %v2398 = vcvt.s32.f32 %v1374
        %v2399 = vcvt.s32.f32 %v1375
        %v2400 = vcvt.s32.f32 %v1376
        %v2401 = vcvt.s32.f32 %v1377
        %v2402 = vcvt.s32.f32 %v1378
        %v2403 = vcvt.s32.f32 %v1379
        %v2404 = vcvt.s32.f32 %v1380
        %v2405 = vcvt.s32.f32 %v1381
        %v2406 = vcvt.s32.f32 %v1382
        %v2407 = vcvt.s32.f32 %v1383
        %v2408 = vcvt.s32.f32 %v1384
        %v2409 = vcvt.s32.f32 %v1385
        %v2410 = vcvt.s32.f32 %v1386
        %v2411 = vcvt.s32.f32 %v1387
        %v2412 = vcvt.s32.f32 %v1388
        %v2413 = vcvt.s32.f32 %v1389
        %v2414 = vcvt.s32.f32 %v1390
        %v2415 = vcvt.s32.f32 %v1391
        %v2416 = vcvt.s32.f32 %v1392
        %v2417 = vcvt.s32.f32 %v1393
        %v2418 = vcvt.s32.f32 %v1394
        %v2419 = vcvt.s32.f32 %v1395
        %v2420 = vcvt.s32.f32 %v1396
        %v2421 = vcvt.s32.f32 %v1397
        %v2422 = vcvt.s32.f32 %v1398
        %v2423 = vcvt.s32.f32 %v1399
        %v2424 = vcvt.s32.f32 %v1400
        %v2425 = vcvt.s32.f32 %v1401
        %v2426 = vcvt.s32.f32 %v1402
        %v2427 = vcvt.s32.f32 %v1403
        %v2428 = vcvt.s32.f32 %v1404
        %v2429 = vcvt.s32.f32 %v1405
        %v2430 = vcvt.s32.f32 %v1406
        %v2431 = vcvt.s32.f32 %v1407
        %v2432 = vcvt.s32.f32 %v1408
        %v2433 = vcvt.s32.f32 %v1409
        %v2434 = vcvt.s32.f32 %v1410
        %v2435 = vcvt.s32.f32 %v1411
        %v2436 = vcvt.s32.f32 %v1412
        %v2437 = vcvt.s32.f32 %v1413
        %v2438 = vcvt.s32.f32 %v1414
        %v2439 = vcvt.s32.f32 %v1415
        %v2440 = vcvt.s32.f32 %v1416
        %v2441 = vcvt.s32.f32 %v1417
        %v2442 = vcvt.s32.f32 %v1418
        %v2443 = vcvt.s32.f32 %v1419
        %v2444 = vcvt.s32.f32 %v1420
        %v2445 = vcvt.s32.f32 %v1421
        %v2446 = vcvt.s32.f32 %v1422
        %v2447 = vcvt.s32.f32 %v1423
        %v2448 = vcvt.s32.f32 %v1424
        %v2449 = vcvt.s32.f32 %v1425
        %v2450 = vcvt.s32.f32 %v1426
        %v2451 = vcvt.s32.f32 %v1427
        %v2452 = vcvt.s32.f32 %v1428
        %v2453 = vcvt.s32.f32 %v1429
        %v2454 = vcvt.s32.f32 %v1430
        %v2455 = vcvt.s32.f32 %v1431
        %v2456 = vcvt.s32.f32 %v1432
        %v2457 = vcvt.s32.f32 %v1433
        %v2458 = vcvt.s32.f32 %v1434
        %v2459 = vcvt.s32.f32 %v1435
        %v2460 = vcvt.s32.f32 %v1436
        %v2461 = vcvt.s32.f32 %v1437
        %v2462 = vcvt.s32.f32 %v1438
        %v2463 = vcvt.s32.f32 %v1439
        %v2464 = vcvt.s32.f32 %v1440
        %v2465 = vcvt.s32.f32 %v1441
        %v2466 = vcvt.s32.f32 %v1442
        %v2467 = vcvt.s32.f32 %v1443
        %v2468 = vcvt.s32.f32 %v1444
        %v2469 = vcvt.s32.f32 %v1445
        %v2470 = vcvt.s32.f32 %v1446
        %v2471 = vcvt.s32.f32 %v1447
        %v2472 = vcvt.s32.f32 %v1448
        %v2473 = vcvt.s32.f32 %v1449
        %v2474 = vcvt.s32.f32 %v1450
        %v2475 = vcvt.s32.f32 %v1451
        %v2476 = vcvt.s32.f32 %v1452
        %v2477 = vcvt.s32.f32 %v1453
        %v2478 = vcvt.s32.f32 %v1454
        %v2479 = vcvt.s32.f32 %v1455
        %v2480 = vcvt.s32.f32 %v1456
        %v2481 = vcvt.s32.f32 %v1457
        %v2482 = vcvt.s32.f32 %v1458
        %v2483 = vcvt.s32.f32 %v1459
        %v2484 = vcvt.s32.f32 %v1460
        %v2485 = vcvt.s32.f32 %v1461
        %v2486 = vcvt.s32.f32 %v1462
        %v2487 = vcvt.s32.f32 %v1463
        %v2488 = vcvt.s32.f32 %v1464
        %v2489 = vcvt.s32.f32 %v1465
        %v2490 = vcvt.s32.f32 %v1466
        %v2491 = vcvt.s32.f32 %v1467
        %v2492 = vcvt.s32.f32 %v1468
        %v2493 = vcvt.s32.f32 %v1469
        %v2494 = vcvt.s32.f32 %v1470
        %v2495 = vcvt.s32.f32 %v1471
        %v2496 = vcvt.s32.f32 %v1472
        %v2497 = vcvt.s32.f32 %v1473
        %v2498 = vcvt.s32.f32 %v1474
        %v2499 = vcvt.s32.f32 %v1475
        %v2500 = vcvt.s32.f32 %v1476
        %v2501 = vcvt.s32.f32 %v1477
        %v2502 = vcvt.s32.f32 %v1478
        %v2503 = vcvt.s32.f32 %v1479
        %v2504 = vcvt.s32.f32 %v1480
        %v2505 = vcvt.s32.f32 %v1481
        %v2506 = vcvt.s32.f32 %v1482
        %v2507 = vcvt.s32.f32 %v1483
        %v2508 = vcvt.s32.f32 %v1484
        %v2509 = vcvt.s32.f32 %v1485
        %v2510 = vcvt.s32.f32 %v1486
        %v2511 = vcvt.s32.f32 %v1487
        %v2512 = vcvt.s32.f32 %v1488
        %v2513 = vcvt.s32.f32 %v1489
        %v2514 = vcvt.s32.f32 %v1490
        %v2515 = vcvt.s32.f32 %v1491
        %v2516 = vcvt.s32.f32 %v1492
        %v2517 = vcvt.s32.f32 %v1493
        %v2518 = vcvt.s32.f32 %v1494
        %v2519 = vcvt.s32.f32 %v1495
        %v2520 = vcvt.s32.f32 %v1496
        %v2521 = vcvt.s32.f32 %v1497
        %v2522 = vcvt.s32.f32 %v1498
        %v2523 = vcvt.s32.f32 %v1499
        %v2524 = vcvt.s32.f32 %v1500
        %v2525 = vcvt.s32.f32 %v1501
        %v2526 = vcvt.s32.f32 %v1502
        %v2527 = vcvt.s32.f32 %v1503
        %v2528 = vcvt.s32.f32 %v1504
        %v2529 = vcvt.s32.f32 %v1505
        %v2530 = vcvt.s32.f32 %v1506
        %v2531 = vcvt.s32.f32 %v1507
        %v2532 = vcvt.s32.f32 %v1508
        %v2533 = vcvt.s32.f32 %v1509
        %v2534 = vcvt.s32.f32 %v1510
        %v2535 = vcvt.s32.f32 %v1511
        %v2536 = vcvt.s32.f32 %v1512
        %v2537 = vcvt.s32.f32 %v1513
        %v2538 = vcvt.s32.f32 %v1514
        %v2539 = vcvt.s32.f32 %v1515
        %v2540 = vcvt.s32.f32 %v1516
        %v2541 = vcvt.s32.f32 %v1517
        %v2542 = vcvt.s32.f32 %v1518
        %v2543 = vcvt.s32.f32 %v1519
        %v2544 = vcvt.s32.f32 %v1520
        %v2545 = vcvt.s32.f32 %v1521
        %v2546 = vcvt.s32.f32 %v1522
        %v2547 = vcvt.s32.f32 %v1523
        %v2548 = vcvt.s32.f32 %v1524
        %v2549 = vcvt.s32.f32 %v1525
        %v2550 = vcvt.s32.f32 %v1526
        %v2551 = vcvt.s32.f32 %v1527
        %v2552 = vcvt.s32.f32 %v1528
        %v2553 = vcvt.s32.f32 %v1529
        %v2554 = vcvt.s32.f32 %v1530
        %v2555 = vcvt.s32.f32 %v1531
        %v2556 = vcvt.s32.f32 %v1532
        %v2557 = vcvt.s32.f32 %v1533
        %v2558 = vcvt.s32.f32 %v1534
        %v2559 = vcvt.s32.f32 %v1535
        %v2560 = vcvt.s32.f32 %v1536
        %v2561 = vcvt.s32.f32 %v1537
        %v2562 = vcvt.s32.f32 %v1538
        %v2563 = vcvt.s32.f32 %v1539
        %v2564 = vcvt.s32.f32 %v1540
        %v2565 = vcvt.s32.f32 %v1541
        %v2566 = vcvt.s32.f32 %v1542
        %v2567 = vcvt.s32.f32 %v1543
        %v2568 = vcvt.s32.f32 %v1544
        %v2569 = vcvt.s32.f32 %v1545
        %v2570 = vcvt.s32.f32 %v1546
        %v2571 = vcvt.s32.f32 %v1547
        %v2572 = vcvt.s32.f32 %v1548
        %v2573 = vcvt.s32.f32 %v1549
        %v2574 = vcvt.s32.f32 %v1550
        %v2575 = vcvt.s32.f32 %v1551
        %v2576 = vcvt.s32.f32 %v1552
        %v2577 = vcvt.s32.f32 %v1553
        %v2578 = vcvt.s32.f32 %v1554
        %v2579 = vcvt.s32.f32 %v1555
        %v2580 = vcvt.s32.f32 %v1556
        %v2581 = vcvt.s32.f32 %v1557
        %v2582 = vcvt.s32.f32 %v1558
        %v2583 = vcvt.s32.f32 %v1559
        %v2584 = vcvt.s32.f32 %v1560
        %v2585 = vcvt.s32.f32 %v1561
        %v2586 = vcvt.s32.f32 %v1562
        %v2587 = vcvt.s32.f32 %v1563
        %v2588 = vcvt.s32.f32 %v1564
        %v2589 = vcvt.s32.f32 %v1565
        %v2590 = vcvt.s32.f32 %v1566
        %v2591 = vcvt.s32.f32 %v1567
        %v2592 = vcvt.s32.f32 %v1568
        %v2593 = vcvt.s32.f32 %v1569
        %v2594 = vcvt.s32.f32 %v1570
        %v2595 = vcvt.s32.f32 %v1571
        %v2596 = vcvt.s32.f32 %v1572
        %v2597 = vcvt.s32.f32 %v1573
        %v2598 = vcvt.s32.f32 %v1574
        %v2599 = vcvt.s32.f32 %v1575
        %v2600 = vcvt.s32.f32 %v1576
        %v2601 = vcvt.s32.f32 %v1577
        %v2602 = vcvt.s32.f32 %v1578
        %v2603 = vcvt.s32.f32 %v1579
        %v2604 = vcvt.s32.f32 %v1580
        %v2605 = vcvt.s32.f32 %v1581
        %v2606 = vcvt.s32.f32 %v1582
        %v2607 = vcvt.s32.f32 %v1583
        %v2608 = vcvt.s32.f32 %v1584
        %v2609 = vcvt.s32.f32 %v1585
        %v2610 = vcvt.s32.f32 %v1586
        %v2611 = vcvt.s32.f32 %v1587
        %v2612 = vcvt.s32.f32 %v1588
        %v2613 = vcvt.s32.f32 %v1589
        %v2614 = vcvt.s32.f32 %v1590
        %v2615 = vcvt.s32.f32 %v1591
        %v2616 = vcvt.s32.f32 %v1592
        %v2617 = vcvt.s32.f32 %v1593
        %v2618 = vcvt.s32.f32 %v1594
        %v2619 = vcvt.s32.f32 %v1595
        %v2620 = vcvt.s32.f32 %v1596
        %v2621 = vcvt.s32.f32 %v1597
        %v2622 = vcvt.s32.f32 %v1598
        %v2623 = vcvt.s32.f32 %v1599
        %v2624 = vcvt.s32.f32 %v1600
        %v2625 = vcvt.s32.f32 %v1601
        %v2626 = vcvt.s32.f32 %v1602
        %v2627 = vcvt.s32.f32 %v1603
        %v2628 = vcvt.s32.f32 %v1604
        %v2629 = vcvt.s32.f32 %v1605
        %v2630 = vcvt.s32.f32 %v1606
        %v2631 = vcvt.s32.f32 %v1607
        %v2632 = vcvt.s32.f32 %v1608
        %v2633 = vcvt.s32.f32 %v1609
        %v2634 = vcvt.s32.f32 %v1610
        %v2635 = vcvt.s32.f32 %v1611
        %v2636 = vcvt.s32.f32 %v1612
        %v2637 = vcvt.s32.f32 %v1613
        %v2638 = vcvt.s32.f32 %v1614
        %v2639 = vcvt.s32.f32 %v1615
        %v2640 = vcvt.s32.f32 %v1616
        %v2641 = vcvt.s32.f32 %v1617
        %v2642 = vcvt.s32.f32 %v1618
        %v2643 = vcvt.s32.f32 %v1619
        %v2644 = vcvt.s32.f32 %v1620
        %v2645 = vcvt.s32.f32 %v1621
        %v2646 = vcvt.s32.f32 %v1622
        %v2647 = vcvt.s32.f32 %v1623
        %v2648 = vcvt.s32.f32 %v1624
        %v2649 = vcvt.s32.f32 %v1625
        %v2650 = vcvt.s32.f32 %v1626
        %v2651 = vcvt.s32.f32 %v1627
        %v2652 = vcvt.s32.f32 %v1628
        %v2653 = vcvt.s32.f32 %v1629
        %v2654 = vcvt.s32.f32 %v1630
        %v2655 = vcvt.s32.f32 %v1631
        %v2656 = vcvt.s32.f32 %v1632
        %v2657 = vcvt.s32.f32 %v1633
        %v2658 = vcvt.s32.f32 %v1634
        %v2659 = vcvt.s32.f32 %v1635
        %v2660 = vcvt.s32.f32 %v1636
        %v2661 = vcvt.s32.f32 %v1637
        %v2662 = vcvt.s32.f32 %v1638
        %v2663 = vcvt.s32.f32 %v1639
        %v2664 = vcvt.s32.f32 %v1640
        %v2665 = vcvt.s32.f32 %v1641
        %v2666 = vcvt.s32.f32 %v1642
        %v2667 = vcvt.s32.f32 %v1643
        %v2668 = vcvt.s32.f32 %v1644
        %v2669 = vcvt.s32.f32 %v1645
        %v2670 = vcvt.s32.f32 %v1646
        %v2671 = vcvt.s32.f32 %v1647
        %v2672 = vcvt.s32.f32 %v1648
        %v2673 = vcvt.s32.f32 %v1649
        %v2674 = vcvt.s32.f32 %v1650
        %v2675 = vcvt.s32.f32 %v1651
        %v2676 = vcvt.s32.f32 %v1652
        %v2677 = vcvt.s32.f32 %v1653
        %v2678 = vcvt.s32.f32 %v1654
        %v2679 = vcvt.s32.f32 %v1655
        %v2680 = vcvt.s32.f32 %v1656
        %v2681 = vcvt.s32.f32 %v1657
        %v2682 = vcvt.s32.f32 %v1658
        %v2683 = vcvt.s32.f32 %v1659
        %v2684 = vcvt.s32.f32 %v1660
        %v2685 = vcvt.s32.f32 %v1661
        %v2686 = vcvt.s32.f32 %v1662
        %v2687 = vcvt.s32.f32 %v1663
        %v2688 = vcvt.s32.f32 %v1664
        %v2689 = vcvt.s32.f32 %v1665
        %v2690 = vcvt.s32.f32 %v1666
        %v2691 = vcvt.s32.f32 %v1667
        %v2692 = vcvt.s32.f32 %v1668
        %v2693 = vcvt.s32.f32 %v1669
        %v2694 = vcvt.s32.f32 %v1670
        %v2695 = vcvt.s32.f32 %v1671
        %v2696 = vcvt.s32.f32 %v1672
        %v2697 = vcvt.s32.f32 %v1673
        %v2698 = vcvt.s32.f32 %v1674
        %v2699 = vcvt.s32.f32 %v1675
        %v2700 = vcvt.s32.f32 %v1676
        %v2701 = vcvt.s32.f32 %v1677
        %v2702 = vcvt.s32.f32 %v1678
        %v2703 = vcvt.s32.f32 %v1679
        %v2704 = vcvt.s32.f32 %v1680
        %v2705 = vcvt.s32.f32 %v1681
        %v2706 = vcvt.s32.f32 %v1682
        %v2707 = vcvt.s32.f32 %v1683
        %v2708 = vcvt.s32.f32 %v1684
        %v2709 = vcvt.s32.f32 %v1685
        %v2710 = vcvt.s32.f32 %v1686
        %v2711 = vcvt.s32.f32 %v1687
        %v2712 = vcvt.s32.f32 %v1688
        %v2713 = vcvt.s32.f32 %v1689
        %v2714 = vcvt.s32.f32 %v1690
        %v2715 = vcvt.s32.f32 %v1691
        %v2716 = vcvt.s32.f32 %v1692
        %v2717 = vcvt.s32.f32 %v1693
        %v2718 = vcvt.s32.f32 %v1694
        %v2719 = vcvt.s32.f32 %v1695
        %v2720 = vcvt.s32.f32 %v1696
        %v2721 = vcvt.s32.f32 %v1697
        %v2722 = vcvt.s32.f32 %v1698
        %v2723 = vcvt.s32.f32 %v1699
        %v2724 = vcvt.s32.f32 %v1700
        %v2725 = vcvt.s32.f32 %v1701
        %v2726 = vcvt.s32.f32 %v1702
        %v2727 = vcvt.s32.f32 %v1703
        %v2728 = vcvt.s32.f32 %v1704
        %v2729 = vcvt.s32.f32 %v1705
        %v2730 = vcvt.s32.f32 %v1706
        %v2731 = vcvt.s32.f32 %v1707
        %v2732 = vcvt.s32.f32 %v1708
        %v2733 = vcvt.s32.f32 %v1709
        %v2734 = vcvt.s32.f32 %v1710
        %v2735 = vcvt.s32.f32 %v1711
        %v2736 = vcvt.s32.f32 %v1712
        %v2737 = vcvt.s32.f32 %v1713
        %v2738 = vcvt.s32.f32 %v1714
        %v2739 = vcvt.s32.f32 %v1715
        %v2740 = vcvt.s32.f32 %v1716
        %v2741 = vcvt.s32.f32 %v1717
        %v2742 = vcvt.s32.f32 %v1718
        %v2743 = vcvt.s32.f32 %v1719
        %v2744 = vcvt.s32.f32 %v1720
        %v2745 = vcvt.s32.f32 %v1721
        %v2746 = vcvt.s32.f32 %v1722
        %v2747 = vcvt.s32.f32 %v1723
        %v2748 = vcvt.s32.f32 %v1724
        %v2749 = vcvt.s32.f32 %v1725
        %v2750 = vcvt.s32.f32 %v1726
        %v2751 = vcvt.s32.f32 %v1727
        %v2752 = vcvt.s32.f32 %v1728
        %v2753 = vcvt.s32.f32 %v1729
        %v2754 = vcvt.s32.f32 %v1730
        %v2755 = vcvt.s32.f32 %v1731
        %v2756 = vcvt.s32.f32 %v1732
        %v2757 = vcvt.s32.f32 %v1733
        %v2758 = vcvt.s32.f32 %v1734
        %v2759 = vcvt.s32.f32 %v1735
        %v2760 = vcvt.s32.f32 %v1736
        %v2761 = vcvt.s32.f32 %v1737
        %v2762 = vcvt.s32.f32 %v1738
        %v2763 = vcvt.s32.f32 %v1739
        %v2764 = vcvt.s32.f32 %v1740
        %v2765 = vcvt.s32.f32 %v1741
        %v2766 = vcvt.s32.f32 %v1742
        %v2767 = vcvt.s32.f32 %v1743
        %v2768 = vcvt.s32.f32 %v1744
        %v2769 = vcvt.s32.f32 %v1745
        %v2770 = vcvt.s32.f32 %v1746
        %v2771 = vcvt.s32.f32 %v1747
        %v2772 = vcvt.s32.f32 %v1748
        %v2773 = vcvt.s32.f32 %v1749
        %v2774 = vcvt.s32.f32 %v1750
        %v2775 = vcvt.s32.f32 %v1751
        %v2776 = vcvt.s32.f32 %v1752
        %v2777 = vcvt.s32.f32 %v1753
        %v2778 = vcvt.s32.f32 %v1754
        %v2779 = vcvt.s32.f32 %v1755
        %v2780 = vcvt.s32.f32 %v1756
        %v2781 = vcvt.s32.f32 %v1757
        %v2782 = vcvt.s32.f32 %v1758
        %v2783 = vcvt.s32.f32 %v1759
        %v2784 = vcvt.s32.f32 %v1760
        %v2785 = vcvt.s32.f32 %v1761
        %v2786 = vcvt.s32.f32 %v1762
        %v2787 = vcvt.s32.f32 %v1763
        %v2788 = vcvt.s32.f32 %v1764
        %v2789 = vcvt.s32.f32 %v1765
        %v2790 = vcvt.s32.f32 %v1766
        %v2791 = vcvt.s32.f32 %v1767
        %v2792 = vcvt.s32.f32 %v1768
        %v2793 = vcvt.s32.f32 %v1769
        %v2794 = vcvt.s32.f32 %v1770
        %v2795 = vcvt.s32.f32 %v1771
        %v2796 = vcvt.s32.f32 %v1772
        %v2797 = vcvt.s32.f32 %v1773
        %v2798 = vcvt.s32.f32 %v1774
        %v2799 = vcvt.s32.f32 %v1775
        %v2800 = vcvt.s32.f32 %v1776
        %v2801 = vcvt.s32.f32 %v1777
        %v2802 = vcvt.s32.f32 %v1778
        %v2803 = vcvt.s32.f32 %v1779
        %v2804 = vcvt.s32.f32 %v1780
        %v2805 = vcvt.s32.f32 %v1781
        %v2806 = vcvt.s32.f32 %v1782
        %v2807 = vcvt.s32.f32 %v1783
        %v2808 = vcvt.s32.f32 %v1784
        %v2809 = vcvt.s32.f32 %v1785
        %v2810 = vcvt.s32.f32 %v1786
        %v2811 = vcvt.s32.f32 %v1787
        %v2812 = vcvt.s32.f32 %v1788
        %v2813 = vcvt.s32.f32 %v1789
        %v2814 = vcvt.s32.f32 %v1790
        %v2815 = vcvt.s32.f32 %v1791
        %v2816 = vcvt.s32.f32 %v1792
        %v2817 = vcvt.s32.f32 %v1793
        %v2818 = vcvt.s32.f32 %v1794
        %v2819 = vcvt.s32.f32 %v1795
        %v2820 = vcvt.s32.f32 %v1796
        %v2821 = vcvt.s32.f32 %v1797
        %v2822 = vcvt.s32.f32 %v1798
        %v2823 = vcvt.s32.f32 %v1799
        %v2824 = vcvt.s32.f32 %v1800
        %v2825 = vcvt.s32.f32 %v1801
        %v2826 = vcvt.s32.f32 %v1802
        %v2827 = vcvt.s32.f32 %v1803
        %v2828 = vcvt.s32.f32 %v1804
        %v2829 = vcvt.s32.f32 %v1805
        %v2830 = vcvt.s32.f32 %v1806
        %v2831 = vcvt.s32.f32 %v1807
        %v2832 = vcvt.s32.f32 %v1808
        %v2833 = vcvt.s32.f32 %v1809
        %v2834 = vcvt.s32.f32 %v1810
        %v2835 = vcvt.s32.f32 %v1811
        %v2836 = vcvt.s32.f32 %v1812
        %v2837 = vcvt.s32.f32 %v1813
        %v2838 = vcvt.s32.f32 %v1814
        %v2839 = vcvt.s32.f32 %v1815
        %v2840 = vcvt.s32.f32 %v1816
        %v2841 = vcvt.s32.f32 %v1817
        %v2842 = vcvt.s32.f32 %v1818
        %v2843 = vcvt.s32.f32 %v1819
        %v2844 = vcvt.s32.f32 %v1820
        %v2845 = vcvt.s32.f32 %v1821
        %v2846 = vcvt.s32.f32 %v1822
        %v2847 = vcvt.s32.f32 %v1823
        %v2848 = vcvt.s32.f32 %v1824
        %v2849 = vcvt.s32.f32 %v1825
        %v2850 = vcvt.s32.f32 %v1826
        %v2851 = vcvt.s32.f32 %v1827
        %v2852 = vcvt.s32.f32 %v1828
        %v2853 = vcvt.s32.f32 %v1829
        %v2854 = vcvt.s32.f32 %v1830
        %v2855 = vcvt.s32.f32 %v1831
        %v2856 = vcvt.s32.f32 %v1832
        %v2857 = vcvt.s32.f32 %v1833
        %v2858 = vcvt.s32.f32 %v1834
        %v2859 = vcvt.s32.f32 %v1835
        %v2860 = vcvt.s32.f32 %v1836
        %v2861 = vcvt.s32.f32 %v1837
        %v2862 = vcvt.s32.f32 %v1838
        %v2863 = vcvt.s32.f32 %v1839
        %v2864 = vcvt.s32.f32 %v1840
        %v2865 = vcvt.s32.f32 %v1841
        %v2866 = vcvt.s32.f32 %v1842
        %v2867 = vcvt.s32.f32 %v1843
        %v2868 = vcvt.s32.f32 %v1844
        %v2869 = vcvt.s32.f32 %v1845
        %v2870 = vcvt.s32.f32 %v1846
        %v2871 = vcvt.s32.f32 %v1847
        %v2872 = vcvt.s32.f32 %v1848
        %v2873 = vcvt.s32.f32 %v1849
        %v2874 = vcvt.s32.f32 %v1850
        %v2875 = vcvt.s32.f32 %v1851
        %v2876 = vcvt.s32.f32 %v1852
        %v2877 = vcvt.s32.f32 %v1853
        %v2878 = vcvt.s32.f32 %v1854
        %v2879 = vcvt.s32.f32 %v1855
        %v2880 = vcvt.s32.f32 %v1856
        %v2881 = vcvt.s32.f32 %v1857
        %v2882 = vcvt.s32.f32 %v1858
        %v2883 = vcvt.s32.f32 %v1859
        %v2884 = vcvt.s32.f32 %v1860
        %v2885 = vcvt.s32.f32 %v1861
        %v2886 = vcvt.s32.f32 %v1862
        %v2887 = vcvt.s32.f32 %v1863
        %v2888 = vcvt.s32.f32 %v1864
        %v2889 = vcvt.s32.f32 %v1865
        %v2890 = vcvt.s32.f32 %v1866
        %v2891 = vcvt.s32.f32 %v1867
        %v2892 = vcvt.s32.f32 %v1868
        %v2893 = vcvt.s32.f32 %v1869
        %v2894 = vcvt.s32.f32 %v1870
        %v2895 = vcvt.s32.f32 %v1871
        %v2896 = vcvt.s32.f32 %v1872
        %v2897 = vcvt.s32.f32 %v1873
        %v2898 = vcvt.s32.f32 %v1874
        %v2899 = vcvt.s32.f32 %v1875
        %v2900 = vcvt.s32.f32 %v1876
        %v2901 = vcvt.s32.f32 %v1877
        %v2902 = vcvt.s32.f32 %v1878
        %v2903 = vcvt.s32.f32 %v1879
        %v2904 = vcvt.s32.f32 %v1880
        %v2905 = vcvt.s32.f32 %v1881
        %v2906 = vcvt.s32.f32 %v1882
        %v2907 = vcvt.s32.f32 %v1883
        %v2908 = vcvt.s32.f32 %v1884
        %v2909 = vcvt.s32.f32 %v1885
        %v2910 = vcvt.s32.f32 %v1886
        %v2911 = vcvt.s32.f32 %v1887
        %v2912 = vcvt.s32.f32 %v1888
        %v2913 = vcvt.s32.f32 %v1889
        %v2914 = vcvt.s32.f32 %v1890
        %v2915 = vcvt.s32.f32 %v1891
        %v2916 = vcvt.s32.f32 %v1892
        %v2917 = vcvt.s32.f32 %v1893
        %v2918 = vcvt.s32.f32 %v1894
        %v2919 = vcvt.s32.f32 %v1895
        %v2920 = vcvt.s32.f32 %v1896
        %v2921 = vcvt.s32.f32 %v1897
        %v2922 = vcvt.s32.f32 %v1898
        %v2923 = vcvt.s32.f32 %v1899
        %v2924 = vcvt.s32.f32 %v1900
        %v2925 = vcvt.s32.f32 %v1901
        %v2926 = vcvt.s32.f32 %v1902
        %v2927 = vcvt.s32.f32 %v1903
        %v2928 = vcvt.s32.f32 %v1904
        %v2929 = vcvt.s32.f32 %v1905
        %v2930 = vcvt.s32.f32 %v1906
        %v2931 = vcvt.s32.f32 %v1907
        %v2932 = vcvt.s32.f32 %v1908
        %v2933 = vcvt.s32.f32 %v1909
        %v2934 = vcvt.s32.f32 %v1910
        %v2935 = vcvt.s32.f32 %v1911
        %v2936 = vcvt.s32.f32 %v1912
        %v2937 = vcvt.s32.f32 %v1913
        %v2938 = vcvt.s32.f32 %v1914
        %v2939 = vcvt.s32.f32 %v1915
        %v2940 = vcvt.s32.f32 %v1916
        %v2941 = vcvt.s32.f32 %v1917
        %v2942 = vcvt.s32.f32 %v1918
        %v2943 = vcvt.s32.f32 %v1919
        %v2944 = vcvt.s32.f32 %v1920
        %v2945 = vcvt.s32.f32 %v1921
        %v2946 = vcvt.s32.f32 %v1922
        %v2947 = vcvt.s32.f32 %v1923
        %v2948 = vcvt.s32.f32 %v1924
        %v2949 = vcvt.s32.f32 %v1925
        %v2950 = vcvt.s32.f32 %v1926
        %v2951 = vcvt.s32.f32 %v1927
        %v2952 = vcvt.s32.f32 %v1928
        %v2953 = vcvt.s32.f32 %v1929
        %v2954 = vcvt.s32.f32 %v1930
        %v2955 = vcvt.s32.f32 %v1931
        %v2956 = vcvt.s32.f32 %v1932
        %v2957 = vcvt.s32.f32 %v1933
        %v2958 = vcvt.s32.f32 %v1934
        %v2959 = vcvt.s32.f32 %v1935
        %v2960 = vcvt.s32.f32 %v1936
        %v2961 = vcvt.s32.f32 %v1937
        %v2962 = vcvt.s32.f32 %v1938
        %v2963 = vcvt.s32.f32 %v1939
        %v2964 = vcvt.s32.f32 %v1940
        %v2965 = vcvt.s32.f32 %v1941
        %v2966 = vcvt.s32.f32 %v1942
        %v2967 = vcvt.s32.f32 %v1943
        %v2968 = vcvt.s32.f32 %v1944
        %v2969 = vcvt.s32.f32 %v1945
        %v2970 = vcvt.s32.f32 %v1946
        %v2971 = vcvt.s32.f32 %v1947
        %v2972 = vcvt.s32.f32 %v1948
        %v2973 = vcvt.s32.f32 %v1949
        %v2974 = vcvt.s32.f32 %v1950
        %v2975 = vcvt.s32.f32 %v1951
        %v2976 = vcvt.s32.f32 %v1952
        %v2977 = vcvt.s32.f32 %v1953
        %v2978 = vcvt.s32.f32 %v1954
        %v2979 = vcvt.s32.f32 %v1955
        %v2980 = vcvt.s32.f32 %v1956
        %v2981 = vcvt.s32.f32 %v1957
        %v2982 = vcvt.s32.f32 %v1958
        %v2983 = vcvt.s32.f32 %v1959
        %v2984 = vcvt.s32.f32 %v1960
        %v2985 = vcvt.s32.f32 %v1961
        %v2986 = vcvt.s32.f32 %v1962
        %v2987 = vcvt.s32.f32 %v1963
        %v2988 = vcvt.s32.f32 %v1964
        %v2989 = vcvt.s32.f32 %v1965
        %v2990 = vcvt.s32.f32 %v1966
        %v2991 = vcvt.s32.f32 %v1967
        %v2992 = vcvt.s32.f32 %v1968
        %v2993 = vcvt.s32.f32 %v1969
        %v2994 = vcvt.s32.f32 %v1970
        %v2995 = vcvt.s32.f32 %v1971
        %v2996 = vcvt.s32.f32 %v1972
        %v2997 = vcvt.s32.f32 %v1973
        %v2998 = vcvt.s32.f32 %v1974
        %v2999 = vcvt.s32.f32 %v1975
        %v3000 = vcvt.s32.f32 %v1976
        %v3001 = vcvt.s32.f32 %v1977
        %v3002 = vcvt.s32.f32 %v1978
        %v3003 = vcvt.s32.f32 %v1979
        %v3004 = vcvt.s32.f32 %v1980
        %v3005 = vcvt.s32.f32 %v1981
        %v3006 = vcvt.s32.f32 %v1982
        %v3007 = vcvt.s32.f32 %v1983
        %v3008 = vcvt.s32.f32 %v1984
        %v3009 = vcvt.s32.f32 %v1985
        %v3010 = vcvt.s32.f32 %v1986
        %v3011 = vcvt.s32.f32 %v1987
        %v3012 = vcvt.s32.f32 %v1988
        %v3013 = vcvt.s32.f32 %v1989
        %v3014 = vcvt.s32.f32 %v1990
        %v3015 = vcvt.s32.f32 %v1991
        %v3016 = vcvt.s32.f32 %v1992
        %v3017 = vcvt.s32.f32 %v1993
        %v3018 = vcvt.s32.f32 %v1994
        %v3019 = vcvt.s32.f32 %v1995
        %v3020 = vcvt.s32.f32 %v1996
        %v3021 = vcvt.s32.f32 %v1997
        %v3022 = vcvt.s32.f32 %v1998
        %v3023 = vcvt.s32.f32 %v1999
        %v3024 = vcvt.s32.f32 %v2000
        %v3025 = vcvt.s32.f32 %v2001
        %v3026 = vcvt.s32.f32 %v2002
        %v3027 = vcvt.s32.f32 %v2003
        %v3028 = vcvt.s32.f32 %v2004
        %v3029 = vcvt.s32.f32 %v2005
        %v3030 = vcvt.s32.f32 %v2006
        %v3031 = vcvt.s32.f32 %v2007
        %v3032 = vcvt.s32.f32 %v2008
        %v3033 = vcvt.s32.f32 %v2009
        %v3034 = vcvt.s32.f32 %v2010
        %v3035 = vcvt.s32.f32 %v2011
        %v3036 = vcvt.s32.f32 %v2012
        %v3037 = vcvt.s32.f32 %v2013
        %v3038 = vcvt.s32.f32 %v2014
        %v3039 = vcvt.s32.f32 %v2015
        %v3040 = vcvt.s32.f32 %v2016
        %v3041 = vcvt.s32.f32 %v2017
        %v3042 = vcvt.s32.f32 %v2018
        %v3043 = vcvt.s32.f32 %v2019
        %v3044 = vcvt.s32.f32 %v2020
        %v3045 = vcvt.s32.f32 %v2021
        %v3046 = vcvt.s32.f32 %v2022
        %v3047 = vcvt.s32.f32 %v2023
        %v3048 = vcvt.s32.f32 %v2024
        %v3049 = vcvt.s32.f32 %v2025
        %v3050 = vcvt.s32.f32 %v2026
        %v3051 = vcvt.s32.f32 %v2027
        %v3052 = vcvt.s32.f32 %v2028
        %v3053 = vcvt.s32.f32 %v2029
        %v3054 = vcvt.s32.f32 %v2030
        %v3055 = vcvt.s32.f32 %v2031
        %v3056 = vcvt.s32.f32 %v2032
        %v3057 = vcvt.s32.f32 %v2033
        %v3058 = vcvt.s32.f32 %v2034
        %v3059 = vcvt.s32.f32 %v2035
        %v3060 = vcvt.s32.f32 %v2036
        %v3061 = vcvt.s32.f32 %v2037
        %v3062 = vcvt.s32.f32 %v2038
        %v3063 = vcvt.s32.f32 %v2039
        %v3064 = vcvt.s32.f32 %v2040
        %v3065 = vcvt.s32.f32 %v2041
        %v3066 = vcvt.s32.f32 %v2042
        %v3067 = vcvt.s32.f32 %v2043
        %v3068 = vcvt.s32.f32 %v2044
        %v3069 = vcvt.s32.f32 %v2045
        %v3070 = vcvt.s32.f32 %v2046
        %v3071 = vcvt.s32.f32 %v2047
        %v3072 = vcvt.s32.f32 %v2048
        %v3073 = vcvt.s32.f32 %v2049
        %v3074 = vcvt.s32.f32 %v2050
        %v3075 = vcvt.s32.f32 %v2051
        %v3076 = vcvt.s32.f32 %v2052
        %v3077 = vcvt.s32.f32 %v2053
        %v3078 = vcvt.s32.f32 %v2054
        %v3079 = vcvt.s32.f32 %v2055
        %v3080 = vcvt.s32.f32 %v2056
        %v3081 = vcvt.s32.f32 %v2057
        %v3082 = vcvt.s32.f32 %v2058
        %v3083 = vcvt.s32.f32 %v2059
        %v3084 = vcvt.s32.f32 %v2060
        %v3085 = vcvt.s32.f32 %v2061
        %v3086 = vcvt.s32.f32 %v2062
        %v3087 = vcvt.s32.f32 %v2063
        %v3088 = vcvt.s32.f32 %v2064
        %v3089 = vcvt.s32.f32 %v2065
        %v3090 = vcvt.s32.f32 %v2066
        %v3091 = vcvt.s32.f32 %v2067
        %v3092 = vcvt.s32.f32 %v2068
        %v3093 = vcvt.s32.f32 %v2069
        %v3094 = vpack.c.bf16 %v2074, %v2070
        %v3095 = vpack.c.bf16 %v2075, %v2071
        %v3096 = vpack.c.bf16 %v2076, %v2072
        %v3097 = vpack.c.bf16 %v2077, %v2073
        %v3098 = vpack.c.bf16 %v2082, %v2078
        %v3099 = vpack.c.bf16 %v2083, %v2079
        %v3100 = vpack.c.bf16 %v2084, %v2080
        %v3101 = vpack.c.bf16 %v2085, %v2081
        %v3102 = vpack.c.bf16 %v2090, %v2086
        %v3103 = vpack.c.bf16 %v2091, %v2087
        %v3104 = vpack.c.bf16 %v2092, %v2088
        %v3105 = vpack.c.bf16 %v2093, %v2089
        %v3106 = vpack.c.bf16 %v2098, %v2094
        %v3107 = vpack.c.bf16 %v2099, %v2095
        %v3108 = vpack.c.bf16 %v2100, %v2096
        %v3109 = vpack.c.bf16 %v2101, %v2097
        %v3110 = vpack.c.bf16 %v2106, %v2102
        %v3111 = vpack.c.bf16 %v2107, %v2103
        %v3112 = vpack.c.bf16 %v2108, %v2104
        %v3113 = vpack.c.bf16 %v2109, %v2105
        %v3114 = vpack.c.bf16 %v2114, %v2110
        %v3115 = vpack.c.bf16 %v2115, %v2111
        %v3116 = vpack.c.bf16 %v2116, %v2112
        %v3117 = vpack.c.bf16 %v2117, %v2113
        %v3118 = vpack.c.bf16 %v2122, %v2118
        %v3119 = vpack.c.bf16 %v2123, %v2119
        %v3120 = vpack.c.bf16 %v2124, %v2120
        %v3121 = vpack.c.bf16 %v2125, %v2121
        %v3122 = vpack.c.bf16 %v2130, %v2126
        %v3123 = vpack.c.bf16 %v2131, %v2127
        %v3124 = vpack.c.bf16 %v2132, %v2128
        %v3125 = vpack.c.bf16 %v2133, %v2129
        %v3126 = vpack.c.bf16 %v2138, %v2134
        %v3127 = vpack.c.bf16 %v2139, %v2135
        %v3128 = vpack.c.bf16 %v2140, %v2136
        %v3129 = vpack.c.bf16 %v2141, %v2137
        %v3130 = vpack.c.bf16 %v2146, %v2142
        %v3131 = vpack.c.bf16 %v2147, %v2143
        %v3132 = vpack.c.bf16 %v2148, %v2144
        %v3133 = vpack.c.bf16 %v2149, %v2145
        %v3134 = vpack.c.bf16 %v2154, %v2150
        %v3135 = vpack.c.bf16 %v2155, %v2151
        %v3136 = vpack.c.bf16 %v2156, %v2152
        %v3137 = vpack.c.bf16 %v2157, %v2153
        %v3138 = vpack.c.bf16 %v2162, %v2158
        %v3139 = vpack.c.bf16 %v2163, %v2159
        %v3140 = vpack.c.bf16 %v2164, %v2160
        %v3141 = vpack.c.bf16 %v2165, %v2161
        %v3142 = vpack.c.bf16 %v2170, %v2166
        %v3143 = vpack.c.bf16 %v2171, %v2167
        %v3144 = vpack.c.bf16 %v2172, %v2168
        %v3145 = vpack.c.bf16 %v2173, %v2169
        %v3146 = vpack.c.bf16 %v2178, %v2174
        %v3147 = vpack.c.bf16 %v2179, %v2175
        %v3148 = vpack.c.bf16 %v2180, %v2176
        %v3149 = vpack.c.bf16 %v2181, %v2177
        %v3150 = vpack.c.bf16 %v2186, %v2182
        %v3151 = vpack.c.bf16 %v2187, %v2183
        %v3152 = vpack.c.bf16 %v2188, %v2184
        %v3153 = vpack.c.bf16 %v2189, %v2185
        %v3154 = vpack.c.bf16 %v2194, %v2190
        %v3155 = vpack.c.bf16 %v2195, %v2191
        %v3156 = vpack.c.bf16 %v2196, %v2192
        %v3157 = vpack.c.bf16 %v2197, %v2193
        %v3158 = vpack.c.bf16 %v2202, %v2198
        %v3159 = vpack.c.bf16 %v2203, %v2199
        %v3160 = vpack.c.bf16 %v2204, %v2200
        %v3161 = vpack.c.bf16 %v2205, %v2201
        %v3162 = vpack.c.bf16 %v2210, %v2206
        %v3163 = vpack.c.bf16 %v2211, %v2207
        %v3164 = vpack.c.bf16 %v2212, %v2208
        %v3165 = vpack.c.bf16 %v2213, %v2209
        %v3166 = vpack.c.bf16 %v2218, %v2214
        %v3167 = vpack.c.bf16 %v2219, %v2215
        %v3168 = vpack.c.bf16 %v2220, %v2216
        %v3169 = vpack.c.bf16 %v2221, %v2217
        %v3170 = vpack.c.bf16 %v2226, %v2222
        %v3171 = vpack.c.bf16 %v2227, %v2223
        %v3172 = vpack.c.bf16 %v2228, %v2224
        %v3173 = vpack.c.bf16 %v2229, %v2225
        %v3174 = vpack.c.bf16 %v2234, %v2230
        %v3175 = vpack.c.bf16 %v2235, %v2231
        %v3176 = vpack.c.bf16 %v2236, %v2232
        %v3177 = vpack.c.bf16 %v2237, %v2233
        %v3178 = vpack.c.bf16 %v2242, %v2238
        %v3179 = vpack.c.bf16 %v2243, %v2239
        %v3180 = vpack.c.bf16 %v2244, %v2240
        %v3181 = vpack.c.bf16 %v2245, %v2241
        %v3182 = vpack.c.bf16 %v2250, %v2246
        %v3183 = vpack.c.bf16 %v2251, %v2247
        %v3184 = vpack.c.bf16 %v2252, %v2248
        %v3185 = vpack.c.bf16 %v2253, %v2249
        %v3186 = vpack.c.bf16 %v2258, %v2254
        %v3187 = vpack.c.bf16 %v2259, %v2255
        %v3188 = vpack.c.bf16 %v2260, %v2256
        %v3189 = vpack.c.bf16 %v2261, %v2257
        %v3190 = vpack.c.bf16 %v2266, %v2262
        %v3191 = vpack.c.bf16 %v2267, %v2263
        %v3192 = vpack.c.bf16 %v2268, %v2264
        %v3193 = vpack.c.bf16 %v2269, %v2265
        %v3194 = vpack.c.bf16 %v2274, %v2270
        %v3195 = vpack.c.bf16 %v2275, %v2271
        %v3196 = vpack.c.bf16 %v2276, %v2272
        %v3197 = vpack.c.bf16 %v2277, %v2273
        %v3198 = vpack.c.bf16 %v2282, %v2278
        %v3199 = vpack.c.bf16 %v2283, %v2279
        %v3200 = vpack.c.bf16 %v2284, %v2280
        %v3201 = vpack.c.bf16 %v2285, %v2281
        %v3202 = vpack.c.bf16 %v2290, %v2286
        %v3203 = vpack.c.bf16 %v2291, %v2287
        %v3204 = vpack.c.bf16 %v2292, %v2288
        %v3205 = vpack.c.bf16 %v2293, %v2289
        %v3206 = vpack.c.bf16 %v2298, %v2294
        %v3207 = vpack.c.bf16 %v2299, %v2295
        %v3208 = vpack.c.bf16 %v2300, %v2296
        %v3209 = vpack.c.bf16 %v2301, %v2297
        %v3210 = vpack.c.bf16 %v2306, %v2302
        %v3211 = vpack.c.bf16 %v2307, %v2303
        %v3212 = vpack.c.bf16 %v2308, %v2304
        %v3213 = vpack.c.bf16 %v2309, %v2305
        %v3214 = vpack.c.bf16 %v2314, %v2310
        %v3215 = vpack.c.bf16 %v2315, %v2311
        %v3216 = vpack.c.bf16 %v2316, %v2312
        %v3217 = vpack.c.bf16 %v2317, %v2313
        %v3218 = vpack.c.bf16 %v2322, %v2318
        %v3219 = vpack.c.bf16 %v2323, %v2319
        %v3220 = vpack.c.bf16 %v2324, %v2320
        %v3221 = vpack.c.bf16 %v2325, %v2321
        %v3222 = vpack.c.bf16 %v2330, %v2326
        %v3223 = vpack.c.bf16 %v2331, %v2327
        %v3224 = vpack.c.bf16 %v2332, %v2328
        %v3225 = vpack.c.bf16 %v2333, %v2329
        %v3226 = vpack.c.bf16 %v2338, %v2334
        %v3227 = vpack.c.bf16 %v2339, %v2335
        %v3228 = vpack.c.bf16 %v2340, %v2336
        %v3229 = vpack.c.bf16 %v2341, %v2337
        %v3230 = vpack.c.bf16 %v2346, %v2342
        %v3231 = vpack.c.bf16 %v2347, %v2343
        %v3232 = vpack.c.bf16 %v2348, %v2344
        %v3233 = vpack.c.bf16 %v2349, %v2345
        %v3234 = vpack.c.bf16 %v2354, %v2350
        %v3235 = vpack.c.bf16 %v2355, %v2351
        %v3236 = vpack.c.bf16 %v2356, %v2352
        %v3237 = vpack.c.bf16 %v2357, %v2353
        %v3238 = vpack.c.bf16 %v2362, %v2358
        %v3239 = vpack.c.bf16 %v2363, %v2359
        %v3240 = vpack.c.bf16 %v2364, %v2360
        %v3241 = vpack.c.bf16 %v2365, %v2361
        %v3242 = vpack.c.bf16 %v2370, %v2366
        %v3243 = vpack.c.bf16 %v2371, %v2367
        %v3244 = vpack.c.bf16 %v2372, %v2368
        %v3245 = vpack.c.bf16 %v2373, %v2369
        %v3246 = vpack.c.bf16 %v2378, %v2374
        %v3247 = vpack.c.bf16 %v2379, %v2375
        %v3248 = vpack.c.bf16 %v2380, %v2376
        %v3249 = vpack.c.bf16 %v2381, %v2377
        %v3250 = vpack.c.bf16 %v2386, %v2382
        %v3251 = vpack.c.bf16 %v2387, %v2383
        %v3252 = vpack.c.bf16 %v2388, %v2384
        %v3253 = vpack.c.bf16 %v2389, %v2385
        %v3254 = vpack.c.bf16 %v2394, %v2390
        %v3255 = vpack.c.bf16 %v2395, %v2391
        %v3256 = vpack.c.bf16 %v2396, %v2392
        %v3257 = vpack.c.bf16 %v2397, %v2393
        %v3258 = vpack.c.bf16 %v2402, %v2398
        %v3259 = vpack.c.bf16 %v2403, %v2399
        %v3260 = vpack.c.bf16 %v2404, %v2400
        %v3261 = vpack.c.bf16 %v2405, %v2401
        %v3262 = vpack.c.bf16 %v2410, %v2406
        %v3263 = vpack.c.bf16 %v2411, %v2407
        %v3264 = vpack.c.bf16 %v2412, %v2408
        %v3265 = vpack.c.bf16 %v2413, %v2409
        %v3266 = vpack.c.bf16 %v2418, %v2414
        %v3267 = vpack.c.bf16 %v2419, %v2415
        %v3268 = vpack.c.bf16 %v2420, %v2416
        %v3269 = vpack.c.bf16 %v2421, %v2417
        %v3270 = vpack.c.bf16 %v2426, %v2422
        %v3271 = vpack.c.bf16 %v2427, %v2423
        %v3272 = vpack.c.bf16 %v2428, %v2424
        %v3273 = vpack.c.bf16 %v2429, %v2425
        %v3274 = vpack.c.bf16 %v2434, %v2430
        %v3275 = vpack.c.bf16 %v2435, %v2431
        %v3276 = vpack.c.bf16 %v2436, %v2432
        %v3277 = vpack.c.bf16 %v2437, %v2433
        %v3278 = vpack.c.bf16 %v2442, %v2438
        %v3279 = vpack.c.bf16 %v2443, %v2439
        %v3280 = vpack.c.bf16 %v2444, %v2440
        %v3281 = vpack.c.bf16 %v2445, %v2441
        %v3282 = vpack.c.bf16 %v2450, %v2446
        %v3283 = vpack.c.bf16 %v2451, %v2447
        %v3284 = vpack.c.bf16 %v2452, %v2448
        %v3285 = vpack.c.bf16 %v2453, %v2449
        %v3286 = vpack.c.bf16 %v2458, %v2454
        %v3287 = vpack.c.bf16 %v2459, %v2455
        %v3288 = vpack.c.bf16 %v2460, %v2456
        %v3289 = vpack.c.bf16 %v2461, %v2457
        %v3290 = vpack.c.bf16 %v2466, %v2462
        %v3291 = vpack.c.bf16 %v2467, %v2463
        %v3292 = vpack.c.bf16 %v2468, %v2464
        %v3293 = vpack.c.bf16 %v2469, %v2465
        %v3294 = vpack.c.bf16 %v2474, %v2470
        %v3295 = vpack.c.bf16 %v2475, %v2471
        %v3296 = vpack.c.bf16 %v2476, %v2472
        %v3297 = vpack.c.bf16 %v2477, %v2473
        %v3298 = vpack.c.bf16 %v2482, %v2478
        %v3299 = vpack.c.bf16 %v2483, %v2479
        %v3300 = vpack.c.bf16 %v2484, %v2480
        %v3301 = vpack.c.bf16 %v2485, %v2481
        %v3302 = vpack.c.bf16 %v2490, %v2486
        %v3303 = vpack.c.bf16 %v2491, %v2487
        %v3304 = vpack.c.bf16 %v2492, %v2488
        %v3305 = vpack.c.bf16 %v2493, %v2489
        %v3306 = vpack.c.bf16 %v2498, %v2494
        %v3307 = vpack.c.bf16 %v2499, %v2495
        %v3308 = vpack.c.bf16 %v2500, %v2496
        %v3309 = vpack.c.bf16 %v2501, %v2497
        %v3310 = vpack.c.bf16 %v2506, %v2502
        %v3311 = vpack.c.bf16 %v2507, %v2503
        %v3312 = vpack.c.bf16 %v2508, %v2504
        %v3313 = vpack.c.bf16 %v2509, %v2505
        %v3314 = vpack.c.bf16 %v2514, %v2510
        %v3315 = vpack.c.bf16 %v2515, %v2511
        %v3316 = vpack.c.bf16 %v2516, %v2512
        %v3317 = vpack.c.bf16 %v2517, %v2513
        %v3318 = vpack.c.bf16 %v2522, %v2518
        %v3319 = vpack.c.bf16 %v2523, %v2519
        %v3320 = vpack.c.bf16 %v2524, %v2520
        %v3321 = vpack.c.bf16 %v2525, %v2521
        %v3322 = vpack.c.bf16 %v2530, %v2526
        %v3323 = vpack.c.bf16 %v2531, %v2527
        %v3324 = vpack.c.bf16 %v2532, %v2528
        %v3325 = vpack.c.bf16 %v2533, %v2529
        %v3326 = vpack.c.bf16 %v2538, %v2534
        %v3327 = vpack.c.bf16 %v2539, %v2535
        %v3328 = vpack.c.bf16 %v2540, %v2536
        %v3329 = vpack.c.bf16 %v2541, %v2537
        %v3330 = vpack.c.bf16 %v2546, %v2542
        %v3331 = vpack.c.bf16 %v2547, %v2543
        %v3332 = vpack.c.bf16 %v2548, %v2544
        %v3333 = vpack.c.bf16 %v2549, %v2545
        %v3334 = vpack.c.bf16 %v2554, %v2550
        %v3335 = vpack.c.bf16 %v2555, %v2551
        %v3336 = vpack.c.bf16 %v2556, %v2552
        %v3337 = vpack.c.bf16 %v2557, %v2553
        %v3338 = vpack.c.bf16 %v2562, %v2558
        %v3339 = vpack.c.bf16 %v2563, %v2559
        %v3340 = vpack.c.bf16 %v2564, %v2560
        %v3341 = vpack.c.bf16 %v2565, %v2561
        %v3342 = vpack.c.bf16 %v2570, %v2566
        %v3343 = vpack.c.bf16 %v2571, %v2567
        %v3344 = vpack.c.bf16 %v2572, %v2568
        %v3345 = vpack.c.bf16 %v2573, %v2569
        %v3346 = vpack.c.bf16 %v2578, %v2574
        %v3347 = vpack.c.bf16 %v2579, %v2575
        %v3348 = vpack.c.bf16 %v2580, %v2576
        %v3349 = vpack.c.bf16 %v2581, %v2577
        %v3350 = vpack.c.bf16 %v2586, %v2582
        %v3351 = vpack.c.bf16 %v2587, %v2583
        %v3352 = vpack.c.bf16 %v2588, %v2584
        %v3353 = vpack.c.bf16 %v2589, %v2585
        %v3354 = vpack.c.bf16 %v2594, %v2590
        %v3355 = vpack.c.bf16 %v2595, %v2591
        %v3356 = vpack.c.bf16 %v2596, %v2592
        %v3357 = vpack.c.bf16 %v2597, %v2593
        %v3358 = vpack.c.bf16 %v2602, %v2598
        %v3359 = vpack.c.bf16 %v2603, %v2599
        %v3360 = vpack.c.bf16 %v2604, %v2600
        %v3361 = vpack.c.bf16 %v2605, %v2601
        %v3362 = vpack.c.bf16 %v2610, %v2606
        %v3363 = vpack.c.bf16 %v2611, %v2607
        %v3364 = vpack.c.bf16 %v2612, %v2608
        %v3365 = vpack.c.bf16 %v2613, %v2609
        %v3366 = vpack.c.bf16 %v2618, %v2614
        %v3367 = vpack.c.bf16 %v2619, %v2615
        %v3368 = vpack.c.bf16 %v2620, %v2616
        %v3369 = vpack.c.bf16 %v2621, %v2617
        %v3370 = vpack.c.bf16 %v2626, %v2622
        %v3371 = vpack.c.bf16 %v2627, %v2623
        %v3372 = vpack.c.bf16 %v2628, %v2624
        %v3373 = vpack.c.bf16 %v2629, %v2625
        %v3374 = vpack.c.bf16 %v2634, %v2630
        %v3375 = vpack.c.bf16 %v2635, %v2631
        %v3376 = vpack.c.bf16 %v2636, %v2632
        %v3377 = vpack.c.bf16 %v2637, %v2633
        %v3378 = vpack.c.bf16 %v2642, %v2638
        %v3379 = vpack.c.bf16 %v2643, %v2639
        %v3380 = vpack.c.bf16 %v2644, %v2640
        %v3381 = vpack.c.bf16 %v2645, %v2641
        %v3382 = vpack.c.bf16 %v2650, %v2646
        %v3383 = vpack.c.bf16 %v2651, %v2647
        %v3384 = vpack.c.bf16 %v2652, %v2648
        %v3385 = vpack.c.bf16 %v2653, %v2649
        %v3386 = vpack.c.bf16 %v2658, %v2654
        %v3387 = vpack.c.bf16 %v2659, %v2655
        %v3388 = vpack.c.bf16 %v2660, %v2656
        %v3389 = vpack.c.bf16 %v2661, %v2657
        %v3390 = vpack.c.bf16 %v2666, %v2662
        %v3391 = vpack.c.bf16 %v2667, %v2663
        %v3392 = vpack.c.bf16 %v2668, %v2664
        %v3393 = vpack.c.bf16 %v2669, %v2665
        %v3394 = vpack.c.bf16 %v2674, %v2670
        %v3395 = vpack.c.bf16 %v2675, %v2671
        %v3396 = vpack.c.bf16 %v2676, %v2672
        %v3397 = vpack.c.bf16 %v2677, %v2673
        %v3398 = vpack.c.bf16 %v2682, %v2678
        %v3399 = vpack.c.bf16 %v2683, %v2679
        %v3400 = vpack.c.bf16 %v2684, %v2680
        %v3401 = vpack.c.bf16 %v2685, %v2681
        %v3402 = vpack.c.bf16 %v2690, %v2686
        %v3403 = vpack.c.bf16 %v2691, %v2687
        %v3404 = vpack.c.bf16 %v2692, %v2688
        %v3405 = vpack.c.bf16 %v2693, %v2689
        %v3406 = vpack.c.bf16 %v2698, %v2694
        %v3407 = vpack.c.bf16 %v2699, %v2695
        %v3408 = vpack.c.bf16 %v2700, %v2696
        %v3409 = vpack.c.bf16 %v2701, %v2697
        %v3410 = vpack.c.bf16 %v2706, %v2702
        %v3411 = vpack.c.bf16 %v2707, %v2703
        %v3412 = vpack.c.bf16 %v2708, %v2704
        %v3413 = vpack.c.bf16 %v2709, %v2705
        %v3414 = vpack.c.bf16 %v2714, %v2710
        %v3415 = vpack.c.bf16 %v2715, %v2711
        %v3416 = vpack.c.bf16 %v2716, %v2712
        %v3417 = vpack.c.bf16 %v2717, %v2713
        %v3418 = vpack.c.bf16 %v2722, %v2718
        %v3419 = vpack.c.bf16 %v2723, %v2719
        %v3420 = vpack.c.bf16 %v2724, %v2720
        %v3421 = vpack.c.bf16 %v2725, %v2721
        %v3422 = vpack.c.bf16 %v2730, %v2726
        %v3423 = vpack.c.bf16 %v2731, %v2727
        %v3424 = vpack.c.bf16 %v2732, %v2728
        %v3425 = vpack.c.bf16 %v2733, %v2729
        %v3426 = vpack.c.bf16 %v2738, %v2734
        %v3427 = vpack.c.bf16 %v2739, %v2735
        %v3428 = vpack.c.bf16 %v2740, %v2736
        %v3429 = vpack.c.bf16 %v2741, %v2737
        %v3430 = vpack.c.bf16 %v2746, %v2742
        %v3431 = vpack.c.bf16 %v2747, %v2743
        %v3432 = vpack.c.bf16 %v2748, %v2744
        %v3433 = vpack.c.bf16 %v2749, %v2745
        %v3434 = vpack.c.bf16 %v2754, %v2750
        %v3435 = vpack.c.bf16 %v2755, %v2751
        %v3436 = vpack.c.bf16 %v2756, %v2752
        %v3437 = vpack.c.bf16 %v2757, %v2753
        %v3438 = vpack.c.bf16 %v2762, %v2758
        %v3439 = vpack.c.bf16 %v2763, %v2759
        %v3440 = vpack.c.bf16 %v2764, %v2760
        %v3441 = vpack.c.bf16 %v2765, %v2761
        %v3442 = vpack.c.bf16 %v2770, %v2766
        %v3443 = vpack.c.bf16 %v2771, %v2767
        %v3444 = vpack.c.bf16 %v2772, %v2768
        %v3445 = vpack.c.bf16 %v2773, %v2769
        %v3446 = vpack.c.bf16 %v2778, %v2774
        %v3447 = vpack.c.bf16 %v2779, %v2775
        %v3448 = vpack.c.bf16 %v2780, %v2776
        %v3449 = vpack.c.bf16 %v2781, %v2777
        %v3450 = vpack.c.bf16 %v2786, %v2782
        %v3451 = vpack.c.bf16 %v2787, %v2783
        %v3452 = vpack.c.bf16 %v2788, %v2784
        %v3453 = vpack.c.bf16 %v2789, %v2785
        %v3454 = vpack.c.bf16 %v2794, %v2790
        %v3455 = vpack.c.bf16 %v2795, %v2791
        %v3456 = vpack.c.bf16 %v2796, %v2792
        %v3457 = vpack.c.bf16 %v2797, %v2793
        %v3458 = vpack.c.bf16 %v2802, %v2798
        %v3459 = vpack.c.bf16 %v2803, %v2799
        %v3460 = vpack.c.bf16 %v2804, %v2800
        %v3461 = vpack.c.bf16 %v2805, %v2801
        %v3462 = vpack.c.bf16 %v2810, %v2806
        %v3463 = vpack.c.bf16 %v2811, %v2807
        %v3464 = vpack.c.bf16 %v2812, %v2808
        %v3465 = vpack.c.bf16 %v2813, %v2809
        %v3466 = vpack.c.bf16 %v2818, %v2814
        %v3467 = vpack.c.bf16 %v2819, %v2815
        %v3468 = vpack.c.bf16 %v2820, %v2816
        %v3469 = vpack.c.bf16 %v2821, %v2817
        %v3470 = vpack.c.bf16 %v2826, %v2822
        %v3471 = vpack.c.bf16 %v2827, %v2823
        %v3472 = vpack.c.bf16 %v2828, %v2824
        %v3473 = vpack.c.bf16 %v2829, %v2825
        %v3474 = vpack.c.bf16 %v2834, %v2830
        %v3475 = vpack.c.bf16 %v2835, %v2831
        %v3476 = vpack.c.bf16 %v2836, %v2832
        %v3477 = vpack.c.bf16 %v2837, %v2833
        %v3478 = vpack.c.bf16 %v2842, %v2838
        %v3479 = vpack.c.bf16 %v2843, %v2839
        %v3480 = vpack.c.bf16 %v2844, %v2840
        %v3481 = vpack.c.bf16 %v2845, %v2841
        %v3482 = vpack.c.bf16 %v2850, %v2846
        %v3483 = vpack.c.bf16 %v2851, %v2847
        %v3484 = vpack.c.bf16 %v2852, %v2848
        %v3485 = vpack.c.bf16 %v2853, %v2849
        %v3486 = vpack.c.bf16 %v2858, %v2854
        %v3487 = vpack.c.bf16 %v2859, %v2855
        %v3488 = vpack.c.bf16 %v2860, %v2856
        %v3489 = vpack.c.bf16 %v2861, %v2857
        %v3490 = vpack.c.bf16 %v2866, %v2862
        %v3491 = vpack.c.bf16 %v2867, %v2863
        %v3492 = vpack.c.bf16 %v2868, %v2864
        %v3493 = vpack.c.bf16 %v2869, %v2865
        %v3494 = vpack.c.bf16 %v2874, %v2870
        %v3495 = vpack.c.bf16 %v2875, %v2871
        %v3496 = vpack.c.bf16 %v2876, %v2872
        %v3497 = vpack.c.bf16 %v2877, %v2873
        %v3498 = vpack.c.bf16 %v2882, %v2878
        %v3499 = vpack.c.bf16 %v2883, %v2879
        %v3500 = vpack.c.bf16 %v2884, %v2880
        %v3501 = vpack.c.bf16 %v2885, %v2881
        %v3502 = vpack.c.bf16 %v2890, %v2886
        %v3503 = vpack.c.bf16 %v2891, %v2887
        %v3504 = vpack.c.bf16 %v2892, %v2888
        %v3505 = vpack.c.bf16 %v2893, %v2889
        %v3506 = vpack.c.bf16 %v2898, %v2894
        %v3507 = vpack.c.bf16 %v2899, %v2895
        %v3508 = vpack.c.bf16 %v2900, %v2896
        %v3509 = vpack.c.bf16 %v2901, %v2897
        %v3510 = vpack.c.bf16 %v2906, %v2902
        %v3511 = vpack.c.bf16 %v2907, %v2903
        %v3512 = vpack.c.bf16 %v2908, %v2904
        %v3513 = vpack.c.bf16 %v2909, %v2905
        %v3514 = vpack.c.bf16 %v2914, %v2910
        %v3515 = vpack.c.bf16 %v2915, %v2911
        %v3516 = vpack.c.bf16 %v2916, %v2912
        %v3517 = vpack.c.bf16 %v2917, %v2913
        %v3518 = vpack.c.bf16 %v2922, %v2918
        %v3519 = vpack.c.bf16 %v2923, %v2919
        %v3520 = vpack.c.bf16 %v2924, %v2920
        %v3521 = vpack.c.bf16 %v2925, %v2921
        %v3522 = vpack.c.bf16 %v2930, %v2926
        %v3523 = vpack.c.bf16 %v2931, %v2927
        %v3524 = vpack.c.bf16 %v2932, %v2928
        %v3525 = vpack.c.bf16 %v2933, %v2929
        %v3526 = vpack.c.bf16 %v2938, %v2934
        %v3527 = vpack.c.bf16 %v2939, %v2935
        %v3528 = vpack.c.bf16 %v2940, %v2936
        %v3529 = vpack.c.bf16 %v2941, %v2937
        %v3530 = vpack.c.bf16 %v2946, %v2942
        %v3531 = vpack.c.bf16 %v2947, %v2943
        %v3532 = vpack.c.bf16 %v2948, %v2944
        %v3533 = vpack.c.bf16 %v2949, %v2945
        %v3534 = vpack.c.bf16 %v2954, %v2950
        %v3535 = vpack.c.bf16 %v2955, %v2951
        %v3536 = vpack.c.bf16 %v2956, %v2952
        %v3537 = vpack.c.bf16 %v2957, %v2953
        %v3538 = vpack.c.bf16 %v2962, %v2958
        %v3539 = vpack.c.bf16 %v2963, %v2959
        %v3540 = vpack.c.bf16 %v2964, %v2960
        %v3541 = vpack.c.bf16 %v2965, %v2961
        %v3542 = vpack.c.bf16 %v2970, %v2966
        %v3543 = vpack.c.bf16 %v2971, %v2967
        %v3544 = vpack.c.bf16 %v2972, %v2968
        %v3545 = vpack.c.bf16 %v2973, %v2969
        %v3546 = vpack.c.bf16 %v2978, %v2974
        %v3547 = vpack.c.bf16 %v2979, %v2975
        %v3548 = vpack.c.bf16 %v2980, %v2976
        %v3549 = vpack.c.bf16 %v2981, %v2977
        %v3550 = vpack.c.bf16 %v2986, %v2982
        %v3551 = vpack.c.bf16 %v2987, %v2983
        %v3552 = vpack.c.bf16 %v2988, %v2984
        %v3553 = vpack.c.bf16 %v2989, %v2985
        %v3554 = vpack.c.bf16 %v2994, %v2990
        %v3555 = vpack.c.bf16 %v2995, %v2991
        %v3556 = vpack.c.bf16 %v2996, %v2992
        %v3557 = vpack.c.bf16 %v2997, %v2993
        %v3558 = vpack.c.bf16 %v3002, %v2998
        %v3559 = vpack.c.bf16 %v3003, %v2999
        %v3560 = vpack.c.bf16 %v3004, %v3000
        %v3561 = vpack.c.bf16 %v3005, %v3001
        %v3562 = vpack.c.bf16 %v3010, %v3006
        %v3563 = vpack.c.bf16 %v3011, %v3007
        %v3564 = vpack.c.bf16 %v3012, %v3008
        %v3565 = vpack.c.bf16 %v3013, %v3009
        %v3566 = vpack.c.bf16 %v3018, %v3014
        %v3567 = vpack.c.bf16 %v3019, %v3015
        %v3568 = vpack.c.bf16 %v3020, %v3016
        %v3569 = vpack.c.bf16 %v3021, %v3017
        %v3570 = vpack.c.bf16 %v3026, %v3022
        %v3571 = vpack.c.bf16 %v3027, %v3023
        %v3572 = vpack.c.bf16 %v3028, %v3024
        %v3573 = vpack.c.bf16 %v3029, %v3025
        %v3574 = vpack.c.bf16 %v3034, %v3030
        %v3575 = vpack.c.bf16 %v3035, %v3031
        %v3576 = vpack.c.bf16 %v3036, %v3032
        %v3577 = vpack.c.bf16 %v3037, %v3033
        %v3578 = vpack.c.bf16 %v3042, %v3038
        %v3579 = vpack.c.bf16 %v3043, %v3039
        %v3580 = vpack.c.bf16 %v3044, %v3040
        %v3581 = vpack.c.bf16 %v3045, %v3041
        %v3582 = vpack.c.bf16 %v3050, %v3046
        %v3583 = vpack.c.bf16 %v3051, %v3047
        %v3584 = vpack.c.bf16 %v3052, %v3048
        %v3585 = vpack.c.bf16 %v3053, %v3049
        %v3586 = vpack.c.bf16 %v3058, %v3054
        %v3587 = vpack.c.bf16 %v3059, %v3055
        %v3588 = vpack.c.bf16 %v3060, %v3056
        %v3589 = vpack.c.bf16 %v3061, %v3057
        %v3590 = vpack.c.bf16 %v3066, %v3062
        %v3591 = vpack.c.bf16 %v3067, %v3063
        %v3592 = vpack.c.bf16 %v3068, %v3064
        %v3593 = vpack.c.bf16 %v3069, %v3065
        %v3594 = vpack.c.bf16 %v3074, %v3070
        %v3595 = vpack.c.bf16 %v3075, %v3071
        %v3596 = vpack.c.bf16 %v3076, %v3072
        %v3597 = vpack.c.bf16 %v3077, %v3073
        %v3598 = vpack.c.bf16 %v3082, %v3078
        %v3599 = vpack.c.bf16 %v3083, %v3079
        %v3600 = vpack.c.bf16 %v3084, %v3080
        %v3601 = vpack.c.bf16 %v3085, %v3081
        %v3602 = vpack.c.bf16 %v3090, %v3086
        %v3603 = vpack.c.bf16 %v3091, %v3087
        %v3604 = vpack.c.bf16 %v3092, %v3088
        %v3605 = vpack.c.bf16 %v3093, %v3089
        %v3606 = vld [vmem:[%s640] sm:$0xff]
        %v3607 = vld [vmem:[%s640 + $0x8] sm:$0xff]
        %v3608 = vld [vmem:[%s640 + $0x10] sm:$0xff]
        %v3609 = vld [vmem:[%s640 + $0x18] sm:$0xff]
        %v3610 = vld [vmem:[%s640 + $0x20] sm:$0xff]
        %v3611 = vld [vmem:[%s640 + $0x28] sm:$0xff]
        %v3612 = vld [vmem:[%s640 + $0x30] sm:$0xff]
        %v3613 = vld [vmem:[%s640 + $0x38] sm:$0xff]
        %v3614 = vld [vmem:[%s640 + $0x40] sm:$0xff]
        %v3615 = vld [vmem:[%s640 + $0x48] sm:$0xff]
        %v3616 = vld [vmem:[%s640 + $0x50] sm:$0xff]
        %v3617 = vld [vmem:[%s640 + $0x58] sm:$0xff]
        %v3618 = vld [vmem:[%s640 + $0x60] sm:$0xff]
        %v3619 = vld [vmem:[%s640 + $0x68] sm:$0xff]
        %v3620 = vld [vmem:[%s640 + $0x70] sm:$0xff]
        %v3621 = vld [vmem:[%s640 + $0x78] sm:$0xff]
        %v3622 = vld [vmem:[%s640 + $0x80] sm:$0xff]
        %v3623 = vld [vmem:[%s640 + $0x88] sm:$0xff]
        %v3624 = vld [vmem:[%s640 + $0x90] sm:$0xff]
        %v3625 = vld [vmem:[%s640 + $0x98] sm:$0xff]
        %v3626 = vld [vmem:[%s640 + $0xa0] sm:$0xff]
        %v3627 = vld [vmem:[%s640 + $0xa8] sm:$0xff]
        %v3628 = vld [vmem:[%s640 + $0xb0] sm:$0xff]
        %v3629 = vld [vmem:[%s640 + $0xb8] sm:$0xff]
        %v3630 = vld [vmem:[%s640 + $0xc0] sm:$0xff]
        %v3631 = vld [vmem:[%s640 + $0xc8] sm:$0xff]
        %v3632 = vld [vmem:[%s640 + $0xd0] sm:$0xff]
        %v3633 = vld [vmem:[%s640 + $0xd8] sm:$0xff]
        %v3634 = vld [vmem:[%s640 + $0xe0] sm:$0xff]
        %v3635 = vld [vmem:[%s640 + $0xe8] sm:$0xff]
        %v3636 = vld [vmem:[%s640 + $0xf0] sm:$0xff]
        %v3637 = vld [vmem:[%s640 + $0xf8] sm:$0xff]
        %v3638 = vld [vmem:[%s640 + $0x100] sm:$0xff]
        %v3639 = vld [vmem:[%s640 + $0x108] sm:$0xff]
        %v3640 = vld [vmem:[%s640 + $0x110] sm:$0xff]
        %v3641 = vld [vmem:[%s640 + $0x118] sm:$0xff]
        %v3642 = vld [vmem:[%s640 + $0x120] sm:$0xff]
        %v3643 = vld [vmem:[%s640 + $0x128] sm:$0xff]
        %v3644 = vld [vmem:[%s640 + $0x130] sm:$0xff]
        %v3645 = vld [vmem:[%s640 + $0x138] sm:$0xff]
        %v3646 = vld [vmem:[%s640 + $0x140] sm:$0xff]
        %v3647 = vld [vmem:[%s640 + $0x148] sm:$0xff]
        %v3648 = vld [vmem:[%s640 + $0x150] sm:$0xff]
        %v3649 = vld [vmem:[%s640 + $0x158] sm:$0xff]
        %v3650 = vld [vmem:[%s640 + $0x160] sm:$0xff]
        %v3651 = vld [vmem:[%s640 + $0x168] sm:$0xff]
        %v3652 = vld [vmem:[%s640 + $0x170] sm:$0xff]
        %v3653 = vld [vmem:[%s640 + $0x178] sm:$0xff]
        %v3654 = vld [vmem:[%s640 + $0x180] sm:$0xff]
        %v3655 = vld [vmem:[%s640 + $0x188] sm:$0xff]
        %v3656 = vld [vmem:[%s640 + $0x190] sm:$0xff]
        %v3657 = vld [vmem:[%s640 + $0x198] sm:$0xff]
        %v3658 = vld [vmem:[%s640 + $0x1a0] sm:$0xff]
        %v3659 = vld [vmem:[%s640 + $0x1a8] sm:$0xff]
        %v3660 = vld [vmem:[%s640 + $0x1b0] sm:$0xff]
        %v3661 = vld [vmem:[%s640 + $0x1b8] sm:$0xff]
        %v3662 = vld [vmem:[%s640 + $0x1c0] sm:$0xff]
        %v3663 = vld [vmem:[%s640 + $0x1c8] sm:$0xff]
        %v3664 = vld [vmem:[%s640 + $0x1d0] sm:$0xff]
        %v3665 = vld [vmem:[%s640 + $0x1d8] sm:$0xff]
        %v3666 = vld [vmem:[%s640 + $0x1e0] sm:$0xff]
        %v3667 = vld [vmem:[%s640 + $0x1e8] sm:$0xff]
        %v3668 = vld [vmem:[%s640 + $0x1f0] sm:$0xff]
        %v3669 = vld [vmem:[%s640 + $0x1f8] sm:$0xff]
        %v3670 = vld [vmem:[%s640 + $0x200] sm:$0xff]
        %v3671 = vld [vmem:[%s640 + $0x208] sm:$0xff]
        %v3672 = vld [vmem:[%s640 + $0x210] sm:$0xff]
        %v3673 = vld [vmem:[%s640 + $0x218] sm:$0xff]
        %v3674 = vld [vmem:[%s640 + $0x220] sm:$0xff]
        %v3675 = vld [vmem:[%s640 + $0x228] sm:$0xff]
        %v3676 = vld [vmem:[%s640 + $0x230] sm:$0xff]
        %v3677 = vld [vmem:[%s640 + $0x238] sm:$0xff]
        %v3678 = vld [vmem:[%s640 + $0x240] sm:$0xff]
        %v3679 = vld [vmem:[%s640 + $0x248] sm:$0xff]
        %v3680 = vld [vmem:[%s640 + $0x250] sm:$0xff]
        %v3681 = vld [vmem:[%s640 + $0x258] sm:$0xff]
        %v3682 = vld [vmem:[%s640 + $0x260] sm:$0xff]
        %v3683 = vld [vmem:[%s640 + $0x268] sm:$0xff]
        %v3684 = vld [vmem:[%s640 + $0x270] sm:$0xff]
        %v3685 = vld [vmem:[%s640 + $0x278] sm:$0xff]
        %v3686 = vld [vmem:[%s640 + $0x280] sm:$0xff]
        %v3687 = vld [vmem:[%s640 + $0x288] sm:$0xff]
        %v3688 = vld [vmem:[%s640 + $0x290] sm:$0xff]
        %v3689 = vld [vmem:[%s640 + $0x298] sm:$0xff]
        %v3690 = vld [vmem:[%s640 + $0x2a0] sm:$0xff]
        %v3691 = vld [vmem:[%s640 + $0x2a8] sm:$0xff]
        %v3692 = vld [vmem:[%s640 + $0x2b0] sm:$0xff]
        %v3693 = vld [vmem:[%s640 + $0x2b8] sm:$0xff]
        %v3694 = vld [vmem:[%s640 + $0x2c0] sm:$0xff]
        %v3695 = vld [vmem:[%s640 + $0x2c8] sm:$0xff]
        %v3696 = vld [vmem:[%s640 + $0x2d0] sm:$0xff]
        %v3697 = vld [vmem:[%s640 + $0x2d8] sm:$0xff]
        %v3698 = vld [vmem:[%s640 + $0x2e0] sm:$0xff]
        %v3699 = vld [vmem:[%s640 + $0x2e8] sm:$0xff]
        %v3700 = vld [vmem:[%s640 + $0x2f0] sm:$0xff]
        %v3701 = vld [vmem:[%s640 + $0x2f8] sm:$0xff]
        %v3702 = vld [vmem:[%s640 + $0x300] sm:$0xff]
        %v3703 = vld [vmem:[%s640 + $0x308] sm:$0xff]
        %v3704 = vld [vmem:[%s640 + $0x310] sm:$0xff]
        %v3705 = vld [vmem:[%s640 + $0x318] sm:$0xff]
        %v3706 = vld [vmem:[%s640 + $0x320] sm:$0xff]
        %v3707 = vld [vmem:[%s640 + $0x328] sm:$0xff]
        %v3708 = vld [vmem:[%s640 + $0x330] sm:$0xff]
        %v3709 = vld [vmem:[%s640 + $0x338] sm:$0xff]
        %v3710 = vld [vmem:[%s640 + $0x340] sm:$0xff]
        %v3711 = vld [vmem:[%s640 + $0x348] sm:$0xff]
        %v3712 = vld [vmem:[%s640 + $0x350] sm:$0xff]
        %v3713 = vld [vmem:[%s640 + $0x358] sm:$0xff]
        %v3714 = vld [vmem:[%s640 + $0x360] sm:$0xff]
        %v3715 = vld [vmem:[%s640 + $0x368] sm:$0xff]
        %v3716 = vld [vmem:[%s640 + $0x370] sm:$0xff]
        %v3717 = vld [vmem:[%s640 + $0x378] sm:$0xff]
        %v3718 = vld [vmem:[%s640 + $0x380] sm:$0xff]
        %v3719 = vld [vmem:[%s640 + $0x388] sm:$0xff]
        %v3720 = vld [vmem:[%s640 + $0x390] sm:$0xff]
        %v3721 = vld [vmem:[%s640 + $0x398] sm:$0xff]
        %v3722 = vld [vmem:[%s640 + $0x3a0] sm:$0xff]
        %v3723 = vld [vmem:[%s640 + $0x3a8] sm:$0xff]
        %v3724 = vld [vmem:[%s640 + $0x3b0] sm:$0xff]
        %v3725 = vld [vmem:[%s640 + $0x3b8] sm:$0xff]
        %v3726 = vld [vmem:[%s640 + $0x3c0] sm:$0xff]
        %v3727 = vld [vmem:[%s640 + $0x3c8] sm:$0xff]
        %v3728 = vld [vmem:[%s640 + $0x3d0] sm:$0xff]
        %v3729 = vld [vmem:[%s640 + $0x3d8] sm:$0xff]
        %v3730 = vld [vmem:[%s640 + $0x3e0] sm:$0xff]
        %v3731 = vld [vmem:[%s640 + $0x3e8] sm:$0xff]
        %v3732 = vld [vmem:[%s640 + $0x3f0] sm:$0xff]
        %v3733 = vld [vmem:[%s640 + $0x3f8] sm:$0xff]
        %v3734 = vld [vmem:[%s640 + $0x400] sm:$0xff]
        %v3735 = vld [vmem:[%s640 + $0x408] sm:$0xff]
        %v3736 = vld [vmem:[%s640 + $0x410] sm:$0xff]
        %v3737 = vld [vmem:[%s640 + $0x418] sm:$0xff]
        %v3738 = vld [vmem:[%s640 + $0x420] sm:$0xff]
        %v3739 = vld [vmem:[%s640 + $0x428] sm:$0xff]
        %v3740 = vld [vmem:[%s640 + $0x430] sm:$0xff]
        %v3741 = vld [vmem:[%s640 + $0x438] sm:$0xff]
        %v3742 = vld [vmem:[%s640 + $0x440] sm:$0xff]
        %v3743 = vld [vmem:[%s640 + $0x448] sm:$0xff]
        %v3744 = vld [vmem:[%s640 + $0x450] sm:$0xff]
        %v3745 = vld [vmem:[%s640 + $0x458] sm:$0xff]
        %v3746 = vld [vmem:[%s640 + $0x460] sm:$0xff]
        %v3747 = vld [vmem:[%s640 + $0x468] sm:$0xff]
        %v3748 = vld [vmem:[%s640 + $0x470] sm:$0xff]
        %v3749 = vld [vmem:[%s640 + $0x478] sm:$0xff]
        %v3750 = vld [vmem:[%s640 + $0x480] sm:$0xff]
        %v3751 = vld [vmem:[%s640 + $0x488] sm:$0xff]
        %v3752 = vld [vmem:[%s640 + $0x490] sm:$0xff]
        %v3753 = vld [vmem:[%s640 + $0x498] sm:$0xff]
        %v3754 = vld [vmem:[%s640 + $0x4a0] sm:$0xff]
        %v3755 = vld [vmem:[%s640 + $0x4a8] sm:$0xff]
        %v3756 = vld [vmem:[%s640 + $0x4b0] sm:$0xff]
        %v3757 = vld [vmem:[%s640 + $0x4b8] sm:$0xff]
        %v3758 = vld [vmem:[%s640 + $0x4c0] sm:$0xff]
        %v3759 = vld [vmem:[%s640 + $0x4c8] sm:$0xff]
        %v3760 = vld [vmem:[%s640 + $0x4d0] sm:$0xff]
        %v3761 = vld [vmem:[%s640 + $0x4d8] sm:$0xff]
        %v3762 = vld [vmem:[%s640 + $0x4e0] sm:$0xff]
        %v3763 = vld [vmem:[%s640 + $0x4e8] sm:$0xff]
        %v3764 = vld [vmem:[%s640 + $0x4f0] sm:$0xff]
        %v3765 = vld [vmem:[%s640 + $0x4f8] sm:$0xff]
        %v3766 = vld [vmem:[%s640 + $0x500] sm:$0xff]
        %v3767 = vld [vmem:[%s640 + $0x508] sm:$0xff]
        %v3768 = vld [vmem:[%s640 + $0x510] sm:$0xff]
        %v3769 = vld [vmem:[%s640 + $0x518] sm:$0xff]
        %v3770 = vld [vmem:[%s640 + $0x520] sm:$0xff]
        %v3771 = vld [vmem:[%s640 + $0x528] sm:$0xff]
        %v3772 = vld [vmem:[%s640 + $0x530] sm:$0xff]
        %v3773 = vld [vmem:[%s640 + $0x538] sm:$0xff]
        %v3774 = vld [vmem:[%s640 + $0x540] sm:$0xff]
        %v3775 = vld [vmem:[%s640 + $0x548] sm:$0xff]
        %v3776 = vld [vmem:[%s640 + $0x550] sm:$0xff]
        %v3777 = vld [vmem:[%s640 + $0x558] sm:$0xff]
        %v3778 = vld [vmem:[%s640 + $0x560] sm:$0xff]
        %v3779 = vld [vmem:[%s640 + $0x568] sm:$0xff]
        %v3780 = vld [vmem:[%s640 + $0x570] sm:$0xff]
        %v3781 = vld [vmem:[%s640 + $0x578] sm:$0xff]
        %v3782 = vld [vmem:[%s640 + $0x580] sm:$0xff]
        %v3783 = vld [vmem:[%s640 + $0x588] sm:$0xff]
        %v3784 = vld [vmem:[%s640 + $0x590] sm:$0xff]
        %v3785 = vld [vmem:[%s640 + $0x598] sm:$0xff]
        %v3786 = vld [vmem:[%s640 + $0x5a0] sm:$0xff]
        %v3787 = vld [vmem:[%s640 + $0x5a8] sm:$0xff]
        %v3788 = vld [vmem:[%s640 + $0x5b0] sm:$0xff]
        %v3789 = vld [vmem:[%s640 + $0x5b8] sm:$0xff]
        %v3790 = vld [vmem:[%s640 + $0x5c0] sm:$0xff]
        %v3791 = vld [vmem:[%s640 + $0x5c8] sm:$0xff]
        %v3792 = vld [vmem:[%s640 + $0x5d0] sm:$0xff]
        %v3793 = vld [vmem:[%s640 + $0x5d8] sm:$0xff]
        %v3794 = vld [vmem:[%s640 + $0x5e0] sm:$0xff]
        %v3795 = vld [vmem:[%s640 + $0x5e8] sm:$0xff]
        %v3796 = vld [vmem:[%s640 + $0x5f0] sm:$0xff]
        %v3797 = vld [vmem:[%s640 + $0x5f8] sm:$0xff]
        %v3798 = vld [vmem:[%s640 + $0x600] sm:$0xff]
        %v3799 = vld [vmem:[%s640 + $0x608] sm:$0xff]
        %v3800 = vld [vmem:[%s640 + $0x610] sm:$0xff]
        %v3801 = vld [vmem:[%s640 + $0x618] sm:$0xff]
        %v3802 = vld [vmem:[%s640 + $0x620] sm:$0xff]
        %v3803 = vld [vmem:[%s640 + $0x628] sm:$0xff]
        %v3804 = vld [vmem:[%s640 + $0x630] sm:$0xff]
        %v3805 = vld [vmem:[%s640 + $0x638] sm:$0xff]
        %v3806 = vld [vmem:[%s640 + $0x640] sm:$0xff]
        %v3807 = vld [vmem:[%s640 + $0x648] sm:$0xff]
        %v3808 = vld [vmem:[%s640 + $0x650] sm:$0xff]
        %v3809 = vld [vmem:[%s640 + $0x658] sm:$0xff]
        %v3810 = vld [vmem:[%s640 + $0x660] sm:$0xff]
        %v3811 = vld [vmem:[%s640 + $0x668] sm:$0xff]
        %v3812 = vld [vmem:[%s640 + $0x670] sm:$0xff]
        %v3813 = vld [vmem:[%s640 + $0x678] sm:$0xff]
        %v3814 = vld [vmem:[%s640 + $0x680] sm:$0xff]
        %v3815 = vld [vmem:[%s640 + $0x688] sm:$0xff]
        %v3816 = vld [vmem:[%s640 + $0x690] sm:$0xff]
        %v3817 = vld [vmem:[%s640 + $0x698] sm:$0xff]
        %v3818 = vld [vmem:[%s640 + $0x6a0] sm:$0xff]
        %v3819 = vld [vmem:[%s640 + $0x6a8] sm:$0xff]
        %v3820 = vld [vmem:[%s640 + $0x6b0] sm:$0xff]
        %v3821 = vld [vmem:[%s640 + $0x6b8] sm:$0xff]
        %v3822 = vld [vmem:[%s640 + $0x6c0] sm:$0xff]
        %v3823 = vld [vmem:[%s640 + $0x6c8] sm:$0xff]
        %v3824 = vld [vmem:[%s640 + $0x6d0] sm:$0xff]
        %v3825 = vld [vmem:[%s640 + $0x6d8] sm:$0xff]
        %v3826 = vld [vmem:[%s640 + $0x6e0] sm:$0xff]
        %v3827 = vld [vmem:[%s640 + $0x6e8] sm:$0xff]
        %v3828 = vld [vmem:[%s640 + $0x6f0] sm:$0xff]
        %v3829 = vld [vmem:[%s640 + $0x6f8] sm:$0xff]
        %v3830 = vld [vmem:[%s640 + $0x700] sm:$0xff]
        %v3831 = vld [vmem:[%s640 + $0x708] sm:$0xff]
        %v3832 = vld [vmem:[%s640 + $0x710] sm:$0xff]
        %v3833 = vld [vmem:[%s640 + $0x718] sm:$0xff]
        %v3834 = vld [vmem:[%s640 + $0x720] sm:$0xff]
        %v3835 = vld [vmem:[%s640 + $0x728] sm:$0xff]
        %v3836 = vld [vmem:[%s640 + $0x730] sm:$0xff]
        %v3837 = vld [vmem:[%s640 + $0x738] sm:$0xff]
        %v3838 = vld [vmem:[%s640 + $0x740] sm:$0xff]
        %v3839 = vld [vmem:[%s640 + $0x748] sm:$0xff]
        %v3840 = vld [vmem:[%s640 + $0x750] sm:$0xff]
        %v3841 = vld [vmem:[%s640 + $0x758] sm:$0xff]
        %v3842 = vld [vmem:[%s640 + $0x760] sm:$0xff]
        %v3843 = vld [vmem:[%s640 + $0x768] sm:$0xff]
        %v3844 = vld [vmem:[%s640 + $0x770] sm:$0xff]
        %v3845 = vld [vmem:[%s640 + $0x778] sm:$0xff]
        %v3846 = vld [vmem:[%s640 + $0x780] sm:$0xff]
        %v3847 = vld [vmem:[%s640 + $0x788] sm:$0xff]
        %v3848 = vld [vmem:[%s640 + $0x790] sm:$0xff]
        %v3849 = vld [vmem:[%s640 + $0x798] sm:$0xff]
        %v3850 = vld [vmem:[%s640 + $0x7a0] sm:$0xff]
        %v3851 = vld [vmem:[%s640 + $0x7a8] sm:$0xff]
        %v3852 = vld [vmem:[%s640 + $0x7b0] sm:$0xff]
        %v3853 = vld [vmem:[%s640 + $0x7b8] sm:$0xff]
        %v3854 = vld [vmem:[%s640 + $0x7c0] sm:$0xff]
        %v3855 = vld [vmem:[%s640 + $0x7c8] sm:$0xff]
        %v3856 = vld [vmem:[%s640 + $0x7d0] sm:$0xff]
        %v3857 = vld [vmem:[%s640 + $0x7d8] sm:$0xff]
        %v3858 = vld [vmem:[%s640 + $0x7e0] sm:$0xff]
        %v3859 = vld [vmem:[%s640 + $0x7e8] sm:$0xff]
        %v3860 = vld [vmem:[%s640 + $0x7f0] sm:$0xff]
        %v3861 = vld [vmem:[%s640 + $0x7f8] sm:$0xff]
        %v3862 = vunpack.c.0.s8 %v3606
        %v3863 = vunpack.c.0.s8 %v3607
        %v3864 = vunpack.c.0.s8 %v3608
        %v3865 = vunpack.c.0.s8 %v3609
        %v3866 = vunpack.c.1.s8 %v3606
        %v3867 = vunpack.c.1.s8 %v3607
        %v3868 = vunpack.c.1.s8 %v3608
        %v3869 = vunpack.c.1.s8 %v3609
        %v3870 = vunpack.c.2.s8 %v3606
        %v3871 = vunpack.c.2.s8 %v3607
        %v3872 = vunpack.c.2.s8 %v3608
        %v3873 = vunpack.c.2.s8 %v3609
        %v3874 = vunpack.c.3.s8 %v3606
        %v3875 = vunpack.c.3.s8 %v3607
        %v3876 = vunpack.c.3.s8 %v3608
        %v3877 = vunpack.c.3.s8 %v3609
        %v3878 = vunpack.c.0.s8 %v3610
        %v3879 = vunpack.c.0.s8 %v3611
        %v3880 = vunpack.c.0.s8 %v3612
        %v3881 = vunpack.c.0.s8 %v3613
        %v3882 = vunpack.c.1.s8 %v3610
        %v3883 = vunpack.c.1.s8 %v3611
        %v3884 = vunpack.c.1.s8 %v3612
        %v3885 = vunpack.c.1.s8 %v3613
        %v3886 = vunpack.c.2.s8 %v3610
        %v3887 = vunpack.c.2.s8 %v3611
        %v3888 = vunpack.c.2.s8 %v3612
        %v3889 = vunpack.c.2.s8 %v3613
        %v3890 = vunpack.c.3.s8 %v3610
        %v3891 = vunpack.c.3.s8 %v3611
        %v3892 = vunpack.c.3.s8 %v3612
        %v3893 = vunpack.c.3.s8 %v3613
        %v3894 = vunpack.c.0.s8 %v3614
        %v3895 = vunpack.c.0.s8 %v3615
        %v3896 = vunpack.c.0.s8 %v3616
        %v3897 = vunpack.c.0.s8 %v3617
        %v3898 = vunpack.c.1.s8 %v3614
        %v3899 = vunpack.c.1.s8 %v3615
        %v3900 = vunpack.c.1.s8 %v3616
        %v3901 = vunpack.c.1.s8 %v3617
        %v3902 = vunpack.c.2.s8 %v3614
        %v3903 = vunpack.c.2.s8 %v3615
        %v3904 = vunpack.c.2.s8 %v3616
        %v3905 = vunpack.c.2.s8 %v3617
        %v3906 = vunpack.c.3.s8 %v3614
        %v3907 = vunpack.c.3.s8 %v3615
        %v3908 = vunpack.c.3.s8 %v3616
        %v3909 = vunpack.c.3.s8 %v3617
        %v3910 = vunpack.c.0.s8 %v3618
        %v3911 = vunpack.c.0.s8 %v3619
        %v3912 = vunpack.c.0.s8 %v3620
        %v3913 = vunpack.c.0.s8 %v3621
        %v3914 = vunpack.c.1.s8 %v3618
        %v3915 = vunpack.c.1.s8 %v3619
        %v3916 = vunpack.c.1.s8 %v3620
        %v3917 = vunpack.c.1.s8 %v3621
        %v3918 = vunpack.c.2.s8 %v3618
        %v3919 = vunpack.c.2.s8 %v3619
        %v3920 = vunpack.c.2.s8 %v3620
        %v3921 = vunpack.c.2.s8 %v3621
        %v3922 = vunpack.c.3.s8 %v3618
        %v3923 = vunpack.c.3.s8 %v3619
        %v3924 = vunpack.c.3.s8 %v3620
        %v3925 = vunpack.c.3.s8 %v3621
        %v3926 = vunpack.c.0.s8 %v3622
        %v3927 = vunpack.c.0.s8 %v3623
        %v3928 = vunpack.c.0.s8 %v3624
        %v3929 = vunpack.c.0.s8 %v3625
        %v3930 = vunpack.c.1.s8 %v3622
        %v3931 = vunpack.c.1.s8 %v3623
        %v3932 = vunpack.c.1.s8 %v3624
        %v3933 = vunpack.c.1.s8 %v3625
        %v3934 = vunpack.c.2.s8 %v3622
        %v3935 = vunpack.c.2.s8 %v3623
        %v3936 = vunpack.c.2.s8 %v3624
        %v3937 = vunpack.c.2.s8 %v3625
        %v3938 = vunpack.c.3.s8 %v3622
        %v3939 = vunpack.c.3.s8 %v3623
        %v3940 = vunpack.c.3.s8 %v3624
        %v3941 = vunpack.c.3.s8 %v3625
        %v3942 = vunpack.c.0.s8 %v3626
        %v3943 = vunpack.c.0.s8 %v3627
        %v3944 = vunpack.c.0.s8 %v3628
        %v3945 = vunpack.c.0.s8 %v3629
        %v3946 = vunpack.c.1.s8 %v3626
        %v3947 = vunpack.c.1.s8 %v3627
        %v3948 = vunpack.c.1.s8 %v3628
        %v3949 = vunpack.c.1.s8 %v3629
        %v3950 = vunpack.c.2.s8 %v3626
        %v3951 = vunpack.c.2.s8 %v3627
        %v3952 = vunpack.c.2.s8 %v3628
        %v3953 = vunpack.c.2.s8 %v3629
        %v3954 = vunpack.c.3.s8 %v3626
        %v3955 = vunpack.c.3.s8 %v3627
        %v3956 = vunpack.c.3.s8 %v3628
        %v3957 = vunpack.c.3.s8 %v3629
        %v3958 = vunpack.c.0.s8 %v3630
        %v3959 = vunpack.c.0.s8 %v3631
        %v3960 = vunpack.c.0.s8 %v3632
        %v3961 = vunpack.c.0.s8 %v3633
        %v3962 = vunpack.c.1.s8 %v3630
        %v3963 = vunpack.c.1.s8 %v3631
        %v3964 = vunpack.c.1.s8 %v3632
        %v3965 = vunpack.c.1.s8 %v3633
        %v3966 = vunpack.c.2.s8 %v3630
        %v3967 = vunpack.c.2.s8 %v3631
        %v3968 = vunpack.c.2.s8 %v3632
        %v3969 = vunpack.c.2.s8 %v3633
        %v3970 = vunpack.c.3.s8 %v3630
        %v3971 = vunpack.c.3.s8 %v3631
        %v3972 = vunpack.c.3.s8 %v3632
        %v3973 = vunpack.c.3.s8 %v3633
        %v3974 = vunpack.c.0.s8 %v3634
        %v3975 = vunpack.c.0.s8 %v3635
        %v3976 = vunpack.c.0.s8 %v3636
        %v3977 = vunpack.c.0.s8 %v3637
        %v3978 = vunpack.c.1.s8 %v3634
        %v3979 = vunpack.c.1.s8 %v3635
        %v3980 = vunpack.c.1.s8 %v3636
        %v3981 = vunpack.c.1.s8 %v3637
        %v3982 = vunpack.c.2.s8 %v3634
        %v3983 = vunpack.c.2.s8 %v3635
        %v3984 = vunpack.c.2.s8 %v3636
        %v3985 = vunpack.c.2.s8 %v3637
        %v3986 = vunpack.c.3.s8 %v3634
        %v3987 = vunpack.c.3.s8 %v3635
        %v3988 = vunpack.c.3.s8 %v3636
        %v3989 = vunpack.c.3.s8 %v3637
        %v3990 = vunpack.c.0.s8 %v3638
        %v3991 = vunpack.c.0.s8 %v3639
        %v3992 = vunpack.c.0.s8 %v3640
        %v3993 = vunpack.c.0.s8 %v3641
        %v3994 = vunpack.c.1.s8 %v3638
        %v3995 = vunpack.c.1.s8 %v3639
        %v3996 = vunpack.c.1.s8 %v3640
        %v3997 = vunpack.c.1.s8 %v3641
        %v3998 = vunpack.c.2.s8 %v3638
        %v3999 = vunpack.c.2.s8 %v3639
        %v4000 = vunpack.c.2.s8 %v3640
        %v4001 = vunpack.c.2.s8 %v3641
        %v4002 = vunpack.c.3.s8 %v3638
        %v4003 = vunpack.c.3.s8 %v3639
        %v4004 = vunpack.c.3.s8 %v3640
        %v4005 = vunpack.c.3.s8 %v3641
        %v4006 = vunpack.c.0.s8 %v3642
        %v4007 = vunpack.c.0.s8 %v3643
        %v4008 = vunpack.c.0.s8 %v3644
        %v4009 = vunpack.c.0.s8 %v3645
        %v4010 = vunpack.c.1.s8 %v3642
        %v4011 = vunpack.c.1.s8 %v3643
        %v4012 = vunpack.c.1.s8 %v3644
        %v4013 = vunpack.c.1.s8 %v3645
        %v4014 = vunpack.c.2.s8 %v3642
        %v4015 = vunpack.c.2.s8 %v3643
        %v4016 = vunpack.c.2.s8 %v3644
        %v4017 = vunpack.c.2.s8 %v3645
        %v4018 = vunpack.c.3.s8 %v3642
        %v4019 = vunpack.c.3.s8 %v3643
        %v4020 = vunpack.c.3.s8 %v3644
        %v4021 = vunpack.c.3.s8 %v3645
        %v4022 = vunpack.c.0.s8 %v3646
        %v4023 = vunpack.c.0.s8 %v3647
        %v4024 = vunpack.c.0.s8 %v3648
        %v4025 = vunpack.c.0.s8 %v3649
        %v4026 = vunpack.c.1.s8 %v3646
        %v4027 = vunpack.c.1.s8 %v3647
        %v4028 = vunpack.c.1.s8 %v3648
        %v4029 = vunpack.c.1.s8 %v3649
        %v4030 = vunpack.c.2.s8 %v3646
        %v4031 = vunpack.c.2.s8 %v3647
        %v4032 = vunpack.c.2.s8 %v3648
        %v4033 = vunpack.c.2.s8 %v3649
        %v4034 = vunpack.c.3.s8 %v3646
        %v4035 = vunpack.c.3.s8 %v3647
        %v4036 = vunpack.c.3.s8 %v3648
        %v4037 = vunpack.c.3.s8 %v3649
        %v4038 = vunpack.c.0.s8 %v3650
        %v4039 = vunpack.c.0.s8 %v3651
        %v4040 = vunpack.c.0.s8 %v3652
        %v4041 = vunpack.c.0.s8 %v3653
        %v4042 = vunpack.c.1.s8 %v3650
        %v4043 = vunpack.c.1.s8 %v3651
        %v4044 = vunpack.c.1.s8 %v3652
        %v4045 = vunpack.c.1.s8 %v3653
        %v4046 = vunpack.c.2.s8 %v3650
        %v4047 = vunpack.c.2.s8 %v3651
        %v4048 = vunpack.c.2.s8 %v3652
        %v4049 = vunpack.c.2.s8 %v3653
        %v4050 = vunpack.c.3.s8 %v3650
        %v4051 = vunpack.c.3.s8 %v3651
        %v4052 = vunpack.c.3.s8 %v3652
        %v4053 = vunpack.c.3.s8 %v3653
        %v4054 = vunpack.c.0.s8 %v3654
        %v4055 = vunpack.c.0.s8 %v3655
        %v4056 = vunpack.c.0.s8 %v3656
        %v4057 = vunpack.c.0.s8 %v3657
        %v4058 = vunpack.c.1.s8 %v3654
        %v4059 = vunpack.c.1.s8 %v3655
        %v4060 = vunpack.c.1.s8 %v3656
        %v4061 = vunpack.c.1.s8 %v3657
        %v4062 = vunpack.c.2.s8 %v3654
        %v4063 = vunpack.c.2.s8 %v3655
        %v4064 = vunpack.c.2.s8 %v3656
        %v4065 = vunpack.c.2.s8 %v3657
        %v4066 = vunpack.c.3.s8 %v3654
        %v4067 = vunpack.c.3.s8 %v3655
        %v4068 = vunpack.c.3.s8 %v3656
        %v4069 = vunpack.c.3.s8 %v3657
        %v4070 = vunpack.c.0.s8 %v3658
        %v4071 = vunpack.c.0.s8 %v3659
        %v4072 = vunpack.c.0.s8 %v3660
        %v4073 = vunpack.c.0.s8 %v3661
        %v4074 = vunpack.c.1.s8 %v3658
        %v4075 = vunpack.c.1.s8 %v3659
        %v4076 = vunpack.c.1.s8 %v3660
        %v4077 = vunpack.c.1.s8 %v3661
        %v4078 = vunpack.c.2.s8 %v3658
        %v4079 = vunpack.c.2.s8 %v3659
        %v4080 = vunpack.c.2.s8 %v3660
        %v4081 = vunpack.c.2.s8 %v3661
        %v4082 = vunpack.c.3.s8 %v3658
        %v4083 = vunpack.c.3.s8 %v3659
        %v4084 = vunpack.c.3.s8 %v3660
        %v4085 = vunpack.c.3.s8 %v3661
        %v4086 = vunpack.c.0.s8 %v3662
        %v4087 = vunpack.c.0.s8 %v3663
        %v4088 = vunpack.c.0.s8 %v3664
        %v4089 = vunpack.c.0.s8 %v3665
        %v4090 = vunpack.c.1.s8 %v3662
        %v4091 = vunpack.c.1.s8 %v3663
        %v4092 = vunpack.c.1.s8 %v3664
        %v4093 = vunpack.c.1.s8 %v3665
        %v4094 = vunpack.c.2.s8 %v3662
        %v4095 = vunpack.c.2.s8 %v3663
        %v4096 = vunpack.c.2.s8 %v3664
        %v4097 = vunpack.c.2.s8 %v3665
        %v4098 = vunpack.c.3.s8 %v3662
        %v4099 = vunpack.c.3.s8 %v3663
        %v4100 = vunpack.c.3.s8 %v3664
        %v4101 = vunpack.c.3.s8 %v3665
        %v4102 = vunpack.c.0.s8 %v3666
        %v4103 = vunpack.c.0.s8 %v3667
        %v4104 = vunpack.c.0.s8 %v3668
        %v4105 = vunpack.c.0.s8 %v3669
        %v4106 = vunpack.c.1.s8 %v3666
        %v4107 = vunpack.c.1.s8 %v3667
        %v4108 = vunpack.c.1.s8 %v3668
        %v4109 = vunpack.c.1.s8 %v3669
        %v4110 = vunpack.c.2.s8 %v3666
        %v4111 = vunpack.c.2.s8 %v3667
        %v4112 = vunpack.c.2.s8 %v3668
        %v4113 = vunpack.c.2.s8 %v3669
        %v4114 = vunpack.c.3.s8 %v3666
        %v4115 = vunpack.c.3.s8 %v3667
        %v4116 = vunpack.c.3.s8 %v3668
        %v4117 = vunpack.c.3.s8 %v3669
        %v4118 = vunpack.c.0.s8 %v3670
        %v4119 = vunpack.c.0.s8 %v3671
        %v4120 = vunpack.c.0.s8 %v3672
        %v4121 = vunpack.c.0.s8 %v3673
        %v4122 = vunpack.c.1.s8 %v3670
        %v4123 = vunpack.c.1.s8 %v3671
        %v4124 = vunpack.c.1.s8 %v3672
        %v4125 = vunpack.c.1.s8 %v3673
        %v4126 = vunpack.c.2.s8 %v3670
        %v4127 = vunpack.c.2.s8 %v3671
        %v4128 = vunpack.c.2.s8 %v3672
        %v4129 = vunpack.c.2.s8 %v3673
        %v4130 = vunpack.c.3.s8 %v3670
        %v4131 = vunpack.c.3.s8 %v3671
        %v4132 = vunpack.c.3.s8 %v3672
        %v4133 = vunpack.c.3.s8 %v3673
        %v4134 = vunpack.c.0.s8 %v3674
        %v4135 = vunpack.c.0.s8 %v3675
        %v4136 = vunpack.c.0.s8 %v3676
        %v4137 = vunpack.c.0.s8 %v3677
        %v4138 = vunpack.c.1.s8 %v3674
        %v4139 = vunpack.c.1.s8 %v3675
        %v4140 = vunpack.c.1.s8 %v3676
        %v4141 = vunpack.c.1.s8 %v3677
        %v4142 = vunpack.c.2.s8 %v3674
        %v4143 = vunpack.c.2.s8 %v3675
        %v4144 = vunpack.c.2.s8 %v3676
        %v4145 = vunpack.c.2.s8 %v3677
        %v4146 = vunpack.c.3.s8 %v3674
        %v4147 = vunpack.c.3.s8 %v3675
        %v4148 = vunpack.c.3.s8 %v3676
        %v4149 = vunpack.c.3.s8 %v3677
        %v4150 = vunpack.c.0.s8 %v3678
        %v4151 = vunpack.c.0.s8 %v3679
        %v4152 = vunpack.c.0.s8 %v3680
        %v4153 = vunpack.c.0.s8 %v3681
        %v4154 = vunpack.c.1.s8 %v3678
        %v4155 = vunpack.c.1.s8 %v3679
        %v4156 = vunpack.c.1.s8 %v3680
        %v4157 = vunpack.c.1.s8 %v3681
        %v4158 = vunpack.c.2.s8 %v3678
        %v4159 = vunpack.c.2.s8 %v3679
        %v4160 = vunpack.c.2.s8 %v3680
        %v4161 = vunpack.c.2.s8 %v3681
        %v4162 = vunpack.c.3.s8 %v3678
        %v4163 = vunpack.c.3.s8 %v3679
        %v4164 = vunpack.c.3.s8 %v3680
        %v4165 = vunpack.c.3.s8 %v3681
        %v4166 = vunpack.c.0.s8 %v3682
        %v4167 = vunpack.c.0.s8 %v3683
        %v4168 = vunpack.c.0.s8 %v3684
        %v4169 = vunpack.c.0.s8 %v3685
        %v4170 = vunpack.c.1.s8 %v3682
        %v4171 = vunpack.c.1.s8 %v3683
        %v4172 = vunpack.c.1.s8 %v3684
        %v4173 = vunpack.c.1.s8 %v3685
        %v4174 = vunpack.c.2.s8 %v3682
        %v4175 = vunpack.c.2.s8 %v3683
        %v4176 = vunpack.c.2.s8 %v3684
        %v4177 = vunpack.c.2.s8 %v3685
        %v4178 = vunpack.c.3.s8 %v3682
        %v4179 = vunpack.c.3.s8 %v3683
        %v4180 = vunpack.c.3.s8 %v3684
        %v4181 = vunpack.c.3.s8 %v3685
        %v4182 = vunpack.c.0.s8 %v3686
        %v4183 = vunpack.c.0.s8 %v3687
        %v4184 = vunpack.c.0.s8 %v3688
        %v4185 = vunpack.c.0.s8 %v3689
        %v4186 = vunpack.c.1.s8 %v3686
        %v4187 = vunpack.c.1.s8 %v3687
        %v4188 = vunpack.c.1.s8 %v3688
        %v4189 = vunpack.c.1.s8 %v3689
        %v4190 = vunpack.c.2.s8 %v3686
        %v4191 = vunpack.c.2.s8 %v3687
        %v4192 = vunpack.c.2.s8 %v3688
        %v4193 = vunpack.c.2.s8 %v3689
        %v4194 = vunpack.c.3.s8 %v3686
        %v4195 = vunpack.c.3.s8 %v3687
        %v4196 = vunpack.c.3.s8 %v3688
        %v4197 = vunpack.c.3.s8 %v3689
        %v4198 = vunpack.c.0.s8 %v3690
        %v4199 = vunpack.c.0.s8 %v3691
        %v4200 = vunpack.c.0.s8 %v3692
        %v4201 = vunpack.c.0.s8 %v3693
        %v4202 = vunpack.c.1.s8 %v3690
        %v4203 = vunpack.c.1.s8 %v3691
        %v4204 = vunpack.c.1.s8 %v3692
        %v4205 = vunpack.c.1.s8 %v3693
        %v4206 = vunpack.c.2.s8 %v3690
        %v4207 = vunpack.c.2.s8 %v3691
        %v4208 = vunpack.c.2.s8 %v3692
        %v4209 = vunpack.c.2.s8 %v3693
        %v4210 = vunpack.c.3.s8 %v3690
        %v4211 = vunpack.c.3.s8 %v3691
        %v4212 = vunpack.c.3.s8 %v3692
        %v4213 = vunpack.c.3.s8 %v3693
        %v4214 = vunpack.c.0.s8 %v3694
        %v4215 = vunpack.c.0.s8 %v3695
        %v4216 = vunpack.c.0.s8 %v3696
        %v4217 = vunpack.c.0.s8 %v3697
        %v4218 = vunpack.c.1.s8 %v3694
        %v4219 = vunpack.c.1.s8 %v3695
        %v4220 = vunpack.c.1.s8 %v3696
        %v4221 = vunpack.c.1.s8 %v3697
        %v4222 = vunpack.c.2.s8 %v3694
        %v4223 = vunpack.c.2.s8 %v3695
        %v4224 = vunpack.c.2.s8 %v3696
        %v4225 = vunpack.c.2.s8 %v3697
        %v4226 = vunpack.c.3.s8 %v3694
        %v4227 = vunpack.c.3.s8 %v3695
        %v4228 = vunpack.c.3.s8 %v3696
        %v4229 = vunpack.c.3.s8 %v3697
        %v4230 = vunpack.c.0.s8 %v3698
        %v4231 = vunpack.c.0.s8 %v3699
        %v4232 = vunpack.c.0.s8 %v3700
        %v4233 = vunpack.c.0.s8 %v3701
        %v4234 = vunpack.c.1.s8 %v3698
        %v4235 = vunpack.c.1.s8 %v3699
        %v4236 = vunpack.c.1.s8 %v3700
        %v4237 = vunpack.c.1.s8 %v3701
        %v4238 = vunpack.c.2.s8 %v3698
        %v4239 = vunpack.c.2.s8 %v3699
        %v4240 = vunpack.c.2.s8 %v3700
        %v4241 = vunpack.c.2.s8 %v3701
        %v4242 = vunpack.c.3.s8 %v3698
        %v4243 = vunpack.c.3.s8 %v3699
        %v4244 = vunpack.c.3.s8 %v3700
        %v4245 = vunpack.c.3.s8 %v3701
        %v4246 = vunpack.c.0.s8 %v3702
        %v4247 = vunpack.c.0.s8 %v3703
        %v4248 = vunpack.c.0.s8 %v3704
        %v4249 = vunpack.c.0.s8 %v3705
        %v4250 = vunpack.c.1.s8 %v3702
        %v4251 = vunpack.c.1.s8 %v3703
        %v4252 = vunpack.c.1.s8 %v3704
        %v4253 = vunpack.c.1.s8 %v3705
        %v4254 = vunpack.c.2.s8 %v3702
        %v4255 = vunpack.c.2.s8 %v3703
        %v4256 = vunpack.c.2.s8 %v3704
        %v4257 = vunpack.c.2.s8 %v3705
        %v4258 = vunpack.c.3.s8 %v3702
        %v4259 = vunpack.c.3.s8 %v3703
        %v4260 = vunpack.c.3.s8 %v3704
        %v4261 = vunpack.c.3.s8 %v3705
        %v4262 = vunpack.c.0.s8 %v3706
        %v4263 = vunpack.c.0.s8 %v3707
        %v4264 = vunpack.c.0.s8 %v3708
        %v4265 = vunpack.c.0.s8 %v3709
        %v4266 = vunpack.c.1.s8 %v3706
        %v4267 = vunpack.c.1.s8 %v3707
        %v4268 = vunpack.c.1.s8 %v3708
        %v4269 = vunpack.c.1.s8 %v3709
        %v4270 = vunpack.c.2.s8 %v3706
        %v4271 = vunpack.c.2.s8 %v3707
        %v4272 = vunpack.c.2.s8 %v3708
        %v4273 = vunpack.c.2.s8 %v3709
        %v4274 = vunpack.c.3.s8 %v3706
        %v4275 = vunpack.c.3.s8 %v3707
        %v4276 = vunpack.c.3.s8 %v3708
        %v4277 = vunpack.c.3.s8 %v3709
        %v4278 = vunpack.c.0.s8 %v3710
        %v4279 = vunpack.c.0.s8 %v3711
        %v4280 = vunpack.c.0.s8 %v3712
        %v4281 = vunpack.c.0.s8 %v3713
        %v4282 = vunpack.c.1.s8 %v3710
        %v4283 = vunpack.c.1.s8 %v3711
        %v4284 = vunpack.c.1.s8 %v3712
        %v4285 = vunpack.c.1.s8 %v3713
        %v4286 = vunpack.c.2.s8 %v3710
        %v4287 = vunpack.c.2.s8 %v3711
        %v4288 = vunpack.c.2.s8 %v3712
        %v4289 = vunpack.c.2.s8 %v3713
        %v4290 = vunpack.c.3.s8 %v3710
        %v4291 = vunpack.c.3.s8 %v3711
        %v4292 = vunpack.c.3.s8 %v3712
        %v4293 = vunpack.c.3.s8 %v3713
        %v4294 = vunpack.c.0.s8 %v3714
        %v4295 = vunpack.c.0.s8 %v3715
        %v4296 = vunpack.c.0.s8 %v3716
        %v4297 = vunpack.c.0.s8 %v3717
        %v4298 = vunpack.c.1.s8 %v3714
        %v4299 = vunpack.c.1.s8 %v3715
        %v4300 = vunpack.c.1.s8 %v3716
        %v4301 = vunpack.c.1.s8 %v3717
        %v4302 = vunpack.c.2.s8 %v3714
        %v4303 = vunpack.c.2.s8 %v3715
        %v4304 = vunpack.c.2.s8 %v3716
        %v4305 = vunpack.c.2.s8 %v3717
        %v4306 = vunpack.c.3.s8 %v3714
        %v4307 = vunpack.c.3.s8 %v3715
        %v4308 = vunpack.c.3.s8 %v3716
        %v4309 = vunpack.c.3.s8 %v3717
        %v4310 = vunpack.c.0.s8 %v3718
        %v4311 = vunpack.c.0.s8 %v3719
        %v4312 = vunpack.c.0.s8 %v3720
        %v4313 = vunpack.c.0.s8 %v3721
        %v4314 = vunpack.c.1.s8 %v3718
        %v4315 = vunpack.c.1.s8 %v3719
        %v4316 = vunpack.c.1.s8 %v3720
        %v4317 = vunpack.c.1.s8 %v3721
        %v4318 = vunpack.c.2.s8 %v3718
        %v4319 = vunpack.c.2.s8 %v3719
        %v4320 = vunpack.c.2.s8 %v3720
        %v4321 = vunpack.c.2.s8 %v3721
        %v4322 = vunpack.c.3.s8 %v3718
        %v4323 = vunpack.c.3.s8 %v3719
        %v4324 = vunpack.c.3.s8 %v3720
        %v4325 = vunpack.c.3.s8 %v3721
        %v4326 = vunpack.c.0.s8 %v3722
        %v4327 = vunpack.c.0.s8 %v3723
        %v4328 = vunpack.c.0.s8 %v3724
        %v4329 = vunpack.c.0.s8 %v3725
        %v4330 = vunpack.c.1.s8 %v3722
        %v4331 = vunpack.c.1.s8 %v3723
        %v4332 = vunpack.c.1.s8 %v3724
        %v4333 = vunpack.c.1.s8 %v3725
        %v4334 = vunpack.c.2.s8 %v3722
        %v4335 = vunpack.c.2.s8 %v3723
        %v4336 = vunpack.c.2.s8 %v3724
        %v4337 = vunpack.c.2.s8 %v3725
        %v4338 = vunpack.c.3.s8 %v3722
        %v4339 = vunpack.c.3.s8 %v3723
        %v4340 = vunpack.c.3.s8 %v3724
        %v4341 = vunpack.c.3.s8 %v3725
        %v4342 = vunpack.c.0.s8 %v3726
        %v4343 = vunpack.c.0.s8 %v3727
        %v4344 = vunpack.c.0.s8 %v3728
        %v4345 = vunpack.c.0.s8 %v3729
        %v4346 = vunpack.c.1.s8 %v3726
        %v4347 = vunpack.c.1.s8 %v3727
        %v4348 = vunpack.c.1.s8 %v3728
        %v4349 = vunpack.c.1.s8 %v3729
        %v4350 = vunpack.c.2.s8 %v3726
        %v4351 = vunpack.c.2.s8 %v3727
        %v4352 = vunpack.c.2.s8 %v3728
        %v4353 = vunpack.c.2.s8 %v3729
        %v4354 = vunpack.c.3.s8 %v3726
        %v4355 = vunpack.c.3.s8 %v3727
        %v4356 = vunpack.c.3.s8 %v3728
        %v4357 = vunpack.c.3.s8 %v3729
        %v4358 = vunpack.c.0.s8 %v3730
        %v4359 = vunpack.c.0.s8 %v3731
        %v4360 = vunpack.c.0.s8 %v3732
        %v4361 = vunpack.c.0.s8 %v3733
        %v4362 = vunpack.c.1.s8 %v3730
        %v4363 = vunpack.c.1.s8 %v3731
        %v4364 = vunpack.c.1.s8 %v3732
        %v4365 = vunpack.c.1.s8 %v3733
        %v4366 = vunpack.c.2.s8 %v3730
        %v4367 = vunpack.c.2.s8 %v3731
        %v4368 = vunpack.c.2.s8 %v3732
        %v4369 = vunpack.c.2.s8 %v3733
        %v4370 = vunpack.c.3.s8 %v3730
        %v4371 = vunpack.c.3.s8 %v3731
        %v4372 = vunpack.c.3.s8 %v3732
        %v4373 = vunpack.c.3.s8 %v3733
        %v4374 = vunpack.c.0.s8 %v3734
        %v4375 = vunpack.c.0.s8 %v3735
        %v4376 = vunpack.c.0.s8 %v3736
        %v4377 = vunpack.c.0.s8 %v3737
        %v4378 = vunpack.c.1.s8 %v3734
        %v4379 = vunpack.c.1.s8 %v3735
        %v4380 = vunpack.c.1.s8 %v3736
        %v4381 = vunpack.c.1.s8 %v3737
        %v4382 = vunpack.c.2.s8 %v3734
        %v4383 = vunpack.c.2.s8 %v3735
        %v4384 = vunpack.c.2.s8 %v3736
        %v4385 = vunpack.c.2.s8 %v3737
        %v4386 = vunpack.c.3.s8 %v3734
        %v4387 = vunpack.c.3.s8 %v3735
        %v4388 = vunpack.c.3.s8 %v3736
        %v4389 = vunpack.c.3.s8 %v3737
        %v4390 = vunpack.c.0.s8 %v3738
        %v4391 = vunpack.c.0.s8 %v3739
        %v4392 = vunpack.c.0.s8 %v3740
        %v4393 = vunpack.c.0.s8 %v3741
        %v4394 = vunpack.c.1.s8 %v3738
        %v4395 = vunpack.c.1.s8 %v3739
        %v4396 = vunpack.c.1.s8 %v3740
        %v4397 = vunpack.c.1.s8 %v3741
        %v4398 = vunpack.c.2.s8 %v3738
        %v4399 = vunpack.c.2.s8 %v3739
        %v4400 = vunpack.c.2.s8 %v3740
        %v4401 = vunpack.c.2.s8 %v3741
        %v4402 = vunpack.c.3.s8 %v3738
        %v4403 = vunpack.c.3.s8 %v3739
        %v4404 = vunpack.c.3.s8 %v3740
        %v4405 = vunpack.c.3.s8 %v3741
        %v4406 = vunpack.c.0.s8 %v3742
        %v4407 = vunpack.c.0.s8 %v3743
        %v4408 = vunpack.c.0.s8 %v3744
        %v4409 = vunpack.c.0.s8 %v3745
        %v4410 = vunpack.c.1.s8 %v3742
        %v4411 = vunpack.c.1.s8 %v3743
        %v4412 = vunpack.c.1.s8 %v3744
        %v4413 = vunpack.c.1.s8 %v3745
        %v4414 = vunpack.c.2.s8 %v3742
        %v4415 = vunpack.c.2.s8 %v3743
        %v4416 = vunpack.c.2.s8 %v3744
        %v4417 = vunpack.c.2.s8 %v3745
        %v4418 = vunpack.c.3.s8 %v3742
        %v4419 = vunpack.c.3.s8 %v3743
        %v4420 = vunpack.c.3.s8 %v3744
        %v4421 = vunpack.c.3.s8 %v3745
        %v4422 = vunpack.c.0.s8 %v3746
        %v4423 = vunpack.c.0.s8 %v3747
        %v4424 = vunpack.c.0.s8 %v3748
        %v4425 = vunpack.c.0.s8 %v3749
        %v4426 = vunpack.c.1.s8 %v3746
        %v4427 = vunpack.c.1.s8 %v3747
        %v4428 = vunpack.c.1.s8 %v3748
        %v4429 = vunpack.c.1.s8 %v3749
        %v4430 = vunpack.c.2.s8 %v3746
        %v4431 = vunpack.c.2.s8 %v3747
        %v4432 = vunpack.c.2.s8 %v3748
        %v4433 = vunpack.c.2.s8 %v3749
        %v4434 = vunpack.c.3.s8 %v3746
        %v4435 = vunpack.c.3.s8 %v3747
        %v4436 = vunpack.c.3.s8 %v3748
        %v4437 = vunpack.c.3.s8 %v3749
        %v4438 = vunpack.c.0.s8 %v3750
        %v4439 = vunpack.c.0.s8 %v3751
        %v4440 = vunpack.c.0.s8 %v3752
        %v4441 = vunpack.c.0.s8 %v3753
        %v4442 = vunpack.c.1.s8 %v3750
        %v4443 = vunpack.c.1.s8 %v3751
        %v4444 = vunpack.c.1.s8 %v3752
        %v4445 = vunpack.c.1.s8 %v3753
        %v4446 = vunpack.c.2.s8 %v3750
        %v4447 = vunpack.c.2.s8 %v3751
        %v4448 = vunpack.c.2.s8 %v3752
        %v4449 = vunpack.c.2.s8 %v3753
        %v4450 = vunpack.c.3.s8 %v3750
        %v4451 = vunpack.c.3.s8 %v3751
        %v4452 = vunpack.c.3.s8 %v3752
        %v4453 = vunpack.c.3.s8 %v3753
        %v4454 = vunpack.c.0.s8 %v3754
        %v4455 = vunpack.c.0.s8 %v3755
        %v4456 = vunpack.c.0.s8 %v3756
        %v4457 = vunpack.c.0.s8 %v3757
        %v4458 = vunpack.c.1.s8 %v3754
        %v4459 = vunpack.c.1.s8 %v3755
        %v4460 = vunpack.c.1.s8 %v3756
        %v4461 = vunpack.c.1.s8 %v3757
        %v4462 = vunpack.c.2.s8 %v3754
        %v4463 = vunpack.c.2.s8 %v3755
        %v4464 = vunpack.c.2.s8 %v3756
        %v4465 = vunpack.c.2.s8 %v3757
        %v4466 = vunpack.c.3.s8 %v3754
        %v4467 = vunpack.c.3.s8 %v3755
        %v4468 = vunpack.c.3.s8 %v3756
        %v4469 = vunpack.c.3.s8 %v3757
        %v4470 = vunpack.c.0.s8 %v3758
        %v4471 = vunpack.c.0.s8 %v3759
        %v4472 = vunpack.c.0.s8 %v3760
        %v4473 = vunpack.c.0.s8 %v3761
        %v4474 = vunpack.c.1.s8 %v3758
        %v4475 = vunpack.c.1.s8 %v3759
        %v4476 = vunpack.c.1.s8 %v3760
        %v4477 = vunpack.c.1.s8 %v3761
        %v4478 = vunpack.c.2.s8 %v3758
        %v4479 = vunpack.c.2.s8 %v3759
        %v4480 = vunpack.c.2.s8 %v3760
        %v4481 = vunpack.c.2.s8 %v3761
        %v4482 = vunpack.c.3.s8 %v3758
        %v4483 = vunpack.c.3.s8 %v3759
        %v4484 = vunpack.c.3.s8 %v3760
        %v4485 = vunpack.c.3.s8 %v3761
        %v4486 = vunpack.c.0.s8 %v3762
        %v4487 = vunpack.c.0.s8 %v3763
        %v4488 = vunpack.c.0.s8 %v3764
        %v4489 = vunpack.c.0.s8 %v3765
        %v4490 = vunpack.c.1.s8 %v3762
        %v4491 = vunpack.c.1.s8 %v3763
        %v4492 = vunpack.c.1.s8 %v3764
        %v4493 = vunpack.c.1.s8 %v3765
        %v4494 = vunpack.c.2.s8 %v3762
        %v4495 = vunpack.c.2.s8 %v3763
        %v4496 = vunpack.c.2.s8 %v3764
        %v4497 = vunpack.c.2.s8 %v3765
        %v4498 = vunpack.c.3.s8 %v3762
        %v4499 = vunpack.c.3.s8 %v3763
        %v4500 = vunpack.c.3.s8 %v3764
        %v4501 = vunpack.c.3.s8 %v3765
        %v4502 = vunpack.c.0.s8 %v3766
        %v4503 = vunpack.c.0.s8 %v3767
        %v4504 = vunpack.c.0.s8 %v3768
        %v4505 = vunpack.c.0.s8 %v3769
        %v4506 = vunpack.c.1.s8 %v3766
        %v4507 = vunpack.c.1.s8 %v3767
        %v4508 = vunpack.c.1.s8 %v3768
        %v4509 = vunpack.c.1.s8 %v3769
        %v4510 = vunpack.c.2.s8 %v3766
        %v4511 = vunpack.c.2.s8 %v3767
        %v4512 = vunpack.c.2.s8 %v3768
        %v4513 = vunpack.c.2.s8 %v3769
        %v4514 = vunpack.c.3.s8 %v3766
        %v4515 = vunpack.c.3.s8 %v3767
        %v4516 = vunpack.c.3.s8 %v3768
        %v4517 = vunpack.c.3.s8 %v3769
        %v4518 = vunpack.c.0.s8 %v3770
        %v4519 = vunpack.c.0.s8 %v3771
        %v4520 = vunpack.c.0.s8 %v3772
        %v4521 = vunpack.c.0.s8 %v3773
        %v4522 = vunpack.c.1.s8 %v3770
        %v4523 = vunpack.c.1.s8 %v3771
        %v4524 = vunpack.c.1.s8 %v3772
        %v4525 = vunpack.c.1.s8 %v3773
        %v4526 = vunpack.c.2.s8 %v3770
        %v4527 = vunpack.c.2.s8 %v3771
        %v4528 = vunpack.c.2.s8 %v3772
        %v4529 = vunpack.c.2.s8 %v3773
        %v4530 = vunpack.c.3.s8 %v3770
        %v4531 = vunpack.c.3.s8 %v3771
        %v4532 = vunpack.c.3.s8 %v3772
        %v4533 = vunpack.c.3.s8 %v3773
        %v4534 = vunpack.c.0.s8 %v3774
        %v4535 = vunpack.c.0.s8 %v3775
        %v4536 = vunpack.c.0.s8 %v3776
        %v4537 = vunpack.c.0.s8 %v3777
        %v4538 = vunpack.c.1.s8 %v3774
        %v4539 = vunpack.c.1.s8 %v3775
        %v4540 = vunpack.c.1.s8 %v3776
        %v4541 = vunpack.c.1.s8 %v3777
        %v4542 = vunpack.c.2.s8 %v3774
        %v4543 = vunpack.c.2.s8 %v3775
        %v4544 = vunpack.c.2.s8 %v3776
        %v4545 = vunpack.c.2.s8 %v3777
        %v4546 = vunpack.c.3.s8 %v3774
        %v4547 = vunpack.c.3.s8 %v3775
        %v4548 = vunpack.c.3.s8 %v3776
        %v4549 = vunpack.c.3.s8 %v3777
        %v4550 = vunpack.c.0.s8 %v3778
        %v4551 = vunpack.c.0.s8 %v3779
        %v4552 = vunpack.c.0.s8 %v3780
        %v4553 = vunpack.c.0.s8 %v3781
        %v4554 = vunpack.c.1.s8 %v3778
        %v4555 = vunpack.c.1.s8 %v3779
        %v4556 = vunpack.c.1.s8 %v3780
        %v4557 = vunpack.c.1.s8 %v3781
        %v4558 = vunpack.c.2.s8 %v3778
        %v4559 = vunpack.c.2.s8 %v3779
        %v4560 = vunpack.c.2.s8 %v3780
        %v4561 = vunpack.c.2.s8 %v3781
        %v4562 = vunpack.c.3.s8 %v3778
        %v4563 = vunpack.c.3.s8 %v3779
        %v4564 = vunpack.c.3.s8 %v3780
        %v4565 = vunpack.c.3.s8 %v3781
        %v4566 = vunpack.c.0.s8 %v3782
        %v4567 = vunpack.c.0.s8 %v3783
        %v4568 = vunpack.c.0.s8 %v3784
        %v4569 = vunpack.c.0.s8 %v3785
        %v4570 = vunpack.c.1.s8 %v3782
        %v4571 = vunpack.c.1.s8 %v3783
        %v4572 = vunpack.c.1.s8 %v3784
        %v4573 = vunpack.c.1.s8 %v3785
        %v4574 = vunpack.c.2.s8 %v3782
        %v4575 = vunpack.c.2.s8 %v3783
        %v4576 = vunpack.c.2.s8 %v3784
        %v4577 = vunpack.c.2.s8 %v3785
        %v4578 = vunpack.c.3.s8 %v3782
        %v4579 = vunpack.c.3.s8 %v3783
        %v4580 = vunpack.c.3.s8 %v3784
        %v4581 = vunpack.c.3.s8 %v3785
        %v4582 = vunpack.c.0.s8 %v3786
        %v4583 = vunpack.c.0.s8 %v3787
        %v4584 = vunpack.c.0.s8 %v3788
        %v4585 = vunpack.c.0.s8 %v3789
        %v4586 = vunpack.c.1.s8 %v3786
        %v4587 = vunpack.c.1.s8 %v3787
        %v4588 = vunpack.c.1.s8 %v3788
        %v4589 = vunpack.c.1.s8 %v3789
        %v4590 = vunpack.c.2.s8 %v3786
        %v4591 = vunpack.c.2.s8 %v3787
        %v4592 = vunpack.c.2.s8 %v3788
        %v4593 = vunpack.c.2.s8 %v3789
        %v4594 = vunpack.c.3.s8 %v3786
        %v4595 = vunpack.c.3.s8 %v3787
        %v4596 = vunpack.c.3.s8 %v3788
        %v4597 = vunpack.c.3.s8 %v3789
        %v4598 = vunpack.c.0.s8 %v3790
        %v4599 = vunpack.c.0.s8 %v3791
        %v4600 = vunpack.c.0.s8 %v3792
        %v4601 = vunpack.c.0.s8 %v3793
        %v4602 = vunpack.c.1.s8 %v3790
        %v4603 = vunpack.c.1.s8 %v3791
        %v4604 = vunpack.c.1.s8 %v3792
        %v4605 = vunpack.c.1.s8 %v3793
        %v4606 = vunpack.c.2.s8 %v3790
        %v4607 = vunpack.c.2.s8 %v3791
        %v4608 = vunpack.c.2.s8 %v3792
        %v4609 = vunpack.c.2.s8 %v3793
        %v4610 = vunpack.c.3.s8 %v3790
        %v4611 = vunpack.c.3.s8 %v3791
        %v4612 = vunpack.c.3.s8 %v3792
        %v4613 = vunpack.c.3.s8 %v3793
        %v4614 = vunpack.c.0.s8 %v3794
        %v4615 = vunpack.c.0.s8 %v3795
        %v4616 = vunpack.c.0.s8 %v3796
        %v4617 = vunpack.c.0.s8 %v3797
        %v4618 = vunpack.c.1.s8 %v3794
        %v4619 = vunpack.c.1.s8 %v3795
        %v4620 = vunpack.c.1.s8 %v3796
        %v4621 = vunpack.c.1.s8 %v3797
        %v4622 = vunpack.c.2.s8 %v3794
        %v4623 = vunpack.c.2.s8 %v3795
        %v4624 = vunpack.c.2.s8 %v3796
        %v4625 = vunpack.c.2.s8 %v3797
        %v4626 = vunpack.c.3.s8 %v3794
        %v4627 = vunpack.c.3.s8 %v3795
        %v4628 = vunpack.c.3.s8 %v3796
        %v4629 = vunpack.c.3.s8 %v3797
        %v4630 = vunpack.c.0.s8 %v3798
        %v4631 = vunpack.c.0.s8 %v3799
        %v4632 = vunpack.c.0.s8 %v3800
        %v4633 = vunpack.c.0.s8 %v3801
        %v4634 = vunpack.c.1.s8 %v3798
        %v4635 = vunpack.c.1.s8 %v3799
        %v4636 = vunpack.c.1.s8 %v3800
        %v4637 = vunpack.c.1.s8 %v3801
        %v4638 = vunpack.c.2.s8 %v3798
        %v4639 = vunpack.c.2.s8 %v3799
        %v4640 = vunpack.c.2.s8 %v3800
        %v4641 = vunpack.c.2.s8 %v3801
        %v4642 = vunpack.c.3.s8 %v3798
        %v4643 = vunpack.c.3.s8 %v3799
        %v4644 = vunpack.c.3.s8 %v3800
        %v4645 = vunpack.c.3.s8 %v3801
        %v4646 = vunpack.c.0.s8 %v3802
        %v4647 = vunpack.c.0.s8 %v3803
        %v4648 = vunpack.c.0.s8 %v3804
        %v4649 = vunpack.c.0.s8 %v3805
        %v4650 = vunpack.c.1.s8 %v3802
        %v4651 = vunpack.c.1.s8 %v3803
        %v4652 = vunpack.c.1.s8 %v3804
        %v4653 = vunpack.c.1.s8 %v3805
        %v4654 = vunpack.c.2.s8 %v3802
        %v4655 = vunpack.c.2.s8 %v3803
        %v4656 = vunpack.c.2.s8 %v3804
        %v4657 = vunpack.c.2.s8 %v3805
        %v4658 = vunpack.c.3.s8 %v3802
        %v4659 = vunpack.c.3.s8 %v3803
        %v4660 = vunpack.c.3.s8 %v3804
        %v4661 = vunpack.c.3.s8 %v3805
        %v4662 = vunpack.c.0.s8 %v3806
        %v4663 = vunpack.c.0.s8 %v3807
        %v4664 = vunpack.c.0.s8 %v3808
        %v4665 = vunpack.c.0.s8 %v3809
        %v4666 = vunpack.c.1.s8 %v3806
        %v4667 = vunpack.c.1.s8 %v3807
        %v4668 = vunpack.c.1.s8 %v3808
        %v4669 = vunpack.c.1.s8 %v3809
        %v4670 = vunpack.c.2.s8 %v3806
        %v4671 = vunpack.c.2.s8 %v3807
        %v4672 = vunpack.c.2.s8 %v3808
        %v4673 = vunpack.c.2.s8 %v3809
        %v4674 = vunpack.c.3.s8 %v3806
        %v4675 = vunpack.c.3.s8 %v3807
        %v4676 = vunpack.c.3.s8 %v3808
        %v4677 = vunpack.c.3.s8 %v3809
        %v4678 = vunpack.c.0.s8 %v3810
        %v4679 = vunpack.c.0.s8 %v3811
        %v4680 = vunpack.c.0.s8 %v3812
        %v4681 = vunpack.c.0.s8 %v3813
        %v4682 = vunpack.c.1.s8 %v3810
        %v4683 = vunpack.c.1.s8 %v3811
        %v4684 = vunpack.c.1.s8 %v3812
        %v4685 = vunpack.c.1.s8 %v3813
        %v4686 = vunpack.c.2.s8 %v3810
        %v4687 = vunpack.c.2.s8 %v3811
        %v4688 = vunpack.c.2.s8 %v3812
        %v4689 = vunpack.c.2.s8 %v3813
        %v4690 = vunpack.c.3.s8 %v3810
        %v4691 = vunpack.c.3.s8 %v3811
        %v4692 = vunpack.c.3.s8 %v3812
        %v4693 = vunpack.c.3.s8 %v3813
        %v4694 = vunpack.c.0.s8 %v3814
        %v4695 = vunpack.c.0.s8 %v3815
        %v4696 = vunpack.c.0.s8 %v3816
        %v4697 = vunpack.c.0.s8 %v3817
        %v4698 = vunpack.c.1.s8 %v3814
        %v4699 = vunpack.c.1.s8 %v3815
        %v4700 = vunpack.c.1.s8 %v3816
        %v4701 = vunpack.c.1.s8 %v3817
        %v4702 = vunpack.c.2.s8 %v3814
        %v4703 = vunpack.c.2.s8 %v3815
        %v4704 = vunpack.c.2.s8 %v3816
        %v4705 = vunpack.c.2.s8 %v3817
        %v4706 = vunpack.c.3.s8 %v3814
        %v4707 = vunpack.c.3.s8 %v3815
        %v4708 = vunpack.c.3.s8 %v3816
        %v4709 = vunpack.c.3.s8 %v3817
        %v4710 = vunpack.c.0.s8 %v3818
        %v4711 = vunpack.c.0.s8 %v3819
        %v4712 = vunpack.c.0.s8 %v3820
        %v4713 = vunpack.c.0.s8 %v3821
        %v4714 = vunpack.c.1.s8 %v3818
        %v4715 = vunpack.c.1.s8 %v3819
        %v4716 = vunpack.c.1.s8 %v3820
        %v4717 = vunpack.c.1.s8 %v3821
        %v4718 = vunpack.c.2.s8 %v3818
        %v4719 = vunpack.c.2.s8 %v3819
        %v4720 = vunpack.c.2.s8 %v3820
        %v4721 = vunpack.c.2.s8 %v3821
        %v4722 = vunpack.c.3.s8 %v3818
        %v4723 = vunpack.c.3.s8 %v3819
        %v4724 = vunpack.c.3.s8 %v3820
        %v4725 = vunpack.c.3.s8 %v3821
        %v4726 = vunpack.c.0.s8 %v3822
        %v4727 = vunpack.c.0.s8 %v3823
        %v4728 = vunpack.c.0.s8 %v3824
        %v4729 = vunpack.c.0.s8 %v3825
        %v4730 = vunpack.c.1.s8 %v3822
        %v4731 = vunpack.c.1.s8 %v3823
        %v4732 = vunpack.c.1.s8 %v3824
        %v4733 = vunpack.c.1.s8 %v3825
        %v4734 = vunpack.c.2.s8 %v3822
        %v4735 = vunpack.c.2.s8 %v3823
        %v4736 = vunpack.c.2.s8 %v3824
        %v4737 = vunpack.c.2.s8 %v3825
        %v4738 = vunpack.c.3.s8 %v3822
        %v4739 = vunpack.c.3.s8 %v3823
        %v4740 = vunpack.c.3.s8 %v3824
        %v4741 = vunpack.c.3.s8 %v3825
        %v4742 = vunpack.c.0.s8 %v3826
        %v4743 = vunpack.c.0.s8 %v3827
        %v4744 = vunpack.c.0.s8 %v3828
        %v4745 = vunpack.c.0.s8 %v3829
        %v4746 = vunpack.c.1.s8 %v3826
        %v4747 = vunpack.c.1.s8 %v3827
        %v4748 = vunpack.c.1.s8 %v3828
        %v4749 = vunpack.c.1.s8 %v3829
        %v4750 = vunpack.c.2.s8 %v3826
        %v4751 = vunpack.c.2.s8 %v3827
        %v4752 = vunpack.c.2.s8 %v3828
        %v4753 = vunpack.c.2.s8 %v3829
        %v4754 = vunpack.c.3.s8 %v3826
        %v4755 = vunpack.c.3.s8 %v3827
        %v4756 = vunpack.c.3.s8 %v3828
        %v4757 = vunpack.c.3.s8 %v3829
        %v4758 = vunpack.c.0.s8 %v3830
        %v4759 = vunpack.c.0.s8 %v3831
        %v4760 = vunpack.c.0.s8 %v3832
        %v4761 = vunpack.c.0.s8 %v3833
        %v4762 = vunpack.c.1.s8 %v3830
        %v4763 = vunpack.c.1.s8 %v3831
        %v4764 = vunpack.c.1.s8 %v3832
        %v4765 = vunpack.c.1.s8 %v3833
        %v4766 = vunpack.c.2.s8 %v3830
        %v4767 = vunpack.c.2.s8 %v3831
        %v4768 = vunpack.c.2.s8 %v3832
        %v4769 = vunpack.c.2.s8 %v3833
        %v4770 = vunpack.c.3.s8 %v3830
        %v4771 = vunpack.c.3.s8 %v3831
        %v4772 = vunpack.c.3.s8 %v3832
        %v4773 = vunpack.c.3.s8 %v3833
        %v4774 = vunpack.c.0.s8 %v3834
        %v4775 = vunpack.c.0.s8 %v3835
        %v4776 = vunpack.c.0.s8 %v3836
        %v4777 = vunpack.c.0.s8 %v3837
        %v4778 = vunpack.c.1.s8 %v3834
        %v4779 = vunpack.c.1.s8 %v3835
        %v4780 = vunpack.c.1.s8 %v3836
        %v4781 = vunpack.c.1.s8 %v3837
        %v4782 = vunpack.c.2.s8 %v3834
        %v4783 = vunpack.c.2.s8 %v3835
        %v4784 = vunpack.c.2.s8 %v3836
        %v4785 = vunpack.c.2.s8 %v3837
        %v4786 = vunpack.c.3.s8 %v3834
        %v4787 = vunpack.c.3.s8 %v3835
        %v4788 = vunpack.c.3.s8 %v3836
        %v4789 = vunpack.c.3.s8 %v3837
        %v4790 = vunpack.c.0.s8 %v3838
        %v4791 = vunpack.c.0.s8 %v3839
        %v4792 = vunpack.c.0.s8 %v3840
        %v4793 = vunpack.c.0.s8 %v3841
        %v4794 = vunpack.c.1.s8 %v3838
        %v4795 = vunpack.c.1.s8 %v3839
        %v4796 = vunpack.c.1.s8 %v3840
        %v4797 = vunpack.c.1.s8 %v3841
        %v4798 = vunpack.c.2.s8 %v3838
        %v4799 = vunpack.c.2.s8 %v3839
        %v4800 = vunpack.c.2.s8 %v3840
        %v4801 = vunpack.c.2.s8 %v3841
        %v4802 = vunpack.c.3.s8 %v3838
        %v4803 = vunpack.c.3.s8 %v3839
        %v4804 = vunpack.c.3.s8 %v3840
        %v4805 = vunpack.c.3.s8 %v3841
        %v4806 = vunpack.c.0.s8 %v3842
        %v4807 = vunpack.c.0.s8 %v3843
        %v4808 = vunpack.c.0.s8 %v3844
        %v4809 = vunpack.c.0.s8 %v3845
        %v4810 = vunpack.c.1.s8 %v3842
        %v4811 = vunpack.c.1.s8 %v3843
        %v4812 = vunpack.c.1.s8 %v3844
        %v4813 = vunpack.c.1.s8 %v3845
        %v4814 = vunpack.c.2.s8 %v3842
        %v4815 = vunpack.c.2.s8 %v3843
        %v4816 = vunpack.c.2.s8 %v3844
        %v4817 = vunpack.c.2.s8 %v3845
        %v4818 = vunpack.c.3.s8 %v3842
        %v4819 = vunpack.c.3.s8 %v3843
        %v4820 = vunpack.c.3.s8 %v3844
        %v4821 = vunpack.c.3.s8 %v3845
        %v4822 = vunpack.c.0.s8 %v3846
        %v4823 = vunpack.c.0.s8 %v3847
        %v4824 = vunpack.c.0.s8 %v3848
        %v4825 = vunpack.c.0.s8 %v3849
        %v4826 = vunpack.c.1.s8 %v3846
        %v4827 = vunpack.c.1.s8 %v3847
        %v4828 = vunpack.c.1.s8 %v3848
        %v4829 = vunpack.c.1.s8 %v3849
        %v4830 = vunpack.c.2.s8 %v3846
        %v4831 = vunpack.c.2.s8 %v3847
        %v4832 = vunpack.c.2.s8 %v3848
        %v4833 = vunpack.c.2.s8 %v3849
        %v4834 = vunpack.c.3.s8 %v3846
        %v4835 = vunpack.c.3.s8 %v3847
        %v4836 = vunpack.c.3.s8 %v3848
        %v4837 = vunpack.c.3.s8 %v3849
        %v4838 = vunpack.c.0.s8 %v3850
        %v4839 = vunpack.c.0.s8 %v3851
        %v4840 = vunpack.c.0.s8 %v3852
        %v4841 = vunpack.c.0.s8 %v3853
        %v4842 = vunpack.c.1.s8 %v3850
        %v4843 = vunpack.c.1.s8 %v3851
        %v4844 = vunpack.c.1.s8 %v3852
        %v4845 = vunpack.c.1.s8 %v3853
        %v4846 = vunpack.c.2.s8 %v3850
        %v4847 = vunpack.c.2.s8 %v3851
        %v4848 = vunpack.c.2.s8 %v3852
        %v4849 = vunpack.c.2.s8 %v3853
        %v4850 = vunpack.c.3.s8 %v3850
        %v4851 = vunpack.c.3.s8 %v3851
        %v4852 = vunpack.c.3.s8 %v3852
        %v4853 = vunpack.c.3.s8 %v3853
        %v4854 = vunpack.c.0.s8 %v3854
        %v4855 = vunpack.c.0.s8 %v3855
        %v4856 = vunpack.c.0.s8 %v3856
        %v4857 = vunpack.c.0.s8 %v3857
        %v4858 = vunpack.c.1.s8 %v3854
        %v4859 = vunpack.c.1.s8 %v3855
        %v4860 = vunpack.c.1.s8 %v3856
        %v4861 = vunpack.c.1.s8 %v3857
        %v4862 = vunpack.c.2.s8 %v3854
        %v4863 = vunpack.c.2.s8 %v3855
        %v4864 = vunpack.c.2.s8 %v3856
        %v4865 = vunpack.c.2.s8 %v3857
        %v4866 = vunpack.c.3.s8 %v3854
        %v4867 = vunpack.c.3.s8 %v3855
        %v4868 = vunpack.c.3.s8 %v3856
        %v4869 = vunpack.c.3.s8 %v3857
        %v4870 = vunpack.c.0.s8 %v3858
        %v4871 = vunpack.c.0.s8 %v3859
        %v4872 = vunpack.c.0.s8 %v3860
        %v4873 = vunpack.c.0.s8 %v3861
        %v4874 = vunpack.c.1.s8 %v3858
        %v4875 = vunpack.c.1.s8 %v3859
        %v4876 = vunpack.c.1.s8 %v3860
        %v4877 = vunpack.c.1.s8 %v3861
        %v4878 = vunpack.c.2.s8 %v3858
        %v4879 = vunpack.c.2.s8 %v3859
        %v4880 = vunpack.c.2.s8 %v3860
        %v4881 = vunpack.c.2.s8 %v3861
        %v4882 = vunpack.c.3.s8 %v3858
        %v4883 = vunpack.c.3.s8 %v3859
        %v4884 = vunpack.c.3.s8 %v3860
        %v4885 = vunpack.c.3.s8 %v3861
        %v4886 = vcvt.s32.f32 %v3862
        %v4887 = vcvt.s32.f32 %v3863
        %v4888 = vcvt.s32.f32 %v3864
        %v4889 = vcvt.s32.f32 %v3865
        %v4890 = vcvt.s32.f32 %v3866
        %v4891 = vcvt.s32.f32 %v3867
        %v4892 = vcvt.s32.f32 %v3868
        %v4893 = vcvt.s32.f32 %v3869
        %v4894 = vcvt.s32.f32 %v3870
        %v4895 = vcvt.s32.f32 %v3871
        %v4896 = vcvt.s32.f32 %v3872
        %v4897 = vcvt.s32.f32 %v3873
        %v4898 = vcvt.s32.f32 %v3874
        %v4899 = vcvt.s32.f32 %v3875
        %v4900 = vcvt.s32.f32 %v3876
        %v4901 = vcvt.s32.f32 %v3877
        %v4902 = vcvt.s32.f32 %v3878
        %v4903 = vcvt.s32.f32 %v3879
        %v4904 = vcvt.s32.f32 %v3880
        %v4905 = vcvt.s32.f32 %v3881
        %v4906 = vcvt.s32.f32 %v3882
        %v4907 = vcvt.s32.f32 %v3883
        %v4908 = vcvt.s32.f32 %v3884
        %v4909 = vcvt.s32.f32 %v3885
        %v4910 = vcvt.s32.f32 %v3886
        %v4911 = vcvt.s32.f32 %v3887
        %v4912 = vcvt.s32.f32 %v3888
        %v4913 = vcvt.s32.f32 %v3889
        %v4914 = vcvt.s32.f32 %v3890
        %v4915 = vcvt.s32.f32 %v3891
        %v4916 = vcvt.s32.f32 %v3892
        %v4917 = vcvt.s32.f32 %v3893
        %v4918 = vcvt.s32.f32 %v3894
        %v4919 = vcvt.s32.f32 %v3895
        %v4920 = vcvt.s32.f32 %v3896
        %v4921 = vcvt.s32.f32 %v3897
        %v4922 = vcvt.s32.f32 %v3898
        %v4923 = vcvt.s32.f32 %v3899
        %v4924 = vcvt.s32.f32 %v3900
        %v4925 = vcvt.s32.f32 %v3901
        %v4926 = vcvt.s32.f32 %v3902
        %v4927 = vcvt.s32.f32 %v3903
        %v4928 = vcvt.s32.f32 %v3904
        %v4929 = vcvt.s32.f32 %v3905
        %v4930 = vcvt.s32.f32 %v3906
        %v4931 = vcvt.s32.f32 %v3907
        %v4932 = vcvt.s32.f32 %v3908
        %v4933 = vcvt.s32.f32 %v3909
        %v4934 = vcvt.s32.f32 %v3910
        %v4935 = vcvt.s32.f32 %v3911
        %v4936 = vcvt.s32.f32 %v3912
        %v4937 = vcvt.s32.f32 %v3913
        %v4938 = vcvt.s32.f32 %v3914
        %v4939 = vcvt.s32.f32 %v3915
        %v4940 = vcvt.s32.f32 %v3916
        %v4941 = vcvt.s32.f32 %v3917
        %v4942 = vcvt.s32.f32 %v3918
        %v4943 = vcvt.s32.f32 %v3919
        %v4944 = vcvt.s32.f32 %v3920
        %v4945 = vcvt.s32.f32 %v3921
        %v4946 = vcvt.s32.f32 %v3922
        %v4947 = vcvt.s32.f32 %v3923
        %v4948 = vcvt.s32.f32 %v3924
        %v4949 = vcvt.s32.f32 %v3925
        %v4950 = vcvt.s32.f32 %v3926
        %v4951 = vcvt.s32.f32 %v3927
        %v4952 = vcvt.s32.f32 %v3928
        %v4953 = vcvt.s32.f32 %v3929
        %v4954 = vcvt.s32.f32 %v3930
        %v4955 = vcvt.s32.f32 %v3931
        %v4956 = vcvt.s32.f32 %v3932
        %v4957 = vcvt.s32.f32 %v3933
        %v4958 = vcvt.s32.f32 %v3934
        %v4959 = vcvt.s32.f32 %v3935
        %v4960 = vcvt.s32.f32 %v3936
        %v4961 = vcvt.s32.f32 %v3937
        %v4962 = vcvt.s32.f32 %v3938
        %v4963 = vcvt.s32.f32 %v3939
        %v4964 = vcvt.s32.f32 %v3940
        %v4965 = vcvt.s32.f32 %v3941
        %v4966 = vcvt.s32.f32 %v3942
        %v4967 = vcvt.s32.f32 %v3943
        %v4968 = vcvt.s32.f32 %v3944
        %v4969 = vcvt.s32.f32 %v3945
        %v4970 = vcvt.s32.f32 %v3946
        %v4971 = vcvt.s32.f32 %v3947
        %v4972 = vcvt.s32.f32 %v3948
        %v4973 = vcvt.s32.f32 %v3949
        %v4974 = vcvt.s32.f32 %v3950
        %v4975 = vcvt.s32.f32 %v3951
        %v4976 = vcvt.s32.f32 %v3952
        %v4977 = vcvt.s32.f32 %v3953
        %v4978 = vcvt.s32.f32 %v3954
        %v4979 = vcvt.s32.f32 %v3955
        %v4980 = vcvt.s32.f32 %v3956
        %v4981 = vcvt.s32.f32 %v3957
        %v4982 = vcvt.s32.f32 %v3958
        %v4983 = vcvt.s32.f32 %v3959
        %v4984 = vcvt.s32.f32 %v3960
        %v4985 = vcvt.s32.f32 %v3961
        %v4986 = vcvt.s32.f32 %v3962
        %v4987 = vcvt.s32.f32 %v3963
        %v4988 = vcvt.s32.f32 %v3964
        %v4989 = vcvt.s32.f32 %v3965
        %v4990 = vcvt.s32.f32 %v3966
        %v4991 = vcvt.s32.f32 %v3967
        %v4992 = vcvt.s32.f32 %v3968
        %v4993 = vcvt.s32.f32 %v3969
        %v4994 = vcvt.s32.f32 %v3970
        %v4995 = vcvt.s32.f32 %v3971
        %v4996 = vcvt.s32.f32 %v3972
        %v4997 = vcvt.s32.f32 %v3973
        %v4998 = vcvt.s32.f32 %v3974
        %v4999 = vcvt.s32.f32 %v3975
        %v5000 = vcvt.s32.f32 %v3976
        %v5001 = vcvt.s32.f32 %v3977
        %v5002 = vcvt.s32.f32 %v3978
        %v5003 = vcvt.s32.f32 %v3979
        %v5004 = vcvt.s32.f32 %v3980
        %v5005 = vcvt.s32.f32 %v3981
        %v5006 = vcvt.s32.f32 %v3982
        %v5007 = vcvt.s32.f32 %v3983
        %v5008 = vcvt.s32.f32 %v3984
        %v5009 = vcvt.s32.f32 %v3985
        %v5010 = vcvt.s32.f32 %v3986
        %v5011 = vcvt.s32.f32 %v3987
        %v5012 = vcvt.s32.f32 %v3988
        %v5013 = vcvt.s32.f32 %v3989
        %v5014 = vcvt.s32.f32 %v3990
        %v5015 = vcvt.s32.f32 %v3991
        %v5016 = vcvt.s32.f32 %v3992
        %v5017 = vcvt.s32.f32 %v3993
        %v5018 = vcvt.s32.f32 %v3994
        %v5019 = vcvt.s32.f32 %v3995
        %v5020 = vcvt.s32.f32 %v3996
        %v5021 = vcvt.s32.f32 %v3997
        %v5022 = vcvt.s32.f32 %v3998
        %v5023 = vcvt.s32.f32 %v3999
        %v5024 = vcvt.s32.f32 %v4000
        %v5025 = vcvt.s32.f32 %v4001
        %v5026 = vcvt.s32.f32 %v4002
        %v5027 = vcvt.s32.f32 %v4003
        %v5028 = vcvt.s32.f32 %v4004
        %v5029 = vcvt.s32.f32 %v4005
        %v5030 = vcvt.s32.f32 %v4006
        %v5031 = vcvt.s32.f32 %v4007
        %v5032 = vcvt.s32.f32 %v4008
        %v5033 = vcvt.s32.f32 %v4009
        %v5034 = vcvt.s32.f32 %v4010
        %v5035 = vcvt.s32.f32 %v4011
        %v5036 = vcvt.s32.f32 %v4012
        %v5037 = vcvt.s32.f32 %v4013
        %v5038 = vcvt.s32.f32 %v4014
        %v5039 = vcvt.s32.f32 %v4015
        %v5040 = vcvt.s32.f32 %v4016
        %v5041 = vcvt.s32.f32 %v4017
        %v5042 = vcvt.s32.f32 %v4018
        %v5043 = vcvt.s32.f32 %v4019
        %v5044 = vcvt.s32.f32 %v4020
        %v5045 = vcvt.s32.f32 %v4021
        %v5046 = vcvt.s32.f32 %v4022
        %v5047 = vcvt.s32.f32 %v4023
        %v5048 = vcvt.s32.f32 %v4024
        %v5049 = vcvt.s32.f32 %v4025
        %v5050 = vcvt.s32.f32 %v4026
        %v5051 = vcvt.s32.f32 %v4027
        %v5052 = vcvt.s32.f32 %v4028
        %v5053 = vcvt.s32.f32 %v4029
        %v5054 = vcvt.s32.f32 %v4030
        %v5055 = vcvt.s32.f32 %v4031
        %v5056 = vcvt.s32.f32 %v4032
        %v5057 = vcvt.s32.f32 %v4033
        %v5058 = vcvt.s32.f32 %v4034
        %v5059 = vcvt.s32.f32 %v4035
        %v5060 = vcvt.s32.f32 %v4036
        %v5061 = vcvt.s32.f32 %v4037
        %v5062 = vcvt.s32.f32 %v4038
        %v5063 = vcvt.s32.f32 %v4039
        %v5064 = vcvt.s32.f32 %v4040
        %v5065 = vcvt.s32.f32 %v4041
        %v5066 = vcvt.s32.f32 %v4042
        %v5067 = vcvt.s32.f32 %v4043
        %v5068 = vcvt.s32.f32 %v4044
        %v5069 = vcvt.s32.f32 %v4045
        %v5070 = vcvt.s32.f32 %v4046
        %v5071 = vcvt.s32.f32 %v4047
        %v5072 = vcvt.s32.f32 %v4048
        %v5073 = vcvt.s32.f32 %v4049
        %v5074 = vcvt.s32.f32 %v4050
        %v5075 = vcvt.s32.f32 %v4051
        %v5076 = vcvt.s32.f32 %v4052
        %v5077 = vcvt.s32.f32 %v4053
        %v5078 = vcvt.s32.f32 %v4054
        %v5079 = vcvt.s32.f32 %v4055
        %v5080 = vcvt.s32.f32 %v4056
        %v5081 = vcvt.s32.f32 %v4057
        %v5082 = vcvt.s32.f32 %v4058
        %v5083 = vcvt.s32.f32 %v4059
        %v5084 = vcvt.s32.f32 %v4060
        %v5085 = vcvt.s32.f32 %v4061
        %v5086 = vcvt.s32.f32 %v4062
        %v5087 = vcvt.s32.f32 %v4063
        %v5088 = vcvt.s32.f32 %v4064
        %v5089 = vcvt.s32.f32 %v4065
        %v5090 = vcvt.s32.f32 %v4066
        %v5091 = vcvt.s32.f32 %v4067
        %v5092 = vcvt.s32.f32 %v4068
        %v5093 = vcvt.s32.f32 %v4069
        %v5094 = vcvt.s32.f32 %v4070
        %v5095 = vcvt.s32.f32 %v4071
        %v5096 = vcvt.s32.f32 %v4072
        %v5097 = vcvt.s32.f32 %v4073
        %v5098 = vcvt.s32.f32 %v4074
        %v5099 = vcvt.s32.f32 %v4075
        %v5100 = vcvt.s32.f32 %v4076
        %v5101 = vcvt.s32.f32 %v4077
        %v5102 = vcvt.s32.f32 %v4078
        %v5103 = vcvt.s32.f32 %v4079
        %v5104 = vcvt.s32.f32 %v4080
        %v5105 = vcvt.s32.f32 %v4081
        %v5106 = vcvt.s32.f32 %v4082
        %v5107 = vcvt.s32.f32 %v4083
        %v5108 = vcvt.s32.f32 %v4084
        %v5109 = vcvt.s32.f32 %v4085
        %v5110 = vcvt.s32.f32 %v4086
        %v5111 = vcvt.s32.f32 %v4087
        %v5112 = vcvt.s32.f32 %v4088
        %v5113 = vcvt.s32.f32 %v4089
        %v5114 = vcvt.s32.f32 %v4090
        %v5115 = vcvt.s32.f32 %v4091
        %v5116 = vcvt.s32.f32 %v4092
        %v5117 = vcvt.s32.f32 %v4093
        %v5118 = vcvt.s32.f32 %v4094
        %v5119 = vcvt.s32.f32 %v4095
        %v5120 = vcvt.s32.f32 %v4096
        %v5121 = vcvt.s32.f32 %v4097
        %v5122 = vcvt.s32.f32 %v4098
        %v5123 = vcvt.s32.f32 %v4099
        %v5124 = vcvt.s32.f32 %v4100
        %v5125 = vcvt.s32.f32 %v4101
        %v5126 = vcvt.s32.f32 %v4102
        %v5127 = vcvt.s32.f32 %v4103
        %v5128 = vcvt.s32.f32 %v4104
        %v5129 = vcvt.s32.f32 %v4105
        %v5130 = vcvt.s32.f32 %v4106
        %v5131 = vcvt.s32.f32 %v4107
        %v5132 = vcvt.s32.f32 %v4108
        %v5133 = vcvt.s32.f32 %v4109
        %v5134 = vcvt.s32.f32 %v4110
        %v5135 = vcvt.s32.f32 %v4111
        %v5136 = vcvt.s32.f32 %v4112
        %v5137 = vcvt.s32.f32 %v4113
        %v5138 = vcvt.s32.f32 %v4114
        %v5139 = vcvt.s32.f32 %v4115
        %v5140 = vcvt.s32.f32 %v4116
        %v5141 = vcvt.s32.f32 %v4117
        %v5142 = vcvt.s32.f32 %v4118
        %v5143 = vcvt.s32.f32 %v4119
        %v5144 = vcvt.s32.f32 %v4120
        %v5145 = vcvt.s32.f32 %v4121
        %v5146 = vcvt.s32.f32 %v4122
        %v5147 = vcvt.s32.f32 %v4123
        %v5148 = vcvt.s32.f32 %v4124
        %v5149 = vcvt.s32.f32 %v4125
        %v5150 = vcvt.s32.f32 %v4126
        %v5151 = vcvt.s32.f32 %v4127
        %v5152 = vcvt.s32.f32 %v4128
        %v5153 = vcvt.s32.f32 %v4129
        %v5154 = vcvt.s32.f32 %v4130
        %v5155 = vcvt.s32.f32 %v4131
        %v5156 = vcvt.s32.f32 %v4132
        %v5157 = vcvt.s32.f32 %v4133
        %v5158 = vcvt.s32.f32 %v4134
        %v5159 = vcvt.s32.f32 %v4135
        %v5160 = vcvt.s32.f32 %v4136
        %v5161 = vcvt.s32.f32 %v4137
        %v5162 = vcvt.s32.f32 %v4138
        %v5163 = vcvt.s32.f32 %v4139
        %v5164 = vcvt.s32.f32 %v4140
        %v5165 = vcvt.s32.f32 %v4141
        %v5166 = vcvt.s32.f32 %v4142
        %v5167 = vcvt.s32.f32 %v4143
        %v5168 = vcvt.s32.f32 %v4144
        %v5169 = vcvt.s32.f32 %v4145
        %v5170 = vcvt.s32.f32 %v4146
        %v5171 = vcvt.s32.f32 %v4147
        %v5172 = vcvt.s32.f32 %v4148
        %v5173 = vcvt.s32.f32 %v4149
        %v5174 = vcvt.s32.f32 %v4150
        %v5175 = vcvt.s32.f32 %v4151
        %v5176 = vcvt.s32.f32 %v4152
        %v5177 = vcvt.s32.f32 %v4153
        %v5178 = vcvt.s32.f32 %v4154
        %v5179 = vcvt.s32.f32 %v4155
        %v5180 = vcvt.s32.f32 %v4156
        %v5181 = vcvt.s32.f32 %v4157
        %v5182 = vcvt.s32.f32 %v4158
        %v5183 = vcvt.s32.f32 %v4159
        %v5184 = vcvt.s32.f32 %v4160
        %v5185 = vcvt.s32.f32 %v4161
        %v5186 = vcvt.s32.f32 %v4162
        %v5187 = vcvt.s32.f32 %v4163
        %v5188 = vcvt.s32.f32 %v4164
        %v5189 = vcvt.s32.f32 %v4165
        %v5190 = vcvt.s32.f32 %v4166
        %v5191 = vcvt.s32.f32 %v4167
        %v5192 = vcvt.s32.f32 %v4168
        %v5193 = vcvt.s32.f32 %v4169
        %v5194 = vcvt.s32.f32 %v4170
        %v5195 = vcvt.s32.f32 %v4171
        %v5196 = vcvt.s32.f32 %v4172
        %v5197 = vcvt.s32.f32 %v4173
        %v5198 = vcvt.s32.f32 %v4174
        %v5199 = vcvt.s32.f32 %v4175
        %v5200 = vcvt.s32.f32 %v4176
        %v5201 = vcvt.s32.f32 %v4177
        %v5202 = vcvt.s32.f32 %v4178
        %v5203 = vcvt.s32.f32 %v4179
        %v5204 = vcvt.s32.f32 %v4180
        %v5205 = vcvt.s32.f32 %v4181
        %v5206 = vcvt.s32.f32 %v4182
        %v5207 = vcvt.s32.f32 %v4183
        %v5208 = vcvt.s32.f32 %v4184
        %v5209 = vcvt.s32.f32 %v4185
        %v5210 = vcvt.s32.f32 %v4186
        %v5211 = vcvt.s32.f32 %v4187
        %v5212 = vcvt.s32.f32 %v4188
        %v5213 = vcvt.s32.f32 %v4189
        %v5214 = vcvt.s32.f32 %v4190
        %v5215 = vcvt.s32.f32 %v4191
        %v5216 = vcvt.s32.f32 %v4192
        %v5217 = vcvt.s32.f32 %v4193
        %v5218 = vcvt.s32.f32 %v4194
        %v5219 = vcvt.s32.f32 %v4195
        %v5220 = vcvt.s32.f32 %v4196
        %v5221 = vcvt.s32.f32 %v4197
        %v5222 = vcvt.s32.f32 %v4198
        %v5223 = vcvt.s32.f32 %v4199
        %v5224 = vcvt.s32.f32 %v4200
        %v5225 = vcvt.s32.f32 %v4201
        %v5226 = vcvt.s32.f32 %v4202
        %v5227 = vcvt.s32.f32 %v4203
        %v5228 = vcvt.s32.f32 %v4204
        %v5229 = vcvt.s32.f32 %v4205
        %v5230 = vcvt.s32.f32 %v4206
        %v5231 = vcvt.s32.f32 %v4207
        %v5232 = vcvt.s32.f32 %v4208
        %v5233 = vcvt.s32.f32 %v4209
        %v5234 = vcvt.s32.f32 %v4210
        %v5235 = vcvt.s32.f32 %v4211
        %v5236 = vcvt.s32.f32 %v4212
        %v5237 = vcvt.s32.f32 %v4213
        %v5238 = vcvt.s32.f32 %v4214
        %v5239 = vcvt.s32.f32 %v4215
        %v5240 = vcvt.s32.f32 %v4216
        %v5241 = vcvt.s32.f32 %v4217
        %v5242 = vcvt.s32.f32 %v4218
        %v5243 = vcvt.s32.f32 %v4219
        %v5244 = vcvt.s32.f32 %v4220
        %v5245 = vcvt.s32.f32 %v4221
        %v5246 = vcvt.s32.f32 %v4222
        %v5247 = vcvt.s32.f32 %v4223
        %v5248 = vcvt.s32.f32 %v4224
        %v5249 = vcvt.s32.f32 %v4225
        %v5250 = vcvt.s32.f32 %v4226
        %v5251 = vcvt.s32.f32 %v4227
        %v5252 = vcvt.s32.f32 %v4228
        %v5253 = vcvt.s32.f32 %v4229
        %v5254 = vcvt.s32.f32 %v4230
        %v5255 = vcvt.s32.f32 %v4231
        %v5256 = vcvt.s32.f32 %v4232
        %v5257 = vcvt.s32.f32 %v4233
        %v5258 = vcvt.s32.f32 %v4234
        %v5259 = vcvt.s32.f32 %v4235
        %v5260 = vcvt.s32.f32 %v4236
        %v5261 = vcvt.s32.f32 %v4237
        %v5262 = vcvt.s32.f32 %v4238
        %v5263 = vcvt.s32.f32 %v4239
        %v5264 = vcvt.s32.f32 %v4240
        %v5265 = vcvt.s32.f32 %v4241
        %v5266 = vcvt.s32.f32 %v4242
        %v5267 = vcvt.s32.f32 %v4243
        %v5268 = vcvt.s32.f32 %v4244
        %v5269 = vcvt.s32.f32 %v4245
        %v5270 = vcvt.s32.f32 %v4246
        %v5271 = vcvt.s32.f32 %v4247
        %v5272 = vcvt.s32.f32 %v4248
        %v5273 = vcvt.s32.f32 %v4249
        %v5274 = vcvt.s32.f32 %v4250
        %v5275 = vcvt.s32.f32 %v4251
        %v5276 = vcvt.s32.f32 %v4252
        %v5277 = vcvt.s32.f32 %v4253
        %v5278 = vcvt.s32.f32 %v4254
        %v5279 = vcvt.s32.f32 %v4255
        %v5280 = vcvt.s32.f32 %v4256
        %v5281 = vcvt.s32.f32 %v4257
        %v5282 = vcvt.s32.f32 %v4258
        %v5283 = vcvt.s32.f32 %v4259
        %v5284 = vcvt.s32.f32 %v4260
        %v5285 = vcvt.s32.f32 %v4261
        %v5286 = vcvt.s32.f32 %v4262
        %v5287 = vcvt.s32.f32 %v4263
        %v5288 = vcvt.s32.f32 %v4264
        %v5289 = vcvt.s32.f32 %v4265
        %v5290 = vcvt.s32.f32 %v4266
        %v5291 = vcvt.s32.f32 %v4267
        %v5292 = vcvt.s32.f32 %v4268
        %v5293 = vcvt.s32.f32 %v4269
        %v5294 = vcvt.s32.f32 %v4270
        %v5295 = vcvt.s32.f32 %v4271
        %v5296 = vcvt.s32.f32 %v4272
        %v5297 = vcvt.s32.f32 %v4273
        %v5298 = vcvt.s32.f32 %v4274
        %v5299 = vcvt.s32.f32 %v4275
        %v5300 = vcvt.s32.f32 %v4276
        %v5301 = vcvt.s32.f32 %v4277
        %v5302 = vcvt.s32.f32 %v4278
        %v5303 = vcvt.s32.f32 %v4279
        %v5304 = vcvt.s32.f32 %v4280
        %v5305 = vcvt.s32.f32 %v4281
        %v5306 = vcvt.s32.f32 %v4282
        %v5307 = vcvt.s32.f32 %v4283
        %v5308 = vcvt.s32.f32 %v4284
        %v5309 = vcvt.s32.f32 %v4285
        %v5310 = vcvt.s32.f32 %v4286
        %v5311 = vcvt.s32.f32 %v4287
        %v5312 = vcvt.s32.f32 %v4288
        %v5313 = vcvt.s32.f32 %v4289
        %v5314 = vcvt.s32.f32 %v4290
        %v5315 = vcvt.s32.f32 %v4291
        %v5316 = vcvt.s32.f32 %v4292
        %v5317 = vcvt.s32.f32 %v4293
        %v5318 = vcvt.s32.f32 %v4294
        %v5319 = vcvt.s32.f32 %v4295
        %v5320 = vcvt.s32.f32 %v4296
        %v5321 = vcvt.s32.f32 %v4297
        %v5322 = vcvt.s32.f32 %v4298
        %v5323 = vcvt.s32.f32 %v4299
        %v5324 = vcvt.s32.f32 %v4300
        %v5325 = vcvt.s32.f32 %v4301
        %v5326 = vcvt.s32.f32 %v4302
        %v5327 = vcvt.s32.f32 %v4303
        %v5328 = vcvt.s32.f32 %v4304
        %v5329 = vcvt.s32.f32 %v4305
        %v5330 = vcvt.s32.f32 %v4306
        %v5331 = vcvt.s32.f32 %v4307
        %v5332 = vcvt.s32.f32 %v4308
        %v5333 = vcvt.s32.f32 %v4309
        %v5334 = vcvt.s32.f32 %v4310
        %v5335 = vcvt.s32.f32 %v4311
        %v5336 = vcvt.s32.f32 %v4312
        %v5337 = vcvt.s32.f32 %v4313
        %v5338 = vcvt.s32.f32 %v4314
        %v5339 = vcvt.s32.f32 %v4315
        %v5340 = vcvt.s32.f32 %v4316
        %v5341 = vcvt.s32.f32 %v4317
        %v5342 = vcvt.s32.f32 %v4318
        %v5343 = vcvt.s32.f32 %v4319
        %v5344 = vcvt.s32.f32 %v4320
        %v5345 = vcvt.s32.f32 %v4321
        %v5346 = vcvt.s32.f32 %v4322
        %v5347 = vcvt.s32.f32 %v4323
        %v5348 = vcvt.s32.f32 %v4324
        %v5349 = vcvt.s32.f32 %v4325
        %v5350 = vcvt.s32.f32 %v4326
        %v5351 = vcvt.s32.f32 %v4327
        %v5352 = vcvt.s32.f32 %v4328
        %v5353 = vcvt.s32.f32 %v4329
        %v5354 = vcvt.s32.f32 %v4330
        %v5355 = vcvt.s32.f32 %v4331
        %v5356 = vcvt.s32.f32 %v4332
        %v5357 = vcvt.s32.f32 %v4333
        %v5358 = vcvt.s32.f32 %v4334
        %v5359 = vcvt.s32.f32 %v4335
        %v5360 = vcvt.s32.f32 %v4336
        %v5361 = vcvt.s32.f32 %v4337
        %v5362 = vcvt.s32.f32 %v4338
        %v5363 = vcvt.s32.f32 %v4339
        %v5364 = vcvt.s32.f32 %v4340
        %v5365 = vcvt.s32.f32 %v4341
        %v5366 = vcvt.s32.f32 %v4342
        %v5367 = vcvt.s32.f32 %v4343
        %v5368 = vcvt.s32.f32 %v4344
        %v5369 = vcvt.s32.f32 %v4345
        %v5370 = vcvt.s32.f32 %v4346
        %v5371 = vcvt.s32.f32 %v4347
        %v5372 = vcvt.s32.f32 %v4348
        %v5373 = vcvt.s32.f32 %v4349
        %v5374 = vcvt.s32.f32 %v4350
        %v5375 = vcvt.s32.f32 %v4351
        %v5376 = vcvt.s32.f32 %v4352
        %v5377 = vcvt.s32.f32 %v4353
        %v5378 = vcvt.s32.f32 %v4354
        %v5379 = vcvt.s32.f32 %v4355
        %v5380 = vcvt.s32.f32 %v4356
        %v5381 = vcvt.s32.f32 %v4357
        %v5382 = vcvt.s32.f32 %v4358
        %v5383 = vcvt.s32.f32 %v4359
        %v5384 = vcvt.s32.f32 %v4360
        %v5385 = vcvt.s32.f32 %v4361
        %v5386 = vcvt.s32.f32 %v4362
        %v5387 = vcvt.s32.f32 %v4363
        %v5388 = vcvt.s32.f32 %v4364
        %v5389 = vcvt.s32.f32 %v4365
        %v5390 = vcvt.s32.f32 %v4366
        %v5391 = vcvt.s32.f32 %v4367
        %v5392 = vcvt.s32.f32 %v4368
        %v5393 = vcvt.s32.f32 %v4369
        %v5394 = vcvt.s32.f32 %v4370
        %v5395 = vcvt.s32.f32 %v4371
        %v5396 = vcvt.s32.f32 %v4372
        %v5397 = vcvt.s32.f32 %v4373
        %v5398 = vcvt.s32.f32 %v4374
        %v5399 = vcvt.s32.f32 %v4375
        %v5400 = vcvt.s32.f32 %v4376
        %v5401 = vcvt.s32.f32 %v4377
        %v5402 = vcvt.s32.f32 %v4378
        %v5403 = vcvt.s32.f32 %v4379
        %v5404 = vcvt.s32.f32 %v4380
        %v5405 = vcvt.s32.f32 %v4381
        %v5406 = vcvt.s32.f32 %v4382
        %v5407 = vcvt.s32.f32 %v4383
        %v5408 = vcvt.s32.f32 %v4384
        %v5409 = vcvt.s32.f32 %v4385
        %v5410 = vcvt.s32.f32 %v4386
        %v5411 = vcvt.s32.f32 %v4387
        %v5412 = vcvt.s32.f32 %v4388
        %v5413 = vcvt.s32.f32 %v4389
        %v5414 = vcvt.s32.f32 %v4390
        %v5415 = vcvt.s32.f32 %v4391
        %v5416 = vcvt.s32.f32 %v4392
        %v5417 = vcvt.s32.f32 %v4393
        %v5418 = vcvt.s32.f32 %v4394
        %v5419 = vcvt.s32.f32 %v4395
        %v5420 = vcvt.s32.f32 %v4396
        %v5421 = vcvt.s32.f32 %v4397
        %v5422 = vcvt.s32.f32 %v4398
        %v5423 = vcvt.s32.f32 %v4399
        %v5424 = vcvt.s32.f32 %v4400
        %v5425 = vcvt.s32.f32 %v4401
        %v5426 = vcvt.s32.f32 %v4402
        %v5427 = vcvt.s32.f32 %v4403
        %v5428 = vcvt.s32.f32 %v4404
        %v5429 = vcvt.s32.f32 %v4405
        %v5430 = vcvt.s32.f32 %v4406
        %v5431 = vcvt.s32.f32 %v4407
        %v5432 = vcvt.s32.f32 %v4408
        %v5433 = vcvt.s32.f32 %v4409
        %v5434 = vcvt.s32.f32 %v4410
        %v5435 = vcvt.s32.f32 %v4411
        %v5436 = vcvt.s32.f32 %v4412
        %v5437 = vcvt.s32.f32 %v4413
        %v5438 = vcvt.s32.f32 %v4414
        %v5439 = vcvt.s32.f32 %v4415
        %v5440 = vcvt.s32.f32 %v4416
        %v5441 = vcvt.s32.f32 %v4417
        %v5442 = vcvt.s32.f32 %v4418
        %v5443 = vcvt.s32.f32 %v4419
        %v5444 = vcvt.s32.f32 %v4420
        %v5445 = vcvt.s32.f32 %v4421
        %v5446 = vcvt.s32.f32 %v4422
        %v5447 = vcvt.s32.f32 %v4423
        %v5448 = vcvt.s32.f32 %v4424
        %v5449 = vcvt.s32.f32 %v4425
        %v5450 = vcvt.s32.f32 %v4426
        %v5451 = vcvt.s32.f32 %v4427
        %v5452 = vcvt.s32.f32 %v4428
        %v5453 = vcvt.s32.f32 %v4429
        %v5454 = vcvt.s32.f32 %v4430
        %v5455 = vcvt.s32.f32 %v4431
        %v5456 = vcvt.s32.f32 %v4432
        %v5457 = vcvt.s32.f32 %v4433
        %v5458 = vcvt.s32.f32 %v4434
        %v5459 = vcvt.s32.f32 %v4435
        %v5460 = vcvt.s32.f32 %v4436
        %v5461 = vcvt.s32.f32 %v4437
        %v5462 = vcvt.s32.f32 %v4438
        %v5463 = vcvt.s32.f32 %v4439
        %v5464 = vcvt.s32.f32 %v4440
        %v5465 = vcvt.s32.f32 %v4441
        %v5466 = vcvt.s32.f32 %v4442
        %v5467 = vcvt.s32.f32 %v4443
        %v5468 = vcvt.s32.f32 %v4444
        %v5469 = vcvt.s32.f32 %v4445
        %v5470 = vcvt.s32.f32 %v4446
        %v5471 = vcvt.s32.f32 %v4447
        %v5472 = vcvt.s32.f32 %v4448
        %v5473 = vcvt.s32.f32 %v4449
        %v5474 = vcvt.s32.f32 %v4450
        %v5475 = vcvt.s32.f32 %v4451
        %v5476 = vcvt.s32.f32 %v4452
        %v5477 = vcvt.s32.f32 %v4453
        %v5478 = vcvt.s32.f32 %v4454
        %v5479 = vcvt.s32.f32 %v4455
        %v5480 = vcvt.s32.f32 %v4456
        %v5481 = vcvt.s32.f32 %v4457
        %v5482 = vcvt.s32.f32 %v4458
        %v5483 = vcvt.s32.f32 %v4459
        %v5484 = vcvt.s32.f32 %v4460
        %v5485 = vcvt.s32.f32 %v4461
        %v5486 = vcvt.s32.f32 %v4462
        %v5487 = vcvt.s32.f32 %v4463
        %v5488 = vcvt.s32.f32 %v4464
        %v5489 = vcvt.s32.f32 %v4465
        %v5490 = vcvt.s32.f32 %v4466
        %v5491 = vcvt.s32.f32 %v4467
        %v5492 = vcvt.s32.f32 %v4468
        %v5493 = vcvt.s32.f32 %v4469
        %v5494 = vcvt.s32.f32 %v4470
        %v5495 = vcvt.s32.f32 %v4471
        %v5496 = vcvt.s32.f32 %v4472
        %v5497 = vcvt.s32.f32 %v4473
        %v5498 = vcvt.s32.f32 %v4474
        %v5499 = vcvt.s32.f32 %v4475
        %v5500 = vcvt.s32.f32 %v4476
        %v5501 = vcvt.s32.f32 %v4477
        %v5502 = vcvt.s32.f32 %v4478
        %v5503 = vcvt.s32.f32 %v4479
        %v5504 = vcvt.s32.f32 %v4480
        %v5505 = vcvt.s32.f32 %v4481
        %v5506 = vcvt.s32.f32 %v4482
        %v5507 = vcvt.s32.f32 %v4483
        %v5508 = vcvt.s32.f32 %v4484
        %v5509 = vcvt.s32.f32 %v4485
        %v5510 = vcvt.s32.f32 %v4486
        %v5511 = vcvt.s32.f32 %v4487
        %v5512 = vcvt.s32.f32 %v4488
        %v5513 = vcvt.s32.f32 %v4489
        %v5514 = vcvt.s32.f32 %v4490
        %v5515 = vcvt.s32.f32 %v4491
        %v5516 = vcvt.s32.f32 %v4492
        %v5517 = vcvt.s32.f32 %v4493
        %v5518 = vcvt.s32.f32 %v4494
        %v5519 = vcvt.s32.f32 %v4495
        %v5520 = vcvt.s32.f32 %v4496
        %v5521 = vcvt.s32.f32 %v4497
        %v5522 = vcvt.s32.f32 %v4498
        %v5523 = vcvt.s32.f32 %v4499
        %v5524 = vcvt.s32.f32 %v4500
        %v5525 = vcvt.s32.f32 %v4501
        %v5526 = vcvt.s32.f32 %v4502
        %v5527 = vcvt.s32.f32 %v4503
        %v5528 = vcvt.s32.f32 %v4504
        %v5529 = vcvt.s32.f32 %v4505
        %v5530 = vcvt.s32.f32 %v4506
        %v5531 = vcvt.s32.f32 %v4507
        %v5532 = vcvt.s32.f32 %v4508
        %v5533 = vcvt.s32.f32 %v4509
        %v5534 = vcvt.s32.f32 %v4510
        %v5535 = vcvt.s32.f32 %v4511
        %v5536 = vcvt.s32.f32 %v4512
        %v5537 = vcvt.s32.f32 %v4513
        %v5538 = vcvt.s32.f32 %v4514
        %v5539 = vcvt.s32.f32 %v4515
        %v5540 = vcvt.s32.f32 %v4516
        %v5541 = vcvt.s32.f32 %v4517
        %v5542 = vcvt.s32.f32 %v4518
        %v5543 = vcvt.s32.f32 %v4519
        %v5544 = vcvt.s32.f32 %v4520
        %v5545 = vcvt.s32.f32 %v4521
        %v5546 = vcvt.s32.f32 %v4522
        %v5547 = vcvt.s32.f32 %v4523
        %v5548 = vcvt.s32.f32 %v4524
        %v5549 = vcvt.s32.f32 %v4525
        %v5550 = vcvt.s32.f32 %v4526
        %v5551 = vcvt.s32.f32 %v4527
        %v5552 = vcvt.s32.f32 %v4528
        %v5553 = vcvt.s32.f32 %v4529
        %v5554 = vcvt.s32.f32 %v4530
        %v5555 = vcvt.s32.f32 %v4531
        %v5556 = vcvt.s32.f32 %v4532
        %v5557 = vcvt.s32.f32 %v4533
        %v5558 = vcvt.s32.f32 %v4534
        %v5559 = vcvt.s32.f32 %v4535
        %v5560 = vcvt.s32.f32 %v4536
        %v5561 = vcvt.s32.f32 %v4537
        %v5562 = vcvt.s32.f32 %v4538
        %v5563 = vcvt.s32.f32 %v4539
        %v5564 = vcvt.s32.f32 %v4540
        %v5565 = vcvt.s32.f32 %v4541
        %v5566 = vcvt.s32.f32 %v4542
        %v5567 = vcvt.s32.f32 %v4543
        %v5568 = vcvt.s32.f32 %v4544
        %v5569 = vcvt.s32.f32 %v4545
        %v5570 = vcvt.s32.f32 %v4546
        %v5571 = vcvt.s32.f32 %v4547
        %v5572 = vcvt.s32.f32 %v4548
        %v5573 = vcvt.s32.f32 %v4549
        %v5574 = vcvt.s32.f32 %v4550
        %v5575 = vcvt.s32.f32 %v4551
        %v5576 = vcvt.s32.f32 %v4552
        %v5577 = vcvt.s32.f32 %v4553
        %v5578 = vcvt.s32.f32 %v4554
        %v5579 = vcvt.s32.f32 %v4555
        %v5580 = vcvt.s32.f32 %v4556
        %v5581 = vcvt.s32.f32 %v4557
        %v5582 = vcvt.s32.f32 %v4558
        %v5583 = vcvt.s32.f32 %v4559
        %v5584 = vcvt.s32.f32 %v4560
        %v5585 = vcvt.s32.f32 %v4561
        %v5586 = vcvt.s32.f32 %v4562
        %v5587 = vcvt.s32.f32 %v4563
        %v5588 = vcvt.s32.f32 %v4564
        %v5589 = vcvt.s32.f32 %v4565
        %v5590 = vcvt.s32.f32 %v4566
        %v5591 = vcvt.s32.f32 %v4567
        %v5592 = vcvt.s32.f32 %v4568
        %v5593 = vcvt.s32.f32 %v4569
        %v5594 = vcvt.s32.f32 %v4570
        %v5595 = vcvt.s32.f32 %v4571
        %v5596 = vcvt.s32.f32 %v4572
        %v5597 = vcvt.s32.f32 %v4573
        %v5598 = vcvt.s32.f32 %v4574
        %v5599 = vcvt.s32.f32 %v4575
        %v5600 = vcvt.s32.f32 %v4576
        %v5601 = vcvt.s32.f32 %v4577
        %v5602 = vcvt.s32.f32 %v4578
        %v5603 = vcvt.s32.f32 %v4579
        %v5604 = vcvt.s32.f32 %v4580
        %v5605 = vcvt.s32.f32 %v4581
        %v5606 = vcvt.s32.f32 %v4582
        %v5607 = vcvt.s32.f32 %v4583
        %v5608 = vcvt.s32.f32 %v4584
        %v5609 = vcvt.s32.f32 %v4585
        %v5610 = vcvt.s32.f32 %v4586
        %v5611 = vcvt.s32.f32 %v4587
        %v5612 = vcvt.s32.f32 %v4588
        %v5613 = vcvt.s32.f32 %v4589
        %v5614 = vcvt.s32.f32 %v4590
        %v5615 = vcvt.s32.f32 %v4591
        %v5616 = vcvt.s32.f32 %v4592
        %v5617 = vcvt.s32.f32 %v4593
        %v5618 = vcvt.s32.f32 %v4594
        %v5619 = vcvt.s32.f32 %v4595
        %v5620 = vcvt.s32.f32 %v4596
        %v5621 = vcvt.s32.f32 %v4597
        %v5622 = vcvt.s32.f32 %v4598
        %v5623 = vcvt.s32.f32 %v4599
        %v5624 = vcvt.s32.f32 %v4600
        %v5625 = vcvt.s32.f32 %v4601
        %v5626 = vcvt.s32.f32 %v4602
        %v5627 = vcvt.s32.f32 %v4603
        %v5628 = vcvt.s32.f32 %v4604
        %v5629 = vcvt.s32.f32 %v4605
        %v5630 = vcvt.s32.f32 %v4606
        %v5631 = vcvt.s32.f32 %v4607
        %v5632 = vcvt.s32.f32 %v4608
        %v5633 = vcvt.s32.f32 %v4609
        %v5634 = vcvt.s32.f32 %v4610
        %v5635 = vcvt.s32.f32 %v4611
        %v5636 = vcvt.s32.f32 %v4612
        %v5637 = vcvt.s32.f32 %v4613
        %v5638 = vcvt.s32.f32 %v4614
        %v5639 = vcvt.s32.f32 %v4615
        %v5640 = vcvt.s32.f32 %v4616
        %v5641 = vcvt.s32.f32 %v4617
        %v5642 = vcvt.s32.f32 %v4618
        %v5643 = vcvt.s32.f32 %v4619
        %v5644 = vcvt.s32.f32 %v4620
        %v5645 = vcvt.s32.f32 %v4621
        %v5646 = vcvt.s32.f32 %v4622
        %v5647 = vcvt.s32.f32 %v4623
        %v5648 = vcvt.s32.f32 %v4624
        %v5649 = vcvt.s32.f32 %v4625
        %v5650 = vcvt.s32.f32 %v4626
        %v5651 = vcvt.s32.f32 %v4627
        %v5652 = vcvt.s32.f32 %v4628
        %v5653 = vcvt.s32.f32 %v4629
        %v5654 = vcvt.s32.f32 %v4630
        %v5655 = vcvt.s32.f32 %v4631
        %v5656 = vcvt.s32.f32 %v4632
        %v5657 = vcvt.s32.f32 %v4633
        %v5658 = vcvt.s32.f32 %v4634
        %v5659 = vcvt.s32.f32 %v4635
        %v5660 = vcvt.s32.f32 %v4636
        %v5661 = vcvt.s32.f32 %v4637
        %v5662 = vcvt.s32.f32 %v4638
        %v5663 = vcvt.s32.f32 %v4639
        %v5664 = vcvt.s32.f32 %v4640
        %v5665 = vcvt.s32.f32 %v4641
        %v5666 = vcvt.s32.f32 %v4642
        %v5667 = vcvt.s32.f32 %v4643
        %v5668 = vcvt.s32.f32 %v4644
        %v5669 = vcvt.s32.f32 %v4645
        %v5670 = vcvt.s32.f32 %v4646
        %v5671 = vcvt.s32.f32 %v4647
        %v5672 = vcvt.s32.f32 %v4648
        %v5673 = vcvt.s32.f32 %v4649
        %v5674 = vcvt.s32.f32 %v4650
        %v5675 = vcvt.s32.f32 %v4651
        %v5676 = vcvt.s32.f32 %v4652
        %v5677 = vcvt.s32.f32 %v4653
        %v5678 = vcvt.s32.f32 %v4654
        %v5679 = vcvt.s32.f32 %v4655
        %v5680 = vcvt.s32.f32 %v4656
        %v5681 = vcvt.s32.f32 %v4657
        %v5682 = vcvt.s32.f32 %v4658
        %v5683 = vcvt.s32.f32 %v4659
        %v5684 = vcvt.s32.f32 %v4660
        %v5685 = vcvt.s32.f32 %v4661
        %v5686 = vcvt.s32.f32 %v4662
        %v5687 = vcvt.s32.f32 %v4663
        %v5688 = vcvt.s32.f32 %v4664
        %v5689 = vcvt.s32.f32 %v4665
        %v5690 = vcvt.s32.f32 %v4666
        %v5691 = vcvt.s32.f32 %v4667
        %v5692 = vcvt.s32.f32 %v4668
        %v5693 = vcvt.s32.f32 %v4669
        %v5694 = vcvt.s32.f32 %v4670
        %v5695 = vcvt.s32.f32 %v4671
        %v5696 = vcvt.s32.f32 %v4672
        %v5697 = vcvt.s32.f32 %v4673
        %v5698 = vcvt.s32.f32 %v4674
        %v5699 = vcvt.s32.f32 %v4675
        %v5700 = vcvt.s32.f32 %v4676
        %v5701 = vcvt.s32.f32 %v4677
        %v5702 = vcvt.s32.f32 %v4678
        %v5703 = vcvt.s32.f32 %v4679
        %v5704 = vcvt.s32.f32 %v4680
        %v5705 = vcvt.s32.f32 %v4681
        %v5706 = vcvt.s32.f32 %v4682
        %v5707 = vcvt.s32.f32 %v4683
        %v5708 = vcvt.s32.f32 %v4684
        %v5709 = vcvt.s32.f32 %v4685
        %v5710 = vcvt.s32.f32 %v4686
        %v5711 = vcvt.s32.f32 %v4687
        %v5712 = vcvt.s32.f32 %v4688
        %v5713 = vcvt.s32.f32 %v4689
        %v5714 = vcvt.s32.f32 %v4690
        %v5715 = vcvt.s32.f32 %v4691
        %v5716 = vcvt.s32.f32 %v4692
        %v5717 = vcvt.s32.f32 %v4693
        %v5718 = vcvt.s32.f32 %v4694
        %v5719 = vcvt.s32.f32 %v4695
        %v5720 = vcvt.s32.f32 %v4696
        %v5721 = vcvt.s32.f32 %v4697
        %v5722 = vcvt.s32.f32 %v4698
        %v5723 = vcvt.s32.f32 %v4699
        %v5724 = vcvt.s32.f32 %v4700
        %v5725 = vcvt.s32.f32 %v4701
        %v5726 = vcvt.s32.f32 %v4702
        %v5727 = vcvt.s32.f32 %v4703
        %v5728 = vcvt.s32.f32 %v4704
        %v5729 = vcvt.s32.f32 %v4705
        %v5730 = vcvt.s32.f32 %v4706
        %v5731 = vcvt.s32.f32 %v4707
        %v5732 = vcvt.s32.f32 %v4708
        %v5733 = vcvt.s32.f32 %v4709
        %v5734 = vcvt.s32.f32 %v4710
        %v5735 = vcvt.s32.f32 %v4711
        %v5736 = vcvt.s32.f32 %v4712
        %v5737 = vcvt.s32.f32 %v4713
        %v5738 = vcvt.s32.f32 %v4714
        %v5739 = vcvt.s32.f32 %v4715
        %v5740 = vcvt.s32.f32 %v4716
        %v5741 = vcvt.s32.f32 %v4717
        %v5742 = vcvt.s32.f32 %v4718
        %v5743 = vcvt.s32.f32 %v4719
        %v5744 = vcvt.s32.f32 %v4720
        %v5745 = vcvt.s32.f32 %v4721
        %v5746 = vcvt.s32.f32 %v4722
        %v5747 = vcvt.s32.f32 %v4723
        %v5748 = vcvt.s32.f32 %v4724
        %v5749 = vcvt.s32.f32 %v4725
        %v5750 = vcvt.s32.f32 %v4726
        %v5751 = vcvt.s32.f32 %v4727
        %v5752 = vcvt.s32.f32 %v4728
        %v5753 = vcvt.s32.f32 %v4729
        %v5754 = vcvt.s32.f32 %v4730
        %v5755 = vcvt.s32.f32 %v4731
        %v5756 = vcvt.s32.f32 %v4732
        %v5757 = vcvt.s32.f32 %v4733
        %v5758 = vcvt.s32.f32 %v4734
        %v5759 = vcvt.s32.f32 %v4735
        %v5760 = vcvt.s32.f32 %v4736
        %v5761 = vcvt.s32.f32 %v4737
        %v5762 = vcvt.s32.f32 %v4738
        %v5763 = vcvt.s32.f32 %v4739
        %v5764 = vcvt.s32.f32 %v4740
        %v5765 = vcvt.s32.f32 %v4741
        %v5766 = vcvt.s32.f32 %v4742
        %v5767 = vcvt.s32.f32 %v4743
        %v5768 = vcvt.s32.f32 %v4744
        %v5769 = vcvt.s32.f32 %v4745
        %v5770 = vcvt.s32.f32 %v4746
        %v5771 = vcvt.s32.f32 %v4747
        %v5772 = vcvt.s32.f32 %v4748
        %v5773 = vcvt.s32.f32 %v4749
        %v5774 = vcvt.s32.f32 %v4750
        %v5775 = vcvt.s32.f32 %v4751
        %v5776 = vcvt.s32.f32 %v4752
        %v5777 = vcvt.s32.f32 %v4753
        %v5778 = vcvt.s32.f32 %v4754
        %v5779 = vcvt.s32.f32 %v4755
        %v5780 = vcvt.s32.f32 %v4756
        %v5781 = vcvt.s32.f32 %v4757
        %v5782 = vcvt.s32.f32 %v4758
        %v5783 = vcvt.s32.f32 %v4759
        %v5784 = vcvt.s32.f32 %v4760
        %v5785 = vcvt.s32.f32 %v4761
        %v5786 = vcvt.s32.f32 %v4762
        %v5787 = vcvt.s32.f32 %v4763
        %v5788 = vcvt.s32.f32 %v4764
        %v5789 = vcvt.s32.f32 %v4765
        %v5790 = vcvt.s32.f32 %v4766
        %v5791 = vcvt.s32.f32 %v4767
        %v5792 = vcvt.s32.f32 %v4768
        %v5793 = vcvt.s32.f32 %v4769
        %v5794 = vcvt.s32.f32 %v4770
        %v5795 = vcvt.s32.f32 %v4771
        %v5796 = vcvt.s32.f32 %v4772
        %v5797 = vcvt.s32.f32 %v4773
        %v5798 = vcvt.s32.f32 %v4774
        %v5799 = vcvt.s32.f32 %v4775
        %v5800 = vcvt.s32.f32 %v4776
        %v5801 = vcvt.s32.f32 %v4777
        %v5802 = vcvt.s32.f32 %v4778
        %v5803 = vcvt.s32.f32 %v4779
        %v5804 = vcvt.s32.f32 %v4780
        %v5805 = vcvt.s32.f32 %v4781
        %v5806 = vcvt.s32.f32 %v4782
        %v5807 = vcvt.s32.f32 %v4783
        %v5808 = vcvt.s32.f32 %v4784
        %v5809 = vcvt.s32.f32 %v4785
        %v5810 = vcvt.s32.f32 %v4786
        %v5811 = vcvt.s32.f32 %v4787
        %v5812 = vcvt.s32.f32 %v4788
        %v5813 = vcvt.s32.f32 %v4789
        %v5814 = vcvt.s32.f32 %v4790
        %v5815 = vcvt.s32.f32 %v4791
        %v5816 = vcvt.s32.f32 %v4792
        %v5817 = vcvt.s32.f32 %v4793
        %v5818 = vcvt.s32.f32 %v4794
        %v5819 = vcvt.s32.f32 %v4795
        %v5820 = vcvt.s32.f32 %v4796
        %v5821 = vcvt.s32.f32 %v4797
        %v5822 = vcvt.s32.f32 %v4798
        %v5823 = vcvt.s32.f32 %v4799
        %v5824 = vcvt.s32.f32 %v4800
        %v5825 = vcvt.s32.f32 %v4801
        %v5826 = vcvt.s32.f32 %v4802
        %v5827 = vcvt.s32.f32 %v4803
        %v5828 = vcvt.s32.f32 %v4804
        %v5829 = vcvt.s32.f32 %v4805
        %v5830 = vcvt.s32.f32 %v4806
        %v5831 = vcvt.s32.f32 %v4807
        %v5832 = vcvt.s32.f32 %v4808
        %v5833 = vcvt.s32.f32 %v4809
        %v5834 = vcvt.s32.f32 %v4810
        %v5835 = vcvt.s32.f32 %v4811
        %v5836 = vcvt.s32.f32 %v4812
        %v5837 = vcvt.s32.f32 %v4813
        %v5838 = vcvt.s32.f32 %v4814
        %v5839 = vcvt.s32.f32 %v4815
        %v5840 = vcvt.s32.f32 %v4816
        %v5841 = vcvt.s32.f32 %v4817
        %v5842 = vcvt.s32.f32 %v4818
        %v5843 = vcvt.s32.f32 %v4819
        %v5844 = vcvt.s32.f32 %v4820
        %v5845 = vcvt.s32.f32 %v4821
        %v5846 = vcvt.s32.f32 %v4822
        %v5847 = vcvt.s32.f32 %v4823
        %v5848 = vcvt.s32.f32 %v4824
        %v5849 = vcvt.s32.f32 %v4825
        %v5850 = vcvt.s32.f32 %v4826
        %v5851 = vcvt.s32.f32 %v4827
        %v5852 = vcvt.s32.f32 %v4828
        %v5853 = vcvt.s32.f32 %v4829
        %v5854 = vcvt.s32.f32 %v4830
        %v5855 = vcvt.s32.f32 %v4831
        %v5856 = vcvt.s32.f32 %v4832
        %v5857 = vcvt.s32.f32 %v4833
        %v5858 = vcvt.s32.f32 %v4834
        %v5859 = vcvt.s32.f32 %v4835
        %v5860 = vcvt.s32.f32 %v4836
        %v5861 = vcvt.s32.f32 %v4837
        %v5862 = vcvt.s32.f32 %v4838
        %v5863 = vcvt.s32.f32 %v4839
        %v5864 = vcvt.s32.f32 %v4840
        %v5865 = vcvt.s32.f32 %v4841
        %v5866 = vcvt.s32.f32 %v4842
        %v5867 = vcvt.s32.f32 %v4843
        %v5868 = vcvt.s32.f32 %v4844
        %v5869 = vcvt.s32.f32 %v4845
        %v5870 = vcvt.s32.f32 %v4846
        %v5871 = vcvt.s32.f32 %v4847
        %v5872 = vcvt.s32.f32 %v4848
        %v5873 = vcvt.s32.f32 %v4849
        %v5874 = vcvt.s32.f32 %v4850
        %v5875 = vcvt.s32.f32 %v4851
        %v5876 = vcvt.s32.f32 %v4852
        %v5877 = vcvt.s32.f32 %v4853
        %v5878 = vcvt.s32.f32 %v4854
        %v5879 = vcvt.s32.f32 %v4855
        %v5880 = vcvt.s32.f32 %v4856
        %v5881 = vcvt.s32.f32 %v4857
        %v5882 = vcvt.s32.f32 %v4858
        %v5883 = vcvt.s32.f32 %v4859
        %v5884 = vcvt.s32.f32 %v4860
        %v5885 = vcvt.s32.f32 %v4861
        %v5886 = vcvt.s32.f32 %v4862
        %v5887 = vcvt.s32.f32 %v4863
        %v5888 = vcvt.s32.f32 %v4864
        %v5889 = vcvt.s32.f32 %v4865
        %v5890 = vcvt.s32.f32 %v4866
        %v5891 = vcvt.s32.f32 %v4867
        %v5892 = vcvt.s32.f32 %v4868
        %v5893 = vcvt.s32.f32 %v4869
        %v5894 = vcvt.s32.f32 %v4870
        %v5895 = vcvt.s32.f32 %v4871
        %v5896 = vcvt.s32.f32 %v4872
        %v5897 = vcvt.s32.f32 %v4873
        %v5898 = vcvt.s32.f32 %v4874
        %v5899 = vcvt.s32.f32 %v4875
        %v5900 = vcvt.s32.f32 %v4876
        %v5901 = vcvt.s32.f32 %v4877
        %v5902 = vcvt.s32.f32 %v4878
        %v5903 = vcvt.s32.f32 %v4879
        %v5904 = vcvt.s32.f32 %v4880
        %v5905 = vcvt.s32.f32 %v4881
        %v5906 = vcvt.s32.f32 %v4882
        %v5907 = vcvt.s32.f32 %v4883
        %v5908 = vcvt.s32.f32 %v4884
        %v5909 = vcvt.s32.f32 %v4885
        %v5910 = vpack.c.bf16 %v4890, %v4886
        %v5911 = vpack.c.bf16 %v4891, %v4887
        %v5912 = vpack.c.bf16 %v4892, %v4888
        %v5913 = vpack.c.bf16 %v4893, %v4889
        %v5914 = vpack.c.bf16 %v4898, %v4894
        %v5915 = vpack.c.bf16 %v4899, %v4895
        %v5916 = vpack.c.bf16 %v4900, %v4896
        %v5917 = vpack.c.bf16 %v4901, %v4897
        %v5918 = vpack.c.bf16 %v4906, %v4902
        %v5919 = vpack.c.bf16 %v4907, %v4903
        %v5920 = vpack.c.bf16 %v4908, %v4904
        %v5921 = vpack.c.bf16 %v4909, %v4905
        %v5922 = vpack.c.bf16 %v4914, %v4910
        %v5923 = vpack.c.bf16 %v4915, %v4911
        %v5924 = vpack.c.bf16 %v4916, %v4912
        %v5925 = vpack.c.bf16 %v4917, %v4913
        %v5926 = vpack.c.bf16 %v4922, %v4918
        %v5927 = vpack.c.bf16 %v4923, %v4919
        %v5928 = vpack.c.bf16 %v4924, %v4920
        %v5929 = vpack.c.bf16 %v4925, %v4921
        %v5930 = vpack.c.bf16 %v4930, %v4926
        %v5931 = vpack.c.bf16 %v4931, %v4927
        %v5932 = vpack.c.bf16 %v4932, %v4928
        %v5933 = vpack.c.bf16 %v4933, %v4929
        %v5934 = vpack.c.bf16 %v4938, %v4934
        %v5935 = vpack.c.bf16 %v4939, %v4935
        %v5936 = vpack.c.bf16 %v4940, %v4936
        %v5937 = vpack.c.bf16 %v4941, %v4937
        %v5938 = vpack.c.bf16 %v4946, %v4942
        %v5939 = vpack.c.bf16 %v4947, %v4943
        %v5940 = vpack.c.bf16 %v4948, %v4944
        %v5941 = vpack.c.bf16 %v4949, %v4945
        %v5942 = vpack.c.bf16 %v4954, %v4950
        %v5943 = vpack.c.bf16 %v4955, %v4951
        %v5944 = vpack.c.bf16 %v4956, %v4952
        %v5945 = vpack.c.bf16 %v4957, %v4953
        %v5946 = vpack.c.bf16 %v4962, %v4958
        %v5947 = vpack.c.bf16 %v4963, %v4959
        %v5948 = vpack.c.bf16 %v4964, %v4960
        %v5949 = vpack.c.bf16 %v4965, %v4961
        %v5950 = vpack.c.bf16 %v4970, %v4966
        %v5951 = vpack.c.bf16 %v4971, %v4967
        %v5952 = vpack.c.bf16 %v4972, %v4968
        %v5953 = vpack.c.bf16 %v4973, %v4969
        %v5954 = vpack.c.bf16 %v4978, %v4974
        %v5955 = vpack.c.bf16 %v4979, %v4975
        %v5956 = vpack.c.bf16 %v4980, %v4976
        %v5957 = vpack.c.bf16 %v4981, %v4977
        %v5958 = vpack.c.bf16 %v4986, %v4982
        %v5959 = vpack.c.bf16 %v4987, %v4983
        %v5960 = vpack.c.bf16 %v4988, %v4984
        %v5961 = vpack.c.bf16 %v4989, %v4985
        %v5962 = vpack.c.bf16 %v4994, %v4990
        %v5963 = vpack.c.bf16 %v4995, %v4991
        %v5964 = vpack.c.bf16 %v4996, %v4992
        %v5965 = vpack.c.bf16 %v4997, %v4993
        %v5966 = vpack.c.bf16 %v5002, %v4998
        %v5967 = vpack.c.bf16 %v5003, %v4999
        %v5968 = vpack.c.bf16 %v5004, %v5000
        %v5969 = vpack.c.bf16 %v5005, %v5001
        %v5970 = vpack.c.bf16 %v5010, %v5006
        %v5971 = vpack.c.bf16 %v5011, %v5007
        %v5972 = vpack.c.bf16 %v5012, %v5008
        %v5973 = vpack.c.bf16 %v5013, %v5009
        %v5974 = vpack.c.bf16 %v5018, %v5014
        %v5975 = vpack.c.bf16 %v5019, %v5015
        %v5976 = vpack.c.bf16 %v5020, %v5016
        %v5977 = vpack.c.bf16 %v5021, %v5017
        %v5978 = vpack.c.bf16 %v5026, %v5022
        %v5979 = vpack.c.bf16 %v5027, %v5023
        %v5980 = vpack.c.bf16 %v5028, %v5024
        %v5981 = vpack.c.bf16 %v5029, %v5025
        %v5982 = vpack.c.bf16 %v5034, %v5030
        %v5983 = vpack.c.bf16 %v5035, %v5031
        %v5984 = vpack.c.bf16 %v5036, %v5032
        %v5985 = vpack.c.bf16 %v5037, %v5033
        %v5986 = vpack.c.bf16 %v5042, %v5038
        %v5987 = vpack.c.bf16 %v5043, %v5039
        %v5988 = vpack.c.bf16 %v5044, %v5040
        %v5989 = vpack.c.bf16 %v5045, %v5041
        %v5990 = vpack.c.bf16 %v5050, %v5046
        %v5991 = vpack.c.bf16 %v5051, %v5047
        %v5992 = vpack.c.bf16 %v5052, %v5048
        %v5993 = vpack.c.bf16 %v5053, %v5049
        %v5994 = vpack.c.bf16 %v5058, %v5054
        %v5995 = vpack.c.bf16 %v5059, %v5055
        %v5996 = vpack.c.bf16 %v5060, %v5056
        %v5997 = vpack.c.bf16 %v5061, %v5057
        %v5998 = vpack.c.bf16 %v5066, %v5062
        %v5999 = vpack.c.bf16 %v5067, %v5063
        %v6000 = vpack.c.bf16 %v5068, %v5064
        %v6001 = vpack.c.bf16 %v5069, %v5065
        %v6002 = vpack.c.bf16 %v5074, %v5070
        %v6003 = vpack.c.bf16 %v5075, %v5071
        %v6004 = vpack.c.bf16 %v5076, %v5072
        %v6005 = vpack.c.bf16 %v5077, %v5073
        %v6006 = vpack.c.bf16 %v5082, %v5078
        %v6007 = vpack.c.bf16 %v5083, %v5079
        %v6008 = vpack.c.bf16 %v5084, %v5080
        %v6009 = vpack.c.bf16 %v5085, %v5081
        %v6010 = vpack.c.bf16 %v5090, %v5086
        %v6011 = vpack.c.bf16 %v5091, %v5087
        %v6012 = vpack.c.bf16 %v5092, %v5088
        %v6013 = vpack.c.bf16 %v5093, %v5089
        %v6014 = vpack.c.bf16 %v5098, %v5094
        %v6015 = vpack.c.bf16 %v5099, %v5095
        %v6016 = vpack.c.bf16 %v5100, %v5096
        %v6017 = vpack.c.bf16 %v5101, %v5097
        %v6018 = vpack.c.bf16 %v5106, %v5102
        %v6019 = vpack.c.bf16 %v5107, %v5103
        %v6020 = vpack.c.bf16 %v5108, %v5104
        %v6021 = vpack.c.bf16 %v5109, %v5105
        %v6022 = vpack.c.bf16 %v5114, %v5110
        %v6023 = vpack.c.bf16 %v5115, %v5111
        %v6024 = vpack.c.bf16 %v5116, %v5112
        %v6025 = vpack.c.bf16 %v5117, %v5113
        %v6026 = vpack.c.bf16 %v5122, %v5118
        %v6027 = vpack.c.bf16 %v5123, %v5119
        %v6028 = vpack.c.bf16 %v5124, %v5120
        %v6029 = vpack.c.bf16 %v5125, %v5121
        %v6030 = vpack.c.bf16 %v5130, %v5126
        %v6031 = vpack.c.bf16 %v5131, %v5127
        %v6032 = vpack.c.bf16 %v5132, %v5128
        %v6033 = vpack.c.bf16 %v5133, %v5129
        %v6034 = vpack.c.bf16 %v5138, %v5134
        %v6035 = vpack.c.bf16 %v5139, %v5135
        %v6036 = vpack.c.bf16 %v5140, %v5136
        %v6037 = vpack.c.bf16 %v5141, %v5137
        %v6038 = vpack.c.bf16 %v5146, %v5142
        %v6039 = vpack.c.bf16 %v5147, %v5143
        %v6040 = vpack.c.bf16 %v5148, %v5144
        %v6041 = vpack.c.bf16 %v5149, %v5145
        %v6042 = vpack.c.bf16 %v5154, %v5150
        %v6043 = vpack.c.bf16 %v5155, %v5151
        %v6044 = vpack.c.bf16 %v5156, %v5152
        %v6045 = vpack.c.bf16 %v5157, %v5153
        %v6046 = vpack.c.bf16 %v5162, %v5158
        %v6047 = vpack.c.bf16 %v5163, %v5159
        %v6048 = vpack.c.bf16 %v5164, %v5160
        %v6049 = vpack.c.bf16 %v5165, %v5161
        %v6050 = vpack.c.bf16 %v5170, %v5166
        %v6051 = vpack.c.bf16 %v5171, %v5167
        %v6052 = vpack.c.bf16 %v5172, %v5168
        %v6053 = vpack.c.bf16 %v5173, %v5169
        %v6054 = vpack.c.bf16 %v5178, %v5174
        %v6055 = vpack.c.bf16 %v5179, %v5175
        %v6056 = vpack.c.bf16 %v5180, %v5176
        %v6057 = vpack.c.bf16 %v5181, %v5177
        %v6058 = vpack.c.bf16 %v5186, %v5182
        %v6059 = vpack.c.bf16 %v5187, %v5183
        %v6060 = vpack.c.bf16 %v5188, %v5184
        %v6061 = vpack.c.bf16 %v5189, %v5185
        %v6062 = vpack.c.bf16 %v5194, %v5190
        %v6063 = vpack.c.bf16 %v5195, %v5191
        %v6064 = vpack.c.bf16 %v5196, %v5192
        %v6065 = vpack.c.bf16 %v5197, %v5193
        %v6066 = vpack.c.bf16 %v5202, %v5198
        %v6067 = vpack.c.bf16 %v5203, %v5199
        %v6068 = vpack.c.bf16 %v5204, %v5200
        %v6069 = vpack.c.bf16 %v5205, %v5201
        %v6070 = vpack.c.bf16 %v5210, %v5206
        %v6071 = vpack.c.bf16 %v5211, %v5207
        %v6072 = vpack.c.bf16 %v5212, %v5208
        %v6073 = vpack.c.bf16 %v5213, %v5209
        %v6074 = vpack.c.bf16 %v5218, %v5214
        %v6075 = vpack.c.bf16 %v5219, %v5215
        %v6076 = vpack.c.bf16 %v5220, %v5216
        %v6077 = vpack.c.bf16 %v5221, %v5217
        %v6078 = vpack.c.bf16 %v5226, %v5222
        %v6079 = vpack.c.bf16 %v5227, %v5223
        %v6080 = vpack.c.bf16 %v5228, %v5224
        %v6081 = vpack.c.bf16 %v5229, %v5225
        %v6082 = vpack.c.bf16 %v5234, %v5230
        %v6083 = vpack.c.bf16 %v5235, %v5231
        %v6084 = vpack.c.bf16 %v5236, %v5232
        %v6085 = vpack.c.bf16 %v5237, %v5233
        %v6086 = vpack.c.bf16 %v5242, %v5238
        %v6087 = vpack.c.bf16 %v5243, %v5239
        %v6088 = vpack.c.bf16 %v5244, %v5240
        %v6089 = vpack.c.bf16 %v5245, %v5241
        %v6090 = vpack.c.bf16 %v5250, %v5246
        %v6091 = vpack.c.bf16 %v5251, %v5247
        %v6092 = vpack.c.bf16 %v5252, %v5248
        %v6093 = vpack.c.bf16 %v5253, %v5249
        %v6094 = vpack.c.bf16 %v5258, %v5254
        %v6095 = vpack.c.bf16 %v5259, %v5255
        %v6096 = vpack.c.bf16 %v5260, %v5256
        %v6097 = vpack.c.bf16 %v5261, %v5257
        %v6098 = vpack.c.bf16 %v5266, %v5262
        %v6099 = vpack.c.bf16 %v5267, %v5263
        %v6100 = vpack.c.bf16 %v5268, %v5264
        %v6101 = vpack.c.bf16 %v5269, %v5265
        %v6102 = vpack.c.bf16 %v5274, %v5270
        %v6103 = vpack.c.bf16 %v5275, %v5271
        %v6104 = vpack.c.bf16 %v5276, %v5272
        %v6105 = vpack.c.bf16 %v5277, %v5273
        %v6106 = vpack.c.bf16 %v5282, %v5278
        %v6107 = vpack.c.bf16 %v5283, %v5279
        %v6108 = vpack.c.bf16 %v5284, %v5280
        %v6109 = vpack.c.bf16 %v5285, %v5281
        %v6110 = vpack.c.bf16 %v5290, %v5286
        %v6111 = vpack.c.bf16 %v5291, %v5287
        %v6112 = vpack.c.bf16 %v5292, %v5288
        %v6113 = vpack.c.bf16 %v5293, %v5289
        %v6114 = vpack.c.bf16 %v5298, %v5294
        %v6115 = vpack.c.bf16 %v5299, %v5295
        %v6116 = vpack.c.bf16 %v5300, %v5296
        %v6117 = vpack.c.bf16 %v5301, %v5297
        %v6118 = vpack.c.bf16 %v5306, %v5302
        %v6119 = vpack.c.bf16 %v5307, %v5303
        %v6120 = vpack.c.bf16 %v5308, %v5304
        %v6121 = vpack.c.bf16 %v5309, %v5305
        %v6122 = vpack.c.bf16 %v5314, %v5310
        %v6123 = vpack.c.bf16 %v5315, %v5311
        %v6124 = vpack.c.bf16 %v5316, %v5312
        %v6125 = vpack.c.bf16 %v5317, %v5313
        %v6126 = vpack.c.bf16 %v5322, %v5318
        %v6127 = vpack.c.bf16 %v5323, %v5319
        %v6128 = vpack.c.bf16 %v5324, %v5320
        %v6129 = vpack.c.bf16 %v5325, %v5321
        %v6130 = vpack.c.bf16 %v5330, %v5326
        %v6131 = vpack.c.bf16 %v5331, %v5327
        %v6132 = vpack.c.bf16 %v5332, %v5328
        %v6133 = vpack.c.bf16 %v5333, %v5329
        %v6134 = vpack.c.bf16 %v5338, %v5334
        %v6135 = vpack.c.bf16 %v5339, %v5335
        %v6136 = vpack.c.bf16 %v5340, %v5336
        %v6137 = vpack.c.bf16 %v5341, %v5337
        %v6138 = vpack.c.bf16 %v5346, %v5342
        %v6139 = vpack.c.bf16 %v5347, %v5343
        %v6140 = vpack.c.bf16 %v5348, %v5344
        %v6141 = vpack.c.bf16 %v5349, %v5345
        %v6142 = vpack.c.bf16 %v5354, %v5350
        %v6143 = vpack.c.bf16 %v5355, %v5351
        %v6144 = vpack.c.bf16 %v5356, %v5352
        %v6145 = vpack.c.bf16 %v5357, %v5353
        %v6146 = vpack.c.bf16 %v5362, %v5358
        %v6147 = vpack.c.bf16 %v5363, %v5359
        %v6148 = vpack.c.bf16 %v5364, %v5360
        %v6149 = vpack.c.bf16 %v5365, %v5361
        %v6150 = vpack.c.bf16 %v5370, %v5366
        %v6151 = vpack.c.bf16 %v5371, %v5367
        %v6152 = vpack.c.bf16 %v5372, %v5368
        %v6153 = vpack.c.bf16 %v5373, %v5369
        %v6154 = vpack.c.bf16 %v5378, %v5374
        %v6155 = vpack.c.bf16 %v5379, %v5375
        %v6156 = vpack.c.bf16 %v5380, %v5376
        %v6157 = vpack.c.bf16 %v5381, %v5377
        %v6158 = vpack.c.bf16 %v5386, %v5382
        %v6159 = vpack.c.bf16 %v5387, %v5383
        %v6160 = vpack.c.bf16 %v5388, %v5384
        %v6161 = vpack.c.bf16 %v5389, %v5385
        %v6162 = vpack.c.bf16 %v5394, %v5390
        %v6163 = vpack.c.bf16 %v5395, %v5391
        %v6164 = vpack.c.bf16 %v5396, %v5392
        %v6165 = vpack.c.bf16 %v5397, %v5393
        %v6166 = vpack.c.bf16 %v5402, %v5398
        %v6167 = vpack.c.bf16 %v5403, %v5399
        %v6168 = vpack.c.bf16 %v5404, %v5400
        %v6169 = vpack.c.bf16 %v5405, %v5401
        %v6170 = vpack.c.bf16 %v5410, %v5406
        %v6171 = vpack.c.bf16 %v5411, %v5407
        %v6172 = vpack.c.bf16 %v5412, %v5408
        %v6173 = vpack.c.bf16 %v5413, %v5409
        %v6174 = vpack.c.bf16 %v5418, %v5414
        %v6175 = vpack.c.bf16 %v5419, %v5415
        %v6176 = vpack.c.bf16 %v5420, %v5416
        %v6177 = vpack.c.bf16 %v5421, %v5417
        %v6178 = vpack.c.bf16 %v5426, %v5422
        %v6179 = vpack.c.bf16 %v5427, %v5423
        %v6180 = vpack.c.bf16 %v5428, %v5424
        %v6181 = vpack.c.bf16 %v5429, %v5425
        %v6182 = vpack.c.bf16 %v5434, %v5430
        %v6183 = vpack.c.bf16 %v5435, %v5431
        %v6184 = vpack.c.bf16 %v5436, %v5432
        %v6185 = vpack.c.bf16 %v5437, %v5433
        %v6186 = vpack.c.bf16 %v5442, %v5438
        %v6187 = vpack.c.bf16 %v5443, %v5439
        %v6188 = vpack.c.bf16 %v5444, %v5440
        %v6189 = vpack.c.bf16 %v5445, %v5441
        %v6190 = vpack.c.bf16 %v5450, %v5446
        %v6191 = vpack.c.bf16 %v5451, %v5447
        %v6192 = vpack.c.bf16 %v5452, %v5448
        %v6193 = vpack.c.bf16 %v5453, %v5449
        %v6194 = vpack.c.bf16 %v5458, %v5454
        %v6195 = vpack.c.bf16 %v5459, %v5455
        %v6196 = vpack.c.bf16 %v5460, %v5456
        %v6197 = vpack.c.bf16 %v5461, %v5457
        %v6198 = vpack.c.bf16 %v5466, %v5462
        %v6199 = vpack.c.bf16 %v5467, %v5463
        %v6200 = vpack.c.bf16 %v5468, %v5464
        %v6201 = vpack.c.bf16 %v5469, %v5465
        %v6202 = vpack.c.bf16 %v5474, %v5470
        %v6203 = vpack.c.bf16 %v5475, %v5471
        %v6204 = vpack.c.bf16 %v5476, %v5472
        %v6205 = vpack.c.bf16 %v5477, %v5473
        %v6206 = vpack.c.bf16 %v5482, %v5478
        %v6207 = vpack.c.bf16 %v5483, %v5479
        %v6208 = vpack.c.bf16 %v5484, %v5480
        %v6209 = vpack.c.bf16 %v5485, %v5481
        %v6210 = vpack.c.bf16 %v5490, %v5486
        %v6211 = vpack.c.bf16 %v5491, %v5487
        %v6212 = vpack.c.bf16 %v5492, %v5488
        %v6213 = vpack.c.bf16 %v5493, %v5489
        %v6214 = vpack.c.bf16 %v5498, %v5494
        %v6215 = vpack.c.bf16 %v5499, %v5495
        %v6216 = vpack.c.bf16 %v5500, %v5496
        %v6217 = vpack.c.bf16 %v5501, %v5497
        %v6218 = vpack.c.bf16 %v5506, %v5502
        %v6219 = vpack.c.bf16 %v5507, %v5503
        %v6220 = vpack.c.bf16 %v5508, %v5504
        %v6221 = vpack.c.bf16 %v5509, %v5505
        %v6222 = vpack.c.bf16 %v5514, %v5510
        %v6223 = vpack.c.bf16 %v5515, %v5511
        %v6224 = vpack.c.bf16 %v5516, %v5512
        %v6225 = vpack.c.bf16 %v5517, %v5513
        %v6226 = vpack.c.bf16 %v5522, %v5518
        %v6227 = vpack.c.bf16 %v5523, %v5519
        %v6228 = vpack.c.bf16 %v5524, %v5520
        %v6229 = vpack.c.bf16 %v5525, %v5521
        %v6230 = vpack.c.bf16 %v5530, %v5526
        %v6231 = vpack.c.bf16 %v5531, %v5527
        %v6232 = vpack.c.bf16 %v5532, %v5528
        %v6233 = vpack.c.bf16 %v5533, %v5529
        %v6234 = vpack.c.bf16 %v5538, %v5534
        %v6235 = vpack.c.bf16 %v5539, %v5535
        %v6236 = vpack.c.bf16 %v5540, %v5536
        %v6237 = vpack.c.bf16 %v5541, %v5537
        %v6238 = vpack.c.bf16 %v5546, %v5542
        %v6239 = vpack.c.bf16 %v5547, %v5543
        %v6240 = vpack.c.bf16 %v5548, %v5544
        %v6241 = vpack.c.bf16 %v5549, %v5545
        %v6242 = vpack.c.bf16 %v5554, %v5550
        %v6243 = vpack.c.bf16 %v5555, %v5551
        %v6244 = vpack.c.bf16 %v5556, %v5552
        %v6245 = vpack.c.bf16 %v5557, %v5553
        %v6246 = vpack.c.bf16 %v5562, %v5558
        %v6247 = vpack.c.bf16 %v5563, %v5559
        %v6248 = vpack.c.bf16 %v5564, %v5560
        %v6249 = vpack.c.bf16 %v5565, %v5561
        %v6250 = vpack.c.bf16 %v5570, %v5566
        %v6251 = vpack.c.bf16 %v5571, %v5567
        %v6252 = vpack.c.bf16 %v5572, %v5568
        %v6253 = vpack.c.bf16 %v5573, %v5569
        %v6254 = vpack.c.bf16 %v5578, %v5574
        %v6255 = vpack.c.bf16 %v5579, %v5575
        %v6256 = vpack.c.bf16 %v5580, %v5576
        %v6257 = vpack.c.bf16 %v5581, %v5577
        %v6258 = vpack.c.bf16 %v5586, %v5582
        %v6259 = vpack.c.bf16 %v5587, %v5583
        %v6260 = vpack.c.bf16 %v5588, %v5584
        %v6261 = vpack.c.bf16 %v5589, %v5585
        %v6262 = vpack.c.bf16 %v5594, %v5590
        %v6263 = vpack.c.bf16 %v5595, %v5591
        %v6264 = vpack.c.bf16 %v5596, %v5592
        %v6265 = vpack.c.bf16 %v5597, %v5593
        %v6266 = vpack.c.bf16 %v5602, %v5598
        %v6267 = vpack.c.bf16 %v5603, %v5599
        %v6268 = vpack.c.bf16 %v5604, %v5600
        %v6269 = vpack.c.bf16 %v5605, %v5601
        %v6270 = vpack.c.bf16 %v5610, %v5606
        %v6271 = vpack.c.bf16 %v5611, %v5607
        %v6272 = vpack.c.bf16 %v5612, %v5608
        %v6273 = vpack.c.bf16 %v5613, %v5609
        %v6274 = vpack.c.bf16 %v5618, %v5614
        %v6275 = vpack.c.bf16 %v5619, %v5615
        %v6276 = vpack.c.bf16 %v5620, %v5616
        %v6277 = vpack.c.bf16 %v5621, %v5617
        %v6278 = vpack.c.bf16 %v5626, %v5622
        %v6279 = vpack.c.bf16 %v5627, %v5623
        %v6280 = vpack.c.bf16 %v5628, %v5624
        %v6281 = vpack.c.bf16 %v5629, %v5625
        %v6282 = vpack.c.bf16 %v5634, %v5630
        %v6283 = vpack.c.bf16 %v5635, %v5631
        %v6284 = vpack.c.bf16 %v5636, %v5632
        %v6285 = vpack.c.bf16 %v5637, %v5633
        %v6286 = vpack.c.bf16 %v5642, %v5638
        %v6287 = vpack.c.bf16 %v5643, %v5639
        %v6288 = vpack.c.bf16 %v5644, %v5640
        %v6289 = vpack.c.bf16 %v5645, %v5641
        %v6290 = vpack.c.bf16 %v5650, %v5646
        %v6291 = vpack.c.bf16 %v5651, %v5647
        %v6292 = vpack.c.bf16 %v5652, %v5648
        %v6293 = vpack.c.bf16 %v5653, %v5649
        %v6294 = vpack.c.bf16 %v5658, %v5654
        %v6295 = vpack.c.bf16 %v5659, %v5655
        %v6296 = vpack.c.bf16 %v5660, %v5656
        %v6297 = vpack.c.bf16 %v5661, %v5657
        %v6298 = vpack.c.bf16 %v5666, %v5662
        %v6299 = vpack.c.bf16 %v5667, %v5663
        %v6300 = vpack.c.bf16 %v5668, %v5664
        %v6301 = vpack.c.bf16 %v5669, %v5665
        %v6302 = vpack.c.bf16 %v5674, %v5670
        %v6303 = vpack.c.bf16 %v5675, %v5671
        %v6304 = vpack.c.bf16 %v5676, %v5672
        %v6305 = vpack.c.bf16 %v5677, %v5673
        %v6306 = vpack.c.bf16 %v5682, %v5678
        %v6307 = vpack.c.bf16 %v5683, %v5679
        %v6308 = vpack.c.bf16 %v5684, %v5680
        %v6309 = vpack.c.bf16 %v5685, %v5681
        %v6310 = vpack.c.bf16 %v5690, %v5686
        %v6311 = vpack.c.bf16 %v5691, %v5687
        %v6312 = vpack.c.bf16 %v5692, %v5688
        %v6313 = vpack.c.bf16 %v5693, %v5689
        %v6314 = vpack.c.bf16 %v5698, %v5694
        %v6315 = vpack.c.bf16 %v5699, %v5695
        %v6316 = vpack.c.bf16 %v5700, %v5696
        %v6317 = vpack.c.bf16 %v5701, %v5697
        %v6318 = vpack.c.bf16 %v5706, %v5702
        %v6319 = vpack.c.bf16 %v5707, %v5703
        %v6320 = vpack.c.bf16 %v5708, %v5704
        %v6321 = vpack.c.bf16 %v5709, %v5705
        %v6322 = vpack.c.bf16 %v5714, %v5710
        %v6323 = vpack.c.bf16 %v5715, %v5711
        %v6324 = vpack.c.bf16 %v5716, %v5712
        %v6325 = vpack.c.bf16 %v5717, %v5713
        %v6326 = vpack.c.bf16 %v5722, %v5718
        %v6327 = vpack.c.bf16 %v5723, %v5719
        %v6328 = vpack.c.bf16 %v5724, %v5720
        %v6329 = vpack.c.bf16 %v5725, %v5721
        %v6330 = vpack.c.bf16 %v5730, %v5726
        %v6331 = vpack.c.bf16 %v5731, %v5727
        %v6332 = vpack.c.bf16 %v5732, %v5728
        %v6333 = vpack.c.bf16 %v5733, %v5729
        %v6334 = vpack.c.bf16 %v5738, %v5734
        %v6335 = vpack.c.bf16 %v5739, %v5735
        %v6336 = vpack.c.bf16 %v5740, %v5736
        %v6337 = vpack.c.bf16 %v5741, %v5737
        %v6338 = vpack.c.bf16 %v5746, %v5742
        %v6339 = vpack.c.bf16 %v5747, %v5743
        %v6340 = vpack.c.bf16 %v5748, %v5744
        %v6341 = vpack.c.bf16 %v5749, %v5745
        %v6342 = vpack.c.bf16 %v5754, %v5750
        %v6343 = vpack.c.bf16 %v5755, %v5751
        %v6344 = vpack.c.bf16 %v5756, %v5752
        %v6345 = vpack.c.bf16 %v5757, %v5753
        %v6346 = vpack.c.bf16 %v5762, %v5758
        %v6347 = vpack.c.bf16 %v5763, %v5759
        %v6348 = vpack.c.bf16 %v5764, %v5760
        %v6349 = vpack.c.bf16 %v5765, %v5761
        %v6350 = vpack.c.bf16 %v5770, %v5766
        %v6351 = vpack.c.bf16 %v5771, %v5767
        %v6352 = vpack.c.bf16 %v5772, %v5768
        %v6353 = vpack.c.bf16 %v5773, %v5769
        %v6354 = vpack.c.bf16 %v5778, %v5774
        %v6355 = vpack.c.bf16 %v5779, %v5775
        %v6356 = vpack.c.bf16 %v5780, %v5776
        %v6357 = vpack.c.bf16 %v5781, %v5777
        %v6358 = vpack.c.bf16 %v5786, %v5782
        %v6359 = vpack.c.bf16 %v5787, %v5783
        %v6360 = vpack.c.bf16 %v5788, %v5784
        %v6361 = vpack.c.bf16 %v5789, %v5785
        %v6362 = vpack.c.bf16 %v5794, %v5790
        %v6363 = vpack.c.bf16 %v5795, %v5791
        %v6364 = vpack.c.bf16 %v5796, %v5792
        %v6365 = vpack.c.bf16 %v5797, %v5793
        %v6366 = vpack.c.bf16 %v5802, %v5798
        %v6367 = vpack.c.bf16 %v5803, %v5799
        %v6368 = vpack.c.bf16 %v5804, %v5800
        %v6369 = vpack.c.bf16 %v5805, %v5801
        %v6370 = vpack.c.bf16 %v5810, %v5806
        %v6371 = vpack.c.bf16 %v5811, %v5807
        %v6372 = vpack.c.bf16 %v5812, %v5808
        %v6373 = vpack.c.bf16 %v5813, %v5809
        %v6374 = vpack.c.bf16 %v5818, %v5814
        %v6375 = vpack.c.bf16 %v5819, %v5815
        %v6376 = vpack.c.bf16 %v5820, %v5816
        %v6377 = vpack.c.bf16 %v5821, %v5817
        %v6378 = vpack.c.bf16 %v5826, %v5822
        %v6379 = vpack.c.bf16 %v5827, %v5823
        %v6380 = vpack.c.bf16 %v5828, %v5824
        %v6381 = vpack.c.bf16 %v5829, %v5825
        %v6382 = vpack.c.bf16 %v5834, %v5830
        %v6383 = vpack.c.bf16 %v5835, %v5831
        %v6384 = vpack.c.bf16 %v5836, %v5832
        %v6385 = vpack.c.bf16 %v5837, %v5833
        %v6386 = vpack.c.bf16 %v5842, %v5838
        %v6387 = vpack.c.bf16 %v5843, %v5839
        %v6388 = vpack.c.bf16 %v5844, %v5840
        %v6389 = vpack.c.bf16 %v5845, %v5841
        %v6390 = vpack.c.bf16 %v5850, %v5846
        %v6391 = vpack.c.bf16 %v5851, %v5847
        %v6392 = vpack.c.bf16 %v5852, %v5848
        %v6393 = vpack.c.bf16 %v5853, %v5849
        %v6394 = vpack.c.bf16 %v5858, %v5854
        %v6395 = vpack.c.bf16 %v5859, %v5855
        %v6396 = vpack.c.bf16 %v5860, %v5856
        %v6397 = vpack.c.bf16 %v5861, %v5857
        %v6398 = vpack.c.bf16 %v5866, %v5862
        %v6399 = vpack.c.bf16 %v5867, %v5863
        %v6400 = vpack.c.bf16 %v5868, %v5864
        %v6401 = vpack.c.bf16 %v5869, %v5865
        %v6402 = vpack.c.bf16 %v5874, %v5870
        %v6403 = vpack.c.bf16 %v5875, %v5871
        %v6404 = vpack.c.bf16 %v5876, %v5872
        %v6405 = vpack.c.bf16 %v5877, %v5873
        %v6406 = vpack.c.bf16 %v5882, %v5878
        %v6407 = vpack.c.bf16 %v5883, %v5879
        %v6408 = vpack.c.bf16 %v5884, %v5880
        %v6409 = vpack.c.bf16 %v5885, %v5881
        %v6410 = vpack.c.bf16 %v5890, %v5886
        %v6411 = vpack.c.bf16 %v5891, %v5887
        %v6412 = vpack.c.bf16 %v5892, %v5888
        %v6413 = vpack.c.bf16 %v5893, %v5889
        %v6414 = vpack.c.bf16 %v5898, %v5894
        %v6415 = vpack.c.bf16 %v5899, %v5895
        %v6416 = vpack.c.bf16 %v5900, %v5896
        %v6417 = vpack.c.bf16 %v5901, %v5897
        %v6418 = vpack.c.bf16 %v5906, %v5902
        %v6419 = vpack.c.bf16 %v5907, %v5903
        %v6420 = vpack.c.bf16 %v5908, %v5904
        %v6421 = vpack.c.bf16 %v5909, %v5905
        %v6430 = vunpack.c.l.b16 %v774
        %v6431 = vunpack.c.h.b16 %v774
        %v6432 = vunpack.c.l.b16 %v775
        %v6433 = vunpack.c.h.b16 %v775
        %v6434 = vunpack.c.l.b16 %v776
        %v6435 = vunpack.c.h.b16 %v776
        %v6436 = vunpack.c.l.b16 %v777
        %v6437 = vunpack.c.h.b16 %v777
        %v6438 = vunpack.c.l.b16 %v778
        %v6439 = vunpack.c.h.b16 %v778
        %v6440 = vunpack.c.l.b16 %v779
        %v6441 = vunpack.c.h.b16 %v779
        %v6442 = vunpack.c.l.b16 %v780
        %v6443 = vunpack.c.h.b16 %v780
        %v6444 = vunpack.c.l.b16 %v781
        %v6445 = vunpack.c.h.b16 %v781
        %v6446 = vpack.c.b16 %v6430, %v6430
        %v6447 = vpack.c.b16 %v6431, %v6431
        %v6448 = vpack.c.b16 %v6432, %v6432
        %v6449 = vpack.c.b16 %v6433, %v6433
        %v6450 = vpack.c.b16 %v6434, %v6434
        %v6451 = vpack.c.b16 %v6435, %v6435
        %v6452 = vpack.c.b16 %v6436, %v6436
        %v6453 = vpack.c.b16 %v6437, %v6437
        %v6454 = vpack.c.b16 %v6438, %v6438
        %v6455 = vpack.c.b16 %v6439, %v6439
        %v6456 = vpack.c.b16 %v6440, %v6440
        %v6457 = vpack.c.b16 %v6441, %v6441
        %v6458 = vpack.c.b16 %v6442, %v6442
        %v6459 = vpack.c.b16 %v6443, %v6443
        %v6460 = vpack.c.b16 %v6444, %v6444
        %v6461 = vpack.c.b16 %v6445, %v6445
        %6478 = vmatpush.bf16.msra.mxu0 %v3122
        %6479 = vmatpush.bf16.msra.mxu0 %v3118
        %6480 = vmatpush.bf16.msra.mxu0 %v3114
        %6481 = vmatpush.bf16.msra.mxu0 %v3110
        %6482 = vmatpush.bf16.msra.mxu0 %v3106
        %6483 = vmatpush.bf16.msra.mxu0 %v3102
        %6484 = vmatpush.bf16.msra.mxu0 %v3098
        %6485 = vmatpush.bf16.msra.mxu0 %v3094
        %6486 = vmatmul.bf16.gmra.mxu0 %v6446
        %v6487 = vpop.f32.mrf.mxu0
        %v6488 = vadd.f32 0.0, %v6487
        %v6489 = vpop.f32.mrf.mxu0
        %6490 = vdwg.mxu0
        %6491 = vmatpush.bf16.msra.mxu0 %v3154
        %6492 = vmatpush.bf16.msra.mxu0 %v3150
        %6493 = vmatpush.bf16.msra.mxu0 %v3146
        %6494 = vmatpush.bf16.msra.mxu0 %v3142
        %6495 = vmatpush.bf16.msra.mxu0 %v3138
        %6496 = vmatpush.bf16.msra.mxu0 %v3134
        %6497 = vmatpush.bf16.msra.mxu0 %v3130
        %6498 = vmatpush.bf16.msra.mxu0 %v3126
        %6499 = vmatmul.bf16.gmra.mxu0 %v6447
        %v6500 = vpop.f32.mrf.mxu0
        %v6501 = vadd.f32 %v6488, %v6500
        %v6502 = vpop.f32.mrf.mxu0
        %6503 = vdwg.mxu0
        %6504 = vmatpush.bf16.msra.mxu0 %v3186
        %6505 = vmatpush.bf16.msra.mxu0 %v3182
        %6506 = vmatpush.bf16.msra.mxu0 %v3178
        %6507 = vmatpush.bf16.msra.mxu0 %v3174
        %6508 = vmatpush.bf16.msra.mxu0 %v3170
        %6509 = vmatpush.bf16.msra.mxu0 %v3166
        %6510 = vmatpush.bf16.msra.mxu0 %v3162
        %6511 = vmatpush.bf16.msra.mxu0 %v3158
        %6512 = vmatmul.bf16.gmra.mxu0 %v6448
        %v6513 = vpop.f32.mrf.mxu0
        %v6514 = vadd.f32 %v6501, %v6513
        %v6515 = vpop.f32.mrf.mxu0
        %6516 = vdwg.mxu0
        %6517 = vmatpush.bf16.msra.mxu0 %v3218
        %6518 = vmatpush.bf16.msra.mxu0 %v3214
        %6519 = vmatpush.bf16.msra.mxu0 %v3210
        %6520 = vmatpush.bf16.msra.mxu0 %v3206
        %6521 = vmatpush.bf16.msra.mxu0 %v3202
        %6522 = vmatpush.bf16.msra.mxu0 %v3198
        %6523 = vmatpush.bf16.msra.mxu0 %v3194
        %6524 = vmatpush.bf16.msra.mxu0 %v3190
        %6525 = vmatmul.bf16.gmra.mxu0 %v6449
        %v6526 = vpop.f32.mrf.mxu0
        %v6527 = vadd.f32 %v6514, %v6526
        %v6528 = vpop.f32.mrf.mxu0
        %6529 = vdwg.mxu0
        %6530 = vmatpush.bf16.msra.mxu0 %v3250
        %6531 = vmatpush.bf16.msra.mxu0 %v3246
        %6532 = vmatpush.bf16.msra.mxu0 %v3242
        %6533 = vmatpush.bf16.msra.mxu0 %v3238
        %6534 = vmatpush.bf16.msra.mxu0 %v3234
        %6535 = vmatpush.bf16.msra.mxu0 %v3230
        %6536 = vmatpush.bf16.msra.mxu0 %v3226
        %6537 = vmatpush.bf16.msra.mxu0 %v3222
        %6538 = vmatmul.bf16.gmra.mxu0 %v6450
        %v6539 = vpop.f32.mrf.mxu0
        %v6540 = vadd.f32 %v6527, %v6539
        %v6541 = vpop.f32.mrf.mxu0
        %6542 = vdwg.mxu0
        %6543 = vmatpush.bf16.msra.mxu0 %v3282
        %6544 = vmatpush.bf16.msra.mxu0 %v3278
        %6545 = vmatpush.bf16.msra.mxu0 %v3274
        %6546 = vmatpush.bf16.msra.mxu0 %v3270
        %6547 = vmatpush.bf16.msra.mxu0 %v3266
        %6548 = vmatpush.bf16.msra.mxu0 %v3262
        %6549 = vmatpush.bf16.msra.mxu0 %v3258
        %6550 = vmatpush.bf16.msra.mxu0 %v3254
        %6551 = vmatmul.bf16.gmra.mxu0 %v6451
        %v6552 = vpop.f32.mrf.mxu0
        %v6553 = vadd.f32 %v6540, %v6552
        %v6554 = vpop.f32.mrf.mxu0
        %6555 = vdwg.mxu0
        %6556 = vmatpush.bf16.msra.mxu0 %v3314
        %6557 = vmatpush.bf16.msra.mxu0 %v3310
        %6558 = vmatpush.bf16.msra.mxu0 %v3306
        %6559 = vmatpush.bf16.msra.mxu0 %v3302
        %6560 = vmatpush.bf16.msra.mxu0 %v3298
        %6561 = vmatpush.bf16.msra.mxu0 %v3294
        %6562 = vmatpush.bf16.msra.mxu0 %v3290
        %6563 = vmatpush.bf16.msra.mxu0 %v3286
        %6564 = vmatmul.bf16.gmra.mxu0 %v6452
        %v6565 = vpop.f32.mrf.mxu0
        %v6566 = vadd.f32 %v6553, %v6565
        %v6567 = vpop.f32.mrf.mxu0
        %6568 = vdwg.mxu0
        %6569 = vmatpush.bf16.msra.mxu0 %v3346
        %6570 = vmatpush.bf16.msra.mxu0 %v3342
        %6571 = vmatpush.bf16.msra.mxu0 %v3338
        %6572 = vmatpush.bf16.msra.mxu0 %v3334
        %6573 = vmatpush.bf16.msra.mxu0 %v3330
        %6574 = vmatpush.bf16.msra.mxu0 %v3326
        %6575 = vmatpush.bf16.msra.mxu0 %v3322
        %6576 = vmatpush.bf16.msra.mxu0 %v3318
        %6577 = vmatmul.bf16.gmra.mxu0 %v6453
        %v6578 = vpop.f32.mrf.mxu0
        %v6579 = vadd.f32 %v6566, %v6578
        %v6580 = vpop.f32.mrf.mxu0
        %6581 = vdwg.mxu0
        %6582 = vmatpush.bf16.msra.mxu0 %v3378
        %6583 = vmatpush.bf16.msra.mxu0 %v3374
        %6584 = vmatpush.bf16.msra.mxu0 %v3370
        %6585 = vmatpush.bf16.msra.mxu0 %v3366
        %6586 = vmatpush.bf16.msra.mxu0 %v3362
        %6587 = vmatpush.bf16.msra.mxu0 %v3358
        %6588 = vmatpush.bf16.msra.mxu0 %v3354
        %6589 = vmatpush.bf16.msra.mxu0 %v3350
        %6590 = vmatmul.bf16.gmra.mxu0 %v6454
        %v6591 = vpop.f32.mrf.mxu0
        %v6592 = vadd.f32 %v6579, %v6591
        %v6593 = vpop.f32.mrf.mxu0
        %6594 = vdwg.mxu0
        %6595 = vmatpush.bf16.msra.mxu0 %v3410
        %6596 = vmatpush.bf16.msra.mxu0 %v3406
        %6597 = vmatpush.bf16.msra.mxu0 %v3402
        %6598 = vmatpush.bf16.msra.mxu0 %v3398
        %6599 = vmatpush.bf16.msra.mxu0 %v3394
        %6600 = vmatpush.bf16.msra.mxu0 %v3390
        %6601 = vmatpush.bf16.msra.mxu0 %v3386
        %6602 = vmatpush.bf16.msra.mxu0 %v3382
        %6603 = vmatmul.bf16.gmra.mxu0 %v6455
        %v6604 = vpop.f32.mrf.mxu0
        %v6605 = vadd.f32 %v6592, %v6604
        %v6606 = vpop.f32.mrf.mxu0
        %6607 = vdwg.mxu0
        %6608 = vmatpush.bf16.msra.mxu0 %v3442
        %6609 = vmatpush.bf16.msra.mxu0 %v3438
        %6610 = vmatpush.bf16.msra.mxu0 %v3434
        %6611 = vmatpush.bf16.msra.mxu0 %v3430
        %6612 = vmatpush.bf16.msra.mxu0 %v3426
        %6613 = vmatpush.bf16.msra.mxu0 %v3422
        %6614 = vmatpush.bf16.msra.mxu0 %v3418
        %6615 = vmatpush.bf16.msra.mxu0 %v3414
        %6616 = vmatmul.bf16.gmra.mxu0 %v6456
        %v6617 = vpop.f32.mrf.mxu0
        %v6618 = vadd.f32 %v6605, %v6617
        %v6619 = vpop.f32.mrf.mxu0
        %6620 = vdwg.mxu0
        %6621 = vmatpush.bf16.msra.mxu0 %v3474
        %6622 = vmatpush.bf16.msra.mxu0 %v3470
        %6623 = vmatpush.bf16.msra.mxu0 %v3466
        %6624 = vmatpush.bf16.msra.mxu0 %v3462
        %6625 = vmatpush.bf16.msra.mxu0 %v3458
        %6626 = vmatpush.bf16.msra.mxu0 %v3454
        %6627 = vmatpush.bf16.msra.mxu0 %v3450
        %6628 = vmatpush.bf16.msra.mxu0 %v3446
        %6629 = vmatmul.bf16.gmra.mxu0 %v6457
        %v6630 = vpop.f32.mrf.mxu0
        %v6631 = vadd.f32 %v6618, %v6630
        %v6632 = vpop.f32.mrf.mxu0
        %6633 = vdwg.mxu0
        %6634 = vmatpush.bf16.msra.mxu0 %v3506
        %6635 = vmatpush.bf16.msra.mxu0 %v3502
        %6636 = vmatpush.bf16.msra.mxu0 %v3498
        %6637 = vmatpush.bf16.msra.mxu0 %v3494
        %6638 = vmatpush.bf16.msra.mxu0 %v3490
        %6639 = vmatpush.bf16.msra.mxu0 %v3486
        %6640 = vmatpush.bf16.msra.mxu0 %v3482
        %6641 = vmatpush.bf16.msra.mxu0 %v3478
        %6642 = vmatmul.bf16.gmra.mxu0 %v6458
        %v6643 = vpop.f32.mrf.mxu0
        %v6644 = vadd.f32 %v6631, %v6643
        %v6645 = vpop.f32.mrf.mxu0
        %6646 = vdwg.mxu0
        %6647 = vmatpush.bf16.msra.mxu0 %v3538
        %6648 = vmatpush.bf16.msra.mxu0 %v3534
        %6649 = vmatpush.bf16.msra.mxu0 %v3530
        %6650 = vmatpush.bf16.msra.mxu0 %v3526
        %6651 = vmatpush.bf16.msra.mxu0 %v3522
        %6652 = vmatpush.bf16.msra.mxu0 %v3518
        %6653 = vmatpush.bf16.msra.mxu0 %v3514
        %6654 = vmatpush.bf16.msra.mxu0 %v3510
        %6655 = vmatmul.bf16.gmra.mxu0 %v6459
        %v6656 = vpop.f32.mrf.mxu0
        %v6657 = vadd.f32 %v6644, %v6656
        %v6658 = vpop.f32.mrf.mxu0
        %6659 = vdwg.mxu0
        %6660 = vmatpush.bf16.msra.mxu0 %v3570
        %6661 = vmatpush.bf16.msra.mxu0 %v3566
        %6662 = vmatpush.bf16.msra.mxu0 %v3562
        %6663 = vmatpush.bf16.msra.mxu0 %v3558
        %6664 = vmatpush.bf16.msra.mxu0 %v3554
        %6665 = vmatpush.bf16.msra.mxu0 %v3550
        %6666 = vmatpush.bf16.msra.mxu0 %v3546
        %6667 = vmatpush.bf16.msra.mxu0 %v3542
        %6668 = vmatmul.bf16.gmra.mxu0 %v6460
        %v6669 = vpop.f32.mrf.mxu0
        %v6670 = vadd.f32 %v6657, %v6669
        %v6671 = vpop.f32.mrf.mxu0
        %6672 = vdwg.mxu0
        %6673 = vmatpush.bf16.msra.mxu0 %v3602
        %6674 = vmatpush.bf16.msra.mxu0 %v3598
        %6675 = vmatpush.bf16.msra.mxu0 %v3594
        %6676 = vmatpush.bf16.msra.mxu0 %v3590
        %6677 = vmatpush.bf16.msra.mxu0 %v3586
        %6678 = vmatpush.bf16.msra.mxu0 %v3582
        %6679 = vmatpush.bf16.msra.mxu0 %v3578
        %6680 = vmatpush.bf16.msra.mxu0 %v3574
        %6681 = vmatmul.bf16.gmra.mxu0 %v6461
        %v6682 = vpop.f32.mrf.mxu0
        %v6683 = vadd.f32 %v6670, %v6682
        %v6684 = vpop.f32.mrf.mxu0
        %6685 = vdwg.mxu0
        %6686 = vmatpush.bf16.msra.mxu0 %v3123
        %6687 = vmatpush.bf16.msra.mxu0 %v3119
        %6688 = vmatpush.bf16.msra.mxu0 %v3115
        %6689 = vmatpush.bf16.msra.mxu0 %v3111
        %6690 = vmatpush.bf16.msra.mxu0 %v3107
        %6691 = vmatpush.bf16.msra.mxu0 %v3103
        %6692 = vmatpush.bf16.msra.mxu0 %v3099
        %6693 = vmatpush.bf16.msra.mxu0 %v3095
        %6694 = vmatmul.bf16.gmra.mxu0 %v6446
        %v6695 = vpop.f32.mrf.mxu0
        %v6696 = vadd.f32 0.0, %v6695
        %v6697 = vpop.f32.mrf.mxu0
        %6698 = vdwg.mxu0
        %6699 = vmatpush.bf16.msra.mxu0 %v3155
        %6700 = vmatpush.bf16.msra.mxu0 %v3151
        %6701 = vmatpush.bf16.msra.mxu0 %v3147
        %6702 = vmatpush.bf16.msra.mxu0 %v3143
        %6703 = vmatpush.bf16.msra.mxu0 %v3139
        %6704 = vmatpush.bf16.msra.mxu0 %v3135
        %6705 = vmatpush.bf16.msra.mxu0 %v3131
        %6706 = vmatpush.bf16.msra.mxu0 %v3127
        %6707 = vmatmul.bf16.gmra.mxu0 %v6447
        %v6708 = vpop.f32.mrf.mxu0
        %v6709 = vadd.f32 %v6696, %v6708
        %v6710 = vpop.f32.mrf.mxu0
        %6711 = vdwg.mxu0
        %6712 = vmatpush.bf16.msra.mxu0 %v3187
        %6713 = vmatpush.bf16.msra.mxu0 %v3183
        %6714 = vmatpush.bf16.msra.mxu0 %v3179
        %6715 = vmatpush.bf16.msra.mxu0 %v3175
        %6716 = vmatpush.bf16.msra.mxu0 %v3171
        %6717 = vmatpush.bf16.msra.mxu0 %v3167
        %6718 = vmatpush.bf16.msra.mxu0 %v3163
        %6719 = vmatpush.bf16.msra.mxu0 %v3159
        %6720 = vmatmul.bf16.gmra.mxu0 %v6448
        %v6721 = vpop.f32.mrf.mxu0
        %v6722 = vadd.f32 %v6709, %v6721
        %v6723 = vpop.f32.mrf.mxu0
        %6724 = vdwg.mxu0
        %6725 = vmatpush.bf16.msra.mxu0 %v3219
        %6726 = vmatpush.bf16.msra.mxu0 %v3215
        %6727 = vmatpush.bf16.msra.mxu0 %v3211
        %6728 = vmatpush.bf16.msra.mxu0 %v3207
        %6729 = vmatpush.bf16.msra.mxu0 %v3203
        %6730 = vmatpush.bf16.msra.mxu0 %v3199
        %6731 = vmatpush.bf16.msra.mxu0 %v3195
        %6732 = vmatpush.bf16.msra.mxu0 %v3191
        %6733 = vmatmul.bf16.gmra.mxu0 %v6449
        %v6734 = vpop.f32.mrf.mxu0
        %v6735 = vadd.f32 %v6722, %v6734
        %v6736 = vpop.f32.mrf.mxu0
        %6737 = vdwg.mxu0
        %6738 = vmatpush.bf16.msra.mxu0 %v3251
        %6739 = vmatpush.bf16.msra.mxu0 %v3247
        %6740 = vmatpush.bf16.msra.mxu0 %v3243
        %6741 = vmatpush.bf16.msra.mxu0 %v3239
        %6742 = vmatpush.bf16.msra.mxu0 %v3235
        %6743 = vmatpush.bf16.msra.mxu0 %v3231
        %6744 = vmatpush.bf16.msra.mxu0 %v3227
        %6745 = vmatpush.bf16.msra.mxu0 %v3223
        %6746 = vmatmul.bf16.gmra.mxu0 %v6450
        %v6747 = vpop.f32.mrf.mxu0
        %v6748 = vadd.f32 %v6735, %v6747
        %v6749 = vpop.f32.mrf.mxu0
        %6750 = vdwg.mxu0
        %6751 = vmatpush.bf16.msra.mxu0 %v3283
        %6752 = vmatpush.bf16.msra.mxu0 %v3279
        %6753 = vmatpush.bf16.msra.mxu0 %v3275
        %6754 = vmatpush.bf16.msra.mxu0 %v3271
        %6755 = vmatpush.bf16.msra.mxu0 %v3267
        %6756 = vmatpush.bf16.msra.mxu0 %v3263
        %6757 = vmatpush.bf16.msra.mxu0 %v3259
        %6758 = vmatpush.bf16.msra.mxu0 %v3255
        %6759 = vmatmul.bf16.gmra.mxu0 %v6451
        %v6760 = vpop.f32.mrf.mxu0
        %v6761 = vadd.f32 %v6748, %v6760
        %v6762 = vpop.f32.mrf.mxu0
        %6763 = vdwg.mxu0
        %6764 = vmatpush.bf16.msra.mxu0 %v3315
        %6765 = vmatpush.bf16.msra.mxu0 %v3311
        %6766 = vmatpush.bf16.msra.mxu0 %v3307
        %6767 = vmatpush.bf16.msra.mxu0 %v3303
        %6768 = vmatpush.bf16.msra.mxu0 %v3299
        %6769 = vmatpush.bf16.msra.mxu0 %v3295
        %6770 = vmatpush.bf16.msra.mxu0 %v3291
        %6771 = vmatpush.bf16.msra.mxu0 %v3287
        %6772 = vmatmul.bf16.gmra.mxu0 %v6452
        %v6773 = vpop.f32.mrf.mxu0
        %v6774 = vadd.f32 %v6761, %v6773
        %v6775 = vpop.f32.mrf.mxu0
        %6776 = vdwg.mxu0
        %6777 = vmatpush.bf16.msra.mxu0 %v3347
        %6778 = vmatpush.bf16.msra.mxu0 %v3343
        %6779 = vmatpush.bf16.msra.mxu0 %v3339
        %6780 = vmatpush.bf16.msra.mxu0 %v3335
        %6781 = vmatpush.bf16.msra.mxu0 %v3331
        %6782 = vmatpush.bf16.msra.mxu0 %v3327
        %6783 = vmatpush.bf16.msra.mxu0 %v3323
        %6784 = vmatpush.bf16.msra.mxu0 %v3319
        %6785 = vmatmul.bf16.gmra.mxu0 %v6453
        %v6786 = vpop.f32.mrf.mxu0
        %v6787 = vadd.f32 %v6774, %v6786
        %v6788 = vpop.f32.mrf.mxu0
        %6789 = vdwg.mxu0
        %6790 = vmatpush.bf16.msra.mxu0 %v3379
        %6791 = vmatpush.bf16.msra.mxu0 %v3375
        %6792 = vmatpush.bf16.msra.mxu0 %v3371
        %6793 = vmatpush.bf16.msra.mxu0 %v3367
        %6794 = vmatpush.bf16.msra.mxu0 %v3363
        %6795 = vmatpush.bf16.msra.mxu0 %v3359
        %6796 = vmatpush.bf16.msra.mxu0 %v3355
        %6797 = vmatpush.bf16.msra.mxu0 %v3351
        %6798 = vmatmul.bf16.gmra.mxu0 %v6454
        %v6799 = vpop.f32.mrf.mxu0
        %v6800 = vadd.f32 %v6787, %v6799
        %v6801 = vpop.f32.mrf.mxu0
        %6802 = vdwg.mxu0
        %6803 = vmatpush.bf16.msra.mxu0 %v3411
        %6804 = vmatpush.bf16.msra.mxu0 %v3407
        %6805 = vmatpush.bf16.msra.mxu0 %v3403
        %6806 = vmatpush.bf16.msra.mxu0 %v3399
        %6807 = vmatpush.bf16.msra.mxu0 %v3395
        %6808 = vmatpush.bf16.msra.mxu0 %v3391
        %6809 = vmatpush.bf16.msra.mxu0 %v3387
        %6810 = vmatpush.bf16.msra.mxu0 %v3383
        %6811 = vmatmul.bf16.gmra.mxu0 %v6455
        %v6812 = vpop.f32.mrf.mxu0
        %v6813 = vadd.f32 %v6800, %v6812
        %v6814 = vpop.f32.mrf.mxu0
        %6815 = vdwg.mxu0
        %6816 = vmatpush.bf16.msra.mxu0 %v3443
        %6817 = vmatpush.bf16.msra.mxu0 %v3439
        %6818 = vmatpush.bf16.msra.mxu0 %v3435
        %6819 = vmatpush.bf16.msra.mxu0 %v3431
        %6820 = vmatpush.bf16.msra.mxu0 %v3427
        %6821 = vmatpush.bf16.msra.mxu0 %v3423
        %6822 = vmatpush.bf16.msra.mxu0 %v3419
        %6823 = vmatpush.bf16.msra.mxu0 %v3415
        %6824 = vmatmul.bf16.gmra.mxu0 %v6456
        %v6825 = vpop.f32.mrf.mxu0
        %v6826 = vadd.f32 %v6813, %v6825
        %v6827 = vpop.f32.mrf.mxu0
        %6828 = vdwg.mxu0
        %6829 = vmatpush.bf16.msra.mxu0 %v3475
        %6830 = vmatpush.bf16.msra.mxu0 %v3471
        %6831 = vmatpush.bf16.msra.mxu0 %v3467
        %6832 = vmatpush.bf16.msra.mxu0 %v3463
        %6833 = vmatpush.bf16.msra.mxu0 %v3459
        %6834 = vmatpush.bf16.msra.mxu0 %v3455
        %6835 = vmatpush.bf16.msra.mxu0 %v3451
        %6836 = vmatpush.bf16.msra.mxu0 %v3447
        %6837 = vmatmul.bf16.gmra.mxu0 %v6457
        %v6838 = vpop.f32.mrf.mxu0
        %v6839 = vadd.f32 %v6826, %v6838
        %v6840 = vpop.f32.mrf.mxu0
        %6841 = vdwg.mxu0
        %6842 = vmatpush.bf16.msra.mxu0 %v3507
        %6843 = vmatpush.bf16.msra.mxu0 %v3503
        %6844 = vmatpush.bf16.msra.mxu0 %v3499
        %6845 = vmatpush.bf16.msra.mxu0 %v3495
        %6846 = vmatpush.bf16.msra.mxu0 %v3491
        %6847 = vmatpush.bf16.msra.mxu0 %v3487
        %6848 = vmatpush.bf16.msra.mxu0 %v3483
        %6849 = vmatpush.bf16.msra.mxu0 %v3479
        %6850 = vmatmul.bf16.gmra.mxu0 %v6458
        %v6851 = vpop.f32.mrf.mxu0
        %v6852 = vadd.f32 %v6839, %v6851
        %v6853 = vpop.f32.mrf.mxu0
        %6854 = vdwg.mxu0
        %6855 = vmatpush.bf16.msra.mxu0 %v3539
        %6856 = vmatpush.bf16.msra.mxu0 %v3535
        %6857 = vmatpush.bf16.msra.mxu0 %v3531
        %6858 = vmatpush.bf16.msra.mxu0 %v3527
        %6859 = vmatpush.bf16.msra.mxu0 %v3523
        %6860 = vmatpush.bf16.msra.mxu0 %v3519
        %6861 = vmatpush.bf16.msra.mxu0 %v3515
        %6862 = vmatpush.bf16.msra.mxu0 %v3511
        %6863 = vmatmul.bf16.gmra.mxu0 %v6459
        %v6864 = vpop.f32.mrf.mxu0
        %v6865 = vadd.f32 %v6852, %v6864
        %v6866 = vpop.f32.mrf.mxu0
        %6867 = vdwg.mxu0
        %6868 = vmatpush.bf16.msra.mxu0 %v3571
        %6869 = vmatpush.bf16.msra.mxu0 %v3567
        %6870 = vmatpush.bf16.msra.mxu0 %v3563
        %6871 = vmatpush.bf16.msra.mxu0 %v3559
        %6872 = vmatpush.bf16.msra.mxu0 %v3555
        %6873 = vmatpush.bf16.msra.mxu0 %v3551
        %6874 = vmatpush.bf16.msra.mxu0 %v3547
        %6875 = vmatpush.bf16.msra.mxu0 %v3543
        %6876 = vmatmul.bf16.gmra.mxu0 %v6460
        %v6877 = vpop.f32.mrf.mxu0
        %v6878 = vadd.f32 %v6865, %v6877
        %v6879 = vpop.f32.mrf.mxu0
        %6880 = vdwg.mxu0
        %6881 = vmatpush.bf16.msra.mxu0 %v3603
        %6882 = vmatpush.bf16.msra.mxu0 %v3599
        %6883 = vmatpush.bf16.msra.mxu0 %v3595
        %6884 = vmatpush.bf16.msra.mxu0 %v3591
        %6885 = vmatpush.bf16.msra.mxu0 %v3587
        %6886 = vmatpush.bf16.msra.mxu0 %v3583
        %6887 = vmatpush.bf16.msra.mxu0 %v3579
        %6888 = vmatpush.bf16.msra.mxu0 %v3575
        %6889 = vmatmul.bf16.gmra.mxu0 %v6461
        %v6890 = vpop.f32.mrf.mxu0
        %v6891 = vadd.f32 %v6878, %v6890
        %v6892 = vpop.f32.mrf.mxu0
        %6893 = vdwg.mxu0
        %6894 = vmatpush.bf16.msra.mxu0 %v3124
        %6895 = vmatpush.bf16.msra.mxu0 %v3120
        %6896 = vmatpush.bf16.msra.mxu0 %v3116
        %6897 = vmatpush.bf16.msra.mxu0 %v3112
        %6898 = vmatpush.bf16.msra.mxu0 %v3108
        %6899 = vmatpush.bf16.msra.mxu0 %v3104
        %6900 = vmatpush.bf16.msra.mxu0 %v3100
        %6901 = vmatpush.bf16.msra.mxu0 %v3096
        %6902 = vmatmul.bf16.gmra.mxu0 %v6446
        %v6903 = vpop.f32.mrf.mxu0
        %v6904 = vadd.f32 0.0, %v6903
        %v6905 = vpop.f32.mrf.mxu0
        %6906 = vdwg.mxu0
        %6907 = vmatpush.bf16.msra.mxu0 %v3156
        %6908 = vmatpush.bf16.msra.mxu0 %v3152
        %6909 = vmatpush.bf16.msra.mxu0 %v3148
        %6910 = vmatpush.bf16.msra.mxu0 %v3144
        %6911 = vmatpush.bf16.msra.mxu0 %v3140
        %6912 = vmatpush.bf16.msra.mxu0 %v3136
        %6913 = vmatpush.bf16.msra.mxu0 %v3132
        %6914 = vmatpush.bf16.msra.mxu0 %v3128
        %6915 = vmatmul.bf16.gmra.mxu0 %v6447
        %v6916 = vpop.f32.mrf.mxu0
        %v6917 = vadd.f32 %v6904, %v6916
        %v6918 = vpop.f32.mrf.mxu0
        %6919 = vdwg.mxu0
        %6920 = vmatpush.bf16.msra.mxu0 %v3188
        %6921 = vmatpush.bf16.msra.mxu0 %v3184
        %6922 = vmatpush.bf16.msra.mxu0 %v3180
        %6923 = vmatpush.bf16.msra.mxu0 %v3176
        %6924 = vmatpush.bf16.msra.mxu0 %v3172
        %6925 = vmatpush.bf16.msra.mxu0 %v3168
        %6926 = vmatpush.bf16.msra.mxu0 %v3164
        %6927 = vmatpush.bf16.msra.mxu0 %v3160
        %6928 = vmatmul.bf16.gmra.mxu0 %v6448
        %v6929 = vpop.f32.mrf.mxu0
        %v6930 = vadd.f32 %v6917, %v6929
        %v6931 = vpop.f32.mrf.mxu0
        %6932 = vdwg.mxu0
        %6933 = vmatpush.bf16.msra.mxu0 %v3220
        %6934 = vmatpush.bf16.msra.mxu0 %v3216
        %6935 = vmatpush.bf16.msra.mxu0 %v3212
        %6936 = vmatpush.bf16.msra.mxu0 %v3208
        %6937 = vmatpush.bf16.msra.mxu0 %v3204
        %6938 = vmatpush.bf16.msra.mxu0 %v3200
        %6939 = vmatpush.bf16.msra.mxu0 %v3196
        %6940 = vmatpush.bf16.msra.mxu0 %v3192
        %6941 = vmatmul.bf16.gmra.mxu0 %v6449
        %v6942 = vpop.f32.mrf.mxu0
        %v6943 = vadd.f32 %v6930, %v6942
        %v6944 = vpop.f32.mrf.mxu0
        %6945 = vdwg.mxu0
        %6946 = vmatpush.bf16.msra.mxu0 %v3252
        %6947 = vmatpush.bf16.msra.mxu0 %v3248
        %6948 = vmatpush.bf16.msra.mxu0 %v3244
        %6949 = vmatpush.bf16.msra.mxu0 %v3240
        %6950 = vmatpush.bf16.msra.mxu0 %v3236
        %6951 = vmatpush.bf16.msra.mxu0 %v3232
        %6952 = vmatpush.bf16.msra.mxu0 %v3228
        %6953 = vmatpush.bf16.msra.mxu0 %v3224
        %6954 = vmatmul.bf16.gmra.mxu0 %v6450
        %v6955 = vpop.f32.mrf.mxu0
        %v6956 = vadd.f32 %v6943, %v6955
        %v6957 = vpop.f32.mrf.mxu0
        %6958 = vdwg.mxu0
        %6959 = vmatpush.bf16.msra.mxu0 %v3284
        %6960 = vmatpush.bf16.msra.mxu0 %v3280
        %6961 = vmatpush.bf16.msra.mxu0 %v3276
        %6962 = vmatpush.bf16.msra.mxu0 %v3272
        %6963 = vmatpush.bf16.msra.mxu0 %v3268
        %6964 = vmatpush.bf16.msra.mxu0 %v3264
        %6965 = vmatpush.bf16.msra.mxu0 %v3260
        %6966 = vmatpush.bf16.msra.mxu0 %v3256
        %6967 = vmatmul.bf16.gmra.mxu0 %v6451
        %v6968 = vpop.f32.mrf.mxu0
        %v6969 = vadd.f32 %v6956, %v6968
        %v6970 = vpop.f32.mrf.mxu0
        %6971 = vdwg.mxu0
        %6972 = vmatpush.bf16.msra.mxu0 %v3316
        %6973 = vmatpush.bf16.msra.mxu0 %v3312
        %6974 = vmatpush.bf16.msra.mxu0 %v3308
        %6975 = vmatpush.bf16.msra.mxu0 %v3304
        %6976 = vmatpush.bf16.msra.mxu0 %v3300
        %6977 = vmatpush.bf16.msra.mxu0 %v3296
        %6978 = vmatpush.bf16.msra.mxu0 %v3292
        %6979 = vmatpush.bf16.msra.mxu0 %v3288
        %6980 = vmatmul.bf16.gmra.mxu0 %v6452
        %v6981 = vpop.f32.mrf.mxu0
        %v6982 = vadd.f32 %v6969, %v6981
        %v6983 = vpop.f32.mrf.mxu0
        %6984 = vdwg.mxu0
        %6985 = vmatpush.bf16.msra.mxu0 %v3348
        %6986 = vmatpush.bf16.msra.mxu0 %v3344
        %6987 = vmatpush.bf16.msra.mxu0 %v3340
        %6988 = vmatpush.bf16.msra.mxu0 %v3336
        %6989 = vmatpush.bf16.msra.mxu0 %v3332
        %6990 = vmatpush.bf16.msra.mxu0 %v3328
        %6991 = vmatpush.bf16.msra.mxu0 %v3324
        %6992 = vmatpush.bf16.msra.mxu0 %v3320
        %6993 = vmatmul.bf16.gmra.mxu0 %v6453
        %v6994 = vpop.f32.mrf.mxu0
        %v6995 = vadd.f32 %v6982, %v6994
        %v6996 = vpop.f32.mrf.mxu0
        %6997 = vdwg.mxu0
        %6998 = vmatpush.bf16.msra.mxu0 %v3380
        %6999 = vmatpush.bf16.msra.mxu0 %v3376
        %7000 = vmatpush.bf16.msra.mxu0 %v3372
        %7001 = vmatpush.bf16.msra.mxu0 %v3368
        %7002 = vmatpush.bf16.msra.mxu0 %v3364
        %7003 = vmatpush.bf16.msra.mxu0 %v3360
        %7004 = vmatpush.bf16.msra.mxu0 %v3356
        %7005 = vmatpush.bf16.msra.mxu0 %v3352
        %7006 = vmatmul.bf16.gmra.mxu0 %v6454
        %v7007 = vpop.f32.mrf.mxu0
        %v7008 = vadd.f32 %v6995, %v7007
        %v7009 = vpop.f32.mrf.mxu0
        %7010 = vdwg.mxu0
        %7011 = vmatpush.bf16.msra.mxu0 %v3412
        %7012 = vmatpush.bf16.msra.mxu0 %v3408
        %7013 = vmatpush.bf16.msra.mxu0 %v3404
        %7014 = vmatpush.bf16.msra.mxu0 %v3400
        %7015 = vmatpush.bf16.msra.mxu0 %v3396
        %7016 = vmatpush.bf16.msra.mxu0 %v3392
        %7017 = vmatpush.bf16.msra.mxu0 %v3388
        %7018 = vmatpush.bf16.msra.mxu0 %v3384
        %7019 = vmatmul.bf16.gmra.mxu0 %v6455
        %v7020 = vpop.f32.mrf.mxu0
        %v7021 = vadd.f32 %v7008, %v7020
        %v7022 = vpop.f32.mrf.mxu0
        %7023 = vdwg.mxu0
        %7024 = vmatpush.bf16.msra.mxu0 %v3444
        %7025 = vmatpush.bf16.msra.mxu0 %v3440
        %7026 = vmatpush.bf16.msra.mxu0 %v3436
        %7027 = vmatpush.bf16.msra.mxu0 %v3432
        %7028 = vmatpush.bf16.msra.mxu0 %v3428
        %7029 = vmatpush.bf16.msra.mxu0 %v3424
        %7030 = vmatpush.bf16.msra.mxu0 %v3420
        %7031 = vmatpush.bf16.msra.mxu0 %v3416
        %7032 = vmatmul.bf16.gmra.mxu0 %v6456
        %v7033 = vpop.f32.mrf.mxu0
        %v7034 = vadd.f32 %v7021, %v7033
        %v7035 = vpop.f32.mrf.mxu0
        %7036 = vdwg.mxu0
        %7037 = vmatpush.bf16.msra.mxu0 %v3476
        %7038 = vmatpush.bf16.msra.mxu0 %v3472
        %7039 = vmatpush.bf16.msra.mxu0 %v3468
        %7040 = vmatpush.bf16.msra.mxu0 %v3464
        %7041 = vmatpush.bf16.msra.mxu0 %v3460
        %7042 = vmatpush.bf16.msra.mxu0 %v3456
        %7043 = vmatpush.bf16.msra.mxu0 %v3452
        %7044 = vmatpush.bf16.msra.mxu0 %v3448
        %7045 = vmatmul.bf16.gmra.mxu0 %v6457
        %v7046 = vpop.f32.mrf.mxu0
        %v7047 = vadd.f32 %v7034, %v7046
        %v7048 = vpop.f32.mrf.mxu0
        %7049 = vdwg.mxu0
        %7050 = vmatpush.bf16.msra.mxu0 %v3508
        %7051 = vmatpush.bf16.msra.mxu0 %v3504
        %7052 = vmatpush.bf16.msra.mxu0 %v3500
        %7053 = vmatpush.bf16.msra.mxu0 %v3496
        %7054 = vmatpush.bf16.msra.mxu0 %v3492
        %7055 = vmatpush.bf16.msra.mxu0 %v3488
        %7056 = vmatpush.bf16.msra.mxu0 %v3484
        %7057 = vmatpush.bf16.msra.mxu0 %v3480
        %7058 = vmatmul.bf16.gmra.mxu0 %v6458
        %v7059 = vpop.f32.mrf.mxu0
        %v7060 = vadd.f32 %v7047, %v7059
        %v7061 = vpop.f32.mrf.mxu0
        %7062 = vdwg.mxu0
        %7063 = vmatpush.bf16.msra.mxu0 %v3540
        %7064 = vmatpush.bf16.msra.mxu0 %v3536
        %7065 = vmatpush.bf16.msra.mxu0 %v3532
        %7066 = vmatpush.bf16.msra.mxu0 %v3528
        %7067 = vmatpush.bf16.msra.mxu0 %v3524
        %7068 = vmatpush.bf16.msra.mxu0 %v3520
        %7069 = vmatpush.bf16.msra.mxu0 %v3516
        %7070 = vmatpush.bf16.msra.mxu0 %v3512
        %7071 = vmatmul.bf16.gmra.mxu0 %v6459
        %v7072 = vpop.f32.mrf.mxu0
        %v7073 = vadd.f32 %v7060, %v7072
        %v7074 = vpop.f32.mrf.mxu0
        %7075 = vdwg.mxu0
        %7076 = vmatpush.bf16.msra.mxu0 %v3572
        %7077 = vmatpush.bf16.msra.mxu0 %v3568
        %7078 = vmatpush.bf16.msra.mxu0 %v3564
        %7079 = vmatpush.bf16.msra.mxu0 %v3560
        %7080 = vmatpush.bf16.msra.mxu0 %v3556
        %7081 = vmatpush.bf16.msra.mxu0 %v3552
        %7082 = vmatpush.bf16.msra.mxu0 %v3548
        %7083 = vmatpush.bf16.msra.mxu0 %v3544
        %7084 = vmatmul.bf16.gmra.mxu0 %v6460
        %v7085 = vpop.f32.mrf.mxu0
        %v7086 = vadd.f32 %v7073, %v7085
        %v7087 = vpop.f32.mrf.mxu0
        %7088 = vdwg.mxu0
        %7089 = vmatpush.bf16.msra.mxu0 %v3604
        %7090 = vmatpush.bf16.msra.mxu0 %v3600
        %7091 = vmatpush.bf16.msra.mxu0 %v3596
        %7092 = vmatpush.bf16.msra.mxu0 %v3592
        %7093 = vmatpush.bf16.msra.mxu0 %v3588
        %7094 = vmatpush.bf16.msra.mxu0 %v3584
        %7095 = vmatpush.bf16.msra.mxu0 %v3580
        %7096 = vmatpush.bf16.msra.mxu0 %v3576
        %7097 = vmatmul.bf16.gmra.mxu0 %v6461
        %v7098 = vpop.f32.mrf.mxu0
        %v7099 = vadd.f32 %v7086, %v7098
        %v7100 = vpop.f32.mrf.mxu0
        %7101 = vdwg.mxu0
        %7102 = vmatpush.bf16.msra.mxu0 %v3125
        %7103 = vmatpush.bf16.msra.mxu0 %v3121
        %7104 = vmatpush.bf16.msra.mxu0 %v3117
        %7105 = vmatpush.bf16.msra.mxu0 %v3113
        %7106 = vmatpush.bf16.msra.mxu0 %v3109
        %7107 = vmatpush.bf16.msra.mxu0 %v3105
        %7108 = vmatpush.bf16.msra.mxu0 %v3101
        %7109 = vmatpush.bf16.msra.mxu0 %v3097
        %7110 = vmatmul.bf16.gmra.mxu0 %v6446
        %v7111 = vpop.f32.mrf.mxu0
        %v7112 = vadd.f32 0.0, %v7111
        %v7113 = vpop.f32.mrf.mxu0
        %7114 = vdwg.mxu0
        %7115 = vmatpush.bf16.msra.mxu0 %v3157
        %7116 = vmatpush.bf16.msra.mxu0 %v3153
        %7117 = vmatpush.bf16.msra.mxu0 %v3149
        %7118 = vmatpush.bf16.msra.mxu0 %v3145
        %7119 = vmatpush.bf16.msra.mxu0 %v3141
        %7120 = vmatpush.bf16.msra.mxu0 %v3137
        %7121 = vmatpush.bf16.msra.mxu0 %v3133
        %7122 = vmatpush.bf16.msra.mxu0 %v3129
        %7123 = vmatmul.bf16.gmra.mxu0 %v6447
        %v7124 = vpop.f32.mrf.mxu0
        %v7125 = vadd.f32 %v7112, %v7124
        %v7126 = vpop.f32.mrf.mxu0
        %7127 = vdwg.mxu0
        %7128 = vmatpush.bf16.msra.mxu0 %v3189
        %7129 = vmatpush.bf16.msra.mxu0 %v3185
        %7130 = vmatpush.bf16.msra.mxu0 %v3181
        %7131 = vmatpush.bf16.msra.mxu0 %v3177
        %7132 = vmatpush.bf16.msra.mxu0 %v3173
        %7133 = vmatpush.bf16.msra.mxu0 %v3169
        %7134 = vmatpush.bf16.msra.mxu0 %v3165
        %7135 = vmatpush.bf16.msra.mxu0 %v3161
        %7136 = vmatmul.bf16.gmra.mxu0 %v6448
        %v7137 = vpop.f32.mrf.mxu0
        %v7138 = vadd.f32 %v7125, %v7137
        %v7139 = vpop.f32.mrf.mxu0
        %7140 = vdwg.mxu0
        %7141 = vmatpush.bf16.msra.mxu0 %v3221
        %7142 = vmatpush.bf16.msra.mxu0 %v3217
        %7143 = vmatpush.bf16.msra.mxu0 %v3213
        %7144 = vmatpush.bf16.msra.mxu0 %v3209
        %7145 = vmatpush.bf16.msra.mxu0 %v3205
        %7146 = vmatpush.bf16.msra.mxu0 %v3201
        %7147 = vmatpush.bf16.msra.mxu0 %v3197
        %7148 = vmatpush.bf16.msra.mxu0 %v3193
        %7149 = vmatmul.bf16.gmra.mxu0 %v6449
        %v7150 = vpop.f32.mrf.mxu0
        %v7151 = vadd.f32 %v7138, %v7150
        %v7152 = vpop.f32.mrf.mxu0
        %7153 = vdwg.mxu0
        %7154 = vmatpush.bf16.msra.mxu0 %v3253
        %7155 = vmatpush.bf16.msra.mxu0 %v3249
        %7156 = vmatpush.bf16.msra.mxu0 %v3245
        %7157 = vmatpush.bf16.msra.mxu0 %v3241
        %7158 = vmatpush.bf16.msra.mxu0 %v3237
        %7159 = vmatpush.bf16.msra.mxu0 %v3233
        %7160 = vmatpush.bf16.msra.mxu0 %v3229
        %7161 = vmatpush.bf16.msra.mxu0 %v3225
        %7162 = vmatmul.bf16.gmra.mxu0 %v6450
        %v7163 = vpop.f32.mrf.mxu0
        %v7164 = vadd.f32 %v7151, %v7163
        %v7165 = vpop.f32.mrf.mxu0
        %7166 = vdwg.mxu0
        %7167 = vmatpush.bf16.msra.mxu0 %v3285
        %7168 = vmatpush.bf16.msra.mxu0 %v3281
        %7169 = vmatpush.bf16.msra.mxu0 %v3277
        %7170 = vmatpush.bf16.msra.mxu0 %v3273
        %7171 = vmatpush.bf16.msra.mxu0 %v3269
        %7172 = vmatpush.bf16.msra.mxu0 %v3265
        %7173 = vmatpush.bf16.msra.mxu0 %v3261
        %7174 = vmatpush.bf16.msra.mxu0 %v3257
        %7175 = vmatmul.bf16.gmra.mxu0 %v6451
        %v7176 = vpop.f32.mrf.mxu0
        %v7177 = vadd.f32 %v7164, %v7176
        %v7178 = vpop.f32.mrf.mxu0
        %7179 = vdwg.mxu0
        %7180 = vmatpush.bf16.msra.mxu0 %v3317
        %7181 = vmatpush.bf16.msra.mxu0 %v3313
        %7182 = vmatpush.bf16.msra.mxu0 %v3309
        %7183 = vmatpush.bf16.msra.mxu0 %v3305
        %7184 = vmatpush.bf16.msra.mxu0 %v3301
        %7185 = vmatpush.bf16.msra.mxu0 %v3297
        %7186 = vmatpush.bf16.msra.mxu0 %v3293
        %7187 = vmatpush.bf16.msra.mxu0 %v3289
        %7188 = vmatmul.bf16.gmra.mxu0 %v6452
        %v7189 = vpop.f32.mrf.mxu0
        %v7190 = vadd.f32 %v7177, %v7189
        %v7191 = vpop.f32.mrf.mxu0
        %7192 = vdwg.mxu0
        %7193 = vmatpush.bf16.msra.mxu0 %v3349
        %7194 = vmatpush.bf16.msra.mxu0 %v3345
        %7195 = vmatpush.bf16.msra.mxu0 %v3341
        %7196 = vmatpush.bf16.msra.mxu0 %v3337
        %7197 = vmatpush.bf16.msra.mxu0 %v3333
        %7198 = vmatpush.bf16.msra.mxu0 %v3329
        %7199 = vmatpush.bf16.msra.mxu0 %v3325
        %7200 = vmatpush.bf16.msra.mxu0 %v3321
        %7201 = vmatmul.bf16.gmra.mxu0 %v6453
        %v7202 = vpop.f32.mrf.mxu0
        %v7203 = vadd.f32 %v7190, %v7202
        %v7204 = vpop.f32.mrf.mxu0
        %7205 = vdwg.mxu0
        %7206 = vmatpush.bf16.msra.mxu0 %v3381
        %7207 = vmatpush.bf16.msra.mxu0 %v3377
        %7208 = vmatpush.bf16.msra.mxu0 %v3373
        %7209 = vmatpush.bf16.msra.mxu0 %v3369
        %7210 = vmatpush.bf16.msra.mxu0 %v3365
        %7211 = vmatpush.bf16.msra.mxu0 %v3361
        %7212 = vmatpush.bf16.msra.mxu0 %v3357
        %7213 = vmatpush.bf16.msra.mxu0 %v3353
        %7214 = vmatmul.bf16.gmra.mxu0 %v6454
        %v7215 = vpop.f32.mrf.mxu0
        %v7216 = vadd.f32 %v7203, %v7215
        %v7217 = vpop.f32.mrf.mxu0
        %7218 = vdwg.mxu0
        %7219 = vmatpush.bf16.msra.mxu0 %v3413
        %7220 = vmatpush.bf16.msra.mxu0 %v3409
        %7221 = vmatpush.bf16.msra.mxu0 %v3405
        %7222 = vmatpush.bf16.msra.mxu0 %v3401
        %7223 = vmatpush.bf16.msra.mxu0 %v3397
        %7224 = vmatpush.bf16.msra.mxu0 %v3393
        %7225 = vmatpush.bf16.msra.mxu0 %v3389
        %7226 = vmatpush.bf16.msra.mxu0 %v3385
        %7227 = vmatmul.bf16.gmra.mxu0 %v6455
        %v7228 = vpop.f32.mrf.mxu0
        %v7229 = vadd.f32 %v7216, %v7228
        %v7230 = vpop.f32.mrf.mxu0
        %7231 = vdwg.mxu0
        %7232 = vmatpush.bf16.msra.mxu0 %v3445
        %7233 = vmatpush.bf16.msra.mxu0 %v3441
        %7234 = vmatpush.bf16.msra.mxu0 %v3437
        %7235 = vmatpush.bf16.msra.mxu0 %v3433
        %7236 = vmatpush.bf16.msra.mxu0 %v3429
        %7237 = vmatpush.bf16.msra.mxu0 %v3425
        %7238 = vmatpush.bf16.msra.mxu0 %v3421
        %7239 = vmatpush.bf16.msra.mxu0 %v3417
        %7240 = vmatmul.bf16.gmra.mxu0 %v6456
        %v7241 = vpop.f32.mrf.mxu0
        %v7242 = vadd.f32 %v7229, %v7241
        %v7243 = vpop.f32.mrf.mxu0
        %7244 = vdwg.mxu0
        %7245 = vmatpush.bf16.msra.mxu0 %v3477
        %7246 = vmatpush.bf16.msra.mxu0 %v3473
        %7247 = vmatpush.bf16.msra.mxu0 %v3469
        %7248 = vmatpush.bf16.msra.mxu0 %v3465
        %7249 = vmatpush.bf16.msra.mxu0 %v3461
        %7250 = vmatpush.bf16.msra.mxu0 %v3457
        %7251 = vmatpush.bf16.msra.mxu0 %v3453
        %7252 = vmatpush.bf16.msra.mxu0 %v3449
        %7253 = vmatmul.bf16.gmra.mxu0 %v6457
        %v7254 = vpop.f32.mrf.mxu0
        %v7255 = vadd.f32 %v7242, %v7254
        %v7256 = vpop.f32.mrf.mxu0
        %7257 = vdwg.mxu0
        %7258 = vmatpush.bf16.msra.mxu0 %v3509
        %7259 = vmatpush.bf16.msra.mxu0 %v3505
        %7260 = vmatpush.bf16.msra.mxu0 %v3501
        %7261 = vmatpush.bf16.msra.mxu0 %v3497
        %7262 = vmatpush.bf16.msra.mxu0 %v3493
        %7263 = vmatpush.bf16.msra.mxu0 %v3489
        %7264 = vmatpush.bf16.msra.mxu0 %v3485
        %7265 = vmatpush.bf16.msra.mxu0 %v3481
        %7266 = vmatmul.bf16.gmra.mxu0 %v6458
        %v7267 = vpop.f32.mrf.mxu0
        %v7268 = vadd.f32 %v7255, %v7267
        %v7269 = vpop.f32.mrf.mxu0
        %7270 = vdwg.mxu0
        %7271 = vmatpush.bf16.msra.mxu0 %v3541
        %7272 = vmatpush.bf16.msra.mxu0 %v3537
        %7273 = vmatpush.bf16.msra.mxu0 %v3533
        %7274 = vmatpush.bf16.msra.mxu0 %v3529
        %7275 = vmatpush.bf16.msra.mxu0 %v3525
        %7276 = vmatpush.bf16.msra.mxu0 %v3521
        %7277 = vmatpush.bf16.msra.mxu0 %v3517
        %7278 = vmatpush.bf16.msra.mxu0 %v3513
        %7279 = vmatmul.bf16.gmra.mxu0 %v6459
        %v7280 = vpop.f32.mrf.mxu0
        %v7281 = vadd.f32 %v7268, %v7280
        %v7282 = vpop.f32.mrf.mxu0
        %7283 = vdwg.mxu0
        %7284 = vmatpush.bf16.msra.mxu0 %v3573
        %7285 = vmatpush.bf16.msra.mxu0 %v3569
        %7286 = vmatpush.bf16.msra.mxu0 %v3565
        %7287 = vmatpush.bf16.msra.mxu0 %v3561
        %7288 = vmatpush.bf16.msra.mxu0 %v3557
        %7289 = vmatpush.bf16.msra.mxu0 %v3553
        %7290 = vmatpush.bf16.msra.mxu0 %v3549
        %7291 = vmatpush.bf16.msra.mxu0 %v3545
        %7292 = vmatmul.bf16.gmra.mxu0 %v6460
        %v7293 = vpop.f32.mrf.mxu0
        %v7294 = vadd.f32 %v7281, %v7293
        %v7295 = vpop.f32.mrf.mxu0
        %7296 = vdwg.mxu0
        %7297 = vmatpush.bf16.msra.mxu0 %v3605
        %7298 = vmatpush.bf16.msra.mxu0 %v3601
        %7299 = vmatpush.bf16.msra.mxu0 %v3597
        %7300 = vmatpush.bf16.msra.mxu0 %v3593
        %7301 = vmatpush.bf16.msra.mxu0 %v3589
        %7302 = vmatpush.bf16.msra.mxu0 %v3585
        %7303 = vmatpush.bf16.msra.mxu0 %v3581
        %7304 = vmatpush.bf16.msra.mxu0 %v3577
        %7305 = vmatmul.bf16.gmra.mxu0 %v6461
        %v7306 = vpop.f32.mrf.mxu0
        %v7307 = vadd.f32 %v7294, %v7306
        %v7308 = vpop.f32.mrf.mxu0
        %7309 = vdwg.mxu0
        %v7310 = vld [vmem:[%s620] sm:$0xf]
        %v7312 = vperm.slane %v7310, 0
        %v7313 = vperm.slane %v7310, 1
        %v7314 = vperm.slane %v7310, 2
        %v7315 = vperm.slane %v7310, 3
        %v7320 = vmul.f32 %v6683, %v7312
        %v7321 = vmul.f32 %v6891, %v7313
        %v7322 = vmul.f32 %v7099, %v7314
        %v7323 = vmul.f32 %v7307, %v7315
        %v7324 = vld [vmem:[%s630] sm:$0xf]
        %v7326 = vperm.slane %v7324, 0
        %v7327 = vperm.slane %v7324, 1
        %v7328 = vperm.slane %v7324, 2
        %v7329 = vperm.slane %v7324, 3
        %v7334 = vadd.f32 %v7320, %v7326
        %v7335 = vadd.f32 %v7321, %v7327
        %v7336 = vadd.f32 %v7322, %v7328
        %v7337 = vadd.f32 %v7323, %v7329
        %v7338 = vxor.u32 %v7334, 2147483648
        %v7339 = vxor.u32 %v7335, 2147483648
        %v7340 = vxor.u32 %v7336, 2147483648
        %v7341 = vxor.u32 %v7337, 2147483648
        %v7342 = vmul.f32 %v7338, 1.442695
        %v7343 = vpow.pop %v7342
        %v7344 = vmul.f32 %v7339, 1.442695
        %v7345 = vpow.pop %v7344
        %v7346 = vmul.f32 %v7340, 1.442695
        %v7347 = vpow.pop %v7346
        %v7348 = vmul.f32 %v7341, 1.442695
        %v7349 = vpow.pop %v7348
        %v7350 = vadd.f32 %v7343, 1.0
        %v7351 = vadd.f32 %v7345, 1.0
        %v7352 = vadd.f32 %v7347, 1.0
        %v7353 = vadd.f32 %v7349, 1.0
        %v7354 = vrcp.pop %v7350
        %v7355 = vmul.f32 %v7350, %v7354
        %v7356 = vsub.f32 1.0, %v7355
        %v7357 = vmul.f32 %v7354, %v7356
        %v7358 = vadd.f32 %v7354, %v7357
        %vm7359 = vweird.f32 %v7350
        %vm7360 = vweird.f32 %v7354
        %vm7361 = vmor %vm7359, %vm7360
        %v7362 = vsel %vm7361, %v7354, %v7358
        %v7363 = vand.u32 2147483647, %v7350
        %vm7364 = vcmp.eq.f32.partialorder %v7363, 8.507059e+37
        %v7365 = vand.u32 %v7350, 2147483648
        %v7366 = vor.u32 1.1754944e-38, %v7365
        %v7367 = vsel %vm7364, %v7366, %v7362
        %v7368 = vmul.f32 1.0, %v7367
        %v7369 = vrcp.pop %v7351
        %v7370 = vmul.f32 %v7351, %v7369
        %v7371 = vsub.f32 1.0, %v7370
        %v7372 = vmul.f32 %v7369, %v7371
        %v7373 = vadd.f32 %v7369, %v7372
        %vm7374 = vweird.f32 %v7351
        %vm7375 = vweird.f32 %v7369
        %vm7376 = vmor %vm7374, %vm7375
        %v7377 = vsel %vm7376, %v7369, %v7373
        %v7378 = vand.u32 2147483647, %v7351
        %vm7379 = vcmp.eq.f32.partialorder %v7378, 8.507059e+37
        %v7380 = vand.u32 %v7351, 2147483648
        %v7381 = vor.u32 1.1754944e-38, %v7380
        %v7382 = vsel %vm7379, %v7381, %v7377
        %v7383 = vmul.f32 1.0, %v7382
        %v7384 = vrcp.pop %v7352
        %v7385 = vmul.f32 %v7352, %v7384
        %v7386 = vsub.f32 1.0, %v7385
        %v7387 = vmul.f32 %v7384, %v7386
        %v7388 = vadd.f32 %v7384, %v7387
        %vm7389 = vweird.f32 %v7352
        %vm7390 = vweird.f32 %v7384
        %vm7391 = vmor %vm7389, %vm7390
        %v7392 = vsel %vm7391, %v7384, %v7388
        %v7393 = vand.u32 2147483647, %v7352
        %vm7394 = vcmp.eq.f32.partialorder %v7393, 8.507059e+37
        %v7395 = vand.u32 %v7352, 2147483648
        %v7396 = vor.u32 1.1754944e-38, %v7395
        %v7397 = vsel %vm7394, %v7396, %v7392
        %v7398 = vmul.f32 1.0, %v7397
        %v7399 = vrcp.pop %v7353
        %v7400 = vmul.f32 %v7353, %v7399
        %v7401 = vsub.f32 1.0, %v7400
        %v7402 = vmul.f32 %v7399, %v7401
        %v7403 = vadd.f32 %v7399, %v7402
        %vm7404 = vweird.f32 %v7353
        %vm7405 = vweird.f32 %v7399
        %vm7406 = vmor %vm7404, %vm7405
        %v7407 = vsel %vm7406, %v7399, %v7403
        %v7408 = vand.u32 2147483647, %v7353
        %vm7409 = vcmp.eq.f32.partialorder %v7408, 8.507059e+37
        %v7410 = vand.u32 %v7353, 2147483648
        %v7411 = vor.u32 1.1754944e-38, %v7410
        %v7412 = vsel %vm7409, %v7411, %v7407
        %v7413 = vmul.f32 1.0, %v7412
        %v7422 = vunpack.c.l.b16 %v782
        %v7423 = vunpack.c.h.b16 %v782
        %v7424 = vunpack.c.l.b16 %v783
        %v7425 = vunpack.c.h.b16 %v783
        %v7426 = vunpack.c.l.b16 %v784
        %v7427 = vunpack.c.h.b16 %v784
        %v7428 = vunpack.c.l.b16 %v785
        %v7429 = vunpack.c.h.b16 %v785
        %v7430 = vunpack.c.l.b16 %v786
        %v7431 = vunpack.c.h.b16 %v786
        %v7432 = vunpack.c.l.b16 %v787
        %v7433 = vunpack.c.h.b16 %v787
        %v7434 = vunpack.c.l.b16 %v788
        %v7435 = vunpack.c.h.b16 %v788
        %v7436 = vunpack.c.l.b16 %v789
        %v7437 = vunpack.c.h.b16 %v789
        %v7438 = vpack.c.b16 %v7422, %v7422
        %v7439 = vpack.c.b16 %v7423, %v7423
        %v7440 = vpack.c.b16 %v7424, %v7424
        %v7441 = vpack.c.b16 %v7425, %v7425
        %v7442 = vpack.c.b16 %v7426, %v7426
        %v7443 = vpack.c.b16 %v7427, %v7427
        %v7444 = vpack.c.b16 %v7428, %v7428
        %v7445 = vpack.c.b16 %v7429, %v7429
        %v7446 = vpack.c.b16 %v7430, %v7430
        %v7447 = vpack.c.b16 %v7431, %v7431
        %v7448 = vpack.c.b16 %v7432, %v7432
        %v7449 = vpack.c.b16 %v7433, %v7433
        %v7450 = vpack.c.b16 %v7434, %v7434
        %v7451 = vpack.c.b16 %v7435, %v7435
        %v7452 = vpack.c.b16 %v7436, %v7436
        %v7453 = vpack.c.b16 %v7437, %v7437
        %7470 = vmatpush.bf16.msra.mxu0 %v5938
        %7471 = vmatpush.bf16.msra.mxu0 %v5934
        %7472 = vmatpush.bf16.msra.mxu0 %v5930
        %7473 = vmatpush.bf16.msra.mxu0 %v5926
        %7474 = vmatpush.bf16.msra.mxu0 %v5922
        %7475 = vmatpush.bf16.msra.mxu0 %v5918
        %7476 = vmatpush.bf16.msra.mxu0 %v5914
        %7477 = vmatpush.bf16.msra.mxu0 %v5910
        %7478 = vmatmul.bf16.gmra.mxu0 %v7438
        %v7479 = vpop.f32.mrf.mxu0
        %v7480 = vadd.f32 0.0, %v7479
        %v7481 = vpop.f32.mrf.mxu0
        %7482 = vdwg.mxu0
        %7483 = vmatpush.bf16.msra.mxu0 %v5970
        %7484 = vmatpush.bf16.msra.mxu0 %v5966
        %7485 = vmatpush.bf16.msra.mxu0 %v5962
        %7486 = vmatpush.bf16.msra.mxu0 %v5958
        %7487 = vmatpush.bf16.msra.mxu0 %v5954
        %7488 = vmatpush.bf16.msra.mxu0 %v5950
        %7489 = vmatpush.bf16.msra.mxu0 %v5946
        %7490 = vmatpush.bf16.msra.mxu0 %v5942
        %7491 = vmatmul.bf16.gmra.mxu0 %v7439
        %v7492 = vpop.f32.mrf.mxu0
        %v7493 = vadd.f32 %v7480, %v7492
        %v7494 = vpop.f32.mrf.mxu0
        %7495 = vdwg.mxu0
        %7496 = vmatpush.bf16.msra.mxu0 %v6002
        %7497 = vmatpush.bf16.msra.mxu0 %v5998
        %7498 = vmatpush.bf16.msra.mxu0 %v5994
        %7499 = vmatpush.bf16.msra.mxu0 %v5990
        %7500 = vmatpush.bf16.msra.mxu0 %v5986
        %7501 = vmatpush.bf16.msra.mxu0 %v5982
        %7502 = vmatpush.bf16.msra.mxu0 %v5978
        %7503 = vmatpush.bf16.msra.mxu0 %v5974
        %7504 = vmatmul.bf16.gmra.mxu0 %v7440
        %v7505 = vpop.f32.mrf.mxu0
        %v7506 = vadd.f32 %v7493, %v7505
        %v7507 = vpop.f32.mrf.mxu0
        %7508 = vdwg.mxu0
        %7509 = vmatpush.bf16.msra.mxu0 %v6034
        %7510 = vmatpush.bf16.msra.mxu0 %v6030
        %7511 = vmatpush.bf16.msra.mxu0 %v6026
        %7512 = vmatpush.bf16.msra.mxu0 %v6022
        %7513 = vmatpush.bf16.msra.mxu0 %v6018
        %7514 = vmatpush.bf16.msra.mxu0 %v6014
        %7515 = vmatpush.bf16.msra.mxu0 %v6010
        %7516 = vmatpush.bf16.msra.mxu0 %v6006
        %7517 = vmatmul.bf16.gmra.mxu0 %v7441
        %v7518 = vpop.f32.mrf.mxu0
        %v7519 = vadd.f32 %v7506, %v7518
        %v7520 = vpop.f32.mrf.mxu0
        %7521 = vdwg.mxu0
        %7522 = vmatpush.bf16.msra.mxu0 %v6066
        %7523 = vmatpush.bf16.msra.mxu0 %v6062
        %7524 = vmatpush.bf16.msra.mxu0 %v6058
        %7525 = vmatpush.bf16.msra.mxu0 %v6054
        %7526 = vmatpush.bf16.msra.mxu0 %v6050
        %7527 = vmatpush.bf16.msra.mxu0 %v6046
        %7528 = vmatpush.bf16.msra.mxu0 %v6042
        %7529 = vmatpush.bf16.msra.mxu0 %v6038
        %7530 = vmatmul.bf16.gmra.mxu0 %v7442
        %v7531 = vpop.f32.mrf.mxu0
        %v7532 = vadd.f32 %v7519, %v7531
        %v7533 = vpop.f32.mrf.mxu0
        %7534 = vdwg.mxu0
        %7535 = vmatpush.bf16.msra.mxu0 %v6098
        %7536 = vmatpush.bf16.msra.mxu0 %v6094
        %7537 = vmatpush.bf16.msra.mxu0 %v6090
        %7538 = vmatpush.bf16.msra.mxu0 %v6086
        %7539 = vmatpush.bf16.msra.mxu0 %v6082
        %7540 = vmatpush.bf16.msra.mxu0 %v6078
        %7541 = vmatpush.bf16.msra.mxu0 %v6074
        %7542 = vmatpush.bf16.msra.mxu0 %v6070
        %7543 = vmatmul.bf16.gmra.mxu0 %v7443
        %v7544 = vpop.f32.mrf.mxu0
        %v7545 = vadd.f32 %v7532, %v7544
        %v7546 = vpop.f32.mrf.mxu0
        %7547 = vdwg.mxu0
        %7548 = vmatpush.bf16.msra.mxu0 %v6130
        %7549 = vmatpush.bf16.msra.mxu0 %v6126
        %7550 = vmatpush.bf16.msra.mxu0 %v6122
        %7551 = vmatpush.bf16.msra.mxu0 %v6118
        %7552 = vmatpush.bf16.msra.mxu0 %v6114
        %7553 = vmatpush.bf16.msra.mxu0 %v6110
        %7554 = vmatpush.bf16.msra.mxu0 %v6106
        %7555 = vmatpush.bf16.msra.mxu0 %v6102
        %7556 = vmatmul.bf16.gmra.mxu0 %v7444
        %v7557 = vpop.f32.mrf.mxu0
        %v7558 = vadd.f32 %v7545, %v7557
        %v7559 = vpop.f32.mrf.mxu0
        %7560 = vdwg.mxu0
        %7561 = vmatpush.bf16.msra.mxu0 %v6162
        %7562 = vmatpush.bf16.msra.mxu0 %v6158
        %7563 = vmatpush.bf16.msra.mxu0 %v6154
        %7564 = vmatpush.bf16.msra.mxu0 %v6150
        %7565 = vmatpush.bf16.msra.mxu0 %v6146
        %7566 = vmatpush.bf16.msra.mxu0 %v6142
        %7567 = vmatpush.bf16.msra.mxu0 %v6138
        %7568 = vmatpush.bf16.msra.mxu0 %v6134
        %7569 = vmatmul.bf16.gmra.mxu0 %v7445
        %v7570 = vpop.f32.mrf.mxu0
        %v7571 = vadd.f32 %v7558, %v7570
        %v7572 = vpop.f32.mrf.mxu0
        %7573 = vdwg.mxu0
        %7574 = vmatpush.bf16.msra.mxu0 %v6194
        %7575 = vmatpush.bf16.msra.mxu0 %v6190
        %7576 = vmatpush.bf16.msra.mxu0 %v6186
        %7577 = vmatpush.bf16.msra.mxu0 %v6182
        %7578 = vmatpush.bf16.msra.mxu0 %v6178
        %7579 = vmatpush.bf16.msra.mxu0 %v6174
        %7580 = vmatpush.bf16.msra.mxu0 %v6170
        %7581 = vmatpush.bf16.msra.mxu0 %v6166
        %7582 = vmatmul.bf16.gmra.mxu0 %v7446
        %v7583 = vpop.f32.mrf.mxu0
        %v7584 = vadd.f32 %v7571, %v7583
        %v7585 = vpop.f32.mrf.mxu0
        %7586 = vdwg.mxu0
        %7587 = vmatpush.bf16.msra.mxu0 %v6226
        %7588 = vmatpush.bf16.msra.mxu0 %v6222
        %7589 = vmatpush.bf16.msra.mxu0 %v6218
        %7590 = vmatpush.bf16.msra.mxu0 %v6214
        %7591 = vmatpush.bf16.msra.mxu0 %v6210
        %7592 = vmatpush.bf16.msra.mxu0 %v6206
        %7593 = vmatpush.bf16.msra.mxu0 %v6202
        %7594 = vmatpush.bf16.msra.mxu0 %v6198
        %7595 = vmatmul.bf16.gmra.mxu0 %v7447
        %v7596 = vpop.f32.mrf.mxu0
        %v7597 = vadd.f32 %v7584, %v7596
        %v7598 = vpop.f32.mrf.mxu0
        %7599 = vdwg.mxu0
        %7600 = vmatpush.bf16.msra.mxu0 %v6258
        %7601 = vmatpush.bf16.msra.mxu0 %v6254
        %7602 = vmatpush.bf16.msra.mxu0 %v6250
        %7603 = vmatpush.bf16.msra.mxu0 %v6246
        %7604 = vmatpush.bf16.msra.mxu0 %v6242
        %7605 = vmatpush.bf16.msra.mxu0 %v6238
        %7606 = vmatpush.bf16.msra.mxu0 %v6234
        %7607 = vmatpush.bf16.msra.mxu0 %v6230
        %7608 = vmatmul.bf16.gmra.mxu0 %v7448
        %v7609 = vpop.f32.mrf.mxu0
        %v7610 = vadd.f32 %v7597, %v7609
        %v7611 = vpop.f32.mrf.mxu0
        %7612 = vdwg.mxu0
        %7613 = vmatpush.bf16.msra.mxu0 %v6290
        %7614 = vmatpush.bf16.msra.mxu0 %v6286
        %7615 = vmatpush.bf16.msra.mxu0 %v6282
        %7616 = vmatpush.bf16.msra.mxu0 %v6278
        %7617 = vmatpush.bf16.msra.mxu0 %v6274
        %7618 = vmatpush.bf16.msra.mxu0 %v6270
        %7619 = vmatpush.bf16.msra.mxu0 %v6266
        %7620 = vmatpush.bf16.msra.mxu0 %v6262
        %7621 = vmatmul.bf16.gmra.mxu0 %v7449
        %v7622 = vpop.f32.mrf.mxu0
        %v7623 = vadd.f32 %v7610, %v7622
        %v7624 = vpop.f32.mrf.mxu0
        %7625 = vdwg.mxu0
        %7626 = vmatpush.bf16.msra.mxu0 %v6322
        %7627 = vmatpush.bf16.msra.mxu0 %v6318
        %7628 = vmatpush.bf16.msra.mxu0 %v6314
        %7629 = vmatpush.bf16.msra.mxu0 %v6310
        %7630 = vmatpush.bf16.msra.mxu0 %v6306
        %7631 = vmatpush.bf16.msra.mxu0 %v6302
        %7632 = vmatpush.bf16.msra.mxu0 %v6298
        %7633 = vmatpush.bf16.msra.mxu0 %v6294
        %7634 = vmatmul.bf16.gmra.mxu0 %v7450
        %v7635 = vpop.f32.mrf.mxu0
        %v7636 = vadd.f32 %v7623, %v7635
        %v7637 = vpop.f32.mrf.mxu0
        %7638 = vdwg.mxu0
        %7639 = vmatpush.bf16.msra.mxu0 %v6354
        %7640 = vmatpush.bf16.msra.mxu0 %v6350
        %7641 = vmatpush.bf16.msra.mxu0 %v6346
        %7642 = vmatpush.bf16.msra.mxu0 %v6342
        %7643 = vmatpush.bf16.msra.mxu0 %v6338
        %7644 = vmatpush.bf16.msra.mxu0 %v6334
        %7645 = vmatpush.bf16.msra.mxu0 %v6330
        %7646 = vmatpush.bf16.msra.mxu0 %v6326
        %7647 = vmatmul.bf16.gmra.mxu0 %v7451
        %v7648 = vpop.f32.mrf.mxu0
        %v7649 = vadd.f32 %v7636, %v7648
        %v7650 = vpop.f32.mrf.mxu0
        %7651 = vdwg.mxu0
        %7652 = vmatpush.bf16.msra.mxu0 %v6386
        %7653 = vmatpush.bf16.msra.mxu0 %v6382
        %7654 = vmatpush.bf16.msra.mxu0 %v6378
        %7655 = vmatpush.bf16.msra.mxu0 %v6374
        %7656 = vmatpush.bf16.msra.mxu0 %v6370
        %7657 = vmatpush.bf16.msra.mxu0 %v6366
        %7658 = vmatpush.bf16.msra.mxu0 %v6362
        %7659 = vmatpush.bf16.msra.mxu0 %v6358
        %7660 = vmatmul.bf16.gmra.mxu0 %v7452
        %v7661 = vpop.f32.mrf.mxu0
        %v7662 = vadd.f32 %v7649, %v7661
        %v7663 = vpop.f32.mrf.mxu0
        %7664 = vdwg.mxu0
        %7665 = vmatpush.bf16.msra.mxu0 %v6418
        %7666 = vmatpush.bf16.msra.mxu0 %v6414
        %7667 = vmatpush.bf16.msra.mxu0 %v6410
        %7668 = vmatpush.bf16.msra.mxu0 %v6406
        %7669 = vmatpush.bf16.msra.mxu0 %v6402
        %7670 = vmatpush.bf16.msra.mxu0 %v6398
        %7671 = vmatpush.bf16.msra.mxu0 %v6394
        %7672 = vmatpush.bf16.msra.mxu0 %v6390
        %7673 = vmatmul.bf16.gmra.mxu0 %v7453
        %v7674 = vpop.f32.mrf.mxu0
        %v7675 = vadd.f32 %v7662, %v7674
        %v7676 = vpop.f32.mrf.mxu0
        %7677 = vdwg.mxu0
        %7678 = vmatpush.bf16.msra.mxu0 %v5939
        %7679 = vmatpush.bf16.msra.mxu0 %v5935
        %7680 = vmatpush.bf16.msra.mxu0 %v5931
        %7681 = vmatpush.bf16.msra.mxu0 %v5927
        %7682 = vmatpush.bf16.msra.mxu0 %v5923
        %7683 = vmatpush.bf16.msra.mxu0 %v5919
        %7684 = vmatpush.bf16.msra.mxu0 %v5915
        %7685 = vmatpush.bf16.msra.mxu0 %v5911
        %7686 = vmatmul.bf16.gmra.mxu0 %v7438
        %v7687 = vpop.f32.mrf.mxu0
        %v7688 = vadd.f32 0.0, %v7687
        %v7689 = vpop.f32.mrf.mxu0
        %7690 = vdwg.mxu0
        %7691 = vmatpush.bf16.msra.mxu0 %v5971
        %7692 = vmatpush.bf16.msra.mxu0 %v5967
        %7693 = vmatpush.bf16.msra.mxu0 %v5963
        %7694 = vmatpush.bf16.msra.mxu0 %v5959
        %7695 = vmatpush.bf16.msra.mxu0 %v5955
        %7696 = vmatpush.bf16.msra.mxu0 %v5951
        %7697 = vmatpush.bf16.msra.mxu0 %v5947
        %7698 = vmatpush.bf16.msra.mxu0 %v5943
        %7699 = vmatmul.bf16.gmra.mxu0 %v7439
        %v7700 = vpop.f32.mrf.mxu0
        %v7701 = vadd.f32 %v7688, %v7700
        %v7702 = vpop.f32.mrf.mxu0
        %7703 = vdwg.mxu0
        %7704 = vmatpush.bf16.msra.mxu0 %v6003
        %7705 = vmatpush.bf16.msra.mxu0 %v5999
        %7706 = vmatpush.bf16.msra.mxu0 %v5995
        %7707 = vmatpush.bf16.msra.mxu0 %v5991
        %7708 = vmatpush.bf16.msra.mxu0 %v5987
        %7709 = vmatpush.bf16.msra.mxu0 %v5983
        %7710 = vmatpush.bf16.msra.mxu0 %v5979
        %7711 = vmatpush.bf16.msra.mxu0 %v5975
        %7712 = vmatmul.bf16.gmra.mxu0 %v7440
        %v7713 = vpop.f32.mrf.mxu0
        %v7714 = vadd.f32 %v7701, %v7713
        %v7715 = vpop.f32.mrf.mxu0
        %7716 = vdwg.mxu0
        %7717 = vmatpush.bf16.msra.mxu0 %v6035
        %7718 = vmatpush.bf16.msra.mxu0 %v6031
        %7719 = vmatpush.bf16.msra.mxu0 %v6027
        %7720 = vmatpush.bf16.msra.mxu0 %v6023
        %7721 = vmatpush.bf16.msra.mxu0 %v6019
        %7722 = vmatpush.bf16.msra.mxu0 %v6015
        %7723 = vmatpush.bf16.msra.mxu0 %v6011
        %7724 = vmatpush.bf16.msra.mxu0 %v6007
        %7725 = vmatmul.bf16.gmra.mxu0 %v7441
        %v7726 = vpop.f32.mrf.mxu0
        %v7727 = vadd.f32 %v7714, %v7726
        %v7728 = vpop.f32.mrf.mxu0
        %7729 = vdwg.mxu0
        %7730 = vmatpush.bf16.msra.mxu0 %v6067
        %7731 = vmatpush.bf16.msra.mxu0 %v6063
        %7732 = vmatpush.bf16.msra.mxu0 %v6059
        %7733 = vmatpush.bf16.msra.mxu0 %v6055
        %7734 = vmatpush.bf16.msra.mxu0 %v6051
        %7735 = vmatpush.bf16.msra.mxu0 %v6047
        %7736 = vmatpush.bf16.msra.mxu0 %v6043
        %7737 = vmatpush.bf16.msra.mxu0 %v6039
        %7738 = vmatmul.bf16.gmra.mxu0 %v7442
        %v7739 = vpop.f32.mrf.mxu0
        %v7740 = vadd.f32 %v7727, %v7739
        %v7741 = vpop.f32.mrf.mxu0
        %7742 = vdwg.mxu0
        %7743 = vmatpush.bf16.msra.mxu0 %v6099
        %7744 = vmatpush.bf16.msra.mxu0 %v6095
        %7745 = vmatpush.bf16.msra.mxu0 %v6091
        %7746 = vmatpush.bf16.msra.mxu0 %v6087
        %7747 = vmatpush.bf16.msra.mxu0 %v6083
        %7748 = vmatpush.bf16.msra.mxu0 %v6079
        %7749 = vmatpush.bf16.msra.mxu0 %v6075
        %7750 = vmatpush.bf16.msra.mxu0 %v6071
        %7751 = vmatmul.bf16.gmra.mxu0 %v7443
        %v7752 = vpop.f32.mrf.mxu0
        %v7753 = vadd.f32 %v7740, %v7752
        %v7754 = vpop.f32.mrf.mxu0
        %7755 = vdwg.mxu0
        %7756 = vmatpush.bf16.msra.mxu0 %v6131
        %7757 = vmatpush.bf16.msra.mxu0 %v6127
        %7758 = vmatpush.bf16.msra.mxu0 %v6123
        %7759 = vmatpush.bf16.msra.mxu0 %v6119
        %7760 = vmatpush.bf16.msra.mxu0 %v6115
        %7761 = vmatpush.bf16.msra.mxu0 %v6111
        %7762 = vmatpush.bf16.msra.mxu0 %v6107
        %7763 = vmatpush.bf16.msra.mxu0 %v6103
        %7764 = vmatmul.bf16.gmra.mxu0 %v7444
        %v7765 = vpop.f32.mrf.mxu0
        %v7766 = vadd.f32 %v7753, %v7765
        %v7767 = vpop.f32.mrf.mxu0
        %7768 = vdwg.mxu0
        %7769 = vmatpush.bf16.msra.mxu0 %v6163
        %7770 = vmatpush.bf16.msra.mxu0 %v6159
        %7771 = vmatpush.bf16.msra.mxu0 %v6155
        %7772 = vmatpush.bf16.msra.mxu0 %v6151
        %7773 = vmatpush.bf16.msra.mxu0 %v6147
        %7774 = vmatpush.bf16.msra.mxu0 %v6143
        %7775 = vmatpush.bf16.msra.mxu0 %v6139
        %7776 = vmatpush.bf16.msra.mxu0 %v6135
        %7777 = vmatmul.bf16.gmra.mxu0 %v7445
        %v7778 = vpop.f32.mrf.mxu0
        %v7779 = vadd.f32 %v7766, %v7778
        %v7780 = vpop.f32.mrf.mxu0
        %7781 = vdwg.mxu0
        %7782 = vmatpush.bf16.msra.mxu0 %v6195
        %7783 = vmatpush.bf16.msra.mxu0 %v6191
        %7784 = vmatpush.bf16.msra.mxu0 %v6187
        %7785 = vmatpush.bf16.msra.mxu0 %v6183
        %7786 = vmatpush.bf16.msra.mxu0 %v6179
        %7787 = vmatpush.bf16.msra.mxu0 %v6175
        %7788 = vmatpush.bf16.msra.mxu0 %v6171
        %7789 = vmatpush.bf16.msra.mxu0 %v6167
        %7790 = vmatmul.bf16.gmra.mxu0 %v7446
        %v7791 = vpop.f32.mrf.mxu0
        %v7792 = vadd.f32 %v7779, %v7791
        %v7793 = vpop.f32.mrf.mxu0
        %7794 = vdwg.mxu0
        %7795 = vmatpush.bf16.msra.mxu0 %v6227
        %7796 = vmatpush.bf16.msra.mxu0 %v6223
        %7797 = vmatpush.bf16.msra.mxu0 %v6219
        %7798 = vmatpush.bf16.msra.mxu0 %v6215
        %7799 = vmatpush.bf16.msra.mxu0 %v6211
        %7800 = vmatpush.bf16.msra.mxu0 %v6207
        %7801 = vmatpush.bf16.msra.mxu0 %v6203
        %7802 = vmatpush.bf16.msra.mxu0 %v6199
        %7803 = vmatmul.bf16.gmra.mxu0 %v7447
        %v7804 = vpop.f32.mrf.mxu0
        %v7805 = vadd.f32 %v7792, %v7804
        %v7806 = vpop.f32.mrf.mxu0
        %7807 = vdwg.mxu0
        %7808 = vmatpush.bf16.msra.mxu0 %v6259
        %7809 = vmatpush.bf16.msra.mxu0 %v6255
        %7810 = vmatpush.bf16.msra.mxu0 %v6251
        %7811 = vmatpush.bf16.msra.mxu0 %v6247
        %7812 = vmatpush.bf16.msra.mxu0 %v6243
        %7813 = vmatpush.bf16.msra.mxu0 %v6239
        %7814 = vmatpush.bf16.msra.mxu0 %v6235
        %7815 = vmatpush.bf16.msra.mxu0 %v6231
        %7816 = vmatmul.bf16.gmra.mxu0 %v7448
        %v7817 = vpop.f32.mrf.mxu0
        %v7818 = vadd.f32 %v7805, %v7817
        %v7819 = vpop.f32.mrf.mxu0
        %7820 = vdwg.mxu0
        %7821 = vmatpush.bf16.msra.mxu0 %v6291
        %7822 = vmatpush.bf16.msra.mxu0 %v6287
        %7823 = vmatpush.bf16.msra.mxu0 %v6283
        %7824 = vmatpush.bf16.msra.mxu0 %v6279
        %7825 = vmatpush.bf16.msra.mxu0 %v6275
        %7826 = vmatpush.bf16.msra.mxu0 %v6271
        %7827 = vmatpush.bf16.msra.mxu0 %v6267
        %7828 = vmatpush.bf16.msra.mxu0 %v6263
        %7829 = vmatmul.bf16.gmra.mxu0 %v7449
        %v7830 = vpop.f32.mrf.mxu0
        %v7831 = vadd.f32 %v7818, %v7830
        %v7832 = vpop.f32.mrf.mxu0
        %7833 = vdwg.mxu0
        %7834 = vmatpush.bf16.msra.mxu0 %v6323
        %7835 = vmatpush.bf16.msra.mxu0 %v6319
        %7836 = vmatpush.bf16.msra.mxu0 %v6315
        %7837 = vmatpush.bf16.msra.mxu0 %v6311
        %7838 = vmatpush.bf16.msra.mxu0 %v6307
        %7839 = vmatpush.bf16.msra.mxu0 %v6303
        %7840 = vmatpush.bf16.msra.mxu0 %v6299
        %7841 = vmatpush.bf16.msra.mxu0 %v6295
        %7842 = vmatmul.bf16.gmra.mxu0 %v7450
        %v7843 = vpop.f32.mrf.mxu0
        %v7844 = vadd.f32 %v7831, %v7843
        %v7845 = vpop.f32.mrf.mxu0
        %7846 = vdwg.mxu0
        %7847 = vmatpush.bf16.msra.mxu0 %v6355
        %7848 = vmatpush.bf16.msra.mxu0 %v6351
        %7849 = vmatpush.bf16.msra.mxu0 %v6347
        %7850 = vmatpush.bf16.msra.mxu0 %v6343
        %7851 = vmatpush.bf16.msra.mxu0 %v6339
        %7852 = vmatpush.bf16.msra.mxu0 %v6335
        %7853 = vmatpush.bf16.msra.mxu0 %v6331
        %7854 = vmatpush.bf16.msra.mxu0 %v6327
        %7855 = vmatmul.bf16.gmra.mxu0 %v7451
        %v7856 = vpop.f32.mrf.mxu0
        %v7857 = vadd.f32 %v7844, %v7856
        %v7858 = vpop.f32.mrf.mxu0
        %7859 = vdwg.mxu0
        %7860 = vmatpush.bf16.msra.mxu0 %v6387
        %7861 = vmatpush.bf16.msra.mxu0 %v6383
        %7862 = vmatpush.bf16.msra.mxu0 %v6379
        %7863 = vmatpush.bf16.msra.mxu0 %v6375
        %7864 = vmatpush.bf16.msra.mxu0 %v6371
        %7865 = vmatpush.bf16.msra.mxu0 %v6367
        %7866 = vmatpush.bf16.msra.mxu0 %v6363
        %7867 = vmatpush.bf16.msra.mxu0 %v6359
        %7868 = vmatmul.bf16.gmra.mxu0 %v7452
        %v7869 = vpop.f32.mrf.mxu0
        %v7870 = vadd.f32 %v7857, %v7869
        %v7871 = vpop.f32.mrf.mxu0
        %7872 = vdwg.mxu0
        %7873 = vmatpush.bf16.msra.mxu0 %v6419
        %7874 = vmatpush.bf16.msra.mxu0 %v6415
        %7875 = vmatpush.bf16.msra.mxu0 %v6411
        %7876 = vmatpush.bf16.msra.mxu0 %v6407
        %7877 = vmatpush.bf16.msra.mxu0 %v6403
        %7878 = vmatpush.bf16.msra.mxu0 %v6399
        %7879 = vmatpush.bf16.msra.mxu0 %v6395
        %7880 = vmatpush.bf16.msra.mxu0 %v6391
        %7881 = vmatmul.bf16.gmra.mxu0 %v7453
        %v7882 = vpop.f32.mrf.mxu0
        %v7883 = vadd.f32 %v7870, %v7882
        %v7884 = vpop.f32.mrf.mxu0
        %7885 = vdwg.mxu0
        %7886 = vmatpush.bf16.msra.mxu0 %v5940
        %7887 = vmatpush.bf16.msra.mxu0 %v5936
        %7888 = vmatpush.bf16.msra.mxu0 %v5932
        %7889 = vmatpush.bf16.msra.mxu0 %v5928
        %7890 = vmatpush.bf16.msra.mxu0 %v5924
        %7891 = vmatpush.bf16.msra.mxu0 %v5920
        %7892 = vmatpush.bf16.msra.mxu0 %v5916
        %7893 = vmatpush.bf16.msra.mxu0 %v5912
        %7894 = vmatmul.bf16.gmra.mxu0 %v7438
        %v7895 = vpop.f32.mrf.mxu0
        %v7896 = vadd.f32 0.0, %v7895
        %v7897 = vpop.f32.mrf.mxu0
        %7898 = vdwg.mxu0
        %7899 = vmatpush.bf16.msra.mxu0 %v5972
        %7900 = vmatpush.bf16.msra.mxu0 %v5968
        %7901 = vmatpush.bf16.msra.mxu0 %v5964
        %7902 = vmatpush.bf16.msra.mxu0 %v5960
        %7903 = vmatpush.bf16.msra.mxu0 %v5956
        %7904 = vmatpush.bf16.msra.mxu0 %v5952
        %7905 = vmatpush.bf16.msra.mxu0 %v5948
        %7906 = vmatpush.bf16.msra.mxu0 %v5944
        %7907 = vmatmul.bf16.gmra.mxu0 %v7439
        %v7908 = vpop.f32.mrf.mxu0
        %v7909 = vadd.f32 %v7896, %v7908
        %v7910 = vpop.f32.mrf.mxu0
        %7911 = vdwg.mxu0
        %7912 = vmatpush.bf16.msra.mxu0 %v6004
        %7913 = vmatpush.bf16.msra.mxu0 %v6000
        %7914 = vmatpush.bf16.msra.mxu0 %v5996
        %7915 = vmatpush.bf16.msra.mxu0 %v5992
        %7916 = vmatpush.bf16.msra.mxu0 %v5988
        %7917 = vmatpush.bf16.msra.mxu0 %v5984
        %7918 = vmatpush.bf16.msra.mxu0 %v5980
        %7919 = vmatpush.bf16.msra.mxu0 %v5976
        %7920 = vmatmul.bf16.gmra.mxu0 %v7440
        %v7921 = vpop.f32.mrf.mxu0
        %v7922 = vadd.f32 %v7909, %v7921
        %v7923 = vpop.f32.mrf.mxu0
        %7924 = vdwg.mxu0
        %7925 = vmatpush.bf16.msra.mxu0 %v6036
        %7926 = vmatpush.bf16.msra.mxu0 %v6032
        %7927 = vmatpush.bf16.msra.mxu0 %v6028
        %7928 = vmatpush.bf16.msra.mxu0 %v6024
        %7929 = vmatpush.bf16.msra.mxu0 %v6020
        %7930 = vmatpush.bf16.msra.mxu0 %v6016
        %7931 = vmatpush.bf16.msra.mxu0 %v6012
        %7932 = vmatpush.bf16.msra.mxu0 %v6008
        %7933 = vmatmul.bf16.gmra.mxu0 %v7441
        %v7934 = vpop.f32.mrf.mxu0
        %v7935 = vadd.f32 %v7922, %v7934
        %v7936 = vpop.f32.mrf.mxu0
        %7937 = vdwg.mxu0
        %7938 = vmatpush.bf16.msra.mxu0 %v6068
        %7939 = vmatpush.bf16.msra.mxu0 %v6064
        %7940 = vmatpush.bf16.msra.mxu0 %v6060
        %7941 = vmatpush.bf16.msra.mxu0 %v6056
        %7942 = vmatpush.bf16.msra.mxu0 %v6052
        %7943 = vmatpush.bf16.msra.mxu0 %v6048
        %7944 = vmatpush.bf16.msra.mxu0 %v6044
        %7945 = vmatpush.bf16.msra.mxu0 %v6040
        %7946 = vmatmul.bf16.gmra.mxu0 %v7442
        %v7947 = vpop.f32.mrf.mxu0
        %v7948 = vadd.f32 %v7935, %v7947
        %v7949 = vpop.f32.mrf.mxu0
        %7950 = vdwg.mxu0
        %7951 = vmatpush.bf16.msra.mxu0 %v6100
        %7952 = vmatpush.bf16.msra.mxu0 %v6096
        %7953 = vmatpush.bf16.msra.mxu0 %v6092
        %7954 = vmatpush.bf16.msra.mxu0 %v6088
        %7955 = vmatpush.bf16.msra.mxu0 %v6084
        %7956 = vmatpush.bf16.msra.mxu0 %v6080
        %7957 = vmatpush.bf16.msra.mxu0 %v6076
        %7958 = vmatpush.bf16.msra.mxu0 %v6072
        %7959 = vmatmul.bf16.gmra.mxu0 %v7443
        %v7960 = vpop.f32.mrf.mxu0
        %v7961 = vadd.f32 %v7948, %v7960
        %v7962 = vpop.f32.mrf.mxu0
        %7963 = vdwg.mxu0
        %7964 = vmatpush.bf16.msra.mxu0 %v6132
        %7965 = vmatpush.bf16.msra.mxu0 %v6128
        %7966 = vmatpush.bf16.msra.mxu0 %v6124
        %7967 = vmatpush.bf16.msra.mxu0 %v6120
        %7968 = vmatpush.bf16.msra.mxu0 %v6116
        %7969 = vmatpush.bf16.msra.mxu0 %v6112
        %7970 = vmatpush.bf16.msra.mxu0 %v6108
        %7971 = vmatpush.bf16.msra.mxu0 %v6104
        %7972 = vmatmul.bf16.gmra.mxu0 %v7444
        %v7973 = vpop.f32.mrf.mxu0
        %v7974 = vadd.f32 %v7961, %v7973
        %v7975 = vpop.f32.mrf.mxu0
        %7976 = vdwg.mxu0
        %7977 = vmatpush.bf16.msra.mxu0 %v6164
        %7978 = vmatpush.bf16.msra.mxu0 %v6160
        %7979 = vmatpush.bf16.msra.mxu0 %v6156
        %7980 = vmatpush.bf16.msra.mxu0 %v6152
        %7981 = vmatpush.bf16.msra.mxu0 %v6148
        %7982 = vmatpush.bf16.msra.mxu0 %v6144
        %7983 = vmatpush.bf16.msra.mxu0 %v6140
        %7984 = vmatpush.bf16.msra.mxu0 %v6136
        %7985 = vmatmul.bf16.gmra.mxu0 %v7445
        %v7986 = vpop.f32.mrf.mxu0
        %v7987 = vadd.f32 %v7974, %v7986
        %v7988 = vpop.f32.mrf.mxu0
        %7989 = vdwg.mxu0
        %7990 = vmatpush.bf16.msra.mxu0 %v6196
        %7991 = vmatpush.bf16.msra.mxu0 %v6192
        %7992 = vmatpush.bf16.msra.mxu0 %v6188
        %7993 = vmatpush.bf16.msra.mxu0 %v6184
        %7994 = vmatpush.bf16.msra.mxu0 %v6180
        %7995 = vmatpush.bf16.msra.mxu0 %v6176
        %7996 = vmatpush.bf16.msra.mxu0 %v6172
        %7997 = vmatpush.bf16.msra.mxu0 %v6168
        %7998 = vmatmul.bf16.gmra.mxu0 %v7446
        %v7999 = vpop.f32.mrf.mxu0
        %v8000 = vadd.f32 %v7987, %v7999
        %v8001 = vpop.f32.mrf.mxu0
        %8002 = vdwg.mxu0
        %8003 = vmatpush.bf16.msra.mxu0 %v6228
        %8004 = vmatpush.bf16.msra.mxu0 %v6224
        %8005 = vmatpush.bf16.msra.mxu0 %v6220
        %8006 = vmatpush.bf16.msra.mxu0 %v6216
        %8007 = vmatpush.bf16.msra.mxu0 %v6212
        %8008 = vmatpush.bf16.msra.mxu0 %v6208
        %8009 = vmatpush.bf16.msra.mxu0 %v6204
        %8010 = vmatpush.bf16.msra.mxu0 %v6200
        %8011 = vmatmul.bf16.gmra.mxu0 %v7447
        %v8012 = vpop.f32.mrf.mxu0
        %v8013 = vadd.f32 %v8000, %v8012
        %v8014 = vpop.f32.mrf.mxu0
        %8015 = vdwg.mxu0
        %8016 = vmatpush.bf16.msra.mxu0 %v6260
        %8017 = vmatpush.bf16.msra.mxu0 %v6256
        %8018 = vmatpush.bf16.msra.mxu0 %v6252
        %8019 = vmatpush.bf16.msra.mxu0 %v6248
        %8020 = vmatpush.bf16.msra.mxu0 %v6244
        %8021 = vmatpush.bf16.msra.mxu0 %v6240
        %8022 = vmatpush.bf16.msra.mxu0 %v6236
        %8023 = vmatpush.bf16.msra.mxu0 %v6232
        %8024 = vmatmul.bf16.gmra.mxu0 %v7448
        %v8025 = vpop.f32.mrf.mxu0
        %v8026 = vadd.f32 %v8013, %v8025
        %v8027 = vpop.f32.mrf.mxu0
        %8028 = vdwg.mxu0
        %8029 = vmatpush.bf16.msra.mxu0 %v6292
        %8030 = vmatpush.bf16.msra.mxu0 %v6288
        %8031 = vmatpush.bf16.msra.mxu0 %v6284
        %8032 = vmatpush.bf16.msra.mxu0 %v6280
        %8033 = vmatpush.bf16.msra.mxu0 %v6276
        %8034 = vmatpush.bf16.msra.mxu0 %v6272
        %8035 = vmatpush.bf16.msra.mxu0 %v6268
        %8036 = vmatpush.bf16.msra.mxu0 %v6264
        %8037 = vmatmul.bf16.gmra.mxu0 %v7449
        %v8038 = vpop.f32.mrf.mxu0
        %v8039 = vadd.f32 %v8026, %v8038
        %v8040 = vpop.f32.mrf.mxu0
        %8041 = vdwg.mxu0
        %8042 = vmatpush.bf16.msra.mxu0 %v6324
        %8043 = vmatpush.bf16.msra.mxu0 %v6320
        %8044 = vmatpush.bf16.msra.mxu0 %v6316
        %8045 = vmatpush.bf16.msra.mxu0 %v6312
        %8046 = vmatpush.bf16.msra.mxu0 %v6308
        %8047 = vmatpush.bf16.msra.mxu0 %v6304
        %8048 = vmatpush.bf16.msra.mxu0 %v6300
        %8049 = vmatpush.bf16.msra.mxu0 %v6296
        %8050 = vmatmul.bf16.gmra.mxu0 %v7450
        %v8051 = vpop.f32.mrf.mxu0
        %v8052 = vadd.f32 %v8039, %v8051
        %v8053 = vpop.f32.mrf.mxu0
        %8054 = vdwg.mxu0
        %8055 = vmatpush.bf16.msra.mxu0 %v6356
        %8056 = vmatpush.bf16.msra.mxu0 %v6352
        %8057 = vmatpush.bf16.msra.mxu0 %v6348
        %8058 = vmatpush.bf16.msra.mxu0 %v6344
        %8059 = vmatpush.bf16.msra.mxu0 %v6340
        %8060 = vmatpush.bf16.msra.mxu0 %v6336
        %8061 = vmatpush.bf16.msra.mxu0 %v6332
        %8062 = vmatpush.bf16.msra.mxu0 %v6328
        %8063 = vmatmul.bf16.gmra.mxu0 %v7451
        %v8064 = vpop.f32.mrf.mxu0
        %v8065 = vadd.f32 %v8052, %v8064
        %v8066 = vpop.f32.mrf.mxu0
        %8067 = vdwg.mxu0
        %8068 = vmatpush.bf16.msra.mxu0 %v6388
        %8069 = vmatpush.bf16.msra.mxu0 %v6384
        %8070 = vmatpush.bf16.msra.mxu0 %v6380
        %8071 = vmatpush.bf16.msra.mxu0 %v6376
        %8072 = vmatpush.bf16.msra.mxu0 %v6372
        %8073 = vmatpush.bf16.msra.mxu0 %v6368
        %8074 = vmatpush.bf16.msra.mxu0 %v6364
        %8075 = vmatpush.bf16.msra.mxu0 %v6360
        %8076 = vmatmul.bf16.gmra.mxu0 %v7452
        %v8077 = vpop.f32.mrf.mxu0
        %v8078 = vadd.f32 %v8065, %v8077
        %v8079 = vpop.f32.mrf.mxu0
        %8080 = vdwg.mxu0
        %8081 = vmatpush.bf16.msra.mxu0 %v6420
        %8082 = vmatpush.bf16.msra.mxu0 %v6416
        %8083 = vmatpush.bf16.msra.mxu0 %v6412
        %8084 = vmatpush.bf16.msra.mxu0 %v6408
        %8085 = vmatpush.bf16.msra.mxu0 %v6404
        %8086 = vmatpush.bf16.msra.mxu0 %v6400
        %8087 = vmatpush.bf16.msra.mxu0 %v6396
        %8088 = vmatpush.bf16.msra.mxu0 %v6392
        %8089 = vmatmul.bf16.gmra.mxu0 %v7453
        %v8090 = vpop.f32.mrf.mxu0
        %v8091 = vadd.f32 %v8078, %v8090
        %v8092 = vpop.f32.mrf.mxu0
        %8093 = vdwg.mxu0
        %8094 = vmatpush.bf16.msra.mxu0 %v5941
        %8095 = vmatpush.bf16.msra.mxu0 %v5937
        %8096 = vmatpush.bf16.msra.mxu0 %v5933
        %8097 = vmatpush.bf16.msra.mxu0 %v5929
        %8098 = vmatpush.bf16.msra.mxu0 %v5925
        %8099 = vmatpush.bf16.msra.mxu0 %v5921
        %8100 = vmatpush.bf16.msra.mxu0 %v5917
        %8101 = vmatpush.bf16.msra.mxu0 %v5913
        %8102 = vmatmul.bf16.gmra.mxu0 %v7438
        %v8103 = vpop.f32.mrf.mxu0
        %v8104 = vadd.f32 0.0, %v8103
        %v8105 = vpop.f32.mrf.mxu0
        %8106 = vdwg.mxu0
        %8107 = vmatpush.bf16.msra.mxu0 %v5973
        %8108 = vmatpush.bf16.msra.mxu0 %v5969
        %8109 = vmatpush.bf16.msra.mxu0 %v5965
        %8110 = vmatpush.bf16.msra.mxu0 %v5961
        %8111 = vmatpush.bf16.msra.mxu0 %v5957
        %8112 = vmatpush.bf16.msra.mxu0 %v5953
        %8113 = vmatpush.bf16.msra.mxu0 %v5949
        %8114 = vmatpush.bf16.msra.mxu0 %v5945
        %8115 = vmatmul.bf16.gmra.mxu0 %v7439
        %v8116 = vpop.f32.mrf.mxu0
        %v8117 = vadd.f32 %v8104, %v8116
        %v8118 = vpop.f32.mrf.mxu0
        %8119 = vdwg.mxu0
        %8120 = vmatpush.bf16.msra.mxu0 %v6005
        %8121 = vmatpush.bf16.msra.mxu0 %v6001
        %8122 = vmatpush.bf16.msra.mxu0 %v5997
        %8123 = vmatpush.bf16.msra.mxu0 %v5993
        %8124 = vmatpush.bf16.msra.mxu0 %v5989
        %8125 = vmatpush.bf16.msra.mxu0 %v5985
        %8126 = vmatpush.bf16.msra.mxu0 %v5981
        %8127 = vmatpush.bf16.msra.mxu0 %v5977
        %8128 = vmatmul.bf16.gmra.mxu0 %v7440
        %v8129 = vpop.f32.mrf.mxu0
        %v8130 = vadd.f32 %v8117, %v8129
        %v8131 = vpop.f32.mrf.mxu0
        %8132 = vdwg.mxu0
        %8133 = vmatpush.bf16.msra.mxu0 %v6037
        %8134 = vmatpush.bf16.msra.mxu0 %v6033
        %8135 = vmatpush.bf16.msra.mxu0 %v6029
        %8136 = vmatpush.bf16.msra.mxu0 %v6025
        %8137 = vmatpush.bf16.msra.mxu0 %v6021
        %8138 = vmatpush.bf16.msra.mxu0 %v6017
        %8139 = vmatpush.bf16.msra.mxu0 %v6013
        %8140 = vmatpush.bf16.msra.mxu0 %v6009
        %8141 = vmatmul.bf16.gmra.mxu0 %v7441
        %v8142 = vpop.f32.mrf.mxu0
        %v8143 = vadd.f32 %v8130, %v8142
        %v8144 = vpop.f32.mrf.mxu0
        %8145 = vdwg.mxu0
        %8146 = vmatpush.bf16.msra.mxu0 %v6069
        %8147 = vmatpush.bf16.msra.mxu0 %v6065
        %8148 = vmatpush.bf16.msra.mxu0 %v6061
        %8149 = vmatpush.bf16.msra.mxu0 %v6057
        %8150 = vmatpush.bf16.msra.mxu0 %v6053
        %8151 = vmatpush.bf16.msra.mxu0 %v6049
        %8152 = vmatpush.bf16.msra.mxu0 %v6045
        %8153 = vmatpush.bf16.msra.mxu0 %v6041
        %8154 = vmatmul.bf16.gmra.mxu0 %v7442
        %v8155 = vpop.f32.mrf.mxu0
        %v8156 = vadd.f32 %v8143, %v8155
        %v8157 = vpop.f32.mrf.mxu0
        %8158 = vdwg.mxu0
        %8159 = vmatpush.bf16.msra.mxu0 %v6101
        %8160 = vmatpush.bf16.msra.mxu0 %v6097
        %8161 = vmatpush.bf16.msra.mxu0 %v6093
        %8162 = vmatpush.bf16.msra.mxu0 %v6089
        %8163 = vmatpush.bf16.msra.mxu0 %v6085
        %8164 = vmatpush.bf16.msra.mxu0 %v6081
        %8165 = vmatpush.bf16.msra.mxu0 %v6077
        %8166 = vmatpush.bf16.msra.mxu0 %v6073
        %8167 = vmatmul.bf16.gmra.mxu0 %v7443
        %v8168 = vpop.f32.mrf.mxu0
        %v8169 = vadd.f32 %v8156, %v8168
        %v8170 = vpop.f32.mrf.mxu0
        %8171 = vdwg.mxu0
        %8172 = vmatpush.bf16.msra.mxu0 %v6133
        %8173 = vmatpush.bf16.msra.mxu0 %v6129
        %8174 = vmatpush.bf16.msra.mxu0 %v6125
        %8175 = vmatpush.bf16.msra.mxu0 %v6121
        %8176 = vmatpush.bf16.msra.mxu0 %v6117
        %8177 = vmatpush.bf16.msra.mxu0 %v6113
        %8178 = vmatpush.bf16.msra.mxu0 %v6109
        %8179 = vmatpush.bf16.msra.mxu0 %v6105
        %8180 = vmatmul.bf16.gmra.mxu0 %v7444
        %v8181 = vpop.f32.mrf.mxu0
        %v8182 = vadd.f32 %v8169, %v8181
        %v8183 = vpop.f32.mrf.mxu0
        %8184 = vdwg.mxu0
        %8185 = vmatpush.bf16.msra.mxu0 %v6165
        %8186 = vmatpush.bf16.msra.mxu0 %v6161
        %8187 = vmatpush.bf16.msra.mxu0 %v6157
        %8188 = vmatpush.bf16.msra.mxu0 %v6153
        %8189 = vmatpush.bf16.msra.mxu0 %v6149
        %8190 = vmatpush.bf16.msra.mxu0 %v6145
        %8191 = vmatpush.bf16.msra.mxu0 %v6141
        %8192 = vmatpush.bf16.msra.mxu0 %v6137
        %8193 = vmatmul.bf16.gmra.mxu0 %v7445
        %v8194 = vpop.f32.mrf.mxu0
        %v8195 = vadd.f32 %v8182, %v8194
        %v8196 = vpop.f32.mrf.mxu0
        %8197 = vdwg.mxu0
        %8198 = vmatpush.bf16.msra.mxu0 %v6197
        %8199 = vmatpush.bf16.msra.mxu0 %v6193
        %8200 = vmatpush.bf16.msra.mxu0 %v6189
        %8201 = vmatpush.bf16.msra.mxu0 %v6185
        %8202 = vmatpush.bf16.msra.mxu0 %v6181
        %8203 = vmatpush.bf16.msra.mxu0 %v6177
        %8204 = vmatpush.bf16.msra.mxu0 %v6173
        %8205 = vmatpush.bf16.msra.mxu0 %v6169
        %8206 = vmatmul.bf16.gmra.mxu0 %v7446
        %v8207 = vpop.f32.mrf.mxu0
        %v8208 = vadd.f32 %v8195, %v8207
        %v8209 = vpop.f32.mrf.mxu0
        %8210 = vdwg.mxu0
        %8211 = vmatpush.bf16.msra.mxu0 %v6229
        %8212 = vmatpush.bf16.msra.mxu0 %v6225
        %8213 = vmatpush.bf16.msra.mxu0 %v6221
        %8214 = vmatpush.bf16.msra.mxu0 %v6217
        %8215 = vmatpush.bf16.msra.mxu0 %v6213
        %8216 = vmatpush.bf16.msra.mxu0 %v6209
        %8217 = vmatpush.bf16.msra.mxu0 %v6205
        %8218 = vmatpush.bf16.msra.mxu0 %v6201
        %8219 = vmatmul.bf16.gmra.mxu0 %v7447
        %v8220 = vpop.f32.mrf.mxu0
        %v8221 = vadd.f32 %v8208, %v8220
        %v8222 = vpop.f32.mrf.mxu0
        %8223 = vdwg.mxu0
        %8224 = vmatpush.bf16.msra.mxu0 %v6261
        %8225 = vmatpush.bf16.msra.mxu0 %v6257
        %8226 = vmatpush.bf16.msra.mxu0 %v6253
        %8227 = vmatpush.bf16.msra.mxu0 %v6249
        %8228 = vmatpush.bf16.msra.mxu0 %v6245
        %8229 = vmatpush.bf16.msra.mxu0 %v6241
        %8230 = vmatpush.bf16.msra.mxu0 %v6237
        %8231 = vmatpush.bf16.msra.mxu0 %v6233
        %8232 = vmatmul.bf16.gmra.mxu0 %v7448
        %v8233 = vpop.f32.mrf.mxu0
        %v8234 = vadd.f32 %v8221, %v8233
        %v8235 = vpop.f32.mrf.mxu0
        %8236 = vdwg.mxu0
        %8237 = vmatpush.bf16.msra.mxu0 %v6293
        %8238 = vmatpush.bf16.msra.mxu0 %v6289
        %8239 = vmatpush.bf16.msra.mxu0 %v6285
        %8240 = vmatpush.bf16.msra.mxu0 %v6281
        %8241 = vmatpush.bf16.msra.mxu0 %v6277
        %8242 = vmatpush.bf16.msra.mxu0 %v6273
        %8243 = vmatpush.bf16.msra.mxu0 %v6269
        %8244 = vmatpush.bf16.msra.mxu0 %v6265
        %8245 = vmatmul.bf16.gmra.mxu0 %v7449
        %v8246 = vpop.f32.mrf.mxu0
        %v8247 = vadd.f32 %v8234, %v8246
        %v8248 = vpop.f32.mrf.mxu0
        %8249 = vdwg.mxu0
        %8250 = vmatpush.bf16.msra.mxu0 %v6325
        %8251 = vmatpush.bf16.msra.mxu0 %v6321
        %8252 = vmatpush.bf16.msra.mxu0 %v6317
        %8253 = vmatpush.bf16.msra.mxu0 %v6313
        %8254 = vmatpush.bf16.msra.mxu0 %v6309
        %8255 = vmatpush.bf16.msra.mxu0 %v6305
        %8256 = vmatpush.bf16.msra.mxu0 %v6301
        %8257 = vmatpush.bf16.msra.mxu0 %v6297
        %8258 = vmatmul.bf16.gmra.mxu0 %v7450
        %v8259 = vpop.f32.mrf.mxu0
        %v8260 = vadd.f32 %v8247, %v8259
        %v8261 = vpop.f32.mrf.mxu0
        %8262 = vdwg.mxu0
        %8263 = vmatpush.bf16.msra.mxu0 %v6357
        %8264 = vmatpush.bf16.msra.mxu0 %v6353
        %8265 = vmatpush.bf16.msra.mxu0 %v6349
        %8266 = vmatpush.bf16.msra.mxu0 %v6345
        %8267 = vmatpush.bf16.msra.mxu0 %v6341
        %8268 = vmatpush.bf16.msra.mxu0 %v6337
        %8269 = vmatpush.bf16.msra.mxu0 %v6333
        %8270 = vmatpush.bf16.msra.mxu0 %v6329
        %8271 = vmatmul.bf16.gmra.mxu0 %v7451
        %v8272 = vpop.f32.mrf.mxu0
        %v8273 = vadd.f32 %v8260, %v8272
        %v8274 = vpop.f32.mrf.mxu0
        %8275 = vdwg.mxu0
        %8276 = vmatpush.bf16.msra.mxu0 %v6389
        %8277 = vmatpush.bf16.msra.mxu0 %v6385
        %8278 = vmatpush.bf16.msra.mxu0 %v6381
        %8279 = vmatpush.bf16.msra.mxu0 %v6377
        %8280 = vmatpush.bf16.msra.mxu0 %v6373
        %8281 = vmatpush.bf16.msra.mxu0 %v6369
        %8282 = vmatpush.bf16.msra.mxu0 %v6365
        %8283 = vmatpush.bf16.msra.mxu0 %v6361
        %8284 = vmatmul.bf16.gmra.mxu0 %v7452
        %v8285 = vpop.f32.mrf.mxu0
        %v8286 = vadd.f32 %v8273, %v8285
        %v8287 = vpop.f32.mrf.mxu0
        %8288 = vdwg.mxu0
        %8289 = vmatpush.bf16.msra.mxu0 %v6421
        %8290 = vmatpush.bf16.msra.mxu0 %v6417
        %8291 = vmatpush.bf16.msra.mxu0 %v6413
        %8292 = vmatpush.bf16.msra.mxu0 %v6409
        %8293 = vmatpush.bf16.msra.mxu0 %v6405
        %8294 = vmatpush.bf16.msra.mxu0 %v6401
        %8295 = vmatpush.bf16.msra.mxu0 %v6397
        %8296 = vmatpush.bf16.msra.mxu0 %v6393
        %8297 = vmatmul.bf16.gmra.mxu0 %v7453
        %v8298 = vpop.f32.mrf.mxu0
        %v8299 = vadd.f32 %v8286, %v8298
        %v8300 = vpop.f32.mrf.mxu0
        %8301 = vdwg.mxu0
        %v8302 = vld [vmem:[%s650] sm:$0xf]
        %v8304 = vperm.slane %v8302, 0
        %v8305 = vperm.slane %v8302, 1
        %v8306 = vperm.slane %v8302, 2
        %v8307 = vperm.slane %v8302, 3
        %v8312 = vmul.f32 %v7675, %v8304
        %v8313 = vmul.f32 %v7883, %v8305
        %v8314 = vmul.f32 %v8091, %v8306
        %v8315 = vmul.f32 %v8299, %v8307
        %v8316 = vld [vmem:[%s660] sm:$0xf]
        %v8318 = vperm.slane %v8316, 0
        %v8319 = vperm.slane %v8316, 1
        %v8320 = vperm.slane %v8316, 2
        %v8321 = vperm.slane %v8316, 3
        %v8326 = vadd.f32 %v8312, %v8318
        %v8327 = vadd.f32 %v8313, %v8319
        %v8328 = vadd.f32 %v8314, %v8320
        %v8329 = vadd.f32 %v8315, %v8321
        %v8330 = vxor.u32 %v8326, 2147483648
        %v8331 = vxor.u32 %v8327, 2147483648
        %v8332 = vxor.u32 %v8328, 2147483648
        %v8333 = vxor.u32 %v8329, 2147483648
        %v8334 = vmul.f32 %v8330, 1.442695
        %v8335 = vpow.pop %v8334
        %v8336 = vmul.f32 %v8331, 1.442695
        %v8337 = vpow.pop %v8336
        %v8338 = vmul.f32 %v8332, 1.442695
        %v8339 = vpow.pop %v8338
        %v8340 = vmul.f32 %v8333, 1.442695
        %v8341 = vpow.pop %v8340
        %v8342 = vadd.f32 %v8335, 1.0
        %v8343 = vadd.f32 %v8337, 1.0
        %v8344 = vadd.f32 %v8339, 1.0
        %v8345 = vadd.f32 %v8341, 1.0
        %v8346 = vrcp.pop %v8342
        %v8347 = vmul.f32 %v8342, %v8346
        %v8348 = vsub.f32 1.0, %v8347
        %v8349 = vmul.f32 %v8346, %v8348
        %v8350 = vadd.f32 %v8346, %v8349
        %vm8351 = vweird.f32 %v8342
        %vm8352 = vweird.f32 %v8346
        %vm8353 = vmor %vm8351, %vm8352
        %v8354 = vsel %vm8353, %v8346, %v8350
        %v8355 = vand.u32 2147483647, %v8342
        %vm8356 = vcmp.eq.f32.partialorder %v8355, 8.507059e+37
        %v8357 = vand.u32 %v8342, 2147483648
        %v8358 = vor.u32 1.1754944e-38, %v8357
        %v8359 = vsel %vm8356, %v8358, %v8354
        %v8360 = vmul.f32 1.0, %v8359
        %v8361 = vrcp.pop %v8343
        %v8362 = vmul.f32 %v8343, %v8361
        %v8363 = vsub.f32 1.0, %v8362
        %v8364 = vmul.f32 %v8361, %v8363
        %v8365 = vadd.f32 %v8361, %v8364
        %vm8366 = vweird.f32 %v8343
        %vm8367 = vweird.f32 %v8361
        %vm8368 = vmor %vm8366, %vm8367
        %v8369 = vsel %vm8368, %v8361, %v8365
        %v8370 = vand.u32 2147483647, %v8343
        %vm8371 = vcmp.eq.f32.partialorder %v8370, 8.507059e+37
        %v8372 = vand.u32 %v8343, 2147483648
        %v8373 = vor.u32 1.1754944e-38, %v8372
        %v8374 = vsel %vm8371, %v8373, %v8369
        %v8375 = vmul.f32 1.0, %v8374
        %v8376 = vrcp.pop %v8344
        %v8377 = vmul.f32 %v8344, %v8376
        %v8378 = vsub.f32 1.0, %v8377
        %v8379 = vmul.f32 %v8376, %v8378
        %v8380 = vadd.f32 %v8376, %v8379
        %vm8381 = vweird.f32 %v8344
        %vm8382 = vweird.f32 %v8376
        %vm8383 = vmor %vm8381, %vm8382
        %v8384 = vsel %vm8383, %v8376, %v8380
        %v8385 = vand.u32 2147483647, %v8344
        %vm8386 = vcmp.eq.f32.partialorder %v8385, 8.507059e+37
        %v8387 = vand.u32 %v8344, 2147483648
        %v8388 = vor.u32 1.1754944e-38, %v8387
        %v8389 = vsel %vm8386, %v8388, %v8384
        %v8390 = vmul.f32 1.0, %v8389
        %v8391 = vrcp.pop %v8345
        %v8392 = vmul.f32 %v8345, %v8391
        %v8393 = vsub.f32 1.0, %v8392
        %v8394 = vmul.f32 %v8391, %v8393
        %v8395 = vadd.f32 %v8391, %v8394
        %vm8396 = vweird.f32 %v8345
        %vm8397 = vweird.f32 %v8391
        %vm8398 = vmor %vm8396, %vm8397
        %v8399 = vsel %vm8398, %v8391, %v8395
        %v8400 = vand.u32 2147483647, %v8345
        %vm8401 = vcmp.eq.f32.partialorder %v8400, 8.507059e+37
        %v8402 = vand.u32 %v8345, 2147483648
        %v8403 = vor.u32 1.1754944e-38, %v8402
        %v8404 = vsel %vm8401, %v8403, %v8399
        %v8405 = vmul.f32 1.0, %v8404
        %v8406 = vpack.c.bf16 %v7383, %v7368
        %v8407 = vpack.c.bf16 %v7413, %v7398
        %v8408 = vpack.c.bf16 %v8375, %v8360
        %v8409 = vpack.c.bf16 %v8405, %v8390
        %v8412 = vunpack.c.l.b16 %v8406
        %v8413 = vunpack.c.h.b16 %v8406
        %v8414 = vunpack.c.l.b16 %v8407
        %v8415 = vunpack.c.h.b16 %v8407
        %v8416 = vpack.c.b16 %v8412, %v8412
        %v8417 = vpack.c.b16 %v8413, %v8413
        %v8418 = vpack.c.b16 %v8414, %v8414
        %v8419 = vpack.c.b16 %v8415, %v8415
        %v8426 = vunpack.c.l.b16 %v8408
        %v8427 = vunpack.c.h.b16 %v8408
        %v8428 = vunpack.c.l.b16 %v8409
        %v8429 = vunpack.c.h.b16 %v8409
        %v8430 = vpack.c.b16 %v8426, %v8426
        %v8431 = vpack.c.b16 %v8427, %v8427
        %v8432 = vpack.c.b16 %v8428, %v8428
        %v8433 = vpack.c.b16 %v8429, %v8429
        %v8438 = vld [vmem:[%s670] sm:$0xff]
        %v8439 = vld [vmem:[%s670 + $0x8] sm:$0xff]
        %v8440 = vld [vmem:[%s670 + $0x10] sm:$0xff]
        %v8441 = vld [vmem:[%s670 + $0x18] sm:$0xff]
        %v8442 = vld [vmem:[%s670 + $0x20] sm:$0xff]
        %v8443 = vld [vmem:[%s670 + $0x28] sm:$0xff]
        %v8444 = vld [vmem:[%s670 + $0x30] sm:$0xff]
        %v8445 = vld [vmem:[%s670 + $0x38] sm:$0xff]
        %v8446 = vld [vmem:[%s670 + $0x40] sm:$0xff]
        %v8447 = vld [vmem:[%s670 + $0x48] sm:$0xff]
        %v8448 = vld [vmem:[%s670 + $0x50] sm:$0xff]
        %v8449 = vld [vmem:[%s670 + $0x58] sm:$0xff]
        %v8450 = vld [vmem:[%s670 + $0x60] sm:$0xff]
        %v8451 = vld [vmem:[%s670 + $0x68] sm:$0xff]
        %v8452 = vld [vmem:[%s670 + $0x70] sm:$0xff]
        %v8453 = vld [vmem:[%s670 + $0x78] sm:$0xff]
        %v8454 = vld [vmem:[%s670 + $0x80] sm:$0xff]
        %v8455 = vld [vmem:[%s670 + $0x88] sm:$0xff]
        %v8456 = vld [vmem:[%s670 + $0x90] sm:$0xff]
        %v8457 = vld [vmem:[%s670 + $0x98] sm:$0xff]
        %v8458 = vld [vmem:[%s670 + $0xa0] sm:$0xff]
        %v8459 = vld [vmem:[%s670 + $0xa8] sm:$0xff]
        %v8460 = vld [vmem:[%s670 + $0xb0] sm:$0xff]
        %v8461 = vld [vmem:[%s670 + $0xb8] sm:$0xff]
        %v8462 = vld [vmem:[%s670 + $0xc0] sm:$0xff]
        %v8463 = vld [vmem:[%s670 + $0xc8] sm:$0xff]
        %v8464 = vld [vmem:[%s670 + $0xd0] sm:$0xff]
        %v8465 = vld [vmem:[%s670 + $0xd8] sm:$0xff]
        %v8466 = vld [vmem:[%s670 + $0xe0] sm:$0xff]
        %v8467 = vld [vmem:[%s670 + $0xe8] sm:$0xff]
        %v8468 = vld [vmem:[%s670 + $0xf0] sm:$0xff]
        %v8469 = vld [vmem:[%s670 + $0xf8] sm:$0xff]
        %v8470 = vld [vmem:[%s670 + $0x100] sm:$0xff]
        %v8471 = vld [vmem:[%s670 + $0x108] sm:$0xff]
        %v8472 = vld [vmem:[%s670 + $0x110] sm:$0xff]
        %v8473 = vld [vmem:[%s670 + $0x118] sm:$0xff]
        %v8474 = vld [vmem:[%s670 + $0x120] sm:$0xff]
        %v8475 = vld [vmem:[%s670 + $0x128] sm:$0xff]
        %v8476 = vld [vmem:[%s670 + $0x130] sm:$0xff]
        %v8477 = vld [vmem:[%s670 + $0x138] sm:$0xff]
        %v8478 = vld [vmem:[%s670 + $0x140] sm:$0xff]
        %v8479 = vld [vmem:[%s670 + $0x148] sm:$0xff]
        %v8480 = vld [vmem:[%s670 + $0x150] sm:$0xff]
        %v8481 = vld [vmem:[%s670 + $0x158] sm:$0xff]
        %v8482 = vld [vmem:[%s670 + $0x160] sm:$0xff]
        %v8483 = vld [vmem:[%s670 + $0x168] sm:$0xff]
        %v8484 = vld [vmem:[%s670 + $0x170] sm:$0xff]
        %v8485 = vld [vmem:[%s670 + $0x178] sm:$0xff]
        %v8486 = vld [vmem:[%s670 + $0x180] sm:$0xff]
        %v8487 = vld [vmem:[%s670 + $0x188] sm:$0xff]
        %v8488 = vld [vmem:[%s670 + $0x190] sm:$0xff]
        %v8489 = vld [vmem:[%s670 + $0x198] sm:$0xff]
        %v8490 = vld [vmem:[%s670 + $0x1a0] sm:$0xff]
        %v8491 = vld [vmem:[%s670 + $0x1a8] sm:$0xff]
        %v8492 = vld [vmem:[%s670 + $0x1b0] sm:$0xff]
        %v8493 = vld [vmem:[%s670 + $0x1b8] sm:$0xff]
        %v8494 = vld [vmem:[%s670 + $0x1c0] sm:$0xff]
        %v8495 = vld [vmem:[%s670 + $0x1c8] sm:$0xff]
        %v8496 = vld [vmem:[%s670 + $0x1d0] sm:$0xff]
        %v8497 = vld [vmem:[%s670 + $0x1d8] sm:$0xff]
        %v8498 = vld [vmem:[%s670 + $0x1e0] sm:$0xff]
        %v8499 = vld [vmem:[%s670 + $0x1e8] sm:$0xff]
        %v8500 = vld [vmem:[%s670 + $0x1f0] sm:$0xff]
        %v8501 = vld [vmem:[%s670 + $0x1f8] sm:$0xff]
        %v8502 = vld [vmem:[%s670 + $0x200] sm:$0xff]
        %v8503 = vld [vmem:[%s670 + $0x208] sm:$0xff]
        %v8504 = vld [vmem:[%s670 + $0x210] sm:$0xff]
        %v8505 = vld [vmem:[%s670 + $0x218] sm:$0xff]
        %v8506 = vld [vmem:[%s670 + $0x220] sm:$0xff]
        %v8507 = vld [vmem:[%s670 + $0x228] sm:$0xff]
        %v8508 = vld [vmem:[%s670 + $0x230] sm:$0xff]
        %v8509 = vld [vmem:[%s670 + $0x238] sm:$0xff]
        %v8510 = vld [vmem:[%s670 + $0x240] sm:$0xff]
        %v8511 = vld [vmem:[%s670 + $0x248] sm:$0xff]
        %v8512 = vld [vmem:[%s670 + $0x250] sm:$0xff]
        %v8513 = vld [vmem:[%s670 + $0x258] sm:$0xff]
        %v8514 = vld [vmem:[%s670 + $0x260] sm:$0xff]
        %v8515 = vld [vmem:[%s670 + $0x268] sm:$0xff]
        %v8516 = vld [vmem:[%s670 + $0x270] sm:$0xff]
        %v8517 = vld [vmem:[%s670 + $0x278] sm:$0xff]
        %v8518 = vld [vmem:[%s670 + $0x280] sm:$0xff]
        %v8519 = vld [vmem:[%s670 + $0x288] sm:$0xff]
        %v8520 = vld [vmem:[%s670 + $0x290] sm:$0xff]
        %v8521 = vld [vmem:[%s670 + $0x298] sm:$0xff]
        %v8522 = vld [vmem:[%s670 + $0x2a0] sm:$0xff]
        %v8523 = vld [vmem:[%s670 + $0x2a8] sm:$0xff]
        %v8524 = vld [vmem:[%s670 + $0x2b0] sm:$0xff]
        %v8525 = vld [vmem:[%s670 + $0x2b8] sm:$0xff]
        %v8526 = vld [vmem:[%s670 + $0x2c0] sm:$0xff]
        %v8527 = vld [vmem:[%s670 + $0x2c8] sm:$0xff]
        %v8528 = vld [vmem:[%s670 + $0x2d0] sm:$0xff]
        %v8529 = vld [vmem:[%s670 + $0x2d8] sm:$0xff]
        %v8530 = vld [vmem:[%s670 + $0x2e0] sm:$0xff]
        %v8531 = vld [vmem:[%s670 + $0x2e8] sm:$0xff]
        %v8532 = vld [vmem:[%s670 + $0x2f0] sm:$0xff]
        %v8533 = vld [vmem:[%s670 + $0x2f8] sm:$0xff]
        %v8534 = vld [vmem:[%s670 + $0x300] sm:$0xff]
        %v8535 = vld [vmem:[%s670 + $0x308] sm:$0xff]
        %v8536 = vld [vmem:[%s670 + $0x310] sm:$0xff]
        %v8537 = vld [vmem:[%s670 + $0x318] sm:$0xff]
        %v8538 = vld [vmem:[%s670 + $0x320] sm:$0xff]
        %v8539 = vld [vmem:[%s670 + $0x328] sm:$0xff]
        %v8540 = vld [vmem:[%s670 + $0x330] sm:$0xff]
        %v8541 = vld [vmem:[%s670 + $0x338] sm:$0xff]
        %v8542 = vld [vmem:[%s670 + $0x340] sm:$0xff]
        %v8543 = vld [vmem:[%s670 + $0x348] sm:$0xff]
        %v8544 = vld [vmem:[%s670 + $0x350] sm:$0xff]
        %v8545 = vld [vmem:[%s670 + $0x358] sm:$0xff]
        %v8546 = vld [vmem:[%s670 + $0x360] sm:$0xff]
        %v8547 = vld [vmem:[%s670 + $0x368] sm:$0xff]
        %v8548 = vld [vmem:[%s670 + $0x370] sm:$0xff]
        %v8549 = vld [vmem:[%s670 + $0x378] sm:$0xff]
        %v8550 = vld [vmem:[%s670 + $0x380] sm:$0xff]
        %v8551 = vld [vmem:[%s670 + $0x388] sm:$0xff]
        %v8552 = vld [vmem:[%s670 + $0x390] sm:$0xff]
        %v8553 = vld [vmem:[%s670 + $0x398] sm:$0xff]
        %v8554 = vld [vmem:[%s670 + $0x3a0] sm:$0xff]
        %v8555 = vld [vmem:[%s670 + $0x3a8] sm:$0xff]
        %v8556 = vld [vmem:[%s670 + $0x3b0] sm:$0xff]
        %v8557 = vld [vmem:[%s670 + $0x3b8] sm:$0xff]
        %v8558 = vld [vmem:[%s670 + $0x3c0] sm:$0xff]
        %v8559 = vld [vmem:[%s670 + $0x3c8] sm:$0xff]
        %v8560 = vld [vmem:[%s670 + $0x3d0] sm:$0xff]
        %v8561 = vld [vmem:[%s670 + $0x3d8] sm:$0xff]
        %v8562 = vld [vmem:[%s670 + $0x3e0] sm:$0xff]
        %v8563 = vld [vmem:[%s670 + $0x3e8] sm:$0xff]
        %v8564 = vld [vmem:[%s670 + $0x3f0] sm:$0xff]
        %v8565 = vld [vmem:[%s670 + $0x3f8] sm:$0xff]
        %v8566 = vunpack.c.0.s8 %v8438
        %v8567 = vunpack.c.0.s8 %v8439
        %v8568 = vunpack.c.0.s8 %v8440
        %v8569 = vunpack.c.0.s8 %v8441
        %v8570 = vunpack.c.1.s8 %v8438
        %v8571 = vunpack.c.1.s8 %v8439
        %v8572 = vunpack.c.1.s8 %v8440
        %v8573 = vunpack.c.1.s8 %v8441
        %v8574 = vunpack.c.2.s8 %v8438
        %v8575 = vunpack.c.2.s8 %v8439
        %v8576 = vunpack.c.2.s8 %v8440
        %v8577 = vunpack.c.2.s8 %v8441
        %v8578 = vunpack.c.3.s8 %v8438
        %v8579 = vunpack.c.3.s8 %v8439
        %v8580 = vunpack.c.3.s8 %v8440
        %v8581 = vunpack.c.3.s8 %v8441
        %v8582 = vunpack.c.0.s8 %v8442
        %v8583 = vunpack.c.0.s8 %v8443
        %v8584 = vunpack.c.0.s8 %v8444
        %v8585 = vunpack.c.0.s8 %v8445
        %v8586 = vunpack.c.1.s8 %v8442
        %v8587 = vunpack.c.1.s8 %v8443
        %v8588 = vunpack.c.1.s8 %v8444
        %v8589 = vunpack.c.1.s8 %v8445
        %v8590 = vunpack.c.2.s8 %v8442
        %v8591 = vunpack.c.2.s8 %v8443
        %v8592 = vunpack.c.2.s8 %v8444
        %v8593 = vunpack.c.2.s8 %v8445
        %v8594 = vunpack.c.3.s8 %v8442
        %v8595 = vunpack.c.3.s8 %v8443
        %v8596 = vunpack.c.3.s8 %v8444
        %v8597 = vunpack.c.3.s8 %v8445
        %v8598 = vunpack.c.0.s8 %v8446
        %v8599 = vunpack.c.0.s8 %v8447
        %v8600 = vunpack.c.0.s8 %v8448
        %v8601 = vunpack.c.0.s8 %v8449
        %v8602 = vunpack.c.1.s8 %v8446
        %v8603 = vunpack.c.1.s8 %v8447
        %v8604 = vunpack.c.1.s8 %v8448
        %v8605 = vunpack.c.1.s8 %v8449
        %v8606 = vunpack.c.2.s8 %v8446
        %v8607 = vunpack.c.2.s8 %v8447
        %v8608 = vunpack.c.2.s8 %v8448
        %v8609 = vunpack.c.2.s8 %v8449
        %v8610 = vunpack.c.3.s8 %v8446
        %v8611 = vunpack.c.3.s8 %v8447
        %v8612 = vunpack.c.3.s8 %v8448
        %v8613 = vunpack.c.3.s8 %v8449
        %v8614 = vunpack.c.0.s8 %v8450
        %v8615 = vunpack.c.0.s8 %v8451
        %v8616 = vunpack.c.0.s8 %v8452
        %v8617 = vunpack.c.0.s8 %v8453
        %v8618 = vunpack.c.1.s8 %v8450
        %v8619 = vunpack.c.1.s8 %v8451
        %v8620 = vunpack.c.1.s8 %v8452
        %v8621 = vunpack.c.1.s8 %v8453
        %v8622 = vunpack.c.2.s8 %v8450
        %v8623 = vunpack.c.2.s8 %v8451
        %v8624 = vunpack.c.2.s8 %v8452
        %v8625 = vunpack.c.2.s8 %v8453
        %v8626 = vunpack.c.3.s8 %v8450
        %v8627 = vunpack.c.3.s8 %v8451
        %v8628 = vunpack.c.3.s8 %v8452
        %v8629 = vunpack.c.3.s8 %v8453
        %v8630 = vunpack.c.0.s8 %v8454
        %v8631 = vunpack.c.0.s8 %v8455
        %v8632 = vunpack.c.0.s8 %v8456
        %v8633 = vunpack.c.0.s8 %v8457
        %v8634 = vunpack.c.1.s8 %v8454
        %v8635 = vunpack.c.1.s8 %v8455
        %v8636 = vunpack.c.1.s8 %v8456
        %v8637 = vunpack.c.1.s8 %v8457
        %v8638 = vunpack.c.2.s8 %v8454
        %v8639 = vunpack.c.2.s8 %v8455
        %v8640 = vunpack.c.2.s8 %v8456
        %v8641 = vunpack.c.2.s8 %v8457
        %v8642 = vunpack.c.3.s8 %v8454
        %v8643 = vunpack.c.3.s8 %v8455
        %v8644 = vunpack.c.3.s8 %v8456
        %v8645 = vunpack.c.3.s8 %v8457
        %v8646 = vunpack.c.0.s8 %v8458
        %v8647 = vunpack.c.0.s8 %v8459
        %v8648 = vunpack.c.0.s8 %v8460
        %v8649 = vunpack.c.0.s8 %v8461
        %v8650 = vunpack.c.1.s8 %v8458
        %v8651 = vunpack.c.1.s8 %v8459
        %v8652 = vunpack.c.1.s8 %v8460
        %v8653 = vunpack.c.1.s8 %v8461
        %v8654 = vunpack.c.2.s8 %v8458
        %v8655 = vunpack.c.2.s8 %v8459
        %v8656 = vunpack.c.2.s8 %v8460
        %v8657 = vunpack.c.2.s8 %v8461
        %v8658 = vunpack.c.3.s8 %v8458
        %v8659 = vunpack.c.3.s8 %v8459
        %v8660 = vunpack.c.3.s8 %v8460
        %v8661 = vunpack.c.3.s8 %v8461
        %v8662 = vunpack.c.0.s8 %v8462
        %v8663 = vunpack.c.0.s8 %v8463
        %v8664 = vunpack.c.0.s8 %v8464
        %v8665 = vunpack.c.0.s8 %v8465
        %v8666 = vunpack.c.1.s8 %v8462
        %v8667 = vunpack.c.1.s8 %v8463
        %v8668 = vunpack.c.1.s8 %v8464
        %v8669 = vunpack.c.1.s8 %v8465
        %v8670 = vunpack.c.2.s8 %v8462
        %v8671 = vunpack.c.2.s8 %v8463
        %v8672 = vunpack.c.2.s8 %v8464
        %v8673 = vunpack.c.2.s8 %v8465
        %v8674 = vunpack.c.3.s8 %v8462
        %v8675 = vunpack.c.3.s8 %v8463
        %v8676 = vunpack.c.3.s8 %v8464
        %v8677 = vunpack.c.3.s8 %v8465
        %v8678 = vunpack.c.0.s8 %v8466
        %v8679 = vunpack.c.0.s8 %v8467
        %v8680 = vunpack.c.0.s8 %v8468
        %v8681 = vunpack.c.0.s8 %v8469
        %v8682 = vunpack.c.1.s8 %v8466
        %v8683 = vunpack.c.1.s8 %v8467
        %v8684 = vunpack.c.1.s8 %v8468
        %v8685 = vunpack.c.1.s8 %v8469
        %v8686 = vunpack.c.2.s8 %v8466
        %v8687 = vunpack.c.2.s8 %v8467
        %v8688 = vunpack.c.2.s8 %v8468
        %v8689 = vunpack.c.2.s8 %v8469
        %v8690 = vunpack.c.3.s8 %v8466
        %v8691 = vunpack.c.3.s8 %v8467
        %v8692 = vunpack.c.3.s8 %v8468
        %v8693 = vunpack.c.3.s8 %v8469
        %v8694 = vunpack.c.0.s8 %v8470
        %v8695 = vunpack.c.0.s8 %v8471
        %v8696 = vunpack.c.0.s8 %v8472
        %v8697 = vunpack.c.0.s8 %v8473
        %v8698 = vunpack.c.1.s8 %v8470
        %v8699 = vunpack.c.1.s8 %v8471
        %v8700 = vunpack.c.1.s8 %v8472
        %v8701 = vunpack.c.1.s8 %v8473
        %v8702 = vunpack.c.2.s8 %v8470
        %v8703 = vunpack.c.2.s8 %v8471
        %v8704 = vunpack.c.2.s8 %v8472
        %v8705 = vunpack.c.2.s8 %v8473
        %v8706 = vunpack.c.3.s8 %v8470
        %v8707 = vunpack.c.3.s8 %v8471
        %v8708 = vunpack.c.3.s8 %v8472
        %v8709 = vunpack.c.3.s8 %v8473
        %v8710 = vunpack.c.0.s8 %v8474
        %v8711 = vunpack.c.0.s8 %v8475
        %v8712 = vunpack.c.0.s8 %v8476
        %v8713 = vunpack.c.0.s8 %v8477
        %v8714 = vunpack.c.1.s8 %v8474
        %v8715 = vunpack.c.1.s8 %v8475
        %v8716 = vunpack.c.1.s8 %v8476
        %v8717 = vunpack.c.1.s8 %v8477
        %v8718 = vunpack.c.2.s8 %v8474
        %v8719 = vunpack.c.2.s8 %v8475
        %v8720 = vunpack.c.2.s8 %v8476
        %v8721 = vunpack.c.2.s8 %v8477
        %v8722 = vunpack.c.3.s8 %v8474
        %v8723 = vunpack.c.3.s8 %v8475
        %v8724 = vunpack.c.3.s8 %v8476
        %v8725 = vunpack.c.3.s8 %v8477
        %v8726 = vunpack.c.0.s8 %v8478
        %v8727 = vunpack.c.0.s8 %v8479
        %v8728 = vunpack.c.0.s8 %v8480
        %v8729 = vunpack.c.0.s8 %v8481
        %v8730 = vunpack.c.1.s8 %v8478
        %v8731 = vunpack.c.1.s8 %v8479
        %v8732 = vunpack.c.1.s8 %v8480
        %v8733 = vunpack.c.1.s8 %v8481
        %v8734 = vunpack.c.2.s8 %v8478
        %v8735 = vunpack.c.2.s8 %v8479
        %v8736 = vunpack.c.2.s8 %v8480
        %v8737 = vunpack.c.2.s8 %v8481
        %v8738 = vunpack.c.3.s8 %v8478
        %v8739 = vunpack.c.3.s8 %v8479
        %v8740 = vunpack.c.3.s8 %v8480
        %v8741 = vunpack.c.3.s8 %v8481
        %v8742 = vunpack.c.0.s8 %v8482
        %v8743 = vunpack.c.0.s8 %v8483
        %v8744 = vunpack.c.0.s8 %v8484
        %v8745 = vunpack.c.0.s8 %v8485
        %v8746 = vunpack.c.1.s8 %v8482
        %v8747 = vunpack.c.1.s8 %v8483
        %v8748 = vunpack.c.1.s8 %v8484
        %v8749 = vunpack.c.1.s8 %v8485
        %v8750 = vunpack.c.2.s8 %v8482
        %v8751 = vunpack.c.2.s8 %v8483
        %v8752 = vunpack.c.2.s8 %v8484
        %v8753 = vunpack.c.2.s8 %v8485
        %v8754 = vunpack.c.3.s8 %v8482
        %v8755 = vunpack.c.3.s8 %v8483
        %v8756 = vunpack.c.3.s8 %v8484
        %v8757 = vunpack.c.3.s8 %v8485
        %v8758 = vunpack.c.0.s8 %v8486
        %v8759 = vunpack.c.0.s8 %v8487
        %v8760 = vunpack.c.0.s8 %v8488
        %v8761 = vunpack.c.0.s8 %v8489
        %v8762 = vunpack.c.1.s8 %v8486
        %v8763 = vunpack.c.1.s8 %v8487
        %v8764 = vunpack.c.1.s8 %v8488
        %v8765 = vunpack.c.1.s8 %v8489
        %v8766 = vunpack.c.2.s8 %v8486
        %v8767 = vunpack.c.2.s8 %v8487
        %v8768 = vunpack.c.2.s8 %v8488
        %v8769 = vunpack.c.2.s8 %v8489
        %v8770 = vunpack.c.3.s8 %v8486
        %v8771 = vunpack.c.3.s8 %v8487
        %v8772 = vunpack.c.3.s8 %v8488
        %v8773 = vunpack.c.3.s8 %v8489
        %v8774 = vunpack.c.0.s8 %v8490
        %v8775 = vunpack.c.0.s8 %v8491
        %v8776 = vunpack.c.0.s8 %v8492
        %v8777 = vunpack.c.0.s8 %v8493
        %v8778 = vunpack.c.1.s8 %v8490
        %v8779 = vunpack.c.1.s8 %v8491
        %v8780 = vunpack.c.1.s8 %v8492
        %v8781 = vunpack.c.1.s8 %v8493
        %v8782 = vunpack.c.2.s8 %v8490
        %v8783 = vunpack.c.2.s8 %v8491
        %v8784 = vunpack.c.2.s8 %v8492
        %v8785 = vunpack.c.2.s8 %v8493
        %v8786 = vunpack.c.3.s8 %v8490
        %v8787 = vunpack.c.3.s8 %v8491
        %v8788 = vunpack.c.3.s8 %v8492
        %v8789 = vunpack.c.3.s8 %v8493
        %v8790 = vunpack.c.0.s8 %v8494
        %v8791 = vunpack.c.0.s8 %v8495
        %v8792 = vunpack.c.0.s8 %v8496
        %v8793 = vunpack.c.0.s8 %v8497
        %v8794 = vunpack.c.1.s8 %v8494
        %v8795 = vunpack.c.1.s8 %v8495
        %v8796 = vunpack.c.1.s8 %v8496
        %v8797 = vunpack.c.1.s8 %v8497
        %v8798 = vunpack.c.2.s8 %v8494
        %v8799 = vunpack.c.2.s8 %v8495
        %v8800 = vunpack.c.2.s8 %v8496
        %v8801 = vunpack.c.2.s8 %v8497
        %v8802 = vunpack.c.3.s8 %v8494
        %v8803 = vunpack.c.3.s8 %v8495
        %v8804 = vunpack.c.3.s8 %v8496
        %v8805 = vunpack.c.3.s8 %v8497
        %v8806 = vunpack.c.0.s8 %v8498
        %v8807 = vunpack.c.0.s8 %v8499
        %v8808 = vunpack.c.0.s8 %v8500
        %v8809 = vunpack.c.0.s8 %v8501
        %v8810 = vunpack.c.1.s8 %v8498
        %v8811 = vunpack.c.1.s8 %v8499
        %v8812 = vunpack.c.1.s8 %v8500
        %v8813 = vunpack.c.1.s8 %v8501
        %v8814 = vunpack.c.2.s8 %v8498
        %v8815 = vunpack.c.2.s8 %v8499
        %v8816 = vunpack.c.2.s8 %v8500
        %v8817 = vunpack.c.2.s8 %v8501
        %v8818 = vunpack.c.3.s8 %v8498
        %v8819 = vunpack.c.3.s8 %v8499
        %v8820 = vunpack.c.3.s8 %v8500
        %v8821 = vunpack.c.3.s8 %v8501
        %v8822 = vunpack.c.0.s8 %v8502
        %v8823 = vunpack.c.0.s8 %v8503
        %v8824 = vunpack.c.0.s8 %v8504
        %v8825 = vunpack.c.0.s8 %v8505
        %v8826 = vunpack.c.1.s8 %v8502
        %v8827 = vunpack.c.1.s8 %v8503
        %v8828 = vunpack.c.1.s8 %v8504
        %v8829 = vunpack.c.1.s8 %v8505
        %v8830 = vunpack.c.2.s8 %v8502
        %v8831 = vunpack.c.2.s8 %v8503
        %v8832 = vunpack.c.2.s8 %v8504
        %v8833 = vunpack.c.2.s8 %v8505
        %v8834 = vunpack.c.3.s8 %v8502
        %v8835 = vunpack.c.3.s8 %v8503
        %v8836 = vunpack.c.3.s8 %v8504
        %v8837 = vunpack.c.3.s8 %v8505
        %v8838 = vunpack.c.0.s8 %v8506
        %v8839 = vunpack.c.0.s8 %v8507
        %v8840 = vunpack.c.0.s8 %v8508
        %v8841 = vunpack.c.0.s8 %v8509
        %v8842 = vunpack.c.1.s8 %v8506
        %v8843 = vunpack.c.1.s8 %v8507
        %v8844 = vunpack.c.1.s8 %v8508
        %v8845 = vunpack.c.1.s8 %v8509
        %v8846 = vunpack.c.2.s8 %v8506
        %v8847 = vunpack.c.2.s8 %v8507
        %v8848 = vunpack.c.2.s8 %v8508
        %v8849 = vunpack.c.2.s8 %v8509
        %v8850 = vunpack.c.3.s8 %v8506
        %v8851 = vunpack.c.3.s8 %v8507
        %v8852 = vunpack.c.3.s8 %v8508
        %v8853 = vunpack.c.3.s8 %v8509
        %v8854 = vunpack.c.0.s8 %v8510
        %v8855 = vunpack.c.0.s8 %v8511
        %v8856 = vunpack.c.0.s8 %v8512
        %v8857 = vunpack.c.0.s8 %v8513
        %v8858 = vunpack.c.1.s8 %v8510
        %v8859 = vunpack.c.1.s8 %v8511
        %v8860 = vunpack.c.1.s8 %v8512
        %v8861 = vunpack.c.1.s8 %v8513
        %v8862 = vunpack.c.2.s8 %v8510
        %v8863 = vunpack.c.2.s8 %v8511
        %v8864 = vunpack.c.2.s8 %v8512
        %v8865 = vunpack.c.2.s8 %v8513
        %v8866 = vunpack.c.3.s8 %v8510
        %v8867 = vunpack.c.3.s8 %v8511
        %v8868 = vunpack.c.3.s8 %v8512
        %v8869 = vunpack.c.3.s8 %v8513
        %v8870 = vunpack.c.0.s8 %v8514
        %v8871 = vunpack.c.0.s8 %v8515
        %v8872 = vunpack.c.0.s8 %v8516
        %v8873 = vunpack.c.0.s8 %v8517
        %v8874 = vunpack.c.1.s8 %v8514
        %v8875 = vunpack.c.1.s8 %v8515
        %v8876 = vunpack.c.1.s8 %v8516
        %v8877 = vunpack.c.1.s8 %v8517
        %v8878 = vunpack.c.2.s8 %v8514
        %v8879 = vunpack.c.2.s8 %v8515
        %v8880 = vunpack.c.2.s8 %v8516
        %v8881 = vunpack.c.2.s8 %v8517
        %v8882 = vunpack.c.3.s8 %v8514
        %v8883 = vunpack.c.3.s8 %v8515
        %v8884 = vunpack.c.3.s8 %v8516
        %v8885 = vunpack.c.3.s8 %v8517
        %v8886 = vunpack.c.0.s8 %v8518
        %v8887 = vunpack.c.0.s8 %v8519
        %v8888 = vunpack.c.0.s8 %v8520
        %v8889 = vunpack.c.0.s8 %v8521
        %v8890 = vunpack.c.1.s8 %v8518
        %v8891 = vunpack.c.1.s8 %v8519
        %v8892 = vunpack.c.1.s8 %v8520
        %v8893 = vunpack.c.1.s8 %v8521
        %v8894 = vunpack.c.2.s8 %v8518
        %v8895 = vunpack.c.2.s8 %v8519
        %v8896 = vunpack.c.2.s8 %v8520
        %v8897 = vunpack.c.2.s8 %v8521
        %v8898 = vunpack.c.3.s8 %v8518
        %v8899 = vunpack.c.3.s8 %v8519
        %v8900 = vunpack.c.3.s8 %v8520
        %v8901 = vunpack.c.3.s8 %v8521
        %v8902 = vunpack.c.0.s8 %v8522
        %v8903 = vunpack.c.0.s8 %v8523
        %v8904 = vunpack.c.0.s8 %v8524
        %v8905 = vunpack.c.0.s8 %v8525
        %v8906 = vunpack.c.1.s8 %v8522
        %v8907 = vunpack.c.1.s8 %v8523
        %v8908 = vunpack.c.1.s8 %v8524
        %v8909 = vunpack.c.1.s8 %v8525
        %v8910 = vunpack.c.2.s8 %v8522
        %v8911 = vunpack.c.2.s8 %v8523
        %v8912 = vunpack.c.2.s8 %v8524
        %v8913 = vunpack.c.2.s8 %v8525
        %v8914 = vunpack.c.3.s8 %v8522
        %v8915 = vunpack.c.3.s8 %v8523
        %v8916 = vunpack.c.3.s8 %v8524
        %v8917 = vunpack.c.3.s8 %v8525
        %v8918 = vunpack.c.0.s8 %v8526
        %v8919 = vunpack.c.0.s8 %v8527
        %v8920 = vunpack.c.0.s8 %v8528
        %v8921 = vunpack.c.0.s8 %v8529
        %v8922 = vunpack.c.1.s8 %v8526
        %v8923 = vunpack.c.1.s8 %v8527
        %v8924 = vunpack.c.1.s8 %v8528
        %v8925 = vunpack.c.1.s8 %v8529
        %v8926 = vunpack.c.2.s8 %v8526
        %v8927 = vunpack.c.2.s8 %v8527
        %v8928 = vunpack.c.2.s8 %v8528
        %v8929 = vunpack.c.2.s8 %v8529
        %v8930 = vunpack.c.3.s8 %v8526
        %v8931 = vunpack.c.3.s8 %v8527
        %v8932 = vunpack.c.3.s8 %v8528
        %v8933 = vunpack.c.3.s8 %v8529
        %v8934 = vunpack.c.0.s8 %v8530
        %v8935 = vunpack.c.0.s8 %v8531
        %v8936 = vunpack.c.0.s8 %v8532
        %v8937 = vunpack.c.0.s8 %v8533
        %v8938 = vunpack.c.1.s8 %v8530
        %v8939 = vunpack.c.1.s8 %v8531
        %v8940 = vunpack.c.1.s8 %v8532
        %v8941 = vunpack.c.1.s8 %v8533
        %v8942 = vunpack.c.2.s8 %v8530
        %v8943 = vunpack.c.2.s8 %v8531
        %v8944 = vunpack.c.2.s8 %v8532
        %v8945 = vunpack.c.2.s8 %v8533
        %v8946 = vunpack.c.3.s8 %v8530
        %v8947 = vunpack.c.3.s8 %v8531
        %v8948 = vunpack.c.3.s8 %v8532
        %v8949 = vunpack.c.3.s8 %v8533
        %v8950 = vunpack.c.0.s8 %v8534
        %v8951 = vunpack.c.0.s8 %v8535
        %v8952 = vunpack.c.0.s8 %v8536
        %v8953 = vunpack.c.0.s8 %v8537
        %v8954 = vunpack.c.1.s8 %v8534
        %v8955 = vunpack.c.1.s8 %v8535
        %v8956 = vunpack.c.1.s8 %v8536
        %v8957 = vunpack.c.1.s8 %v8537
        %v8958 = vunpack.c.2.s8 %v8534
        %v8959 = vunpack.c.2.s8 %v8535
        %v8960 = vunpack.c.2.s8 %v8536
        %v8961 = vunpack.c.2.s8 %v8537
        %v8962 = vunpack.c.3.s8 %v8534
        %v8963 = vunpack.c.3.s8 %v8535
        %v8964 = vunpack.c.3.s8 %v8536
        %v8965 = vunpack.c.3.s8 %v8537
        %v8966 = vunpack.c.0.s8 %v8538
        %v8967 = vunpack.c.0.s8 %v8539
        %v8968 = vunpack.c.0.s8 %v8540
        %v8969 = vunpack.c.0.s8 %v8541
        %v8970 = vunpack.c.1.s8 %v8538
        %v8971 = vunpack.c.1.s8 %v8539
        %v8972 = vunpack.c.1.s8 %v8540
        %v8973 = vunpack.c.1.s8 %v8541
        %v8974 = vunpack.c.2.s8 %v8538
        %v8975 = vunpack.c.2.s8 %v8539
        %v8976 = vunpack.c.2.s8 %v8540
        %v8977 = vunpack.c.2.s8 %v8541
        %v8978 = vunpack.c.3.s8 %v8538
        %v8979 = vunpack.c.3.s8 %v8539
        %v8980 = vunpack.c.3.s8 %v8540
        %v8981 = vunpack.c.3.s8 %v8541
        %v8982 = vunpack.c.0.s8 %v8542
        %v8983 = vunpack.c.0.s8 %v8543
        %v8984 = vunpack.c.0.s8 %v8544
        %v8985 = vunpack.c.0.s8 %v8545
        %v8986 = vunpack.c.1.s8 %v8542
        %v8987 = vunpack.c.1.s8 %v8543
        %v8988 = vunpack.c.1.s8 %v8544
        %v8989 = vunpack.c.1.s8 %v8545
        %v8990 = vunpack.c.2.s8 %v8542
        %v8991 = vunpack.c.2.s8 %v8543
        %v8992 = vunpack.c.2.s8 %v8544
        %v8993 = vunpack.c.2.s8 %v8545
        %v8994 = vunpack.c.3.s8 %v8542
        %v8995 = vunpack.c.3.s8 %v8543
        %v8996 = vunpack.c.3.s8 %v8544
        %v8997 = vunpack.c.3.s8 %v8545
        %v8998 = vunpack.c.0.s8 %v8546
        %v8999 = vunpack.c.0.s8 %v8547
        %v9000 = vunpack.c.0.s8 %v8548
        %v9001 = vunpack.c.0.s8 %v8549
        %v9002 = vunpack.c.1.s8 %v8546
        %v9003 = vunpack.c.1.s8 %v8547
        %v9004 = vunpack.c.1.s8 %v8548
        %v9005 = vunpack.c.1.s8 %v8549
        %v9006 = vunpack.c.2.s8 %v8546
        %v9007 = vunpack.c.2.s8 %v8547
        %v9008 = vunpack.c.2.s8 %v8548
        %v9009 = vunpack.c.2.s8 %v8549
        %v9010 = vunpack.c.3.s8 %v8546
        %v9011 = vunpack.c.3.s8 %v8547
        %v9012 = vunpack.c.3.s8 %v8548
        %v9013 = vunpack.c.3.s8 %v8549
        %v9014 = vunpack.c.0.s8 %v8550
        %v9015 = vunpack.c.0.s8 %v8551
        %v9016 = vunpack.c.0.s8 %v8552
        %v9017 = vunpack.c.0.s8 %v8553
        %v9018 = vunpack.c.1.s8 %v8550
        %v9019 = vunpack.c.1.s8 %v8551
        %v9020 = vunpack.c.1.s8 %v8552
        %v9021 = vunpack.c.1.s8 %v8553
        %v9022 = vunpack.c.2.s8 %v8550
        %v9023 = vunpack.c.2.s8 %v8551
        %v9024 = vunpack.c.2.s8 %v8552
        %v9025 = vunpack.c.2.s8 %v8553
        %v9026 = vunpack.c.3.s8 %v8550
        %v9027 = vunpack.c.3.s8 %v8551
        %v9028 = vunpack.c.3.s8 %v8552
        %v9029 = vunpack.c.3.s8 %v8553
        %v9030 = vunpack.c.0.s8 %v8554
        %v9031 = vunpack.c.0.s8 %v8555
        %v9032 = vunpack.c.0.s8 %v8556
        %v9033 = vunpack.c.0.s8 %v8557
        %v9034 = vunpack.c.1.s8 %v8554
        %v9035 = vunpack.c.1.s8 %v8555
        %v9036 = vunpack.c.1.s8 %v8556
        %v9037 = vunpack.c.1.s8 %v8557
        %v9038 = vunpack.c.2.s8 %v8554
        %v9039 = vunpack.c.2.s8 %v8555
        %v9040 = vunpack.c.2.s8 %v8556
        %v9041 = vunpack.c.2.s8 %v8557
        %v9042 = vunpack.c.3.s8 %v8554
        %v9043 = vunpack.c.3.s8 %v8555
        %v9044 = vunpack.c.3.s8 %v8556
        %v9045 = vunpack.c.3.s8 %v8557
        %v9046 = vunpack.c.0.s8 %v8558
        %v9047 = vunpack.c.0.s8 %v8559
        %v9048 = vunpack.c.0.s8 %v8560
        %v9049 = vunpack.c.0.s8 %v8561
        %v9050 = vunpack.c.1.s8 %v8558
        %v9051 = vunpack.c.1.s8 %v8559
        %v9052 = vunpack.c.1.s8 %v8560
        %v9053 = vunpack.c.1.s8 %v8561
        %v9054 = vunpack.c.2.s8 %v8558
        %v9055 = vunpack.c.2.s8 %v8559
        %v9056 = vunpack.c.2.s8 %v8560
        %v9057 = vunpack.c.2.s8 %v8561
        %v9058 = vunpack.c.3.s8 %v8558
        %v9059 = vunpack.c.3.s8 %v8559
        %v9060 = vunpack.c.3.s8 %v8560
        %v9061 = vunpack.c.3.s8 %v8561
        %v9062 = vunpack.c.0.s8 %v8562
        %v9063 = vunpack.c.0.s8 %v8563
        %v9064 = vunpack.c.0.s8 %v8564
        %v9065 = vunpack.c.0.s8 %v8565
        %v9066 = vunpack.c.1.s8 %v8562
        %v9067 = vunpack.c.1.s8 %v8563
        %v9068 = vunpack.c.1.s8 %v8564
        %v9069 = vunpack.c.1.s8 %v8565
        %v9070 = vunpack.c.2.s8 %v8562
        %v9071 = vunpack.c.2.s8 %v8563
        %v9072 = vunpack.c.2.s8 %v8564
        %v9073 = vunpack.c.2.s8 %v8565
        %v9074 = vunpack.c.3.s8 %v8562
        %v9075 = vunpack.c.3.s8 %v8563
        %v9076 = vunpack.c.3.s8 %v8564
        %v9077 = vunpack.c.3.s8 %v8565
        %v9078 = vcvt.s32.f32 %v8566
        %v9079 = vcvt.s32.f32 %v8567
        %v9080 = vcvt.s32.f32 %v8568
        %v9081 = vcvt.s32.f32 %v8569
        %v9082 = vcvt.s32.f32 %v8570
        %v9083 = vcvt.s32.f32 %v8571
        %v9084 = vcvt.s32.f32 %v8572
        %v9085 = vcvt.s32.f32 %v8573
        %v9086 = vcvt.s32.f32 %v8574
        %v9087 = vcvt.s32.f32 %v8575
        %v9088 = vcvt.s32.f32 %v8576
        %v9089 = vcvt.s32.f32 %v8577
        %v9090 = vcvt.s32.f32 %v8578
        %v9091 = vcvt.s32.f32 %v8579
        %v9092 = vcvt.s32.f32 %v8580
        %v9093 = vcvt.s32.f32 %v8581
        %v9094 = vcvt.s32.f32 %v8582
        %v9095 = vcvt.s32.f32 %v8583
        %v9096 = vcvt.s32.f32 %v8584
        %v9097 = vcvt.s32.f32 %v8585
        %v9098 = vcvt.s32.f32 %v8586
        %v9099 = vcvt.s32.f32 %v8587
        %v9100 = vcvt.s32.f32 %v8588
        %v9101 = vcvt.s32.f32 %v8589
        %v9102 = vcvt.s32.f32 %v8590
        %v9103 = vcvt.s32.f32 %v8591
        %v9104 = vcvt.s32.f32 %v8592
        %v9105 = vcvt.s32.f32 %v8593
        %v9106 = vcvt.s32.f32 %v8594
        %v9107 = vcvt.s32.f32 %v8595
        %v9108 = vcvt.s32.f32 %v8596
        %v9109 = vcvt.s32.f32 %v8597
        %v9110 = vcvt.s32.f32 %v8598
        %v9111 = vcvt.s32.f32 %v8599
        %v9112 = vcvt.s32.f32 %v8600
        %v9113 = vcvt.s32.f32 %v8601
        %v9114 = vcvt.s32.f32 %v8602
        %v9115 = vcvt.s32.f32 %v8603
        %v9116 = vcvt.s32.f32 %v8604
        %v9117 = vcvt.s32.f32 %v8605
        %v9118 = vcvt.s32.f32 %v8606
        %v9119 = vcvt.s32.f32 %v8607
        %v9120 = vcvt.s32.f32 %v8608
        %v9121 = vcvt.s32.f32 %v8609
        %v9122 = vcvt.s32.f32 %v8610
        %v9123 = vcvt.s32.f32 %v8611
        %v9124 = vcvt.s32.f32 %v8612
        %v9125 = vcvt.s32.f32 %v8613
        %v9126 = vcvt.s32.f32 %v8614
        %v9127 = vcvt.s32.f32 %v8615
        %v9128 = vcvt.s32.f32 %v8616
        %v9129 = vcvt.s32.f32 %v8617
        %v9130 = vcvt.s32.f32 %v8618
        %v9131 = vcvt.s32.f32 %v8619
        %v9132 = vcvt.s32.f32 %v8620
        %v9133 = vcvt.s32.f32 %v8621
        %v9134 = vcvt.s32.f32 %v8622
        %v9135 = vcvt.s32.f32 %v8623
        %v9136 = vcvt.s32.f32 %v8624
        %v9137 = vcvt.s32.f32 %v8625
        %v9138 = vcvt.s32.f32 %v8626
        %v9139 = vcvt.s32.f32 %v8627
        %v9140 = vcvt.s32.f32 %v8628
        %v9141 = vcvt.s32.f32 %v8629
        %v9142 = vcvt.s32.f32 %v8630
        %v9143 = vcvt.s32.f32 %v8631
        %v9144 = vcvt.s32.f32 %v8632
        %v9145 = vcvt.s32.f32 %v8633
        %v9146 = vcvt.s32.f32 %v8634
        %v9147 = vcvt.s32.f32 %v8635
        %v9148 = vcvt.s32.f32 %v8636
        %v9149 = vcvt.s32.f32 %v8637
        %v9150 = vcvt.s32.f32 %v8638
        %v9151 = vcvt.s32.f32 %v8639
        %v9152 = vcvt.s32.f32 %v8640
        %v9153 = vcvt.s32.f32 %v8641
        %v9154 = vcvt.s32.f32 %v8642
        %v9155 = vcvt.s32.f32 %v8643
        %v9156 = vcvt.s32.f32 %v8644
        %v9157 = vcvt.s32.f32 %v8645
        %v9158 = vcvt.s32.f32 %v8646
        %v9159 = vcvt.s32.f32 %v8647
        %v9160 = vcvt.s32.f32 %v8648
        %v9161 = vcvt.s32.f32 %v8649
        %v9162 = vcvt.s32.f32 %v8650
        %v9163 = vcvt.s32.f32 %v8651
        %v9164 = vcvt.s32.f32 %v8652
        %v9165 = vcvt.s32.f32 %v8653
        %v9166 = vcvt.s32.f32 %v8654
        %v9167 = vcvt.s32.f32 %v8655
        %v9168 = vcvt.s32.f32 %v8656
        %v9169 = vcvt.s32.f32 %v8657
        %v9170 = vcvt.s32.f32 %v8658
        %v9171 = vcvt.s32.f32 %v8659
        %v9172 = vcvt.s32.f32 %v8660
        %v9173 = vcvt.s32.f32 %v8661
        %v9174 = vcvt.s32.f32 %v8662
        %v9175 = vcvt.s32.f32 %v8663
        %v9176 = vcvt.s32.f32 %v8664
        %v9177 = vcvt.s32.f32 %v8665
        %v9178 = vcvt.s32.f32 %v8666
        %v9179 = vcvt.s32.f32 %v8667
        %v9180 = vcvt.s32.f32 %v8668
        %v9181 = vcvt.s32.f32 %v8669
        %v9182 = vcvt.s32.f32 %v8670
        %v9183 = vcvt.s32.f32 %v8671
        %v9184 = vcvt.s32.f32 %v8672
        %v9185 = vcvt.s32.f32 %v8673
        %v9186 = vcvt.s32.f32 %v8674
        %v9187 = vcvt.s32.f32 %v8675
        %v9188 = vcvt.s32.f32 %v8676
        %v9189 = vcvt.s32.f32 %v8677
        %v9190 = vcvt.s32.f32 %v8678
        %v9191 = vcvt.s32.f32 %v8679
        %v9192 = vcvt.s32.f32 %v8680
        %v9193 = vcvt.s32.f32 %v8681
        %v9194 = vcvt.s32.f32 %v8682
        %v9195 = vcvt.s32.f32 %v8683
        %v9196 = vcvt.s32.f32 %v8684
        %v9197 = vcvt.s32.f32 %v8685
        %v9198 = vcvt.s32.f32 %v8686
        %v9199 = vcvt.s32.f32 %v8687
        %v9200 = vcvt.s32.f32 %v8688
        %v9201 = vcvt.s32.f32 %v8689
        %v9202 = vcvt.s32.f32 %v8690
        %v9203 = vcvt.s32.f32 %v8691
        %v9204 = vcvt.s32.f32 %v8692
        %v9205 = vcvt.s32.f32 %v8693
        %v9206 = vcvt.s32.f32 %v8694
        %v9207 = vcvt.s32.f32 %v8695
        %v9208 = vcvt.s32.f32 %v8696
        %v9209 = vcvt.s32.f32 %v8697
        %v9210 = vcvt.s32.f32 %v8698
        %v9211 = vcvt.s32.f32 %v8699
        %v9212 = vcvt.s32.f32 %v8700
        %v9213 = vcvt.s32.f32 %v8701
        %v9214 = vcvt.s32.f32 %v8702
        %v9215 = vcvt.s32.f32 %v8703
        %v9216 = vcvt.s32.f32 %v8704
        %v9217 = vcvt.s32.f32 %v8705
        %v9218 = vcvt.s32.f32 %v8706
        %v9219 = vcvt.s32.f32 %v8707
        %v9220 = vcvt.s32.f32 %v8708
        %v9221 = vcvt.s32.f32 %v8709
        %v9222 = vcvt.s32.f32 %v8710
        %v9223 = vcvt.s32.f32 %v8711
        %v9224 = vcvt.s32.f32 %v8712
        %v9225 = vcvt.s32.f32 %v8713
        %v9226 = vcvt.s32.f32 %v8714
        %v9227 = vcvt.s32.f32 %v8715
        %v9228 = vcvt.s32.f32 %v8716
        %v9229 = vcvt.s32.f32 %v8717
        %v9230 = vcvt.s32.f32 %v8718
        %v9231 = vcvt.s32.f32 %v8719
        %v9232 = vcvt.s32.f32 %v8720
        %v9233 = vcvt.s32.f32 %v8721
        %v9234 = vcvt.s32.f32 %v8722
        %v9235 = vcvt.s32.f32 %v8723
        %v9236 = vcvt.s32.f32 %v8724
        %v9237 = vcvt.s32.f32 %v8725
        %v9238 = vcvt.s32.f32 %v8726
        %v9239 = vcvt.s32.f32 %v8727
        %v9240 = vcvt.s32.f32 %v8728
        %v9241 = vcvt.s32.f32 %v8729
        %v9242 = vcvt.s32.f32 %v8730
        %v9243 = vcvt.s32.f32 %v8731
        %v9244 = vcvt.s32.f32 %v8732
        %v9245 = vcvt.s32.f32 %v8733
        %v9246 = vcvt.s32.f32 %v8734
        %v9247 = vcvt.s32.f32 %v8735
        %v9248 = vcvt.s32.f32 %v8736
        %v9249 = vcvt.s32.f32 %v8737
        %v9250 = vcvt.s32.f32 %v8738
        %v9251 = vcvt.s32.f32 %v8739
        %v9252 = vcvt.s32.f32 %v8740
        %v9253 = vcvt.s32.f32 %v8741
        %v9254 = vcvt.s32.f32 %v8742
        %v9255 = vcvt.s32.f32 %v8743
        %v9256 = vcvt.s32.f32 %v8744
        %v9257 = vcvt.s32.f32 %v8745
        %v9258 = vcvt.s32.f32 %v8746
        %v9259 = vcvt.s32.f32 %v8747
        %v9260 = vcvt.s32.f32 %v8748
        %v9261 = vcvt.s32.f32 %v8749
        %v9262 = vcvt.s32.f32 %v8750
        %v9263 = vcvt.s32.f32 %v8751
        %v9264 = vcvt.s32.f32 %v8752
        %v9265 = vcvt.s32.f32 %v8753
        %v9266 = vcvt.s32.f32 %v8754
        %v9267 = vcvt.s32.f32 %v8755
        %v9268 = vcvt.s32.f32 %v8756
        %v9269 = vcvt.s32.f32 %v8757
        %v9270 = vcvt.s32.f32 %v8758
        %v9271 = vcvt.s32.f32 %v8759
        %v9272 = vcvt.s32.f32 %v8760
        %v9273 = vcvt.s32.f32 %v8761
        %v9274 = vcvt.s32.f32 %v8762
        %v9275 = vcvt.s32.f32 %v8763
        %v9276 = vcvt.s32.f32 %v8764
        %v9277 = vcvt.s32.f32 %v8765
        %v9278 = vcvt.s32.f32 %v8766
        %v9279 = vcvt.s32.f32 %v8767
        %v9280 = vcvt.s32.f32 %v8768
        %v9281 = vcvt.s32.f32 %v8769
        %v9282 = vcvt.s32.f32 %v8770
        %v9283 = vcvt.s32.f32 %v8771
        %v9284 = vcvt.s32.f32 %v8772
        %v9285 = vcvt.s32.f32 %v8773
        %v9286 = vcvt.s32.f32 %v8774
        %v9287 = vcvt.s32.f32 %v8775
        %v9288 = vcvt.s32.f32 %v8776
        %v9289 = vcvt.s32.f32 %v8777
        %v9290 = vcvt.s32.f32 %v8778
        %v9291 = vcvt.s32.f32 %v8779
        %v9292 = vcvt.s32.f32 %v8780
        %v9293 = vcvt.s32.f32 %v8781
        %v9294 = vcvt.s32.f32 %v8782
        %v9295 = vcvt.s32.f32 %v8783
        %v9296 = vcvt.s32.f32 %v8784
        %v9297 = vcvt.s32.f32 %v8785
        %v9298 = vcvt.s32.f32 %v8786
        %v9299 = vcvt.s32.f32 %v8787
        %v9300 = vcvt.s32.f32 %v8788
        %v9301 = vcvt.s32.f32 %v8789
        %v9302 = vcvt.s32.f32 %v8790
        %v9303 = vcvt.s32.f32 %v8791
        %v9304 = vcvt.s32.f32 %v8792
        %v9305 = vcvt.s32.f32 %v8793
        %v9306 = vcvt.s32.f32 %v8794
        %v9307 = vcvt.s32.f32 %v8795
        %v9308 = vcvt.s32.f32 %v8796
        %v9309 = vcvt.s32.f32 %v8797
        %v9310 = vcvt.s32.f32 %v8798
        %v9311 = vcvt.s32.f32 %v8799
        %v9312 = vcvt.s32.f32 %v8800
        %v9313 = vcvt.s32.f32 %v8801
        %v9314 = vcvt.s32.f32 %v8802
        %v9315 = vcvt.s32.f32 %v8803
        %v9316 = vcvt.s32.f32 %v8804
        %v9317 = vcvt.s32.f32 %v8805
        %v9318 = vcvt.s32.f32 %v8806
        %v9319 = vcvt.s32.f32 %v8807
        %v9320 = vcvt.s32.f32 %v8808
        %v9321 = vcvt.s32.f32 %v8809
        %v9322 = vcvt.s32.f32 %v8810
        %v9323 = vcvt.s32.f32 %v8811
        %v9324 = vcvt.s32.f32 %v8812
        %v9325 = vcvt.s32.f32 %v8813
        %v9326 = vcvt.s32.f32 %v8814
        %v9327 = vcvt.s32.f32 %v8815
        %v9328 = vcvt.s32.f32 %v8816
        %v9329 = vcvt.s32.f32 %v8817
        %v9330 = vcvt.s32.f32 %v8818
        %v9331 = vcvt.s32.f32 %v8819
        %v9332 = vcvt.s32.f32 %v8820
        %v9333 = vcvt.s32.f32 %v8821
        %v9334 = vcvt.s32.f32 %v8822
        %v9335 = vcvt.s32.f32 %v8823
        %v9336 = vcvt.s32.f32 %v8824
        %v9337 = vcvt.s32.f32 %v8825
        %v9338 = vcvt.s32.f32 %v8826
        %v9339 = vcvt.s32.f32 %v8827
        %v9340 = vcvt.s32.f32 %v8828
        %v9341 = vcvt.s32.f32 %v8829
        %v9342 = vcvt.s32.f32 %v8830
        %v9343 = vcvt.s32.f32 %v8831
        %v9344 = vcvt.s32.f32 %v8832
        %v9345 = vcvt.s32.f32 %v8833
        %v9346 = vcvt.s32.f32 %v8834
        %v9347 = vcvt.s32.f32 %v8835
        %v9348 = vcvt.s32.f32 %v8836
        %v9349 = vcvt.s32.f32 %v8837
        %v9350 = vcvt.s32.f32 %v8838
        %v9351 = vcvt.s32.f32 %v8839
        %v9352 = vcvt.s32.f32 %v8840
        %v9353 = vcvt.s32.f32 %v8841
        %v9354 = vcvt.s32.f32 %v8842
        %v9355 = vcvt.s32.f32 %v8843
        %v9356 = vcvt.s32.f32 %v8844
        %v9357 = vcvt.s32.f32 %v8845
        %v9358 = vcvt.s32.f32 %v8846
        %v9359 = vcvt.s32.f32 %v8847
        %v9360 = vcvt.s32.f32 %v8848
        %v9361 = vcvt.s32.f32 %v8849
        %v9362 = vcvt.s32.f32 %v8850
        %v9363 = vcvt.s32.f32 %v8851
        %v9364 = vcvt.s32.f32 %v8852
        %v9365 = vcvt.s32.f32 %v8853
        %v9366 = vcvt.s32.f32 %v8854
        %v9367 = vcvt.s32.f32 %v8855
        %v9368 = vcvt.s32.f32 %v8856
        %v9369 = vcvt.s32.f32 %v8857
        %v9370 = vcvt.s32.f32 %v8858
        %v9371 = vcvt.s32.f32 %v8859
        %v9372 = vcvt.s32.f32 %v8860
        %v9373 = vcvt.s32.f32 %v8861
        %v9374 = vcvt.s32.f32 %v8862
        %v9375 = vcvt.s32.f32 %v8863
        %v9376 = vcvt.s32.f32 %v8864
        %v9377 = vcvt.s32.f32 %v8865
        %v9378 = vcvt.s32.f32 %v8866
        %v9379 = vcvt.s32.f32 %v8867
        %v9380 = vcvt.s32.f32 %v8868
        %v9381 = vcvt.s32.f32 %v8869
        %v9382 = vcvt.s32.f32 %v8870
        %v9383 = vcvt.s32.f32 %v8871
        %v9384 = vcvt.s32.f32 %v8872
        %v9385 = vcvt.s32.f32 %v8873
        %v9386 = vcvt.s32.f32 %v8874
        %v9387 = vcvt.s32.f32 %v8875
        %v9388 = vcvt.s32.f32 %v8876
        %v9389 = vcvt.s32.f32 %v8877
        %v9390 = vcvt.s32.f32 %v8878
        %v9391 = vcvt.s32.f32 %v8879
        %v9392 = vcvt.s32.f32 %v8880
        %v9393 = vcvt.s32.f32 %v8881
        %v9394 = vcvt.s32.f32 %v8882
        %v9395 = vcvt.s32.f32 %v8883
        %v9396 = vcvt.s32.f32 %v8884
        %v9397 = vcvt.s32.f32 %v8885
        %v9398 = vcvt.s32.f32 %v8886
        %v9399 = vcvt.s32.f32 %v8887
        %v9400 = vcvt.s32.f32 %v8888
        %v9401 = vcvt.s32.f32 %v8889
        %v9402 = vcvt.s32.f32 %v8890
        %v9403 = vcvt.s32.f32 %v8891
        %v9404 = vcvt.s32.f32 %v8892
        %v9405 = vcvt.s32.f32 %v8893
        %v9406 = vcvt.s32.f32 %v8894
        %v9407 = vcvt.s32.f32 %v8895
        %v9408 = vcvt.s32.f32 %v8896
        %v9409 = vcvt.s32.f32 %v8897
        %v9410 = vcvt.s32.f32 %v8898
        %v9411 = vcvt.s32.f32 %v8899
        %v9412 = vcvt.s32.f32 %v8900
        %v9413 = vcvt.s32.f32 %v8901
        %v9414 = vcvt.s32.f32 %v8902
        %v9415 = vcvt.s32.f32 %v8903
        %v9416 = vcvt.s32.f32 %v8904
        %v9417 = vcvt.s32.f32 %v8905
        %v9418 = vcvt.s32.f32 %v8906
        %v9419 = vcvt.s32.f32 %v8907
        %v9420 = vcvt.s32.f32 %v8908
        %v9421 = vcvt.s32.f32 %v8909
        %v9422 = vcvt.s32.f32 %v8910
        %v9423 = vcvt.s32.f32 %v8911
        %v9424 = vcvt.s32.f32 %v8912
        %v9425 = vcvt.s32.f32 %v8913
        %v9426 = vcvt.s32.f32 %v8914
        %v9427 = vcvt.s32.f32 %v8915
        %v9428 = vcvt.s32.f32 %v8916
        %v9429 = vcvt.s32.f32 %v8917
        %v9430 = vcvt.s32.f32 %v8918
        %v9431 = vcvt.s32.f32 %v8919
        %v9432 = vcvt.s32.f32 %v8920
        %v9433 = vcvt.s32.f32 %v8921
        %v9434 = vcvt.s32.f32 %v8922
        %v9435 = vcvt.s32.f32 %v8923
        %v9436 = vcvt.s32.f32 %v8924
        %v9437 = vcvt.s32.f32 %v8925
        %v9438 = vcvt.s32.f32 %v8926
        %v9439 = vcvt.s32.f32 %v8927
        %v9440 = vcvt.s32.f32 %v8928
        %v9441 = vcvt.s32.f32 %v8929
        %v9442 = vcvt.s32.f32 %v8930
        %v9443 = vcvt.s32.f32 %v8931
        %v9444 = vcvt.s32.f32 %v8932
        %v9445 = vcvt.s32.f32 %v8933
        %v9446 = vcvt.s32.f32 %v8934
        %v9447 = vcvt.s32.f32 %v8935
        %v9448 = vcvt.s32.f32 %v8936
        %v9449 = vcvt.s32.f32 %v8937
        %v9450 = vcvt.s32.f32 %v8938
        %v9451 = vcvt.s32.f32 %v8939
        %v9452 = vcvt.s32.f32 %v8940
        %v9453 = vcvt.s32.f32 %v8941
        %v9454 = vcvt.s32.f32 %v8942
        %v9455 = vcvt.s32.f32 %v8943
        %v9456 = vcvt.s32.f32 %v8944
        %v9457 = vcvt.s32.f32 %v8945
        %v9458 = vcvt.s32.f32 %v8946
        %v9459 = vcvt.s32.f32 %v8947
        %v9460 = vcvt.s32.f32 %v8948
        %v9461 = vcvt.s32.f32 %v8949
        %v9462 = vcvt.s32.f32 %v8950
        %v9463 = vcvt.s32.f32 %v8951
        %v9464 = vcvt.s32.f32 %v8952
        %v9465 = vcvt.s32.f32 %v8953
        %v9466 = vcvt.s32.f32 %v8954
        %v9467 = vcvt.s32.f32 %v8955
        %v9468 = vcvt.s32.f32 %v8956
        %v9469 = vcvt.s32.f32 %v8957
        %v9470 = vcvt.s32.f32 %v8958
        %v9471 = vcvt.s32.f32 %v8959
        %v9472 = vcvt.s32.f32 %v8960
        %v9473 = vcvt.s32.f32 %v8961
        %v9474 = vcvt.s32.f32 %v8962
        %v9475 = vcvt.s32.f32 %v8963
        %v9476 = vcvt.s32.f32 %v8964
        %v9477 = vcvt.s32.f32 %v8965
        %v9478 = vcvt.s32.f32 %v8966
        %v9479 = vcvt.s32.f32 %v8967
        %v9480 = vcvt.s32.f32 %v8968
        %v9481 = vcvt.s32.f32 %v8969
        %v9482 = vcvt.s32.f32 %v8970
        %v9483 = vcvt.s32.f32 %v8971
        %v9484 = vcvt.s32.f32 %v8972
        %v9485 = vcvt.s32.f32 %v8973
        %v9486 = vcvt.s32.f32 %v8974
        %v9487 = vcvt.s32.f32 %v8975
        %v9488 = vcvt.s32.f32 %v8976
        %v9489 = vcvt.s32.f32 %v8977
        %v9490 = vcvt.s32.f32 %v8978
        %v9491 = vcvt.s32.f32 %v8979
        %v9492 = vcvt.s32.f32 %v8980
        %v9493 = vcvt.s32.f32 %v8981
        %v9494 = vcvt.s32.f32 %v8982
        %v9495 = vcvt.s32.f32 %v8983
        %v9496 = vcvt.s32.f32 %v8984
        %v9497 = vcvt.s32.f32 %v8985
        %v9498 = vcvt.s32.f32 %v8986
        %v9499 = vcvt.s32.f32 %v8987
        %v9500 = vcvt.s32.f32 %v8988
        %v9501 = vcvt.s32.f32 %v8989
        %v9502 = vcvt.s32.f32 %v8990
        %v9503 = vcvt.s32.f32 %v8991
        %v9504 = vcvt.s32.f32 %v8992
        %v9505 = vcvt.s32.f32 %v8993
        %v9506 = vcvt.s32.f32 %v8994
        %v9507 = vcvt.s32.f32 %v8995
        %v9508 = vcvt.s32.f32 %v8996
        %v9509 = vcvt.s32.f32 %v8997
        %v9510 = vcvt.s32.f32 %v8998
        %v9511 = vcvt.s32.f32 %v8999
        %v9512 = vcvt.s32.f32 %v9000
        %v9513 = vcvt.s32.f32 %v9001
        %v9514 = vcvt.s32.f32 %v9002
        %v9515 = vcvt.s32.f32 %v9003
        %v9516 = vcvt.s32.f32 %v9004
        %v9517 = vcvt.s32.f32 %v9005
        %v9518 = vcvt.s32.f32 %v9006
        %v9519 = vcvt.s32.f32 %v9007
        %v9520 = vcvt.s32.f32 %v9008
        %v9521 = vcvt.s32.f32 %v9009
        %v9522 = vcvt.s32.f32 %v9010
        %v9523 = vcvt.s32.f32 %v9011
        %v9524 = vcvt.s32.f32 %v9012
        %v9525 = vcvt.s32.f32 %v9013
        %v9526 = vcvt.s32.f32 %v9014
        %v9527 = vcvt.s32.f32 %v9015
        %v9528 = vcvt.s32.f32 %v9016
        %v9529 = vcvt.s32.f32 %v9017
        %v9530 = vcvt.s32.f32 %v9018
        %v9531 = vcvt.s32.f32 %v9019
        %v9532 = vcvt.s32.f32 %v9020
        %v9533 = vcvt.s32.f32 %v9021
        %v9534 = vcvt.s32.f32 %v9022
        %v9535 = vcvt.s32.f32 %v9023
        %v9536 = vcvt.s32.f32 %v9024
        %v9537 = vcvt.s32.f32 %v9025
        %v9538 = vcvt.s32.f32 %v9026
        %v9539 = vcvt.s32.f32 %v9027
        %v9540 = vcvt.s32.f32 %v9028
        %v9541 = vcvt.s32.f32 %v9029
        %v9542 = vcvt.s32.f32 %v9030
        %v9543 = vcvt.s32.f32 %v9031
        %v9544 = vcvt.s32.f32 %v9032
        %v9545 = vcvt.s32.f32 %v9033
        %v9546 = vcvt.s32.f32 %v9034
        %v9547 = vcvt.s32.f32 %v9035
        %v9548 = vcvt.s32.f32 %v9036
        %v9549 = vcvt.s32.f32 %v9037
        %v9550 = vcvt.s32.f32 %v9038
        %v9551 = vcvt.s32.f32 %v9039
        %v9552 = vcvt.s32.f32 %v9040
        %v9553 = vcvt.s32.f32 %v9041
        %v9554 = vcvt.s32.f32 %v9042
        %v9555 = vcvt.s32.f32 %v9043
        %v9556 = vcvt.s32.f32 %v9044
        %v9557 = vcvt.s32.f32 %v9045
        %v9558 = vcvt.s32.f32 %v9046
        %v9559 = vcvt.s32.f32 %v9047
        %v9560 = vcvt.s32.f32 %v9048
        %v9561 = vcvt.s32.f32 %v9049
        %v9562 = vcvt.s32.f32 %v9050
        %v9563 = vcvt.s32.f32 %v9051
        %v9564 = vcvt.s32.f32 %v9052
        %v9565 = vcvt.s32.f32 %v9053
        %v9566 = vcvt.s32.f32 %v9054
        %v9567 = vcvt.s32.f32 %v9055
        %v9568 = vcvt.s32.f32 %v9056
        %v9569 = vcvt.s32.f32 %v9057
        %v9570 = vcvt.s32.f32 %v9058
        %v9571 = vcvt.s32.f32 %v9059
        %v9572 = vcvt.s32.f32 %v9060
        %v9573 = vcvt.s32.f32 %v9061
        %v9574 = vcvt.s32.f32 %v9062
        %v9575 = vcvt.s32.f32 %v9063
        %v9576 = vcvt.s32.f32 %v9064
        %v9577 = vcvt.s32.f32 %v9065
        %v9578 = vcvt.s32.f32 %v9066
        %v9579 = vcvt.s32.f32 %v9067
        %v9580 = vcvt.s32.f32 %v9068
        %v9581 = vcvt.s32.f32 %v9069
        %v9582 = vcvt.s32.f32 %v9070
        %v9583 = vcvt.s32.f32 %v9071
        %v9584 = vcvt.s32.f32 %v9072
        %v9585 = vcvt.s32.f32 %v9073
        %v9586 = vcvt.s32.f32 %v9074
        %v9587 = vcvt.s32.f32 %v9075
        %v9588 = vcvt.s32.f32 %v9076
        %v9589 = vcvt.s32.f32 %v9077
        %v9590 = vpack.c.bf16 %v9082, %v9078
        %v9591 = vpack.c.bf16 %v9083, %v9079
        %v9592 = vpack.c.bf16 %v9084, %v9080
        %v9593 = vpack.c.bf16 %v9085, %v9081
        %v9594 = vpack.c.bf16 %v9090, %v9086
        %v9595 = vpack.c.bf16 %v9091, %v9087
        %v9596 = vpack.c.bf16 %v9092, %v9088
        %v9597 = vpack.c.bf16 %v9093, %v9089
        %v9598 = vpack.c.bf16 %v9098, %v9094
        %v9599 = vpack.c.bf16 %v9099, %v9095
        %v9600 = vpack.c.bf16 %v9100, %v9096
        %v9601 = vpack.c.bf16 %v9101, %v9097
        %v9602 = vpack.c.bf16 %v9106, %v9102
        %v9603 = vpack.c.bf16 %v9107, %v9103
        %v9604 = vpack.c.bf16 %v9108, %v9104
        %v9605 = vpack.c.bf16 %v9109, %v9105
        %v9606 = vpack.c.bf16 %v9114, %v9110
        %v9607 = vpack.c.bf16 %v9115, %v9111
        %v9608 = vpack.c.bf16 %v9116, %v9112
        %v9609 = vpack.c.bf16 %v9117, %v9113
        %v9610 = vpack.c.bf16 %v9122, %v9118
        %v9611 = vpack.c.bf16 %v9123, %v9119
        %v9612 = vpack.c.bf16 %v9124, %v9120
        %v9613 = vpack.c.bf16 %v9125, %v9121
        %v9614 = vpack.c.bf16 %v9130, %v9126
        %v9615 = vpack.c.bf16 %v9131, %v9127
        %v9616 = vpack.c.bf16 %v9132, %v9128
        %v9617 = vpack.c.bf16 %v9133, %v9129
        %v9618 = vpack.c.bf16 %v9138, %v9134
        %v9619 = vpack.c.bf16 %v9139, %v9135
        %v9620 = vpack.c.bf16 %v9140, %v9136
        %v9621 = vpack.c.bf16 %v9141, %v9137
        %v9622 = vpack.c.bf16 %v9146, %v9142
        %v9623 = vpack.c.bf16 %v9147, %v9143
        %v9624 = vpack.c.bf16 %v9148, %v9144
        %v9625 = vpack.c.bf16 %v9149, %v9145
        %v9626 = vpack.c.bf16 %v9154, %v9150
        %v9627 = vpack.c.bf16 %v9155, %v9151
        %v9628 = vpack.c.bf16 %v9156, %v9152
        %v9629 = vpack.c.bf16 %v9157, %v9153
        %v9630 = vpack.c.bf16 %v9162, %v9158
        %v9631 = vpack.c.bf16 %v9163, %v9159
        %v9632 = vpack.c.bf16 %v9164, %v9160
        %v9633 = vpack.c.bf16 %v9165, %v9161
        %v9634 = vpack.c.bf16 %v9170, %v9166
        %v9635 = vpack.c.bf16 %v9171, %v9167
        %v9636 = vpack.c.bf16 %v9172, %v9168
        %v9637 = vpack.c.bf16 %v9173, %v9169
        %v9638 = vpack.c.bf16 %v9178, %v9174
        %v9639 = vpack.c.bf16 %v9179, %v9175
        %v9640 = vpack.c.bf16 %v9180, %v9176
        %v9641 = vpack.c.bf16 %v9181, %v9177
        %v9642 = vpack.c.bf16 %v9186, %v9182
        %v9643 = vpack.c.bf16 %v9187, %v9183
        %v9644 = vpack.c.bf16 %v9188, %v9184
        %v9645 = vpack.c.bf16 %v9189, %v9185
        %v9646 = vpack.c.bf16 %v9194, %v9190
        %v9647 = vpack.c.bf16 %v9195, %v9191
        %v9648 = vpack.c.bf16 %v9196, %v9192
        %v9649 = vpack.c.bf16 %v9197, %v9193
        %v9650 = vpack.c.bf16 %v9202, %v9198
        %v9651 = vpack.c.bf16 %v9203, %v9199
        %v9652 = vpack.c.bf16 %v9204, %v9200
        %v9653 = vpack.c.bf16 %v9205, %v9201
        %v9654 = vpack.c.bf16 %v9210, %v9206
        %v9655 = vpack.c.bf16 %v9211, %v9207
        %v9656 = vpack.c.bf16 %v9212, %v9208
        %v9657 = vpack.c.bf16 %v9213, %v9209
        %v9658 = vpack.c.bf16 %v9218, %v9214
        %v9659 = vpack.c.bf16 %v9219, %v9215
        %v9660 = vpack.c.bf16 %v9220, %v9216
        %v9661 = vpack.c.bf16 %v9221, %v9217
        %v9662 = vpack.c.bf16 %v9226, %v9222
        %v9663 = vpack.c.bf16 %v9227, %v9223
        %v9664 = vpack.c.bf16 %v9228, %v9224
        %v9665 = vpack.c.bf16 %v9229, %v9225
        %v9666 = vpack.c.bf16 %v9234, %v9230
        %v9667 = vpack.c.bf16 %v9235, %v9231
        %v9668 = vpack.c.bf16 %v9236, %v9232
        %v9669 = vpack.c.bf16 %v9237, %v9233
        %v9670 = vpack.c.bf16 %v9242, %v9238
        %v9671 = vpack.c.bf16 %v9243, %v9239
        %v9672 = vpack.c.bf16 %v9244, %v9240
        %v9673 = vpack.c.bf16 %v9245, %v9241
        %v9674 = vpack.c.bf16 %v9250, %v9246
        %v9675 = vpack.c.bf16 %v9251, %v9247
        %v9676 = vpack.c.bf16 %v9252, %v9248
        %v9677 = vpack.c.bf16 %v9253, %v9249
        %v9678 = vpack.c.bf16 %v9258, %v9254
        %v9679 = vpack.c.bf16 %v9259, %v9255
        %v9680 = vpack.c.bf16 %v9260, %v9256
        %v9681 = vpack.c.bf16 %v9261, %v9257
        %v9682 = vpack.c.bf16 %v9266, %v9262
        %v9683 = vpack.c.bf16 %v9267, %v9263
        %v9684 = vpack.c.bf16 %v9268, %v9264
        %v9685 = vpack.c.bf16 %v9269, %v9265
        %v9686 = vpack.c.bf16 %v9274, %v9270
        %v9687 = vpack.c.bf16 %v9275, %v9271
        %v9688 = vpack.c.bf16 %v9276, %v9272
        %v9689 = vpack.c.bf16 %v9277, %v9273
        %v9690 = vpack.c.bf16 %v9282, %v9278
        %v9691 = vpack.c.bf16 %v9283, %v9279
        %v9692 = vpack.c.bf16 %v9284, %v9280
        %v9693 = vpack.c.bf16 %v9285, %v9281
        %v9694 = vpack.c.bf16 %v9290, %v9286
        %v9695 = vpack.c.bf16 %v9291, %v9287
        %v9696 = vpack.c.bf16 %v9292, %v9288
        %v9697 = vpack.c.bf16 %v9293, %v9289
        %v9698 = vpack.c.bf16 %v9298, %v9294
        %v9699 = vpack.c.bf16 %v9299, %v9295
        %v9700 = vpack.c.bf16 %v9300, %v9296
        %v9701 = vpack.c.bf16 %v9301, %v9297
        %v9702 = vpack.c.bf16 %v9306, %v9302
        %v9703 = vpack.c.bf16 %v9307, %v9303
        %v9704 = vpack.c.bf16 %v9308, %v9304
        %v9705 = vpack.c.bf16 %v9309, %v9305
        %v9706 = vpack.c.bf16 %v9314, %v9310
        %v9707 = vpack.c.bf16 %v9315, %v9311
        %v9708 = vpack.c.bf16 %v9316, %v9312
        %v9709 = vpack.c.bf16 %v9317, %v9313
        %v9710 = vpack.c.bf16 %v9322, %v9318
        %v9711 = vpack.c.bf16 %v9323, %v9319
        %v9712 = vpack.c.bf16 %v9324, %v9320
        %v9713 = vpack.c.bf16 %v9325, %v9321
        %v9714 = vpack.c.bf16 %v9330, %v9326
        %v9715 = vpack.c.bf16 %v9331, %v9327
        %v9716 = vpack.c.bf16 %v9332, %v9328
        %v9717 = vpack.c.bf16 %v9333, %v9329
        %v9718 = vpack.c.bf16 %v9338, %v9334
        %v9719 = vpack.c.bf16 %v9339, %v9335
        %v9720 = vpack.c.bf16 %v9340, %v9336
        %v9721 = vpack.c.bf16 %v9341, %v9337
        %v9722 = vpack.c.bf16 %v9346, %v9342
        %v9723 = vpack.c.bf16 %v9347, %v9343
        %v9724 = vpack.c.bf16 %v9348, %v9344
        %v9725 = vpack.c.bf16 %v9349, %v9345
        %v9726 = vpack.c.bf16 %v9354, %v9350
        %v9727 = vpack.c.bf16 %v9355, %v9351
        %v9728 = vpack.c.bf16 %v9356, %v9352
        %v9729 = vpack.c.bf16 %v9357, %v9353
        %v9730 = vpack.c.bf16 %v9362, %v9358
        %v9731 = vpack.c.bf16 %v9363, %v9359
        %v9732 = vpack.c.bf16 %v9364, %v9360
        %v9733 = vpack.c.bf16 %v9365, %v9361
        %v9734 = vpack.c.bf16 %v9370, %v9366
        %v9735 = vpack.c.bf16 %v9371, %v9367
        %v9736 = vpack.c.bf16 %v9372, %v9368
        %v9737 = vpack.c.bf16 %v9373, %v9369
        %v9738 = vpack.c.bf16 %v9378, %v9374
        %v9739 = vpack.c.bf16 %v9379, %v9375
        %v9740 = vpack.c.bf16 %v9380, %v9376
        %v9741 = vpack.c.bf16 %v9381, %v9377
        %v9742 = vpack.c.bf16 %v9386, %v9382
        %v9743 = vpack.c.bf16 %v9387, %v9383
        %v9744 = vpack.c.bf16 %v9388, %v9384
        %v9745 = vpack.c.bf16 %v9389, %v9385
        %v9746 = vpack.c.bf16 %v9394, %v9390
        %v9747 = vpack.c.bf16 %v9395, %v9391
        %v9748 = vpack.c.bf16 %v9396, %v9392
        %v9749 = vpack.c.bf16 %v9397, %v9393
        %v9750 = vpack.c.bf16 %v9402, %v9398
        %v9751 = vpack.c.bf16 %v9403, %v9399
        %v9752 = vpack.c.bf16 %v9404, %v9400
        %v9753 = vpack.c.bf16 %v9405, %v9401
        %v9754 = vpack.c.bf16 %v9410, %v9406
        %v9755 = vpack.c.bf16 %v9411, %v9407
        %v9756 = vpack.c.bf16 %v9412, %v9408
        %v9757 = vpack.c.bf16 %v9413, %v9409
        %v9758 = vpack.c.bf16 %v9418, %v9414
        %v9759 = vpack.c.bf16 %v9419, %v9415
        %v9760 = vpack.c.bf16 %v9420, %v9416
        %v9761 = vpack.c.bf16 %v9421, %v9417
        %v9762 = vpack.c.bf16 %v9426, %v9422
        %v9763 = vpack.c.bf16 %v9427, %v9423
        %v9764 = vpack.c.bf16 %v9428, %v9424
        %v9765 = vpack.c.bf16 %v9429, %v9425
        %v9766 = vpack.c.bf16 %v9434, %v9430
        %v9767 = vpack.c.bf16 %v9435, %v9431
        %v9768 = vpack.c.bf16 %v9436, %v9432
        %v9769 = vpack.c.bf16 %v9437, %v9433
        %v9770 = vpack.c.bf16 %v9442, %v9438
        %v9771 = vpack.c.bf16 %v9443, %v9439
        %v9772 = vpack.c.bf16 %v9444, %v9440
        %v9773 = vpack.c.bf16 %v9445, %v9441
        %v9774 = vpack.c.bf16 %v9450, %v9446
        %v9775 = vpack.c.bf16 %v9451, %v9447
        %v9776 = vpack.c.bf16 %v9452, %v9448
        %v9777 = vpack.c.bf16 %v9453, %v9449
        %v9778 = vpack.c.bf16 %v9458, %v9454
        %v9779 = vpack.c.bf16 %v9459, %v9455
        %v9780 = vpack.c.bf16 %v9460, %v9456
        %v9781 = vpack.c.bf16 %v9461, %v9457
        %v9782 = vpack.c.bf16 %v9466, %v9462
        %v9783 = vpack.c.bf16 %v9467, %v9463
        %v9784 = vpack.c.bf16 %v9468, %v9464
        %v9785 = vpack.c.bf16 %v9469, %v9465
        %v9786 = vpack.c.bf16 %v9474, %v9470
        %v9787 = vpack.c.bf16 %v9475, %v9471
        %v9788 = vpack.c.bf16 %v9476, %v9472
        %v9789 = vpack.c.bf16 %v9477, %v9473
        %v9790 = vpack.c.bf16 %v9482, %v9478
        %v9791 = vpack.c.bf16 %v9483, %v9479
        %v9792 = vpack.c.bf16 %v9484, %v9480
        %v9793 = vpack.c.bf16 %v9485, %v9481
        %v9794 = vpack.c.bf16 %v9490, %v9486
        %v9795 = vpack.c.bf16 %v9491, %v9487
        %v9796 = vpack.c.bf16 %v9492, %v9488
        %v9797 = vpack.c.bf16 %v9493, %v9489
        %v9798 = vpack.c.bf16 %v9498, %v9494
        %v9799 = vpack.c.bf16 %v9499, %v9495
        %v9800 = vpack.c.bf16 %v9500, %v9496
        %v9801 = vpack.c.bf16 %v9501, %v9497
        %v9802 = vpack.c.bf16 %v9506, %v9502
        %v9803 = vpack.c.bf16 %v9507, %v9503
        %v9804 = vpack.c.bf16 %v9508, %v9504
        %v9805 = vpack.c.bf16 %v9509, %v9505
        %v9806 = vpack.c.bf16 %v9514, %v9510
        %v9807 = vpack.c.bf16 %v9515, %v9511
        %v9808 = vpack.c.bf16 %v9516, %v9512
        %v9809 = vpack.c.bf16 %v9517, %v9513
        %v9810 = vpack.c.bf16 %v9522, %v9518
        %v9811 = vpack.c.bf16 %v9523, %v9519
        %v9812 = vpack.c.bf16 %v9524, %v9520
        %v9813 = vpack.c.bf16 %v9525, %v9521
        %v9814 = vpack.c.bf16 %v9530, %v9526
        %v9815 = vpack.c.bf16 %v9531, %v9527
        %v9816 = vpack.c.bf16 %v9532, %v9528
        %v9817 = vpack.c.bf16 %v9533, %v9529
        %v9818 = vpack.c.bf16 %v9538, %v9534
        %v9819 = vpack.c.bf16 %v9539, %v9535
        %v9820 = vpack.c.bf16 %v9540, %v9536
        %v9821 = vpack.c.bf16 %v9541, %v9537
        %v9822 = vpack.c.bf16 %v9546, %v9542
        %v9823 = vpack.c.bf16 %v9547, %v9543
        %v9824 = vpack.c.bf16 %v9548, %v9544
        %v9825 = vpack.c.bf16 %v9549, %v9545
        %v9826 = vpack.c.bf16 %v9554, %v9550
        %v9827 = vpack.c.bf16 %v9555, %v9551
        %v9828 = vpack.c.bf16 %v9556, %v9552
        %v9829 = vpack.c.bf16 %v9557, %v9553
        %v9830 = vpack.c.bf16 %v9562, %v9558
        %v9831 = vpack.c.bf16 %v9563, %v9559
        %v9832 = vpack.c.bf16 %v9564, %v9560
        %v9833 = vpack.c.bf16 %v9565, %v9561
        %v9834 = vpack.c.bf16 %v9570, %v9566
        %v9835 = vpack.c.bf16 %v9571, %v9567
        %v9836 = vpack.c.bf16 %v9572, %v9568
        %v9837 = vpack.c.bf16 %v9573, %v9569
        %v9838 = vpack.c.bf16 %v9578, %v9574
        %v9839 = vpack.c.bf16 %v9579, %v9575
        %v9840 = vpack.c.bf16 %v9580, %v9576
        %v9841 = vpack.c.bf16 %v9581, %v9577
        %v9842 = vpack.c.bf16 %v9586, %v9582
        %v9843 = vpack.c.bf16 %v9587, %v9583
        %v9844 = vpack.c.bf16 %v9588, %v9584
        %v9845 = vpack.c.bf16 %v9589, %v9585
        %v9846 = vld [vmem:[#allocation2] sm:$0xff]
        %v9847 = vld [vmem:[#allocation2 + $0x8] sm:$0xff]
        %v9848 = vld [vmem:[#allocation2 + $0x10] sm:$0xff]
        %v9849 = vld [vmem:[#allocation2 + $0x18] sm:$0xff]
        %9850 = vmatpush.bf16.msra.mxu0 %v9618
        %9851 = vmatpush.bf16.msra.mxu0 %v9614
        %9852 = vmatpush.bf16.msra.mxu0 %v9610
        %9853 = vmatpush.bf16.msra.mxu0 %v9606
        %9854 = vmatpush.bf16.msra.mxu0 %v9602
        %9855 = vmatpush.bf16.msra.mxu0 %v9598
        %9856 = vmatpush.bf16.msra.mxu0 %v9594
        %9857 = vmatpush.bf16.msra.mxu0 %v9590
        %9858 = vmatmul.bf16.gmra.mxu0 %v8416
        %v9859 = vpop.f32.mrf.mxu0
        %v9860 = vadd.f32 0.0, %v9859
        %v9861 = vpop.f32.mrf.mxu0
        %9862 = vdwg.mxu0
        %9863 = vmatpush.bf16.msra.mxu0 %v9650
        %9864 = vmatpush.bf16.msra.mxu0 %v9646
        %9865 = vmatpush.bf16.msra.mxu0 %v9642
        %9866 = vmatpush.bf16.msra.mxu0 %v9638
        %9867 = vmatpush.bf16.msra.mxu0 %v9634
        %9868 = vmatpush.bf16.msra.mxu0 %v9630
        %9869 = vmatpush.bf16.msra.mxu0 %v9626
        %9870 = vmatpush.bf16.msra.mxu0 %v9622
        %9871 = vmatmul.bf16.gmra.mxu0 %v8417
        %v9872 = vpop.f32.mrf.mxu0
        %v9873 = vadd.f32 %v9860, %v9872
        %v9874 = vpop.f32.mrf.mxu0
        %9875 = vdwg.mxu0
        %9876 = vmatpush.bf16.msra.mxu0 %v9682
        %9877 = vmatpush.bf16.msra.mxu0 %v9678
        %9878 = vmatpush.bf16.msra.mxu0 %v9674
        %9879 = vmatpush.bf16.msra.mxu0 %v9670
        %9880 = vmatpush.bf16.msra.mxu0 %v9666
        %9881 = vmatpush.bf16.msra.mxu0 %v9662
        %9882 = vmatpush.bf16.msra.mxu0 %v9658
        %9883 = vmatpush.bf16.msra.mxu0 %v9654
        %9884 = vmatmul.bf16.gmra.mxu0 %v8418
        %v9885 = vpop.f32.mrf.mxu0
        %v9886 = vadd.f32 %v9873, %v9885
        %v9887 = vpop.f32.mrf.mxu0
        %9888 = vdwg.mxu0
        %9889 = vmatpush.bf16.msra.mxu0 %v9714
        %9890 = vmatpush.bf16.msra.mxu0 %v9710
        %9891 = vmatpush.bf16.msra.mxu0 %v9706
        %9892 = vmatpush.bf16.msra.mxu0 %v9702
        %9893 = vmatpush.bf16.msra.mxu0 %v9698
        %9894 = vmatpush.bf16.msra.mxu0 %v9694
        %9895 = vmatpush.bf16.msra.mxu0 %v9690
        %9896 = vmatpush.bf16.msra.mxu0 %v9686
        %9897 = vmatmul.bf16.gmra.mxu0 %v8419
        %v9898 = vpop.f32.mrf.mxu0
        %v9899 = vadd.f32 %v9886, %v9898
        %v9900 = vpop.f32.mrf.mxu0
        %9901 = vdwg.mxu0
        %9902 = vmatpush.bf16.msra.mxu0 %v9746
        %9903 = vmatpush.bf16.msra.mxu0 %v9742
        %9904 = vmatpush.bf16.msra.mxu0 %v9738
        %9905 = vmatpush.bf16.msra.mxu0 %v9734
        %9906 = vmatpush.bf16.msra.mxu0 %v9730
        %9907 = vmatpush.bf16.msra.mxu0 %v9726
        %9908 = vmatpush.bf16.msra.mxu0 %v9722
        %9909 = vmatpush.bf16.msra.mxu0 %v9718
        %9910 = vmatmul.bf16.gmra.mxu0 %v8430
        %v9911 = vpop.f32.mrf.mxu0
        %v9912 = vadd.f32 %v9899, %v9911
        %v9913 = vpop.f32.mrf.mxu0
        %9914 = vdwg.mxu0
        %9915 = vmatpush.bf16.msra.mxu0 %v9778
        %9916 = vmatpush.bf16.msra.mxu0 %v9774
        %9917 = vmatpush.bf16.msra.mxu0 %v9770
        %9918 = vmatpush.bf16.msra.mxu0 %v9766
        %9919 = vmatpush.bf16.msra.mxu0 %v9762
        %9920 = vmatpush.bf16.msra.mxu0 %v9758
        %9921 = vmatpush.bf16.msra.mxu0 %v9754
        %9922 = vmatpush.bf16.msra.mxu0 %v9750
        %9923 = vmatmul.bf16.gmra.mxu0 %v8431
        %v9924 = vpop.f32.mrf.mxu0
        %v9925 = vadd.f32 %v9912, %v9924
        %v9926 = vpop.f32.mrf.mxu0
        %9927 = vdwg.mxu0
        %9928 = vmatpush.bf16.msra.mxu0 %v9810
        %9929 = vmatpush.bf16.msra.mxu0 %v9806
        %9930 = vmatpush.bf16.msra.mxu0 %v9802
        %9931 = vmatpush.bf16.msra.mxu0 %v9798
        %9932 = vmatpush.bf16.msra.mxu0 %v9794
        %9933 = vmatpush.bf16.msra.mxu0 %v9790
        %9934 = vmatpush.bf16.msra.mxu0 %v9786
        %9935 = vmatpush.bf16.msra.mxu0 %v9782
        %9936 = vmatmul.bf16.gmra.mxu0 %v8432
        %v9937 = vpop.f32.mrf.mxu0
        %v9938 = vadd.f32 %v9925, %v9937
        %v9939 = vpop.f32.mrf.mxu0
        %9940 = vdwg.mxu0
        %9941 = vmatpush.bf16.msra.mxu0 %v9842
        %9942 = vmatpush.bf16.msra.mxu0 %v9838
        %9943 = vmatpush.bf16.msra.mxu0 %v9834
        %9944 = vmatpush.bf16.msra.mxu0 %v9830
        %9945 = vmatpush.bf16.msra.mxu0 %v9826
        %9946 = vmatpush.bf16.msra.mxu0 %v9822
        %9947 = vmatpush.bf16.msra.mxu0 %v9818
        %9948 = vmatpush.bf16.msra.mxu0 %v9814
        %9949 = vmatmul.bf16.gmra.mxu0 %v8433
        %v9950 = vpop.f32.mrf.mxu0
        %v9951 = vadd.f32 %v9938, %v9950
        %v9952 = vpop.f32.mrf.mxu0
        %9953 = vdwg.mxu0
        %9954 = vmatpush.bf16.msra.mxu0 %v9619
        %9955 = vmatpush.bf16.msra.mxu0 %v9615
        %9956 = vmatpush.bf16.msra.mxu0 %v9611
        %9957 = vmatpush.bf16.msra.mxu0 %v9607
        %9958 = vmatpush.bf16.msra.mxu0 %v9603
        %9959 = vmatpush.bf16.msra.mxu0 %v9599
        %9960 = vmatpush.bf16.msra.mxu0 %v9595
        %9961 = vmatpush.bf16.msra.mxu0 %v9591
        %9962 = vmatmul.bf16.gmra.mxu0 %v8416
        %v9963 = vpop.f32.mrf.mxu0
        %v9964 = vadd.f32 0.0, %v9963
        %v9965 = vpop.f32.mrf.mxu0
        %9966 = vdwg.mxu0
        %9967 = vmatpush.bf16.msra.mxu0 %v9651
        %9968 = vmatpush.bf16.msra.mxu0 %v9647
        %9969 = vmatpush.bf16.msra.mxu0 %v9643
        %9970 = vmatpush.bf16.msra.mxu0 %v9639
        %9971 = vmatpush.bf16.msra.mxu0 %v9635
        %9972 = vmatpush.bf16.msra.mxu0 %v9631
        %9973 = vmatpush.bf16.msra.mxu0 %v9627
        %9974 = vmatpush.bf16.msra.mxu0 %v9623
        %9975 = vmatmul.bf16.gmra.mxu0 %v8417
        %v9976 = vpop.f32.mrf.mxu0
        %v9977 = vadd.f32 %v9964, %v9976
        %v9978 = vpop.f32.mrf.mxu0
        %9979 = vdwg.mxu0
        %9980 = vmatpush.bf16.msra.mxu0 %v9683
        %9981 = vmatpush.bf16.msra.mxu0 %v9679
        %9982 = vmatpush.bf16.msra.mxu0 %v9675
        %9983 = vmatpush.bf16.msra.mxu0 %v9671
        %9984 = vmatpush.bf16.msra.mxu0 %v9667
        %9985 = vmatpush.bf16.msra.mxu0 %v9663
        %9986 = vmatpush.bf16.msra.mxu0 %v9659
        %9987 = vmatpush.bf16.msra.mxu0 %v9655
        %9988 = vmatmul.bf16.gmra.mxu0 %v8418
        %v9989 = vpop.f32.mrf.mxu0
        %v9990 = vadd.f32 %v9977, %v9989
        %v9991 = vpop.f32.mrf.mxu0
        %9992 = vdwg.mxu0
        %9993 = vmatpush.bf16.msra.mxu0 %v9715
        %9994 = vmatpush.bf16.msra.mxu0 %v9711
        %9995 = vmatpush.bf16.msra.mxu0 %v9707
        %9996 = vmatpush.bf16.msra.mxu0 %v9703
        %9997 = vmatpush.bf16.msra.mxu0 %v9699
        %9998 = vmatpush.bf16.msra.mxu0 %v9695
        %9999 = vmatpush.bf16.msra.mxu0 %v9691
        %10000 = vmatpush.bf16.msra.mxu0 %v9687
        %10001 = vmatmul.bf16.gmra.mxu0 %v8419
        %v10002 = vpop.f32.mrf.mxu0
        %v10003 = vadd.f32 %v9990, %v10002
        %v10004 = vpop.f32.mrf.mxu0
        %10005 = vdwg.mxu0
        %10006 = vmatpush.bf16.msra.mxu0 %v9747
        %10007 = vmatpush.bf16.msra.mxu0 %v9743
        %10008 = vmatpush.bf16.msra.mxu0 %v9739
        %10009 = vmatpush.bf16.msra.mxu0 %v9735
        %10010 = vmatpush.bf16.msra.mxu0 %v9731
        %10011 = vmatpush.bf16.msra.mxu0 %v9727
        %10012 = vmatpush.bf16.msra.mxu0 %v9723
        %10013 = vmatpush.bf16.msra.mxu0 %v9719
        %10014 = vmatmul.bf16.gmra.mxu0 %v8430
        %v10015 = vpop.f32.mrf.mxu0
        %v10016 = vadd.f32 %v10003, %v10015
        %v10017 = vpop.f32.mrf.mxu0
        %10018 = vdwg.mxu0
        %10019 = vmatpush.bf16.msra.mxu0 %v9779
        %10020 = vmatpush.bf16.msra.mxu0 %v9775
        %10021 = vmatpush.bf16.msra.mxu0 %v9771
        %10022 = vmatpush.bf16.msra.mxu0 %v9767
        %10023 = vmatpush.bf16.msra.mxu0 %v9763
        %10024 = vmatpush.bf16.msra.mxu0 %v9759
        %10025 = vmatpush.bf16.msra.mxu0 %v9755
        %10026 = vmatpush.bf16.msra.mxu0 %v9751
        %10027 = vmatmul.bf16.gmra.mxu0 %v8431
        %v10028 = vpop.f32.mrf.mxu0
        %v10029 = vadd.f32 %v10016, %v10028
        %v10030 = vpop.f32.mrf.mxu0
        %10031 = vdwg.mxu0
        %10032 = vmatpush.bf16.msra.mxu0 %v9811
        %10033 = vmatpush.bf16.msra.mxu0 %v9807
        %10034 = vmatpush.bf16.msra.mxu0 %v9803
        %10035 = vmatpush.bf16.msra.mxu0 %v9799
        %10036 = vmatpush.bf16.msra.mxu0 %v9795
        %10037 = vmatpush.bf16.msra.mxu0 %v9791
        %10038 = vmatpush.bf16.msra.mxu0 %v9787
        %10039 = vmatpush.bf16.msra.mxu0 %v9783
        %10040 = vmatmul.bf16.gmra.mxu0 %v8432
        %v10041 = vpop.f32.mrf.mxu0
        %v10042 = vadd.f32 %v10029, %v10041
        %v10043 = vpop.f32.mrf.mxu0
        %10044 = vdwg.mxu0
        %10045 = vmatpush.bf16.msra.mxu0 %v9843
        %10046 = vmatpush.bf16.msra.mxu0 %v9839
        %10047 = vmatpush.bf16.msra.mxu0 %v9835
        %10048 = vmatpush.bf16.msra.mxu0 %v9831
        %10049 = vmatpush.bf16.msra.mxu0 %v9827
        %10050 = vmatpush.bf16.msra.mxu0 %v9823
        %10051 = vmatpush.bf16.msra.mxu0 %v9819
        %10052 = vmatpush.bf16.msra.mxu0 %v9815
        %10053 = vmatmul.bf16.gmra.mxu0 %v8433
        %v10054 = vpop.f32.mrf.mxu0
        %v10055 = vadd.f32 %v10042, %v10054
        %v10056 = vpop.f32.mrf.mxu0
        %10057 = vdwg.mxu0
        %10058 = vmatpush.bf16.msra.mxu0 %v9620
        %10059 = vmatpush.bf16.msra.mxu0 %v9616
        %10060 = vmatpush.bf16.msra.mxu0 %v9612
        %10061 = vmatpush.bf16.msra.mxu0 %v9608
        %10062 = vmatpush.bf16.msra.mxu0 %v9604
        %10063 = vmatpush.bf16.msra.mxu0 %v9600
        %10064 = vmatpush.bf16.msra.mxu0 %v9596
        %10065 = vmatpush.bf16.msra.mxu0 %v9592
        %10066 = vmatmul.bf16.gmra.mxu0 %v8416
        %v10067 = vpop.f32.mrf.mxu0
        %v10068 = vadd.f32 0.0, %v10067
        %v10069 = vpop.f32.mrf.mxu0
        %10070 = vdwg.mxu0
        %10071 = vmatpush.bf16.msra.mxu0 %v9652
        %10072 = vmatpush.bf16.msra.mxu0 %v9648
        %10073 = vmatpush.bf16.msra.mxu0 %v9644
        %10074 = vmatpush.bf16.msra.mxu0 %v9640
        %10075 = vmatpush.bf16.msra.mxu0 %v9636
        %10076 = vmatpush.bf16.msra.mxu0 %v9632
        %10077 = vmatpush.bf16.msra.mxu0 %v9628
        %10078 = vmatpush.bf16.msra.mxu0 %v9624
        %10079 = vmatmul.bf16.gmra.mxu0 %v8417
        %v10080 = vpop.f32.mrf.mxu0
        %v10081 = vadd.f32 %v10068, %v10080
        %v10082 = vpop.f32.mrf.mxu0
        %10083 = vdwg.mxu0
        %10084 = vmatpush.bf16.msra.mxu0 %v9684
        %10085 = vmatpush.bf16.msra.mxu0 %v9680
        %10086 = vmatpush.bf16.msra.mxu0 %v9676
        %10087 = vmatpush.bf16.msra.mxu0 %v9672
        %10088 = vmatpush.bf16.msra.mxu0 %v9668
        %10089 = vmatpush.bf16.msra.mxu0 %v9664
        %10090 = vmatpush.bf16.msra.mxu0 %v9660
        %10091 = vmatpush.bf16.msra.mxu0 %v9656
        %10092 = vmatmul.bf16.gmra.mxu0 %v8418
        %v10093 = vpop.f32.mrf.mxu0
        %v10094 = vadd.f32 %v10081, %v10093
        %v10095 = vpop.f32.mrf.mxu0
        %10096 = vdwg.mxu0
        %10097 = vmatpush.bf16.msra.mxu0 %v9716
        %10098 = vmatpush.bf16.msra.mxu0 %v9712
        %10099 = vmatpush.bf16.msra.mxu0 %v9708
        %10100 = vmatpush.bf16.msra.mxu0 %v9704
        %10101 = vmatpush.bf16.msra.mxu0 %v9700
        %10102 = vmatpush.bf16.msra.mxu0 %v9696
        %10103 = vmatpush.bf16.msra.mxu0 %v9692
        %10104 = vmatpush.bf16.msra.mxu0 %v9688
        %10105 = vmatmul.bf16.gmra.mxu0 %v8419
        %v10106 = vpop.f32.mrf.mxu0
        %v10107 = vadd.f32 %v10094, %v10106
        %v10108 = vpop.f32.mrf.mxu0
        %10109 = vdwg.mxu0
        %10110 = vmatpush.bf16.msra.mxu0 %v9748
        %10111 = vmatpush.bf16.msra.mxu0 %v9744
        %10112 = vmatpush.bf16.msra.mxu0 %v9740
        %10113 = vmatpush.bf16.msra.mxu0 %v9736
        %10114 = vmatpush.bf16.msra.mxu0 %v9732
        %10115 = vmatpush.bf16.msra.mxu0 %v9728
        %10116 = vmatpush.bf16.msra.mxu0 %v9724
        %10117 = vmatpush.bf16.msra.mxu0 %v9720
        %10118 = vmatmul.bf16.gmra.mxu0 %v8430
        %v10119 = vpop.f32.mrf.mxu0
        %v10120 = vadd.f32 %v10107, %v10119
        %v10121 = vpop.f32.mrf.mxu0
        %10122 = vdwg.mxu0
        %10123 = vmatpush.bf16.msra.mxu0 %v9780
        %10124 = vmatpush.bf16.msra.mxu0 %v9776
        %10125 = vmatpush.bf16.msra.mxu0 %v9772
        %10126 = vmatpush.bf16.msra.mxu0 %v9768
        %10127 = vmatpush.bf16.msra.mxu0 %v9764
        %10128 = vmatpush.bf16.msra.mxu0 %v9760
        %10129 = vmatpush.bf16.msra.mxu0 %v9756
        %10130 = vmatpush.bf16.msra.mxu0 %v9752
        %10131 = vmatmul.bf16.gmra.mxu0 %v8431
        %v10132 = vpop.f32.mrf.mxu0
        %v10133 = vadd.f32 %v10120, %v10132
        %v10134 = vpop.f32.mrf.mxu0
        %10135 = vdwg.mxu0
        %10136 = vmatpush.bf16.msra.mxu0 %v9812
        %10137 = vmatpush.bf16.msra.mxu0 %v9808
        %10138 = vmatpush.bf16.msra.mxu0 %v9804
        %10139 = vmatpush.bf16.msra.mxu0 %v9800
        %10140 = vmatpush.bf16.msra.mxu0 %v9796
        %10141 = vmatpush.bf16.msra.mxu0 %v9792
        %10142 = vmatpush.bf16.msra.mxu0 %v9788
        %10143 = vmatpush.bf16.msra.mxu0 %v9784
        %10144 = vmatmul.bf16.gmra.mxu0 %v8432
        %v10145 = vpop.f32.mrf.mxu0
        %v10146 = vadd.f32 %v10133, %v10145
        %v10147 = vpop.f32.mrf.mxu0
        %10148 = vdwg.mxu0
        %10149 = vmatpush.bf16.msra.mxu0 %v9844
        %10150 = vmatpush.bf16.msra.mxu0 %v9840
        %10151 = vmatpush.bf16.msra.mxu0 %v9836
        %10152 = vmatpush.bf16.msra.mxu0 %v9832
        %10153 = vmatpush.bf16.msra.mxu0 %v9828
        %10154 = vmatpush.bf16.msra.mxu0 %v9824
        %10155 = vmatpush.bf16.msra.mxu0 %v9820
        %10156 = vmatpush.bf16.msra.mxu0 %v9816
        %10157 = vmatmul.bf16.gmra.mxu0 %v8433
        %v10158 = vpop.f32.mrf.mxu0
        %v10159 = vadd.f32 %v10146, %v10158
        %v10160 = vpop.f32.mrf.mxu0
        %10161 = vdwg.mxu0
        %10162 = vmatpush.bf16.msra.mxu0 %v9621
        %10163 = vmatpush.bf16.msra.mxu0 %v9617
        %10164 = vmatpush.bf16.msra.mxu0 %v9613
        %10165 = vmatpush.bf16.msra.mxu0 %v9609
        %10166 = vmatpush.bf16.msra.mxu0 %v9605
        %10167 = vmatpush.bf16.msra.mxu0 %v9601
        %10168 = vmatpush.bf16.msra.mxu0 %v9597
        %10169 = vmatpush.bf16.msra.mxu0 %v9593
        %10170 = vmatmul.bf16.gmra.mxu0 %v8416
        %v10171 = vpop.f32.mrf.mxu0
        %v10172 = vadd.f32 0.0, %v10171
        %v10173 = vpop.f32.mrf.mxu0
        %10174 = vdwg.mxu0
        %10175 = vmatpush.bf16.msra.mxu0 %v9653
        %10176 = vmatpush.bf16.msra.mxu0 %v9649
        %10177 = vmatpush.bf16.msra.mxu0 %v9645
        %10178 = vmatpush.bf16.msra.mxu0 %v9641
        %10179 = vmatpush.bf16.msra.mxu0 %v9637
        %10180 = vmatpush.bf16.msra.mxu0 %v9633
        %10181 = vmatpush.bf16.msra.mxu0 %v9629
        %10182 = vmatpush.bf16.msra.mxu0 %v9625
        %10183 = vmatmul.bf16.gmra.mxu0 %v8417
        %v10184 = vpop.f32.mrf.mxu0
        %v10185 = vadd.f32 %v10172, %v10184
        %v10186 = vpop.f32.mrf.mxu0
        %10187 = vdwg.mxu0
        %10188 = vmatpush.bf16.msra.mxu0 %v9685
        %10189 = vmatpush.bf16.msra.mxu0 %v9681
        %10190 = vmatpush.bf16.msra.mxu0 %v9677
        %10191 = vmatpush.bf16.msra.mxu0 %v9673
        %10192 = vmatpush.bf16.msra.mxu0 %v9669
        %10193 = vmatpush.bf16.msra.mxu0 %v9665
        %10194 = vmatpush.bf16.msra.mxu0 %v9661
        %10195 = vmatpush.bf16.msra.mxu0 %v9657
        %10196 = vmatmul.bf16.gmra.mxu0 %v8418
        %v10197 = vpop.f32.mrf.mxu0
        %v10198 = vadd.f32 %v10185, %v10197
        %v10199 = vpop.f32.mrf.mxu0
        %10200 = vdwg.mxu0
        %10201 = vmatpush.bf16.msra.mxu0 %v9717
        %10202 = vmatpush.bf16.msra.mxu0 %v9713
        %10203 = vmatpush.bf16.msra.mxu0 %v9709
        %10204 = vmatpush.bf16.msra.mxu0 %v9705
        %10205 = vmatpush.bf16.msra.mxu0 %v9701
        %10206 = vmatpush.bf16.msra.mxu0 %v9697
        %10207 = vmatpush.bf16.msra.mxu0 %v9693
        %10208 = vmatpush.bf16.msra.mxu0 %v9689
        %10209 = vmatmul.bf16.gmra.mxu0 %v8419
        %v10210 = vpop.f32.mrf.mxu0
        %v10211 = vadd.f32 %v10198, %v10210
        %v10212 = vpop.f32.mrf.mxu0
        %10213 = vdwg.mxu0
        %10214 = vmatpush.bf16.msra.mxu0 %v9749
        %10215 = vmatpush.bf16.msra.mxu0 %v9745
        %10216 = vmatpush.bf16.msra.mxu0 %v9741
        %10217 = vmatpush.bf16.msra.mxu0 %v9737
        %10218 = vmatpush.bf16.msra.mxu0 %v9733
        %10219 = vmatpush.bf16.msra.mxu0 %v9729
        %10220 = vmatpush.bf16.msra.mxu0 %v9725
        %10221 = vmatpush.bf16.msra.mxu0 %v9721
        %10222 = vmatmul.bf16.gmra.mxu0 %v8430
        %v10223 = vpop.f32.mrf.mxu0
        %v10224 = vadd.f32 %v10211, %v10223
        %v10225 = vpop.f32.mrf.mxu0
        %10226 = vdwg.mxu0
        %10227 = vmatpush.bf16.msra.mxu0 %v9781
        %10228 = vmatpush.bf16.msra.mxu0 %v9777
        %10229 = vmatpush.bf16.msra.mxu0 %v9773
        %10230 = vmatpush.bf16.msra.mxu0 %v9769
        %10231 = vmatpush.bf16.msra.mxu0 %v9765
        %10232 = vmatpush.bf16.msra.mxu0 %v9761
        %10233 = vmatpush.bf16.msra.mxu0 %v9757
        %10234 = vmatpush.bf16.msra.mxu0 %v9753
        %10235 = vmatmul.bf16.gmra.mxu0 %v8431
        %v10236 = vpop.f32.mrf.mxu0
        %v10237 = vadd.f32 %v10224, %v10236
        %v10238 = vpop.f32.mrf.mxu0
        %10239 = vdwg.mxu0
        %10240 = vmatpush.bf16.msra.mxu0 %v9813
        %10241 = vmatpush.bf16.msra.mxu0 %v9809
        %10242 = vmatpush.bf16.msra.mxu0 %v9805
        %10243 = vmatpush.bf16.msra.mxu0 %v9801
        %10244 = vmatpush.bf16.msra.mxu0 %v9797
        %10245 = vmatpush.bf16.msra.mxu0 %v9793
        %10246 = vmatpush.bf16.msra.mxu0 %v9789
        %10247 = vmatpush.bf16.msra.mxu0 %v9785
        %10248 = vmatmul.bf16.gmra.mxu0 %v8432
        %v10249 = vpop.f32.mrf.mxu0
        %v10250 = vadd.f32 %v10237, %v10249
        %v10251 = vpop.f32.mrf.mxu0
        %10252 = vdwg.mxu0
        %10253 = vmatpush.bf16.msra.mxu0 %v9845
        %10254 = vmatpush.bf16.msra.mxu0 %v9841
        %10255 = vmatpush.bf16.msra.mxu0 %v9837
        %10256 = vmatpush.bf16.msra.mxu0 %v9833
        %10257 = vmatpush.bf16.msra.mxu0 %v9829
        %10258 = vmatpush.bf16.msra.mxu0 %v9825
        %10259 = vmatpush.bf16.msra.mxu0 %v9821
        %10260 = vmatpush.bf16.msra.mxu0 %v9817
        %10261 = vmatmul.bf16.gmra.mxu0 %v8433
        %v10262 = vpop.f32.mrf.mxu0
        %v10263 = vadd.f32 %v10250, %v10262
        %v10264 = vpop.f32.mrf.mxu0
        %10265 = vdwg.mxu0
        %v10266 = vadd.f32 %v9846, %v9951
        %v10267 = vadd.f32 %v9847, %v10055
        %v10268 = vadd.f32 %v9848, %v10159
        %v10269 = vadd.f32 %v9849, %v10263
        %10270 = vst [vmem:[#allocation2] sm:$0xff] %v10266
        %10271 = vst [vmem:[#allocation2 + $0x8] sm:$0xff] %v10267
        %10272 = vst [vmem:[#allocation2 + $0x10] sm:$0xff] %v10268
        %10273 = vst [vmem:[#allocation2 + $0x18] sm:$0xff] %v10269
        %p10274 = scmp.eq.s32.totalorder %s29, 1
        // Predicated region
        $region129: #{tpu_custom_call.1} parent=71 // pred_check
          %p10275 = pneg %p10274
        $region130: #{tpu_custom_call.1} parent=71 // pred_check_branch
          %10277 = sbr.rel (%p10275) target = $region132
        $region131: #{tpu_custom_call.1} parent=71 // pred_region
          %v10278 = vld [vmem:[#allocation2] sm:$0xff]
          %v10279 = vld [vmem:[#allocation2 + $0x8] sm:$0xff]
          %v10280 = vld [vmem:[#allocation2 + $0x10] sm:$0xff]
          %v10281 = vld [vmem:[#allocation2 + $0x18] sm:$0xff]
          %v10282 = vld [vmem:[#allocation15] sm:$0xf]
          %v10284 = vperm.slane %v10282, 0
          %v10285 = vperm.slane %v10282, 1
          %v10286 = vperm.slane %v10282, 2
          %v10287 = vperm.slane %v10282, 3
          %v10292 = vmul.f32 %v10278, %v10284
          %v10293 = vmul.f32 %v10279, %v10285
          %v10294 = vmul.f32 %v10280, %v10286
          %v10295 = vmul.f32 %v10281, %v10287
          %v10296 = vld [vmem:[#allocation16] sm:$0xf]
          %v10298 = vperm.slane %v10296, 0
          %v10299 = vperm.slane %v10296, 1
          %v10300 = vperm.slane %v10296, 2
          %v10301 = vperm.slane %v10296, 3
          %v10306 = vadd.f32 %v10292, %v10298
          %v10307 = vadd.f32 %v10293, %v10299
          %v10308 = vadd.f32 %v10294, %v10300
          %v10309 = vadd.f32 %v10295, %v10301
          %v10310 = vxor.u32 %v10306, 2147483648
          %v10311 = vxor.u32 %v10307, 2147483648
          %v10312 = vxor.u32 %v10308, 2147483648
          %v10313 = vxor.u32 %v10309, 2147483648
          %v10314 = vmul.f32 %v10310, 1.442695
          %v10315 = vpow.pop %v10314
          %v10316 = vmul.f32 %v10311, 1.442695
          %v10317 = vpow.pop %v10316
          %v10318 = vmul.f32 %v10312, 1.442695
          %v10319 = vpow.pop %v10318
          %v10320 = vmul.f32 %v10313, 1.442695
          %v10321 = vpow.pop %v10320
          %v10322 = vadd.f32 %v10315, 1.0
          %v10323 = vadd.f32 %v10317, 1.0
          %v10324 = vadd.f32 %v10319, 1.0
          %v10325 = vadd.f32 %v10321, 1.0
          %v10326 = vrcp.pop %v10322
          %v10327 = vmul.f32 %v10322, %v10326
          %v10328 = vsub.f32 1.0, %v10327
          %v10329 = vmul.f32 %v10326, %v10328
          %v10330 = vadd.f32 %v10326, %v10329
          %vm10331 = vweird.f32 %v10322
          %vm10332 = vweird.f32 %v10326
          %vm10333 = vmor %vm10331, %vm10332
          %v10334 = vsel %vm10333, %v10326, %v10330
          %v10335 = vand.u32 2147483647, %v10322
          %vm10336 = vcmp.eq.f32.partialorder %v10335, 8.507059e+37
          %v10337 = vand.u32 %v10322, 2147483648
          %v10338 = vor.u32 1.1754944e-38, %v10337
          %v10339 = vsel %vm10336, %v10338, %v10334
          %v10340 = vmul.f32 1.0, %v10339
          %v10341 = vrcp.pop %v10323
          %v10342 = vmul.f32 %v10323, %v10341
          %v10343 = vsub.f32 1.0, %v10342
          %v10344 = vmul.f32 %v10341, %v10343
          %v10345 = vadd.f32 %v10341, %v10344
          %vm10346 = vweird.f32 %v10323
          %vm10347 = vweird.f32 %v10341
          %vm10348 = vmor %vm10346, %vm10347
          %v10349 = vsel %vm10348, %v10341, %v10345
          %v10350 = vand.u32 2147483647, %v10323
          %vm10351 = vcmp.eq.f32.partialorder %v10350, 8.507059e+37
          %v10352 = vand.u32 %v10323, 2147483648
          %v10353 = vor.u32 1.1754944e-38, %v10352
          %v10354 = vsel %vm10351, %v10353, %v10349
          %v10355 = vmul.f32 1.0, %v10354
          %v10356 = vrcp.pop %v10324
          %v10357 = vmul.f32 %v10324, %v10356
          %v10358 = vsub.f32 1.0, %v10357
          %v10359 = vmul.f32 %v10356, %v10358
          %v10360 = vadd.f32 %v10356, %v10359
          %vm10361 = vweird.f32 %v10324
          %vm10362 = vweird.f32 %v10356
          %vm10363 = vmor %vm10361, %vm10362
          %v10364 = vsel %vm10363, %v10356, %v10360
          %v10365 = vand.u32 2147483647, %v10324
          %vm10366 = vcmp.eq.f32.partialorder %v10365, 8.507059e+37
          %v10367 = vand.u32 %v10324, 2147483648
          %v10368 = vor.u32 1.1754944e-38, %v10367
          %v10369 = vsel %vm10366, %v10368, %v10364
          %v10370 = vmul.f32 1.0, %v10369
          %v10371 = vrcp.pop %v10325
          %v10372 = vmul.f32 %v10325, %v10371
          %v10373 = vsub.f32 1.0, %v10372
          %v10374 = vmul.f32 %v10371, %v10373
          %v10375 = vadd.f32 %v10371, %v10374
          %vm10376 = vweird.f32 %v10325
          %vm10377 = vweird.f32 %v10371
          %vm10378 = vmor %vm10376, %vm10377
          %v10379 = vsel %vm10378, %v10371, %v10375
          %v10380 = vand.u32 2147483647, %v10325
          %vm10381 = vcmp.eq.f32.partialorder %v10380, 8.507059e+37
          %v10382 = vand.u32 %v10325, 2147483648
          %v10383 = vor.u32 1.1754944e-38, %v10382
          %v10384 = vsel %vm10381, %v10383, %v10379
          %v10385 = vmul.f32 1.0, %v10384
          %v10386 = vpack.c.bf16 %v10340, %v10340
          %v10387 = vpack.c.bf16 %v10355, %v10355
          %v10388 = vpack.c.bf16 %v10370, %v10370
          %v10389 = vpack.c.bf16 %v10385, %v10385
          %v10390 = vld [vmem:[#allocation18] sm:$0xf]
          %v10391 = vld [vmem:[#allocation18 + $0x4] sm:$0xf]
          %v10392 = vld [vmem:[#allocation18 + $0x8] sm:$0xf]
          %v10393 = vld [vmem:[#allocation18 + $0xc] sm:$0xf]
          %v10394 = vld [vmem:[#allocation18 + $0x10] sm:$0xf]
          %v10395 = vld [vmem:[#allocation18 + $0x14] sm:$0xf]
          %v10396 = vld [vmem:[#allocation18 + $0x18] sm:$0xf]
          %v10397 = vld [vmem:[#allocation18 + $0x1c] sm:$0xf]
          %v10398 = vld [vmem:[#allocation18 + $0x20] sm:$0xf]
          %v10399 = vld [vmem:[#allocation18 + $0x24] sm:$0xf]
          %v10400 = vld [vmem:[#allocation18 + $0x28] sm:$0xf]
          %v10401 = vld [vmem:[#allocation18 + $0x2c] sm:$0xf]
          %v10402 = vld [vmem:[#allocation18 + $0x30] sm:$0xf]
          %v10403 = vld [vmem:[#allocation18 + $0x34] sm:$0xf]
          %v10404 = vld [vmem:[#allocation18 + $0x38] sm:$0xf]
          %v10405 = vld [vmem:[#allocation18 + $0x3c] sm:$0xf]
          %v10406 = vld [vmem:[#allocation18 + $0x40] sm:$0xf]
          %v10407 = vld [vmem:[#allocation18 + $0x44] sm:$0xf]
          %v10408 = vld [vmem:[#allocation18 + $0x48] sm:$0xf]
          %v10409 = vld [vmem:[#allocation18 + $0x4c] sm:$0xf]
          %v10410 = vld [vmem:[#allocation18 + $0x50] sm:$0xf]
          %v10411 = vld [vmem:[#allocation18 + $0x54] sm:$0xf]
          %v10412 = vld [vmem:[#allocation18 + $0x58] sm:$0xf]
          %v10413 = vld [vmem:[#allocation18 + $0x5c] sm:$0xf]
          %v10414 = vld [vmem:[#allocation18 + $0x60] sm:$0xf]
          %v10415 = vld [vmem:[#allocation18 + $0x64] sm:$0xf]
          %v10416 = vld [vmem:[#allocation18 + $0x68] sm:$0xf]
          %v10417 = vld [vmem:[#allocation18 + $0x6c] sm:$0xf]
          %v10418 = vld [vmem:[#allocation18 + $0x70] sm:$0xf]
          %v10419 = vld [vmem:[#allocation18 + $0x74] sm:$0xf]
          %v10420 = vld [vmem:[#allocation18 + $0x78] sm:$0xf]
          %v10421 = vld [vmem:[#allocation18 + $0x7c] sm:$0xf]
          %v10422 = vld [vmem:[#allocation18 + $0x80] sm:$0xf]
          %v10423 = vld [vmem:[#allocation18 + $0x84] sm:$0xf]
          %v10424 = vld [vmem:[#allocation18 + $0x88] sm:$0xf]
          %v10425 = vld [vmem:[#allocation18 + $0x8c] sm:$0xf]
          %v10426 = vld [vmem:[#allocation18 + $0x90] sm:$0xf]
          %v10427 = vld [vmem:[#allocation18 + $0x94] sm:$0xf]
          %v10428 = vld [vmem:[#allocation18 + $0x98] sm:$0xf]
          %v10429 = vld [vmem:[#allocation18 + $0x9c] sm:$0xf]
          %v10430 = vld [vmem:[#allocation18 + $0xa0] sm:$0xf]
          %v10431 = vld [vmem:[#allocation18 + $0xa4] sm:$0xf]
          %v10432 = vld [vmem:[#allocation18 + $0xa8] sm:$0xf]
          %v10433 = vld [vmem:[#allocation18 + $0xac] sm:$0xf]
          %v10434 = vld [vmem:[#allocation18 + $0xb0] sm:$0xf]
          %v10435 = vld [vmem:[#allocation18 + $0xb4] sm:$0xf]
          %v10436 = vld [vmem:[#allocation18 + $0xb8] sm:$0xf]
          %v10437 = vld [vmem:[#allocation18 + $0xbc] sm:$0xf]
          %v10438 = vld [vmem:[#allocation18 + $0xc0] sm:$0xf]
          %v10439 = vld [vmem:[#allocation18 + $0xc4] sm:$0xf]
          %v10440 = vld [vmem:[#allocation18 + $0xc8] sm:$0xf]
          %v10441 = vld [vmem:[#allocation18 + $0xcc] sm:$0xf]
          %v10442 = vld [vmem:[#allocation18 + $0xd0] sm:$0xf]
          %v10443 = vld [vmem:[#allocation18 + $0xd4] sm:$0xf]
          %v10444 = vld [vmem:[#allocation18 + $0xd8] sm:$0xf]
          %v10445 = vld [vmem:[#allocation18 + $0xdc] sm:$0xf]
          %v10446 = vld [vmem:[#allocation18 + $0xe0] sm:$0xf]
          %v10447 = vld [vmem:[#allocation18 + $0xe4] sm:$0xf]
          %v10448 = vld [vmem:[#allocation18 + $0xe8] sm:$0xf]
          %v10449 = vld [vmem:[#allocation18 + $0xec] sm:$0xf]
          %v10450 = vld [vmem:[#allocation18 + $0xf0] sm:$0xf]
          %v10451 = vld [vmem:[#allocation18 + $0xf4] sm:$0xf]
          %v10452 = vld [vmem:[#allocation18 + $0xf8] sm:$0xf]
          %v10453 = vld [vmem:[#allocation18 + $0xfc] sm:$0xf]
          %v10454 = vld [vmem:[#allocation19] sm:$0x1]
          %v10456 = vperm.slane %v10454, 0
          %v10522 = vunpack.c.l.b16 %v10390
          %v10523 = vunpack.c.l.b16 %v10391
          %v10524 = vunpack.c.l.b16 %v10392
          %v10525 = vunpack.c.l.b16 %v10393
          %v10526 = vunpack.c.l.b16 %v10394
          %v10527 = vunpack.c.l.b16 %v10395
          %v10528 = vunpack.c.l.b16 %v10396
          %v10529 = vunpack.c.l.b16 %v10397
          %v10530 = vunpack.c.l.b16 %v10398
          %v10531 = vunpack.c.l.b16 %v10399
          %v10532 = vunpack.c.l.b16 %v10400
          %v10533 = vunpack.c.l.b16 %v10401
          %v10534 = vunpack.c.l.b16 %v10402
          %v10535 = vunpack.c.l.b16 %v10403
          %v10536 = vunpack.c.l.b16 %v10404
          %v10537 = vunpack.c.l.b16 %v10405
          %v10538 = vunpack.c.l.b16 %v10406
          %v10539 = vunpack.c.l.b16 %v10407
          %v10540 = vunpack.c.l.b16 %v10408
          %v10541 = vunpack.c.l.b16 %v10409
          %v10542 = vunpack.c.l.b16 %v10410
          %v10543 = vunpack.c.l.b16 %v10411
          %v10544 = vunpack.c.l.b16 %v10412
          %v10545 = vunpack.c.l.b16 %v10413
          %v10546 = vunpack.c.l.b16 %v10414
          %v10547 = vunpack.c.l.b16 %v10415
          %v10548 = vunpack.c.l.b16 %v10416
          %v10549 = vunpack.c.l.b16 %v10417
          %v10550 = vunpack.c.l.b16 %v10418
          %v10551 = vunpack.c.l.b16 %v10419
          %v10552 = vunpack.c.l.b16 %v10420
          %v10553 = vunpack.c.l.b16 %v10421
          %v10554 = vunpack.c.l.b16 %v10422
          %v10555 = vunpack.c.l.b16 %v10423
          %v10556 = vunpack.c.l.b16 %v10424
          %v10557 = vunpack.c.l.b16 %v10425
          %v10558 = vunpack.c.l.b16 %v10426
          %v10559 = vunpack.c.l.b16 %v10427
          %v10560 = vunpack.c.l.b16 %v10428
          %v10561 = vunpack.c.l.b16 %v10429
          %v10562 = vunpack.c.l.b16 %v10430
          %v10563 = vunpack.c.l.b16 %v10431
          %v10564 = vunpack.c.l.b16 %v10432
          %v10565 = vunpack.c.l.b16 %v10433
          %v10566 = vunpack.c.l.b16 %v10434
          %v10567 = vunpack.c.l.b16 %v10435
          %v10568 = vunpack.c.l.b16 %v10436
          %v10569 = vunpack.c.l.b16 %v10437
          %v10570 = vunpack.c.l.b16 %v10438
          %v10571 = vunpack.c.l.b16 %v10439
          %v10572 = vunpack.c.l.b16 %v10440
          %v10573 = vunpack.c.l.b16 %v10441
          %v10574 = vunpack.c.l.b16 %v10442
          %v10575 = vunpack.c.l.b16 %v10443
          %v10576 = vunpack.c.l.b16 %v10444
          %v10577 = vunpack.c.l.b16 %v10445
          %v10578 = vunpack.c.l.b16 %v10446
          %v10579 = vunpack.c.l.b16 %v10447
          %v10580 = vunpack.c.l.b16 %v10448
          %v10581 = vunpack.c.l.b16 %v10449
          %v10582 = vunpack.c.l.b16 %v10450
          %v10583 = vunpack.c.l.b16 %v10451
          %v10584 = vunpack.c.l.b16 %v10452
          %v10585 = vunpack.c.l.b16 %v10453
          %v10586 = vpack.c.b16 %v10523, %v10522
          %v10587 = vpack.c.b16 %v10525, %v10524
          %v10588 = vpack.c.b16 %v10527, %v10526
          %v10589 = vpack.c.b16 %v10529, %v10528
          %v10590 = vpack.c.b16 %v10531, %v10530
          %v10591 = vpack.c.b16 %v10533, %v10532
          %v10592 = vpack.c.b16 %v10535, %v10534
          %v10593 = vpack.c.b16 %v10537, %v10536
          %v10594 = vpack.c.b16 %v10539, %v10538
          %v10595 = vpack.c.b16 %v10541, %v10540
          %v10596 = vpack.c.b16 %v10543, %v10542
          %v10597 = vpack.c.b16 %v10545, %v10544
          %v10598 = vpack.c.b16 %v10547, %v10546
          %v10599 = vpack.c.b16 %v10549, %v10548
          %v10600 = vpack.c.b16 %v10551, %v10550
          %v10601 = vpack.c.b16 %v10553, %v10552
          %v10602 = vpack.c.b16 %v10555, %v10554
          %v10603 = vpack.c.b16 %v10557, %v10556
          %v10604 = vpack.c.b16 %v10559, %v10558
          %v10605 = vpack.c.b16 %v10561, %v10560
          %v10606 = vpack.c.b16 %v10563, %v10562
          %v10607 = vpack.c.b16 %v10565, %v10564
          %v10608 = vpack.c.b16 %v10567, %v10566
          %v10609 = vpack.c.b16 %v10569, %v10568
          %v10610 = vpack.c.b16 %v10571, %v10570
          %v10611 = vpack.c.b16 %v10573, %v10572
          %v10612 = vpack.c.b16 %v10575, %v10574
          %v10613 = vpack.c.b16 %v10577, %v10576
          %v10614 = vpack.c.b16 %v10579, %v10578
          %v10615 = vpack.c.b16 %v10581, %v10580
          %v10616 = vpack.c.b16 %v10583, %v10582
          %v10617 = vpack.c.b16 %v10585, %v10584
          %10650 = vmatpush.bf16.msra.mxu0 %v10593
          %10651 = vmatpush.bf16.msra.mxu0 %v10592
          %10652 = vmatpush.bf16.msra.mxu0 %v10591
          %10653 = vmatpush.bf16.msra.mxu0 %v10590
          %10654 = vmatpush.bf16.msra.mxu0 %v10589
          %10655 = vmatpush.bf16.msra.mxu0 %v10588
          %10656 = vmatpush.bf16.msra.mxu0 %v10587
          %10657 = vmatpush.bf16.msra.mxu0 %v10586
          %10658 = vmatmul.bf16.gmra.mxu0 %v10386
          %v10659 = vpop.f32.mrf.mxu0
          %v10660 = vadd.f32 %v10456, %v10659
          %v10661 = vpop.f32.mrf.mxu0
          %10662 = vdwg.mxu0
          %10663 = vmatpush.bf16.msra.mxu0 %v10601
          %10664 = vmatpush.bf16.msra.mxu0 %v10600
          %10665 = vmatpush.bf16.msra.mxu0 %v10599
          %10666 = vmatpush.bf16.msra.mxu0 %v10598
          %10667 = vmatpush.bf16.msra.mxu0 %v10597
          %10668 = vmatpush.bf16.msra.mxu0 %v10596
          %10669 = vmatpush.bf16.msra.mxu0 %v10595
          %10670 = vmatpush.bf16.msra.mxu0 %v10594
          %10671 = vmatmul.bf16.gmra.mxu0 %v10387
          %v10672 = vpop.f32.mrf.mxu0
          %v10673 = vadd.f32 %v10660, %v10672
          %v10674 = vpop.f32.mrf.mxu0
          %10675 = vdwg.mxu0
          %10676 = vmatpush.bf16.msra.mxu0 %v10609
          %10677 = vmatpush.bf16.msra.mxu0 %v10608
          %10678 = vmatpush.bf16.msra.mxu0 %v10607
          %10679 = vmatpush.bf16.msra.mxu0 %v10606
          %10680 = vmatpush.bf16.msra.mxu0 %v10605
          %10681 = vmatpush.bf16.msra.mxu0 %v10604
          %10682 = vmatpush.bf16.msra.mxu0 %v10603
          %10683 = vmatpush.bf16.msra.mxu0 %v10602
          %10684 = vmatmul.bf16.gmra.mxu0 %v10388
          %v10685 = vpop.f32.mrf.mxu0
          %v10686 = vadd.f32 %v10673, %v10685
          %v10687 = vpop.f32.mrf.mxu0
          %10688 = vdwg.mxu0
          %10689 = vmatpush.bf16.msra.mxu0 %v10617
          %10690 = vmatpush.bf16.msra.mxu0 %v10616
          %10691 = vmatpush.bf16.msra.mxu0 %v10615
          %10692 = vmatpush.bf16.msra.mxu0 %v10614
          %10693 = vmatpush.bf16.msra.mxu0 %v10613
          %10694 = vmatpush.bf16.msra.mxu0 %v10612
          %10695 = vmatpush.bf16.msra.mxu0 %v10611
          %10696 = vmatpush.bf16.msra.mxu0 %v10610
          %10697 = vmatmul.bf16.gmra.mxu0 %v10389
          %v10698 = vpop.f32.mrf.mxu0
          %v10699 = vadd.f32 %v10686, %v10698
          %v10700 = vpop.f32.mrf.mxu0
          %10701 = vdwg.mxu0
          %v10702 = vxor.u32 %v10699, 2147483648
          %v10703 = vmul.f32 %v10702, 1.442695
          %v10704 = vpow.pop %v10703
          %v10705 = vadd.f32 %v10704, 1.0
          %v10706 = vrcp.pop %v10705
          %v10707 = vmul.f32 %v10705, %v10706
          %v10708 = vsub.f32 1.0, %v10707
          %v10709 = vmul.f32 %v10706, %v10708
          %v10710 = vadd.f32 %v10706, %v10709
          %vm10711 = vweird.f32 %v10705
          %vm10712 = vweird.f32 %v10706
          %vm10713 = vmor %vm10711, %vm10712
          %v10714 = vsel %vm10713, %v10706, %v10710
          %v10715 = vand.u32 2147483647, %v10705
          %vm10716 = vcmp.eq.f32.partialorder %v10715, 8.507059e+37
          %v10717 = vand.u32 %v10705, 2147483648
          %v10718 = vor.u32 1.1754944e-38, %v10717
          %v10719 = vsel %vm10716, %v10718, %v10714
          %v10720 = vmul.f32 1.0, %v10719
          %10721 = vst [vmem:[#allocation21] sm:$0xff] %v10720
        $region132: #{tpu_custom_call.1} parent=71 // pred_fallthru
          _
        // Predicated region
        $region133: #{tpu_custom_call.1} parent=71 // pred_check
          %p10722 = pneg %p350
        $region134: #{tpu_custom_call.1} parent=71 // pred_check_branch
          %10724 = sbr.rel (%p10722) target = $region136
        $region135: #{tpu_custom_call.1} parent=71 // pred_region
          %10726 = vsyncadd [#allocation5], 0
          %s10728 = sshll.u32 [#allocation21], 4
          %s10729 = int_to_ptr.vmem [resolvable:$true] %s10728
          %s10730 = sshll.u32 %s13, 4
          %s10731 = int_to_ptr.hbm [resolvable:$true] %s10730
          %10733 = dma.vmem_to_hbm [thread:$0]  %s10729, 128, %s10731, [#allocation5]
        $region136: #{tpu_custom_call.1} parent=71 // pred_fallthru
          _
        // Predicated region
        $region137: #{tpu_custom_call.1} parent=71 // pred_check
          %p10734 = pneg %p350
        $region138: #{tpu_custom_call.1} parent=71 // pred_check_branch
          %10736 = sbr.rel (%p10734) target = $region140
        $region139: #{tpu_custom_call.1} parent=71 // pred_region
          %10738 = dma.done [#allocation5], 128
        $region140: #{tpu_custom_call.1} parent=71 // pred_fallthru
          _
      $region72: #{tpu_custom_call.1} parent=5 // pred_fallthru
        _
      %p10739 = scmp.le.s32.totalorder 2, %s24
      // Predicated region
      $region141: #{tpu_custom_call.1} parent=5 // pred_check
        %p10740 = pneg %p10739
      $region142: #{tpu_custom_call.1} parent=5 // pred_check_branch
        %10742 = sbr.rel (%p10740) target = $region144
      $region143: #{tpu_custom_call.1} parent=5 // pred_region
        %s10743 = ssub.s32 %s24, 2
      $region144: #{tpu_custom_call.1} parent=5 // pred_fallthru
        _
    $region6: #{tpu_custom_call.1} parent=1 // loop_footer
      %s28 = sadd.s32 1, %s24
    $region7: #{tpu_custom_call.1} parent=1 // loop_footer_branch
      %23 = sbr.rel target = $region3
    $region8: #{tpu_custom_call.1} parent=1 // loop_exit
      _
    %10744 = vsyncpa [#allocation4], 1
    %s10745 = scalar_lea.sflag [#allocation4], 1
    %10746 = vsyncpa %s10745, 1
    %10747 = vsyncpa [#allocation7], 1
    %10748 = vsyncpa [#allocation17], 1
    %10749 = vsyncpa [#allocation20], 1
    %10750 = vsyncpa [#allocation5], 1
    %s10751 = scalar_lea.sflag [#allocation5], 1
    %10752 = vsyncpa %s10751, 1

</llo_original>
